<compile_context>
chip_gen: v7x
topology: tpu7x:2x2x1
jax: 0.10.0
libtpu: 0.0.40
codegen_flags: <defaults>
</compile_context>

<pallas_src>
import math
from functools import partial

import jax
import jax.numpy as jnp
from jax.experimental import pallas as pl
from jax.experimental.pallas import tpu as pltpu


DILATIONS = (2, 3, 5)


# ---------------------------------------------------------------------------
# Fused ASPP5d kernel: one grid step per batch sample does all five branches
# and the bottleneck, with GroupNorm(1,C)+ReLU fused as epilogues.
#
# Per-sample layouts inside the kernel:
#   x_ref : (D*H, W*Cin)              un-padded input, (w, ci) merged on lanes
#   a_ref : (Dp, Hp, Wp*Cin)          spatially padded input (pad = max dilation)
#   wd_ref: (ndil*9, Wp*Cin, W*base)  block weights, one per (dilation, kd, kh);
#                                     the 3 W-direction taps folded into K
#   w2_ref: (W*Cin, W*base)           1x1x1 conv2, block-diagonal over w
#   wg_ref: (W*Cin, W*base)           1x1x1 conv of the global-pool branch, W-tiled
#   wb_ref: (5, W*base, W*out)        bottleneck 1x1x1, block-diagonal over w
#   o_ref : (D*H, W*out)
# ---------------------------------------------------------------------------
def _aspp_kernel(x_ref, a_ref, wd_ref, w2_ref, wg_ref, wb_ref, o_ref, *,
                 D, H, W, pad, dils, Cin, base):
    R = D * H
    WCI = (W + 2 * pad) * Cin
    WB = W * base
    inv_vol = 1.0 / (D * H * W)

    def gn_relu(v):
        # GroupNorm(num_groups=1) over the whole per-sample slab (identity affine
        # at init, eps matches torch's 1e-5), followed by ReLU.
        m = jnp.mean(v)
        var = jnp.mean((v - m) * (v - m))
        return jnp.maximum((v - m) * jax.lax.rsqrt(var + 1e-5), 0.0)

    x_int = x_ref[...]                                               # (R, W*Cin)

    # --- branch 1: AdaptiveAvgPool3d(1) -> 1x1x1 conv -> GN -> ReLU ->
    #     trilinear upsample of a (1,1,1) map == per-channel constant broadcast.
    g = jnp.sum(jnp.dot(x_int, wg_ref[...], preferred_element_type=jnp.float32),
                axis=0, keepdims=True) * inv_vol                     # (1, WB), W-tiled
    feat1 = jnp.broadcast_to(gn_relu(g), (R, WB))

    # --- branch 2: 1x1x1 conv -> GN -> ReLU
    feat2 = gn_relu(jnp.dot(x_int, w2_ref[...],
                            preferred_element_type=jnp.float32))     # (R, WB)

    # --- bottleneck accumulated per branch (channel concat never materialized).
    out = jnp.dot(feat1, wb_ref[0], preferred_element_type=jnp.float32)
    out = out + jnp.dot(feat2, wb_ref[1], preferred_element_type=jnp.float32)

    # --- branches 3..5: dilated 3x3x3 convs -> GN -> ReLU.
    # W-taps and channels are folded into K, so each (kd, kh) pair is a single
    # (R, Wp*Cin) @ (Wp*Cin, W*base) MXU matmul on lane-dense operands.
    for di, d in enumerate(dils):
        acc = jnp.zeros((R, WB), jnp.float32)
        for kd in range(3):
            for kh in range(3):
                zs = pad + d * (kd - 1)
                ys = pad + d * (kh - 1)
                patch = a_ref[zs:zs + D, ys:ys + H, :].reshape(R, WCI)
                acc = acc + jnp.dot(patch, wd_ref[(di * 3 + kd) * 3 + kh],
                                    preferred_element_type=jnp.float32)
        fd = gn_relu(acc)
        out = out + jnp.dot(fd, wb_ref[2 + di], preferred_element_type=jnp.float32)

    # --- bottleneck GN + ReLU epilogue; lane-dense (W*out_ch = 256) store.
    o_ref[...] = gn_relu(out)


# ---------------------------------------------------------------------------
# Host-side construction of the small block-structured weight matrices.
# These encode the conv taps so the kernel only does dense matmuls.
# ---------------------------------------------------------------------------
def _build_block_weights(params, W, pad, dilations):
    w2 = params["w_conv2"][:, :, 0, 0, 0]                 # (base, Cin)
    wg = params["w_gap"][:, :, 0, 0, 0]                   # (base, Cin)
    wb = params["w_bottleneck"][:, :, 0, 0, 0]            # (out, (2+ndil)*base)
    base, cin = w2.shape
    Wp = W + 2 * pad
    eye_w = jnp.eye(W, dtype=jnp.float32)

    # conv2 (1x1x1): block-diagonal over the W positions merged into the lane axis.
    w2_blk = jnp.kron(eye_w, w2.T)                        # (W*Cin, W*base)
    # global-pool 1x1x1 conv, tiled over W on both sides (the pooled value is the
    # same for every w, so GN statistics over the tiled slab are exact).
    wg_blk = jnp.tile(wg.T, (W, W))                       # (W*Cin, W*base)

    # dilated 3x3x3 convs: for each (dilation, kd, kh), a (Wp*Cin, W*base) matrix
    # scattering the 3 kw taps to their padded-W source columns.
    pw = jnp.arange(Wp)[:, None]
    xw = jnp.arange(W)[None, :]
    blks = []
    for di, d in enumerate(dilations):
        w = params["w_aspp"][di]                          # (base, Cin, 3, 3, 3)
        for kd in range(3):
            for kh in range(3):
                blk = jnp.zeros((Wp * cin, W * base), jnp.float32)
                for kw in range(3):
                    sel = (pw == (pad + xw + d * (kw - 1))).astype(jnp.float32)
                    blk = blk + jnp.kron(sel, w[:, :, kd, kh, kw].T)
                blks.append(blk)
    wd_blk = jnp.stack(blks)                              # (ndil*9, Wp*Cin, W*base)

    # bottleneck 1x1x1: one block-diagonal matrix per concatenated branch.
    wb_blk = jnp.stack([jnp.kron(eye_w, wb[:, i * base:(i + 1) * base].T)
                        for i in range(wb.shape[1] // base)])   # (5, W*base, W*out)
    return wd_blk, w2_blk, wg_blk, wb_blk


# ---------------------------------------------------------------------------
# ASPP5d forward.  x: (N, in_ch, D, H, W) NCDHW  ->  (N, out_ch, D, H, W)
# ---------------------------------------------------------------------------
def aspp5d_forward(x, params, dilations=DILATIONS):
    N, Cin, D, H, W = x.shape
    base = params["w_conv2"].shape[0]
    out_ch = params["w_bottleneck"].shape[0]
    ndil = len(dilations)
    pad = max(dilations)
    Dp, Hp, Wp = D + 2 * pad, H + 2 * pad, W + 2 * pad
    WCI, WI, WB, WO = Wp * Cin, W * Cin, W * base, W * out_ch
    R = D * H

    # channels-last, then merge (W, Cin) into the lane axis.
    x_cl = jnp.transpose(x, (0, 2, 3, 4, 1))                         # (N, D, H, W, Cin)
    x_im = x_cl.reshape(N, R, WI)
    a_pad = jnp.pad(x_cl, ((0, 0), (pad, pad), (pad, pad), (pad, pad), (0, 0)))
    a_pad = a_pad.reshape(N, Dp, Hp, WCI)

    wd_blk, w2_blk, wg_blk, wb_blk = _build_block_weights(params, W, pad, dilations)

    kernel = partial(_aspp_kernel, D=D, H=H, W=W, pad=pad,
                     dils=tuple(dilations), Cin=Cin, base=base)

    out = pl.pallas_call(
        kernel,
        out_shape=jax.ShapeDtypeStruct((N, R, WO), jnp.float32),
        grid=(N,),
        in_specs=[
            pl.BlockSpec((None, R, WI), lambda n: (n, 0, 0)),
            pl.BlockSpec((None, Dp, Hp, WCI), lambda n: (n, 0, 0, 0)),
            pl.BlockSpec((ndil * 9, WCI, WB), lambda n: (0, 0, 0)),
            pl.BlockSpec((WI, WB), lambda n: (0, 0)),
            pl.BlockSpec((WI, WB), lambda n: (0, 0)),
            pl.BlockSpec((2 + ndil, WB, WO), lambda n: (0, 0, 0)),
        ],
        out_specs=pl.BlockSpec((None, R, WO), lambda n: (n, 0, 0)),
        compiler_params=pltpu.CompilerParams(
            dimension_semantics=("parallel",),      # batch shards over v7x's 2 TCs
            vmem_limit_bytes=32 * 1024 * 1024,      # explicit; ~4 MiB actually used
        ),
    )(x_im, a_pad, wd_blk, w2_blk, wg_blk, wb_blk)

    y = out.reshape(N, D, H, W, out_ch)
    return jnp.transpose(y, (0, 4, 1, 2, 3))                         # NCDHW


def init_params(key, in_ch, base_ch, out_ch, dilations):
    """Conv3d weights via kaiming_normal_ (std = sqrt(2 / fan_in)), no bias.
    GroupNorm affine params stay at init (weight=1, bias=0) => identity affine."""
    n_aspp = len(dilations)
    keys = jax.random.split(key, 3 + n_aspp)

    def kaiming(k, shape):
        fan_in = shape[1] * shape[2] * shape[3] * shape[4]
        std = math.sqrt(2.0 / fan_in)
        return std * jax.random.normal(k, shape, jnp.float32)

    return {
        "w_gap": kaiming(keys[0], (base_ch, in_ch, 1, 1, 1)),
        "w_conv2": kaiming(keys[1], (base_ch, in_ch, 1, 1, 1)),
        "w_aspp": [kaiming(keys[2 + i], (base_ch, in_ch, 3, 3, 3))
                   for i in range(n_aspp)],
        "w_bottleneck": kaiming(keys[2 + n_aspp],
                                (out_ch, (2 + n_aspp) * base_ch, 1, 1, 1)),
    }


if __name__ == "__main__":
    N, IN_CH, D, H, W = 2, 4, 8, 8, 8
    BASE_CH, OUT_CH = 16, 32

    key = jax.random.PRNGKey(0)
    k_params, k_input = jax.random.split(key)
    params = init_params(k_params, IN_CH, BASE_CH, OUT_CH, DILATIONS)
    x = jax.random.normal(k_input, (N, IN_CH, D, H, W), jnp.float32)

    fwd = jax.jit(aspp5d_forward)
    out = jax.block_until_ready(fwd(x, params))

    assert out.shape == (N, OUT_CH, D, H, W), out.shape
    assert out.dtype == jnp.float32
    assert bool(jnp.all(jnp.isfinite(out)))
    print("KERNEL_OK")
</pallas_src>

<mosaic_0001>
module attributes {stable_mosaic.version = 11 : i64} {
  func.func @_aspp_kernel(%arg0: i32, %arg1: memref<1x64x32xf32, #tpu.memory_space<vmem>>, %arg2: memref<1x18x18x72xf32, #tpu.memory_space<vmem>>, %arg3: memref<27x72x128xf32, #tpu.memory_space<vmem>>, %arg4: memref<32x128xf32, #tpu.memory_space<vmem>>, %arg5: memref<32x128xf32, #tpu.memory_space<vmem>>, %arg6: memref<5x128x256xf32, #tpu.memory_space<vmem>>, %arg7: memref<1x64x256xf32, #tpu.memory_space<vmem>>) attributes {dimension_semantics = [#tpu.dimension_semantics<parallel>], iteration_bounds = array<i64: 2>, scalar_prefetch = 0 : i64, scratch_operands = 0 : i64, tpu.core_type = #tpu.core_type<tc>, window_params = [{transform_indices = @transform_0, window_bounds = array<i64: 1, 64, 32>}, {transform_indices = @transform_1, window_bounds = array<i64: 1, 18, 18, 72>}, {pipeline_mode = #tpu.pipeline_mode<synchronous>, transform_indices = @transform_2, window_bounds = array<i64: 27, 72, 128>}, {pipeline_mode = #tpu.pipeline_mode<synchronous>, transform_indices = @transform_3, window_bounds = array<i64: 32, 128>}, {pipeline_mode = #tpu.pipeline_mode<synchronous>, transform_indices = @transform_4, window_bounds = array<i64: 32, 128>}, {pipeline_mode = #tpu.pipeline_mode<synchronous>, transform_indices = @transform_5, window_bounds = array<i64: 5, 128, 256>}, {transform_indices = @transform_6, window_bounds = array<i64: 1, 64, 256>}]} {
    %c0 = arith.constant 0 : index
    %c0_0 = arith.constant 0 : index
    %c0_1 = arith.constant 0 : index
    %0 = vector.load %arg1[%c0, %c0_0, %c0_1] : memref<1x64x32xf32, #tpu.memory_space<vmem>>, vector<1x64x32xf32>
    %1 = vector.shape_cast %0 : vector<1x64x32xf32> to vector<64x32xf32>
    %c0_2 = arith.constant 0 : index
    %c0_3 = arith.constant 0 : index
    %2 = vector.load %arg5[%c0_2, %c0_3] : memref<32x128xf32, #tpu.memory_space<vmem>>, vector<32x128xf32>
    %cst = arith.constant dense<0.000000e+00> : vector<64x128xf32>
    %3 = tpu.matmul %1, %2, %cst {dimension_numbers = #tpu.dot_dimension_numbers<[1], [0], [0], [1], [0, 0, 1, 1], [], []>} : vector<64x32xf32>, vector<32x128xf32>, vector<64x128xf32> -> vector<64x128xf32>
    %cst_4 = arith.constant dense<0.000000e+00> : vector<128xf32>
    %4 = vector.multi_reduction <add>, %3, %cst_4 [0] : vector<64x128xf32> to vector<128xf32>
    %5 = vector.shape_cast %4 : vector<128xf32> to vector<1x128xf32>
    %cst_5 = arith.constant 0.001953125 : f32
    %6 = vector.broadcast %cst_5 : f32 to vector<1x128xf32>
    %7 = arith.mulf %5, %6 : vector<1x128xf32>
    %8 = vector.shape_cast %7 : vector<1x128xf32> to vector<1x1x128xf32>
    %cst_6 = arith.constant dense<0.000000e+00> : vector<1xf32>
    %9 = vector.multi_reduction <add>, %8, %cst_6 [1, 2] : vector<1x1x128xf32> to vector<1xf32>
    %10 = vector.shape_cast %9 : vector<1xf32> to vector<1x1x1xf32>
    %11 = vector.extract %10[0, 0, 0] : f32 from vector<1x1x1xf32>
    %cst_7 = arith.constant 1.280000e+02 : f32
    %12 = arith.divf %11, %cst_7 : f32
    %13 = vector.broadcast %12 : f32 to vector<1x128xf32>
    %14 = arith.subf %7, %13 : vector<1x128xf32>
    %15 = vector.broadcast %12 : f32 to vector<1x128xf32>
    %16 = arith.subf %7, %15 : vector<1x128xf32>
    %17 = arith.mulf %14, %16 : vector<1x128xf32>
    %18 = vector.shape_cast %17 : vector<1x128xf32> to vector<1x1x128xf32>
    %cst_8 = arith.constant dense<0.000000e+00> : vector<1xf32>
    %19 = vector.multi_reduction <add>, %18, %cst_8 [1, 2] : vector<1x1x128xf32> to vector<1xf32>
    %20 = vector.shape_cast %19 : vector<1xf32> to vector<1x1x1xf32>
    %21 = vector.extract %20[0, 0, 0] : f32 from vector<1x1x1xf32>
    %cst_9 = arith.constant 1.280000e+02 : f32
    %22 = arith.divf %21, %cst_9 : f32
    %23 = vector.broadcast %12 : f32 to vector<1x128xf32>
    %24 = arith.subf %7, %23 : vector<1x128xf32>
    %cst_10 = arith.constant 9.99999974E-6 : f32
    %25 = arith.addf %22, %cst_10 : f32
    %26 = math.rsqrt %25 : f32
    %27 = vector.broadcast %26 : f32 to vector<1x128xf32>
    %28 = arith.mulf %24, %27 : vector<1x128xf32>
    %cst_11 = arith.constant 0.000000e+00 : f32
    %29 = vector.broadcast %cst_11 : f32 to vector<1x128xf32>
    %30 = arith.maximumf %28, %29 : vector<1x128xf32>
    %31 = vector.shape_cast %30 : vector<1x128xf32> to vector<1x128xf32>
    %32 = vector.broadcast %31 : vector<1x128xf32> to vector<64x128xf32>
    %c0_12 = arith.constant 0 : index
    %c0_13 = arith.constant 0 : index
    %33 = vector.load %arg4[%c0_12, %c0_13] : memref<32x128xf32, #tpu.memory_space<vmem>>, vector<32x128xf32>
    %cst_14 = arith.constant dense<0.000000e+00> : vector<64x128xf32>
    %34 = tpu.matmul %1, %33, %cst_14 {dimension_numbers = #tpu.dot_dimension_numbers<[1], [0], [0], [1], [0, 0, 1, 1], [], []>} : vector<64x32xf32>, vector<32x128xf32>, vector<64x128xf32> -> vector<64x128xf32>
    %35 = vector.shape_cast %34 : vector<64x128xf32> to vector<1x64x128xf32>
    %cst_15 = arith.constant dense<0.000000e+00> : vector<1xf32>
    %36 = vector.multi_reduction <add>, %35, %cst_15 [1, 2] : vector<1x64x128xf32> to vector<1xf32>
    %37 = vector.shape_cast %36 : vector<1xf32> to vector<1x1x1xf32>
    %38 = vector.extract %37[0, 0, 0] : f32 from vector<1x1x1xf32>
    %cst_16 = arith.constant 8.192000e+03 : f32
    %39 = arith.divf %38, %cst_16 : f32
    %40 = vector.broadcast %39 : f32 to vector<64x128xf32>
    %41 = arith.subf %34, %40 : vector<64x128xf32>
    %42 = vector.broadcast %39 : f32 to vector<64x128xf32>
    %43 = arith.subf %34, %42 : vector<64x128xf32>
    %44 = arith.mulf %41, %43 : vector<64x128xf32>
    %45 = vector.shape_cast %44 : vector<64x128xf32> to vector<1x64x128xf32>
    %cst_17 = arith.constant dense<0.000000e+00> : vector<1xf32>
    %46 = vector.multi_reduction <add>, %45, %cst_17 [1, 2] : vector<1x64x128xf32> to vector<1xf32>
    %47 = vector.shape_cast %46 : vector<1xf32> to vector<1x1x1xf32>
    %48 = vector.extract %47[0, 0, 0] : f32 from vector<1x1x1xf32>
    %cst_18 = arith.constant 8.192000e+03 : f32
    %49 = arith.divf %48, %cst_18 : f32
    %50 = vector.broadcast %39 : f32 to vector<64x128xf32>
    %51 = arith.subf %34, %50 : vector<64x128xf32>
    %cst_19 = arith.constant 9.99999974E-6 : f32
    %52 = arith.addf %49, %cst_19 : f32
    %53 = math.rsqrt %52 : f32
    %54 = vector.broadcast %53 : f32 to vector<64x128xf32>
    %55 = arith.mulf %51, %54 : vector<64x128xf32>
    %cst_20 = arith.constant 0.000000e+00 : f32
    %56 = vector.broadcast %cst_20 : f32 to vector<64x128xf32>
    %57 = arith.maximumf %55, %56 : vector<64x128xf32>
    %c0_21 = arith.constant 0 : index
    %c0_22 = arith.constant 0 : index
    %c0_23 = arith.constant 0 : index
    %58 = vector.load %arg6[%c0_21, %c0_22, %c0_23] : memref<5x128x256xf32, #tpu.memory_space<vmem>>, vector<1x128x256xf32>
    %59 = vector.shape_cast %58 : vector<1x128x256xf32> to vector<128x256xf32>
    %cst_24 = arith.constant dense<0.000000e+00> : vector<64x256xf32>
    %60 = tpu.matmul %32, %59, %cst_24 {dimension_numbers = #tpu.dot_dimension_numbers<[1], [0], [0], [1], [0, 0, 1, 1], [], []>} : vector<64x128xf32>, vector<128x256xf32>, vector<64x256xf32> -> vector<64x256xf32>
    %c1 = arith.constant 1 : index
    %c0_25 = arith.constant 0 : index
    %c0_26 = arith.constant 0 : index
    %61 = vector.load %arg6[%c1, %c0_25, %c0_26] : memref<5x128x256xf32, #tpu.memory_space<vmem>>, vector<1x128x256xf32>
    %62 = vector.shape_cast %61 : vector<1x128x256xf32> to vector<128x256xf32>
    %cst_27 = arith.constant dense<0.000000e+00> : vector<64x256xf32>
    %63 = tpu.matmul %57, %62, %cst_27 {dimension_numbers = #tpu.dot_dimension_numbers<[1], [0], [0], [1], [0, 0, 1, 1], [], []>} : vector<64x128xf32>, vector<128x256xf32>, vector<64x256xf32> -> vector<64x256xf32>
    %64 = arith.addf %60, %63 : vector<64x256xf32>
    %cst_28 = arith.constant 0.000000e+00 : f32
    %65 = vector.broadcast %cst_28 : f32 to vector<64x128xf32>
    %c0_29 = arith.constant 0 : index
    %c3 = arith.constant 3 : index
    %c3_30 = arith.constant 3 : index
    %c0_31 = arith.constant 0 : index
    %66 = vector.load %arg2[%c0_29, %c3, %c3_30, %c0_31] : memref<1x18x18x72xf32, #tpu.memory_space<vmem>>, vector<1x8x8x72xf32>
    %67 = vector.shape_cast %66 : vector<1x8x8x72xf32> to vector<8x8x72xf32>
    %68 = vector.shape_cast %67 : vector<8x8x72xf32> to vector<64x72xf32>
    %c0_32 = arith.constant 0 : index
    %c0_33 = arith.constant 0 : index
    %c0_34 = arith.constant 0 : index
    %69 = vector.load %arg3[%c0_32, %c0_33, %c0_34] : memref<27x72x128xf32, #tpu.memory_space<vmem>>, vector<1x72x128xf32>
    %70 = vector.shape_cast %69 : vector<1x72x128xf32> to vector<72x128xf32>
    %cst_35 = arith.constant dense<0.000000e+00> : vector<64x128xf32>
    %71 = tpu.matmul %68, %70, %cst_35 {dimension_numbers = #tpu.dot_dimension_numbers<[1], [0], [0], [1], [0, 0, 1, 1], [], []>} : vector<64x72xf32>, vector<72x128xf32>, vector<64x128xf32> -> vector<64x128xf32>
    %72 = arith.addf %65, %71 : vector<64x128xf32>
    %c0_36 = arith.constant 0 : index
    %c3_37 = arith.constant 3 : index
    %c5 = arith.constant 5 : index
    %c0_38 = arith.constant 0 : index
    %73 = vector.load %arg2[%c0_36, %c3_37, %c5, %c0_38] : memref<1x18x18x72xf32, #tpu.memory_space<vmem>>, vector<1x8x8x72xf32>
    %74 = vector.shape_cast %73 : vector<1x8x8x72xf32> to vector<8x8x72xf32>
    %75 = vector.shape_cast %74 : vector<8x8x72xf32> to vector<64x72xf32>
    %c1_39 = arith.constant 1 : index
    %c0_40 = arith.constant 0 : index
    %c0_41 = arith.constant 0 : index
    %76 = vector.load %arg3[%c1_39, %c0_40, %c0_41] : memref<27x72x128xf32, #tpu.memory_space<vmem>>, vector<1x72x128xf32>
    %77 = vector.shape_cast %76 : vector<1x72x128xf32> to vector<72x128xf32>
    %cst_42 = arith.constant dense<0.000000e+00> : vector<64x128xf32>
    %78 = tpu.matmul %75, %77, %cst_42 {dimension_numbers = #tpu.dot_dimension_numbers<[1], [0], [0], [1], [0, 0, 1, 1], [], []>} : vector<64x72xf32>, vector<72x128xf32>, vector<64x128xf32> -> vector<64x128xf32>
    %79 = arith.addf %72, %78 : vector<64x128xf32>
    %c0_43 = arith.constant 0 : index
    %c3_44 = arith.constant 3 : index
    %c7 = arith.constant 7 : index
    %c0_45 = arith.constant 0 : index
    %80 = vector.load %arg2[%c0_43, %c3_44, %c7, %c0_45] : memref<1x18x18x72xf32, #tpu.memory_space<vmem>>, vector<1x8x8x72xf32>
    %81 = vector.shape_cast %80 : vector<1x8x8x72xf32> to vector<8x8x72xf32>
    %82 = vector.shape_cast %81 : vector<8x8x72xf32> to vector<64x72xf32>
    %c2 = arith.constant 2 : index
    %c0_46 = arith.constant 0 : index
    %c0_47 = arith.constant 0 : index
    %83 = vector.load %arg3[%c2, %c0_46, %c0_47] : memref<27x72x128xf32, #tpu.memory_space<vmem>>, vector<1x72x128xf32>
    %84 = vector.shape_cast %83 : vector<1x72x128xf32> to vector<72x128xf32>
    %cst_48 = arith.constant dense<0.000000e+00> : vector<64x128xf32>
    %85 = tpu.matmul %82, %84, %cst_48 {dimension_numbers = #tpu.dot_dimension_numbers<[1], [0], [0], [1], [0, 0, 1, 1], [], []>} : vector<64x72xf32>, vector<72x128xf32>, vector<64x128xf32> -> vector<64x128xf32>
    %86 = arith.addf %79, %85 : vector<64x128xf32>
    %c0_49 = arith.constant 0 : index
    %c5_50 = arith.constant 5 : index
    %c3_51 = arith.constant 3 : index
    %c0_52 = arith.constant 0 : index
    %87 = vector.load %arg2[%c0_49, %c5_50, %c3_51, %c0_52] : memref<1x18x18x72xf32, #tpu.memory_space<vmem>>, vector<1x8x8x72xf32>
    %88 = vector.shape_cast %87 : vector<1x8x8x72xf32> to vector<8x8x72xf32>
    %89 = vector.shape_cast %88 : vector<8x8x72xf32> to vector<64x72xf32>
    %c3_53 = arith.constant 3 : index
    %c0_54 = arith.constant 0 : index
    %c0_55 = arith.constant 0 : index
    %90 = vector.load %arg3[%c3_53, %c0_54, %c0_55] : memref<27x72x128xf32, #tpu.memory_space<vmem>>, vector<1x72x128xf32>
    %91 = vector.shape_cast %90 : vector<1x72x128xf32> to vector<72x128xf32>
    %cst_56 = arith.constant dense<0.000000e+00> : vector<64x128xf32>
    %92 = tpu.matmul %89, %91, %cst_56 {dimension_numbers = #tpu.dot_dimension_numbers<[1], [0], [0], [1], [0, 0, 1, 1], [], []>} : vector<64x72xf32>, vector<72x128xf32>, vector<64x128xf32> -> vector<64x128xf32>
    %93 = arith.addf %86, %92 : vector<64x128xf32>
    %c0_57 = arith.constant 0 : index
    %c5_58 = arith.constant 5 : index
    %c5_59 = arith.constant 5 : index
    %c0_60 = arith.constant 0 : index
    %94 = vector.load %arg2[%c0_57, %c5_58, %c5_59, %c0_60] : memref<1x18x18x72xf32, #tpu.memory_space<vmem>>, vector<1x8x8x72xf32>
    %95 = vector.shape_cast %94 : vector<1x8x8x72xf32> to vector<8x8x72xf32>
    %96 = vector.shape_cast %95 : vector<8x8x72xf32> to vector<64x72xf32>
    %c4 = arith.constant 4 : index
    %c0_61 = arith.constant 0 : index
    %c0_62 = arith.constant 0 : index
    %97 = vector.load %arg3[%c4, %c0_61, %c0_62] : memref<27x72x128xf32, #tpu.memory_space<vmem>>, vector<1x72x128xf32>
    %98 = vector.shape_cast %97 : vector<1x72x128xf32> to vector<72x128xf32>
    %cst_63 = arith.constant dense<0.000000e+00> : vector<64x128xf32>
    %99 = tpu.matmul %96, %98, %cst_63 {dimension_numbers = #tpu.dot_dimension_numbers<[1], [0], [0], [1], [0, 0, 1, 1], [], []>} : vector<64x72xf32>, vector<72x128xf32>, vector<64x128xf32> -> vector<64x128xf32>
    %100 = arith.addf %93, %99 : vector<64x128xf32>
    %c0_64 = arith.constant 0 : index
    %c5_65 = arith.constant 5 : index
    %c7_66 = arith.constant 7 : index
    %c0_67 = arith.constant 0 : index
    %101 = vector.load %arg2[%c0_64, %c5_65, %c7_66, %c0_67] : memref<1x18x18x72xf32, #tpu.memory_space<vmem>>, vector<1x8x8x72xf32>
    %102 = vector.shape_cast %101 : vector<1x8x8x72xf32> to vector<8x8x72xf32>
    %103 = vector.shape_cast %102 : vector<8x8x72xf32> to vector<64x72xf32>
    %c5_68 = arith.constant 5 : index
    %c0_69 = arith.constant 0 : index
    %c0_70 = arith.constant 0 : index
    %104 = vector.load %arg3[%c5_68, %c0_69, %c0_70] : memref<27x72x128xf32, #tpu.memory_space<vmem>>, vector<1x72x128xf32>
    %105 = vector.shape_cast %104 : vector<1x72x128xf32> to vector<72x128xf32>
    %cst_71 = arith.constant dense<0.000000e+00> : vector<64x128xf32>
    %106 = tpu.matmul %103, %105, %cst_71 {dimension_numbers = #tpu.dot_dimension_numbers<[1], [0], [0], [1], [0, 0, 1, 1], [], []>} : vector<64x72xf32>, vector<72x128xf32>, vector<64x128xf32> -> vector<64x128xf32>
    %107 = arith.addf %100, %106 : vector<64x128xf32>
    %c0_72 = arith.constant 0 : index
    %c7_73 = arith.constant 7 : index
    %c3_74 = arith.constant 3 : index
    %c0_75 = arith.constant 0 : index
    %108 = vector.load %arg2[%c0_72, %c7_73, %c3_74, %c0_75] : memref<1x18x18x72xf32, #tpu.memory_space<vmem>>, vector<1x8x8x72xf32>
    %109 = vector.shape_cast %108 : vector<1x8x8x72xf32> to vector<8x8x72xf32>
    %110 = vector.shape_cast %109 : vector<8x8x72xf32> to vector<64x72xf32>
    %c6 = arith.constant 6 : index
    %c0_76 = arith.constant 0 : index
    %c0_77 = arith.constant 0 : index
    %111 = vector.load %arg3[%c6, %c0_76, %c0_77] : memref<27x72x128xf32, #tpu.memory_space<vmem>>, vector<1x72x128xf32>
    %112 = vector.shape_cast %111 : vector<1x72x128xf32> to vector<72x128xf32>
    %cst_78 = arith.constant dense<0.000000e+00> : vector<64x128xf32>
    %113 = tpu.matmul %110, %112, %cst_78 {dimension_numbers = #tpu.dot_dimension_numbers<[1], [0], [0], [1], [0, 0, 1, 1], [], []>} : vector<64x72xf32>, vector<72x128xf32>, vector<64x128xf32> -> vector<64x128xf32>
    %114 = arith.addf %107, %113 : vector<64x128xf32>
    %c0_79 = arith.constant 0 : index
    %c7_80 = arith.constant 7 : index
    %c5_81 = arith.constant 5 : index
    %c0_82 = arith.constant 0 : index
    %115 = vector.load %arg2[%c0_79, %c7_80, %c5_81, %c0_82] : memref<1x18x18x72xf32, #tpu.memory_space<vmem>>, vector<1x8x8x72xf32>
    %116 = vector.shape_cast %115 : vector<1x8x8x72xf32> to vector<8x8x72xf32>
    %117 = vector.shape_cast %116 : vector<8x8x72xf32> to vector<64x72xf32>
    %c7_83 = arith.constant 7 : index
    %c0_84 = arith.constant 0 : index
    %c0_85 = arith.constant 0 : index
    %118 = vector.load %arg3[%c7_83, %c0_84, %c0_85] : memref<27x72x128xf32, #tpu.memory_space<vmem>>, vector<1x72x128xf32>
    %119 = vector.shape_cast %118 : vector<1x72x128xf32> to vector<72x128xf32>
    %cst_86 = arith.constant dense<0.000000e+00> : vector<64x128xf32>
    %120 = tpu.matmul %117, %119, %cst_86 {dimension_numbers = #tpu.dot_dimension_numbers<[1], [0], [0], [1], [0, 0, 1, 1], [], []>} : vector<64x72xf32>, vector<72x128xf32>, vector<64x128xf32> -> vector<64x128xf32>
    %121 = arith.addf %114, %120 : vector<64x128xf32>
    %c0_87 = arith.constant 0 : index
    %c7_88 = arith.constant 7 : index
    %c7_89 = arith.constant 7 : index
    %c0_90 = arith.constant 0 : index
    %122 = vector.load %arg2[%c0_87, %c7_88, %c7_89, %c0_90] : memref<1x18x18x72xf32, #tpu.memory_space<vmem>>, vector<1x8x8x72xf32>
    %123 = vector.shape_cast %122 : vector<1x8x8x72xf32> to vector<8x8x72xf32>
    %124 = vector.shape_cast %123 : vector<8x8x72xf32> to vector<64x72xf32>
    %c8 = arith.constant 8 : index
    %c0_91 = arith.constant 0 : index
    %c0_92 = arith.constant 0 : index
    %125 = vector.load %arg3[%c8, %c0_91, %c0_92] : memref<27x72x128xf32, #tpu.memory_space<vmem>>, vector<1x72x128xf32>
    %126 = vector.shape_cast %125 : vector<1x72x128xf32> to vector<72x128xf32>
    %cst_93 = arith.constant dense<0.000000e+00> : vector<64x128xf32>
    %127 = tpu.matmul %124, %126, %cst_93 {dimension_numbers = #tpu.dot_dimension_numbers<[1], [0], [0], [1], [0, 0, 1, 1], [], []>} : vector<64x72xf32>, vector<72x128xf32>, vector<64x128xf32> -> vector<64x128xf32>
    %128 = arith.addf %121, %127 : vector<64x128xf32>
    %129 = vector.shape_cast %128 : vector<64x128xf32> to vector<1x64x128xf32>
    %cst_94 = arith.constant dense<0.000000e+00> : vector<1xf32>
    %130 = vector.multi_reduction <add>, %129, %cst_94 [1, 2] : vector<1x64x128xf32> to vector<1xf32>
    %131 = vector.shape_cast %130 : vector<1xf32> to vector<1x1x1xf32>
    %132 = vector.extract %131[0, 0, 0] : f32 from vector<1x1x1xf32>
    %cst_95 = arith.constant 8.192000e+03 : f32
    %133 = arith.divf %132, %cst_95 : f32
    %134 = vector.broadcast %133 : f32 to vector<64x128xf32>
    %135 = arith.subf %128, %134 : vector<64x128xf32>
    %136 = vector.broadcast %133 : f32 to vector<64x128xf32>
    %137 = arith.subf %128, %136 : vector<64x128xf32>
    %138 = arith.mulf %135, %137 : vector<64x128xf32>
    %139 = vector.shape_cast %138 : vector<64x128xf32> to vector<1x64x128xf32>
    %cst_96 = arith.constant dense<0.000000e+00> : vector<1xf32>
    %140 = vector.multi_reduction <add>, %139, %cst_96 [1, 2] : vector<1x64x128xf32> to vector<1xf32>
    %141 = vector.shape_cast %140 : vector<1xf32> to vector<1x1x1xf32>
    %142 = vector.extract %141[0, 0, 0] : f32 from vector<1x1x1xf32>
    %cst_97 = arith.constant 8.192000e+03 : f32
    %143 = arith.divf %142, %cst_97 : f32
    %144 = vector.broadcast %133 : f32 to vector<64x128xf32>
    %145 = arith.subf %128, %144 : vector<64x128xf32>
    %cst_98 = arith.constant 9.99999974E-6 : f32
    %146 = arith.addf %143, %cst_98 : f32
    %147 = math.rsqrt %146 : f32
    %148 = vector.broadcast %147 : f32 to vector<64x128xf32>
    %149 = arith.mulf %145, %148 : vector<64x128xf32>
    %cst_99 = arith.constant 0.000000e+00 : f32
    %150 = vector.broadcast %cst_99 : f32 to vector<64x128xf32>
    %151 = arith.maximumf %149, %150 : vector<64x128xf32>
    %c2_100 = arith.constant 2 : index
    %c0_101 = arith.constant 0 : index
    %c0_102 = arith.constant 0 : index
    %152 = vector.load %arg6[%c2_100, %c0_101, %c0_102] : memref<5x128x256xf32, #tpu.memory_space<vmem>>, vector<1x128x256xf32>
    %153 = vector.shape_cast %152 : vector<1x128x256xf32> to vector<128x256xf32>
    %cst_103 = arith.constant dense<0.000000e+00> : vector<64x256xf32>
    %154 = tpu.matmul %151, %153, %cst_103 {dimension_numbers = #tpu.dot_dimension_numbers<[1], [0], [0], [1], [0, 0, 1, 1], [], []>} : vector<64x128xf32>, vector<128x256xf32>, vector<64x256xf32> -> vector<64x256xf32>
    %155 = arith.addf %64, %154 : vector<64x256xf32>
    %cst_104 = arith.constant 0.000000e+00 : f32
    %156 = vector.broadcast %cst_104 : f32 to vector<64x128xf32>
    %c0_105 = arith.constant 0 : index
    %c2_106 = arith.constant 2 : index
    %c2_107 = arith.constant 2 : index
    %c0_108 = arith.constant 0 : index
    %157 = vector.load %arg2[%c0_105, %c2_106, %c2_107, %c0_108] : memref<1x18x18x72xf32, #tpu.memory_space<vmem>>, vector<1x8x8x72xf32>
    %158 = vector.shape_cast %157 : vector<1x8x8x72xf32> to vector<8x8x72xf32>
    %159 = vector.shape_cast %158 : vector<8x8x72xf32> to vector<64x72xf32>
    %c9 = arith.constant 9 : index
    %c0_109 = arith.constant 0 : index
    %c0_110 = arith.constant 0 : index
    %160 = vector.load %arg3[%c9, %c0_109, %c0_110] : memref<27x72x128xf32, #tpu.memory_space<vmem>>, vector<1x72x128xf32>
    %161 = vector.shape_cast %160 : vector<1x72x128xf32> to vector<72x128xf32>
    %cst_111 = arith.constant dense<0.000000e+00> : vector<64x128xf32>
    %162 = tpu.matmul %159, %161, %cst_111 {dimension_numbers = #tpu.dot_dimension_numbers<[1], [0], [0], [1], [0, 0, 1, 1], [], []>} : vector<64x72xf32>, vector<72x128xf32>, vector<64x128xf32> -> vector<64x128xf32>
    %163 = arith.addf %156, %162 : vector<64x128xf32>
    %c0_112 = arith.constant 0 : index
    %c2_113 = arith.constant 2 : index
    %c5_114 = arith.constant 5 : index
    %c0_115 = arith.constant 0 : index
    %164 = vector.load %arg2[%c0_112, %c2_113, %c5_114, %c0_115] : memref<1x18x18x72xf32, #tpu.memory_space<vmem>>, vector<1x8x8x72xf32>
    %165 = vector.shape_cast %164 : vector<1x8x8x72xf32> to vector<8x8x72xf32>
    %166 = vector.shape_cast %165 : vector<8x8x72xf32> to vector<64x72xf32>
    %c10 = arith.constant 10 : index
    %c0_116 = arith.constant 0 : index
    %c0_117 = arith.constant 0 : index
    %167 = vector.load %arg3[%c10, %c0_116, %c0_117] : memref<27x72x128xf32, #tpu.memory_space<vmem>>, vector<1x72x128xf32>
    %168 = vector.shape_cast %167 : vector<1x72x128xf32> to vector<72x128xf32>
    %cst_118 = arith.constant dense<0.000000e+00> : vector<64x128xf32>
    %169 = tpu.matmul %166, %168, %cst_118 {dimension_numbers = #tpu.dot_dimension_numbers<[1], [0], [0], [1], [0, 0, 1, 1], [], []>} : vector<64x72xf32>, vector<72x128xf32>, vector<64x128xf32> -> vector<64x128xf32>
    %170 = arith.addf %163, %169 : vector<64x128xf32>
    %c0_119 = arith.constant 0 : index
    %c2_120 = arith.constant 2 : index
    %c8_121 = arith.constant 8 : index
    %c0_122 = arith.constant 0 : index
    %171 = vector.load %arg2[%c0_119, %c2_120, %c8_121, %c0_122] : memref<1x18x18x72xf32, #tpu.memory_space<vmem>>, vector<1x8x8x72xf32>
    %172 = vector.shape_cast %171 : vector<1x8x8x72xf32> to vector<8x8x72xf32>
    %173 = vector.shape_cast %172 : vector<8x8x72xf32> to vector<64x72xf32>
    %c11 = arith.constant 11 : index
    %c0_123 = arith.constant 0 : index
    %c0_124 = arith.constant 0 : index
    %174 = vector.load %arg3[%c11, %c0_123, %c0_124] : memref<27x72x128xf32, #tpu.memory_space<vmem>>, vector<1x72x128xf32>
    %175 = vector.shape_cast %174 : vector<1x72x128xf32> to vector<72x128xf32>
    %cst_125 = arith.constant dense<0.000000e+00> : vector<64x128xf32>
    %176 = tpu.matmul %173, %175, %cst_125 {dimension_numbers = #tpu.dot_dimension_numbers<[1], [0], [0], [1], [0, 0, 1, 1], [], []>} : vector<64x72xf32>, vector<72x128xf32>, vector<64x128xf32> -> vector<64x128xf32>
    %177 = arith.addf %170, %176 : vector<64x128xf32>
    %c0_126 = arith.constant 0 : index
    %c5_127 = arith.constant 5 : index
    %c2_128 = arith.constant 2 : index
    %c0_129 = arith.constant 0 : index
    %178 = vector.load %arg2[%c0_126, %c5_127, %c2_128, %c0_129] : memref<1x18x18x72xf32, #tpu.memory_space<vmem>>, vector<1x8x8x72xf32>
    %179 = vector.shape_cast %178 : vector<1x8x8x72xf32> to vector<8x8x72xf32>
    %180 = vector.shape_cast %179 : vector<8x8x72xf32> to vector<64x72xf32>
    %c12 = arith.constant 12 : index
    %c0_130 = arith.constant 0 : index
    %c0_131 = arith.constant 0 : index
    %181 = vector.load %arg3[%c12, %c0_130, %c0_131] : memref<27x72x128xf32, #tpu.memory_space<vmem>>, vector<1x72x128xf32>
    %182 = vector.shape_cast %181 : vector<1x72x128xf32> to vector<72x128xf32>
    %cst_132 = arith.constant dense<0.000000e+00> : vector<64x128xf32>
    %183 = tpu.matmul %180, %182, %cst_132 {dimension_numbers = #tpu.dot_dimension_numbers<[1], [0], [0], [1], [0, 0, 1, 1], [], []>} : vector<64x72xf32>, vector<72x128xf32>, vector<64x128xf32> -> vector<64x128xf32>
    %184 = arith.addf %177, %183 : vector<64x128xf32>
    %c0_133 = arith.constant 0 : index
    %c5_134 = arith.constant 5 : index
    %c5_135 = arith.constant 5 : index
    %c0_136 = arith.constant 0 : index
    %185 = vector.load %arg2[%c0_133, %c5_134, %c5_135, %c0_136] : memref<1x18x18x72xf32, #tpu.memory_space<vmem>>, vector<1x8x8x72xf32>
    %186 = vector.shape_cast %185 : vector<1x8x8x72xf32> to vector<8x8x72xf32>
    %187 = vector.shape_cast %186 : vector<8x8x72xf32> to vector<64x72xf32>
    %c13 = arith.constant 13 : index
    %c0_137 = arith.constant 0 : index
    %c0_138 = arith.constant 0 : index
    %188 = vector.load %arg3[%c13, %c0_137, %c0_138] : memref<27x72x128xf32, #tpu.memory_space<vmem>>, vector<1x72x128xf32>
    %189 = vector.shape_cast %188 : vector<1x72x128xf32> to vector<72x128xf32>
    %cst_139 = arith.constant dense<0.000000e+00> : vector<64x128xf32>
    %190 = tpu.matmul %187, %189, %cst_139 {dimension_numbers = #tpu.dot_dimension_numbers<[1], [0], [0], [1], [0, 0, 1, 1], [], []>} : vector<64x72xf32>, vector<72x128xf32>, vector<64x128xf32> -> vector<64x128xf32>
    %191 = arith.addf %184, %190 : vector<64x128xf32>
    %c0_140 = arith.constant 0 : index
    %c5_141 = arith.constant 5 : index
    %c8_142 = arith.constant 8 : index
    %c0_143 = arith.constant 0 : index
    %192 = vector.load %arg2[%c0_140, %c5_141, %c8_142, %c0_143] : memref<1x18x18x72xf32, #tpu.memory_space<vmem>>, vector<1x8x8x72xf32>
    %193 = vector.shape_cast %192 : vector<1x8x8x72xf32> to vector<8x8x72xf32>
    %194 = vector.shape_cast %193 : vector<8x8x72xf32> to vector<64x72xf32>
    %c14 = arith.constant 14 : index
    %c0_144 = arith.constant 0 : index
    %c0_145 = arith.constant 0 : index
    %195 = vector.load %arg3[%c14, %c0_144, %c0_145] : memref<27x72x128xf32, #tpu.memory_space<vmem>>, vector<1x72x128xf32>
    %196 = vector.shape_cast %195 : vector<1x72x128xf32> to vector<72x128xf32>
    %cst_146 = arith.constant dense<0.000000e+00> : vector<64x128xf32>
    %197 = tpu.matmul %194, %196, %cst_146 {dimension_numbers = #tpu.dot_dimension_numbers<[1], [0], [0], [1], [0, 0, 1, 1], [], []>} : vector<64x72xf32>, vector<72x128xf32>, vector<64x128xf32> -> vector<64x128xf32>
    %198 = arith.addf %191, %197 : vector<64x128xf32>
    %c0_147 = arith.constant 0 : index
    %c8_148 = arith.constant 8 : index
    %c2_149 = arith.constant 2 : index
    %c0_150 = arith.constant 0 : index
    %199 = vector.load %arg2[%c0_147, %c8_148, %c2_149, %c0_150] : memref<1x18x18x72xf32, #tpu.memory_space<vmem>>, vector<1x8x8x72xf32>
    %200 = vector.shape_cast %199 : vector<1x8x8x72xf32> to vector<8x8x72xf32>
    %201 = vector.shape_cast %200 : vector<8x8x72xf32> to vector<64x72xf32>
    %c15 = arith.constant 15 : index
    %c0_151 = arith.constant 0 : index
    %c0_152 = arith.constant 0 : index
    %202 = vector.load %arg3[%c15, %c0_151, %c0_152] : memref<27x72x128xf32, #tpu.memory_space<vmem>>, vector<1x72x128xf32>
    %203 = vector.shape_cast %202 : vector<1x72x128xf32> to vector<72x128xf32>
    %cst_153 = arith.constant dense<0.000000e+00> : vector<64x128xf32>
    %204 = tpu.matmul %201, %203, %cst_153 {dimension_numbers = #tpu.dot_dimension_numbers<[1], [0], [0], [1], [0, 0, 1, 1], [], []>} : vector<64x72xf32>, vector<72x128xf32>, vector<64x128xf32> -> vector<64x128xf32>
    %205 = arith.addf %198, %204 : vector<64x128xf32>
    %c0_154 = arith.constant 0 : index
    %c8_155 = arith.constant 8 : index
    %c5_156 = arith.constant 5 : index
    %c0_157 = arith.constant 0 : index
    %206 = vector.load %arg2[%c0_154, %c8_155, %c5_156, %c0_157] : memref<1x18x18x72xf32, #tpu.memory_space<vmem>>, vector<1x8x8x72xf32>
    %207 = vector.shape_cast %206 : vector<1x8x8x72xf32> to vector<8x8x72xf32>
    %208 = vector.shape_cast %207 : vector<8x8x72xf32> to vector<64x72xf32>
    %c16 = arith.constant 16 : index
    %c0_158 = arith.constant 0 : index
    %c0_159 = arith.constant 0 : index
    %209 = vector.load %arg3[%c16, %c0_158, %c0_159] : memref<27x72x128xf32, #tpu.memory_space<vmem>>, vector<1x72x128xf32>
    %210 = vector.shape_cast %209 : vector<1x72x128xf32> to vector<72x128xf32>
    %cst_160 = arith.constant dense<0.000000e+00> : vector<64x128xf32>
    %211 = tpu.matmul %208, %210, %cst_160 {dimension_numbers = #tpu.dot_dimension_numbers<[1], [0], [0], [1], [0, 0, 1, 1], [], []>} : vector<64x72xf32>, vector<72x128xf32>, vector<64x128xf32> -> vector<64x128xf32>
    %212 = arith.addf %205, %211 : vector<64x128xf32>
    %c0_161 = arith.constant 0 : index
    %c8_162 = arith.constant 8 : index
    %c8_163 = arith.constant 8 : index
    %c0_164 = arith.constant 0 : index
    %213 = vector.load %arg2[%c0_161, %c8_162, %c8_163, %c0_164] : memref<1x18x18x72xf32, #tpu.memory_space<vmem>>, vector<1x8x8x72xf32>
    %214 = vector.shape_cast %213 : vector<1x8x8x72xf32> to vector<8x8x72xf32>
    %215 = vector.shape_cast %214 : vector<8x8x72xf32> to vector<64x72xf32>
    %c17 = arith.constant 17 : index
    %c0_165 = arith.constant 0 : index
    %c0_166 = arith.constant 0 : index
    %216 = vector.load %arg3[%c17, %c0_165, %c0_166] : memref<27x72x128xf32, #tpu.memory_space<vmem>>, vector<1x72x128xf32>
    %217 = vector.shape_cast %216 : vector<1x72x128xf32> to vector<72x128xf32>
    %cst_167 = arith.constant dense<0.000000e+00> : vector<64x128xf32>
    %218 = tpu.matmul %215, %217, %cst_167 {dimension_numbers = #tpu.dot_dimension_numbers<[1], [0], [0], [1], [0, 0, 1, 1], [], []>} : vector<64x72xf32>, vector<72x128xf32>, vector<64x128xf32> -> vector<64x128xf32>
    %219 = arith.addf %212, %218 : vector<64x128xf32>
    %220 = vector.shape_cast %219 : vector<64x128xf32> to vector<1x64x128xf32>
    %cst_168 = arith.constant dense<0.000000e+00> : vector<1xf32>
    %221 = vector.multi_reduction <add>, %220, %cst_168 [1, 2] : vector<1x64x128xf32> to vector<1xf32>
    %222 = vector.shape_cast %221 : vector<1xf32> to vector<1x1x1xf32>
    %223 = vector.extract %222[0, 0, 0] : f32 from vector<1x1x1xf32>
    %cst_169 = arith.constant 8.192000e+03 : f32
    %224 = arith.divf %223, %cst_169 : f32
    %225 = vector.broadcast %224 : f32 to vector<64x128xf32>
    %226 = arith.subf %219, %225 : vector<64x128xf32>
    %227 = vector.broadcast %224 : f32 to vector<64x128xf32>
    %228 = arith.subf %219, %227 : vector<64x128xf32>
    %229 = arith.mulf %226, %228 : vector<64x128xf32>
    %230 = vector.shape_cast %229 : vector<64x128xf32> to vector<1x64x128xf32>
    %cst_170 = arith.constant dense<0.000000e+00> : vector<1xf32>
    %231 = vector.multi_reduction <add>, %230, %cst_170 [1, 2] : vector<1x64x128xf32> to vector<1xf32>
    %232 = vector.shape_cast %231 : vector<1xf32> to vector<1x1x1xf32>
    %233 = vector.extract %232[0, 0, 0] : f32 from vector<1x1x1xf32>
    %cst_171 = arith.constant 8.192000e+03 : f32
    %234 = arith.divf %233, %cst_171 : f32
    %235 = vector.broadcast %224 : f32 to vector<64x128xf32>
    %236 = arith.subf %219, %235 : vector<64x128xf32>
    %cst_172 = arith.constant 9.99999974E-6 : f32
    %237 = arith.addf %234, %cst_172 : f32
    %238 = math.rsqrt %237 : f32
    %239 = vector.broadcast %238 : f32 to vector<64x128xf32>
    %240 = arith.mulf %236, %239 : vector<64x128xf32>
    %cst_173 = arith.constant 0.000000e+00 : f32
    %241 = vector.broadcast %cst_173 : f32 to vector<64x128xf32>
    %242 = arith.maximumf %240, %241 : vector<64x128xf32>
    %c3_174 = arith.constant 3 : index
    %c0_175 = arith.constant 0 : index
    %c0_176 = arith.constant 0 : index
    %243 = vector.load %arg6[%c3_174, %c0_175, %c0_176] : memref<5x128x256xf32, #tpu.memory_space<vmem>>, vector<1x128x256xf32>
    %244 = vector.shape_cast %243 : vector<1x128x256xf32> to vector<128x256xf32>
    %cst_177 = arith.constant dense<0.000000e+00> : vector<64x256xf32>
    %245 = tpu.matmul %242, %244, %cst_177 {dimension_numbers = #tpu.dot_dimension_numbers<[1], [0], [0], [1], [0, 0, 1, 1], [], []>} : vector<64x128xf32>, vector<128x256xf32>, vector<64x256xf32> -> vector<64x256xf32>
    %246 = arith.addf %155, %245 : vector<64x256xf32>
    %cst_178 = arith.constant 0.000000e+00 : f32
    %247 = vector.broadcast %cst_178 : f32 to vector<64x128xf32>
    %c0_179 = arith.constant 0 : index
    %c0_180 = arith.constant 0 : index
    %c0_181 = arith.constant 0 : index
    %c0_182 = arith.constant 0 : index
    %248 = vector.load %arg2[%c0_179, %c0_180, %c0_181, %c0_182] : memref<1x18x18x72xf32, #tpu.memory_space<vmem>>, vector<1x8x8x72xf32>
    %249 = vector.shape_cast %248 : vector<1x8x8x72xf32> to vector<8x8x72xf32>
    %250 = vector.shape_cast %249 : vector<8x8x72xf32> to vector<64x72xf32>
    %c18 = arith.constant 18 : index
    %c0_183 = arith.constant 0 : index
    %c0_184 = arith.constant 0 : index
    %251 = vector.load %arg3[%c18, %c0_183, %c0_184] : memref<27x72x128xf32, #tpu.memory_space<vmem>>, vector<1x72x128xf32>
    %252 = vector.shape_cast %251 : vector<1x72x128xf32> to vector<72x128xf32>
    %cst_185 = arith.constant dense<0.000000e+00> : vector<64x128xf32>
    %253 = tpu.matmul %250, %252, %cst_185 {dimension_numbers = #tpu.dot_dimension_numbers<[1], [0], [0], [1], [0, 0, 1, 1], [], []>} : vector<64x72xf32>, vector<72x128xf32>, vector<64x128xf32> -> vector<64x128xf32>
    %254 = arith.addf %247, %253 : vector<64x128xf32>
    %c0_186 = arith.constant 0 : index
    %c0_187 = arith.constant 0 : index
    %c5_188 = arith.constant 5 : index
    %c0_189 = arith.constant 0 : index
    %255 = vector.load %arg2[%c0_186, %c0_187, %c5_188, %c0_189] : memref<1x18x18x72xf32, #tpu.memory_space<vmem>>, vector<1x8x8x72xf32>
    %256 = vector.shape_cast %255 : vector<1x8x8x72xf32> to vector<8x8x72xf32>
    %257 = vector.shape_cast %256 : vector<8x8x72xf32> to vector<64x72xf32>
    %c19 = arith.constant 19 : index
    %c0_190 = arith.constant 0 : index
    %c0_191 = arith.constant 0 : index
    %258 = vector.load %arg3[%c19, %c0_190, %c0_191] : memref<27x72x128xf32, #tpu.memory_space<vmem>>, vector<1x72x128xf32>
    %259 = vector.shape_cast %258 : vector<1x72x128xf32> to vector<72x128xf32>
    %cst_192 = arith.constant dense<0.000000e+00> : vector<64x128xf32>
    %260 = tpu.matmul %257, %259, %cst_192 {dimension_numbers = #tpu.dot_dimension_numbers<[1], [0], [0], [1], [0, 0, 1, 1], [], []>} : vector<64x72xf32>, vector<72x128xf32>, vector<64x128xf32> -> vector<64x128xf32>
    %261 = arith.addf %254, %260 : vector<64x128xf32>
    %c0_193 = arith.constant 0 : index
    %c0_194 = arith.constant 0 : index
    %c10_195 = arith.constant 10 : index
    %c0_196 = arith.constant 0 : index
    %262 = vector.load %arg2[%c0_193, %c0_194, %c10_195, %c0_196] : memref<1x18x18x72xf32, #tpu.memory_space<vmem>>, vector<1x8x8x72xf32>
    %263 = vector.shape_cast %262 : vector<1x8x8x72xf32> to vector<8x8x72xf32>
    %264 = vector.shape_cast %263 : vector<8x8x72xf32> to vector<64x72xf32>
    %c20 = arith.constant 20 : index
    %c0_197 = arith.constant 0 : index
    %c0_198 = arith.constant 0 : index
    %265 = vector.load %arg3[%c20, %c0_197, %c0_198] : memref<27x72x128xf32, #tpu.memory_space<vmem>>, vector<1x72x128xf32>
    %266 = vector.shape_cast %265 : vector<1x72x128xf32> to vector<72x128xf32>
    %cst_199 = arith.constant dense<0.000000e+00> : vector<64x128xf32>
    %267 = tpu.matmul %264, %266, %cst_199 {dimension_numbers = #tpu.dot_dimension_numbers<[1], [0], [0], [1], [0, 0, 1, 1], [], []>} : vector<64x72xf32>, vector<72x128xf32>, vector<64x128xf32> -> vector<64x128xf32>
    %268 = arith.addf %261, %267 : vector<64x128xf32>
    %c0_200 = arith.constant 0 : index
    %c5_201 = arith.constant 5 : index
    %c0_202 = arith.constant 0 : index
    %c0_203 = arith.constant 0 : index
    %269 = vector.load %arg2[%c0_200, %c5_201, %c0_202, %c0_203] : memref<1x18x18x72xf32, #tpu.memory_space<vmem>>, vector<1x8x8x72xf32>
    %270 = vector.shape_cast %269 : vector<1x8x8x72xf32> to vector<8x8x72xf32>
    %271 = vector.shape_cast %270 : vector<8x8x72xf32> to vector<64x72xf32>
    %c21 = arith.constant 21 : index
    %c0_204 = arith.constant 0 : index
    %c0_205 = arith.constant 0 : index
    %272 = vector.load %arg3[%c21, %c0_204, %c0_205] : memref<27x72x128xf32, #tpu.memory_space<vmem>>, vector<1x72x128xf32>
    %273 = vector.shape_cast %272 : vector<1x72x128xf32> to vector<72x128xf32>
    %cst_206 = arith.constant dense<0.000000e+00> : vector<64x128xf32>
    %274 = tpu.matmul %271, %273, %cst_206 {dimension_numbers = #tpu.dot_dimension_numbers<[1], [0], [0], [1], [0, 0, 1, 1], [], []>} : vector<64x72xf32>, vector<72x128xf32>, vector<64x128xf32> -> vector<64x128xf32>
    %275 = arith.addf %268, %274 : vector<64x128xf32>
    %c0_207 = arith.constant 0 : index
    %c5_208 = arith.constant 5 : index
    %c5_209 = arith.constant 5 : index
    %c0_210 = arith.constant 0 : index
    %276 = vector.load %arg2[%c0_207, %c5_208, %c5_209, %c0_210] : memref<1x18x18x72xf32, #tpu.memory_space<vmem>>, vector<1x8x8x72xf32>
    %277 = vector.shape_cast %276 : vector<1x8x8x72xf32> to vector<8x8x72xf32>
    %278 = vector.shape_cast %277 : vector<8x8x72xf32> to vector<64x72xf32>
    %c22 = arith.constant 22 : index
    %c0_211 = arith.constant 0 : index
    %c0_212 = arith.constant 0 : index
    %279 = vector.load %arg3[%c22, %c0_211, %c0_212] : memref<27x72x128xf32, #tpu.memory_space<vmem>>, vector<1x72x128xf32>
    %280 = vector.shape_cast %279 : vector<1x72x128xf32> to vector<72x128xf32>
    %cst_213 = arith.constant dense<0.000000e+00> : vector<64x128xf32>
    %281 = tpu.matmul %278, %280, %cst_213 {dimension_numbers = #tpu.dot_dimension_numbers<[1], [0], [0], [1], [0, 0, 1, 1], [], []>} : vector<64x72xf32>, vector<72x128xf32>, vector<64x128xf32> -> vector<64x128xf32>
    %282 = arith.addf %275, %281 : vector<64x128xf32>
    %c0_214 = arith.constant 0 : index
    %c5_215 = arith.constant 5 : index
    %c10_216 = arith.constant 10 : index
    %c0_217 = arith.constant 0 : index
    %283 = vector.load %arg2[%c0_214, %c5_215, %c10_216, %c0_217] : memref<1x18x18x72xf32, #tpu.memory_space<vmem>>, vector<1x8x8x72xf32>
    %284 = vector.shape_cast %283 : vector<1x8x8x72xf32> to vector<8x8x72xf32>
    %285 = vector.shape_cast %284 : vector<8x8x72xf32> to vector<64x72xf32>
    %c23 = arith.constant 23 : index
    %c0_218 = arith.constant 0 : index
    %c0_219 = arith.constant 0 : index
    %286 = vector.load %arg3[%c23, %c0_218, %c0_219] : memref<27x72x128xf32, #tpu.memory_space<vmem>>, vector<1x72x128xf32>
    %287 = vector.shape_cast %286 : vector<1x72x128xf32> to vector<72x128xf32>
    %cst_220 = arith.constant dense<0.000000e+00> : vector<64x128xf32>
    %288 = tpu.matmul %285, %287, %cst_220 {dimension_numbers = #tpu.dot_dimension_numbers<[1], [0], [0], [1], [0, 0, 1, 1], [], []>} : vector<64x72xf32>, vector<72x128xf32>, vector<64x128xf32> -> vector<64x128xf32>
    %289 = arith.addf %282, %288 : vector<64x128xf32>
    %c0_221 = arith.constant 0 : index
    %c10_222 = arith.constant 10 : index
    %c0_223 = arith.constant 0 : index
    %c0_224 = arith.constant 0 : index
    %290 = vector.load %arg2[%c0_221, %c10_222, %c0_223, %c0_224] : memref<1x18x18x72xf32, #tpu.memory_space<vmem>>, vector<1x8x8x72xf32>
    %291 = vector.shape_cast %290 : vector<1x8x8x72xf32> to vector<8x8x72xf32>
    %292 = vector.shape_cast %291 : vector<8x8x72xf32> to vector<64x72xf32>
    %c24 = arith.constant 24 : index
    %c0_225 = arith.constant 0 : index
    %c0_226 = arith.constant 0 : index
    %293 = vector.load %arg3[%c24, %c0_225, %c0_226] : memref<27x72x128xf32, #tpu.memory_space<vmem>>, vector<1x72x128xf32>
    %294 = vector.shape_cast %293 : vector<1x72x128xf32> to vector<72x128xf32>
    %cst_227 = arith.constant dense<0.000000e+00> : vector<64x128xf32>
    %295 = tpu.matmul %292, %294, %cst_227 {dimension_numbers = #tpu.dot_dimension_numbers<[1], [0], [0], [1], [0, 0, 1, 1], [], []>} : vector<64x72xf32>, vector<72x128xf32>, vector<64x128xf32> -> vector<64x128xf32>
    %296 = arith.addf %289, %295 : vector<64x128xf32>
    %c0_228 = arith.constant 0 : index
    %c10_229 = arith.constant 10 : index
    %c5_230 = arith.constant 5 : index
    %c0_231 = arith.constant 0 : index
    %297 = vector.load %arg2[%c0_228, %c10_229, %c5_230, %c0_231] : memref<1x18x18x72xf32, #tpu.memory_space<vmem>>, vector<1x8x8x72xf32>
    %298 = vector.shape_cast %297 : vector<1x8x8x72xf32> to vector<8x8x72xf32>
    %299 = vector.shape_cast %298 : vector<8x8x72xf32> to vector<64x72xf32>
    %c25 = arith.constant 25 : index
    %c0_232 = arith.constant 0 : index
    %c0_233 = arith.constant 0 : index
    %300 = vector.load %arg3[%c25, %c0_232, %c0_233] : memref<27x72x128xf32, #tpu.memory_space<vmem>>, vector<1x72x128xf32>
    %301 = vector.shape_cast %300 : vector<1x72x128xf32> to vector<72x128xf32>
    %cst_234 = arith.constant dense<0.000000e+00> : vector<64x128xf32>
    %302 = tpu.matmul %299, %301, %cst_234 {dimension_numbers = #tpu.dot_dimension_numbers<[1], [0], [0], [1], [0, 0, 1, 1], [], []>} : vector<64x72xf32>, vector<72x128xf32>, vector<64x128xf32> -> vector<64x128xf32>
    %303 = arith.addf %296, %302 : vector<64x128xf32>
    %c0_235 = arith.constant 0 : index
    %c10_236 = arith.constant 10 : index
    %c10_237 = arith.constant 10 : index
    %c0_238 = arith.constant 0 : index
    %304 = vector.load %arg2[%c0_235, %c10_236, %c10_237, %c0_238] : memref<1x18x18x72xf32, #tpu.memory_space<vmem>>, vector<1x8x8x72xf32>
    %305 = vector.shape_cast %304 : vector<1x8x8x72xf32> to vector<8x8x72xf32>
    %306 = vector.shape_cast %305 : vector<8x8x72xf32> to vector<64x72xf32>
    %c26 = arith.constant 26 : index
    %c0_239 = arith.constant 0 : index
    %c0_240 = arith.constant 0 : index
    %307 = vector.load %arg3[%c26, %c0_239, %c0_240] : memref<27x72x128xf32, #tpu.memory_space<vmem>>, vector<1x72x128xf32>
    %308 = vector.shape_cast %307 : vector<1x72x128xf32> to vector<72x128xf32>
    %cst_241 = arith.constant dense<0.000000e+00> : vector<64x128xf32>
    %309 = tpu.matmul %306, %308, %cst_241 {dimension_numbers = #tpu.dot_dimension_numbers<[1], [0], [0], [1], [0, 0, 1, 1], [], []>} : vector<64x72xf32>, vector<72x128xf32>, vector<64x128xf32> -> vector<64x128xf32>
    %310 = arith.addf %303, %309 : vector<64x128xf32>
    %311 = vector.shape_cast %310 : vector<64x128xf32> to vector<1x64x128xf32>
    %cst_242 = arith.constant dense<0.000000e+00> : vector<1xf32>
    %312 = vector.multi_reduction <add>, %311, %cst_242 [1, 2] : vector<1x64x128xf32> to vector<1xf32>
    %313 = vector.shape_cast %312 : vector<1xf32> to vector<1x1x1xf32>
    %314 = vector.extract %313[0, 0, 0] : f32 from vector<1x1x1xf32>
    %cst_243 = arith.constant 8.192000e+03 : f32
    %315 = arith.divf %314, %cst_243 : f32
    %316 = vector.broadcast %315 : f32 to vector<64x128xf32>
    %317 = arith.subf %310, %316 : vector<64x128xf32>
    %318 = vector.broadcast %315 : f32 to vector<64x128xf32>
    %319 = arith.subf %310, %318 : vector<64x128xf32>
    %320 = arith.mulf %317, %319 : vector<64x128xf32>
    %321 = vector.shape_cast %320 : vector<64x128xf32> to vector<1x64x128xf32>
    %cst_244 = arith.constant dense<0.000000e+00> : vector<1xf32>
    %322 = vector.multi_reduction <add>, %321, %cst_244 [1, 2] : vector<1x64x128xf32> to vector<1xf32>
    %323 = vector.shape_cast %322 : vector<1xf32> to vector<1x1x1xf32>
    %324 = vector.extract %323[0, 0, 0] : f32 from vector<1x1x1xf32>
    %cst_245 = arith.constant 8.192000e+03 : f32
    %325 = arith.divf %324, %cst_245 : f32
    %326 = vector.broadcast %315 : f32 to vector<64x128xf32>
    %327 = arith.subf %310, %326 : vector<64x128xf32>
    %cst_246 = arith.constant 9.99999974E-6 : f32
    %328 = arith.addf %325, %cst_246 : f32
    %329 = math.rsqrt %328 : f32
    %330 = vector.broadcast %329 : f32 to vector<64x128xf32>
    %331 = arith.mulf %327, %330 : vector<64x128xf32>
    %cst_247 = arith.constant 0.000000e+00 : f32
    %332 = vector.broadcast %cst_247 : f32 to vector<64x128xf32>
    %333 = arith.maximumf %331, %332 : vector<64x128xf32>
    %c4_248 = arith.constant 4 : index
    %c0_249 = arith.constant 0 : index
    %c0_250 = arith.constant 0 : index
    %334 = vector.load %arg6[%c4_248, %c0_249, %c0_250] : memref<5x128x256xf32, #tpu.memory_space<vmem>>, vector<1x128x256xf32>
    %335 = vector.shape_cast %334 : vector<1x128x256xf32> to vector<128x256xf32>
    %cst_251 = arith.constant dense<0.000000e+00> : vector<64x256xf32>
    %336 = tpu.matmul %333, %335, %cst_251 {dimension_numbers = #tpu.dot_dimension_numbers<[1], [0], [0], [1], [0, 0, 1, 1], [], []>} : vector<64x128xf32>, vector<128x256xf32>, vector<64x256xf32> -> vector<64x256xf32>
    %337 = arith.addf %246, %336 : vector<64x256xf32>
    %338 = vector.shape_cast %337 : vector<64x256xf32> to vector<1x64x256xf32>
    %cst_252 = arith.constant dense<0.000000e+00> : vector<1xf32>
    %339 = vector.multi_reduction <add>, %338, %cst_252 [1, 2] : vector<1x64x256xf32> to vector<1xf32>
    %340 = vector.shape_cast %339 : vector<1xf32> to vector<1x1x1xf32>
    %341 = vector.extract %340[0, 0, 0] : f32 from vector<1x1x1xf32>
    %cst_253 = arith.constant 1.638400e+04 : f32
    %342 = arith.divf %341, %cst_253 : f32
    %343 = vector.broadcast %342 : f32 to vector<64x256xf32>
    %344 = arith.subf %337, %343 : vector<64x256xf32>
    %345 = vector.broadcast %342 : f32 to vector<64x256xf32>
    %346 = arith.subf %337, %345 : vector<64x256xf32>
    %347 = arith.mulf %344, %346 : vector<64x256xf32>
    %348 = vector.shape_cast %347 : vector<64x256xf32> to vector<1x64x256xf32>
    %cst_254 = arith.constant dense<0.000000e+00> : vector<1xf32>
    %349 = vector.multi_reduction <add>, %348, %cst_254 [1, 2] : vector<1x64x256xf32> to vector<1xf32>
    %350 = vector.shape_cast %349 : vector<1xf32> to vector<1x1x1xf32>
    %351 = vector.extract %350[0, 0, 0] : f32 from vector<1x1x1xf32>
    %cst_255 = arith.constant 1.638400e+04 : f32
    %352 = arith.divf %351, %cst_255 : f32
    %353 = vector.broadcast %342 : f32 to vector<64x256xf32>
    %354 = arith.subf %337, %353 : vector<64x256xf32>
    %cst_256 = arith.constant 9.99999974E-6 : f32
    %355 = arith.addf %352, %cst_256 : f32
    %356 = math.rsqrt %355 : f32
    %357 = vector.broadcast %356 : f32 to vector<64x256xf32>
    %358 = arith.mulf %354, %357 : vector<64x256xf32>
    %cst_257 = arith.constant 0.000000e+00 : f32
    %359 = vector.broadcast %cst_257 : f32 to vector<64x256xf32>
    %360 = arith.maximumf %358, %359 : vector<64x256xf32>
    %c0_258 = arith.constant 0 : index
    %c0_259 = arith.constant 0 : index
    %c0_260 = arith.constant 0 : index
    %361 = vector.load %arg7[%c0_258, %c0_259, %c0_260] : memref<1x64x256xf32, #tpu.memory_space<vmem>>, vector<1x64x256xf32>
    %362 = vector.shape_cast %361 : vector<1x64x256xf32> to vector<64x256xf32>
    %363 = vector.shape_cast %360 : vector<64x256xf32> to vector<1x64x256xf32>
    tpu.vector_store %arg7[%c0_258, %c0_259, %c0_260], %363 {strides = array<i32>} : memref<1x64x256xf32, #tpu.memory_space<vmem>>, vector<1x64x256xf32>,
    return
  }
  func.func @transform_0(%arg0: i32) -> (i32, i32, i32) {
    %c0_i32 = arith.constant 0 : i32
    %c0_i32_0 = arith.constant 0 : i32
    %c0_i32_1 = arith.constant 0 : i32
    return %arg0, %c0_i32, %c0_i32_0 : i32, i32, i32
  }
  func.func @transform_1(%arg0: i32) -> (i32, i32, i32, i32) {
    %c0_i32 = arith.constant 0 : i32
    %c0_i32_0 = arith.constant 0 : i32
    %c0_i32_1 = arith.constant 0 : i32
    %c0_i32_2 = arith.constant 0 : i32
    return %arg0, %c0_i32, %c0_i32_0, %c0_i32_1 : i32, i32, i32, i32
  }
  func.func @transform_2(%arg0: i32) -> (i32, i32, i32) {
    %c0_i32 = arith.constant 0 : i32
    %c0_i32_0 = arith.constant 0 : i32
    %c0_i32_1 = arith.constant 0 : i32
    %c0_i32_2 = arith.constant 0 : i32
    return %c0_i32, %c0_i32_0, %c0_i32_1 : i32, i32, i32
  }
  func.func @transform_3(%arg0: i32) -> (i32, i32) {
    %c0_i32 = arith.constant 0 : i32
    %c0_i32_0 = arith.constant 0 : i32
    %c0_i32_1 = arith.constant 0 : i32
    return %c0_i32, %c0_i32_0 : i32, i32
  }
  func.func @transform_4(%arg0: i32) -> (i32, i32) {
    %c0_i32 = arith.constant 0 : i32
    %c0_i32_0 = arith.constant 0 : i32
    %c0_i32_1 = arith.constant 0 : i32
    return %c0_i32, %c0_i32_0 : i32, i32
  }
  func.func @transform_5(%arg0: i32) -> (i32, i32, i32) {
    %c0_i32 = arith.constant 0 : i32
    %c0_i32_0 = arith.constant 0 : i32
    %c0_i32_1 = arith.constant 0 : i32
    %c0_i32_2 = arith.constant 0 : i32
    return %c0_i32, %c0_i32_0, %c0_i32_1 : i32, i32, i32
  }
  func.func @transform_6(%arg0: i32) -> (i32, i32, i32) {
    %c0_i32 = arith.constant 0 : i32
    %c0_i32_0 = arith.constant 0 : i32
    %c0_i32_1 = arith.constant 0 : i32
    return %arg0, %c0_i32, %c0_i32_0 : i32, i32, i32
  }
}

</mosaic_0001>

<llo_original>
// kernel: tile.8
$region0: #{tile.8}
  #allocation0 [shape = 's32[1]{0}', space=sflag, size = 0x4, scoped, tag = 'scoped memory for tile.8']
  %s0 = inlined_call_operand.vmem [shape: f32[4,16], index: 0, kind: input, shape index: {}]
  %s1 = inlined_call_operand.vmem [shape: f32[8,4,8,16], index: 1, kind: output, shape index: {}]
  // Predicated region
  $region2: #{tile.8} parent=0 // pred_check
    _
  $region3: #{tile.8} parent=0 // pred_check_branch
    %3 = sbr.rel (0) target = $region5
  $region4: #{tile.8} parent=0 // pred_region
    _
  $region5: #{tile.8} parent=0 // pred_fallthru
    _
  %v4 = vld [vmem:[%s0] ss:$0 sm:$0xff]
  %5 = vst [vmem:[%s1] sm:$0xff] %v4
  %s6 = scalar_lea.vmem %s1, 32
  %7 = vst [vmem:[%s6] sm:$0xff] %v4
  %s8 = scalar_lea.vmem %s1, 64
  %9 = vst [vmem:[%s8] sm:$0xff] %v4
  %s10 = scalar_lea.vmem %s1, 96
  %11 = vst [vmem:[%s10] sm:$0xff] %v4
  %s12 = scalar_lea.vmem %s1, 128
  %13 = vst [vmem:[%s12] sm:$0xff] %v4
  %s14 = scalar_lea.vmem %s1, 160
  %15 = vst [vmem:[%s14] sm:$0xff] %v4
  %s16 = scalar_lea.vmem %s1, 192
  %17 = vst [vmem:[%s16] sm:$0xff] %v4
  %s18 = scalar_lea.vmem %s1, 224
  %19 = vst [vmem:[%s18] sm:$0xff] %v4
  %s20 = scalar_lea.vmem %s0, 1
  %v21 = vld [vmem:[%s20] ss:$0 sm:$0xff]
  %s22 = scalar_lea.vmem %s1, 8
  %23 = vst [vmem:[%s22] sm:$0xff] %v21
  %s24 = scalar_lea.vmem %s1, 40
  %25 = vst [vmem:[%s24] sm:$0xff] %v21
  %s26 = scalar_lea.vmem %s1, 72
  %27 = vst [vmem:[%s26] sm:$0xff] %v21
  %s28 = scalar_lea.vmem %s1, 104
  %29 = vst [vmem:[%s28] sm:$0xff] %v21
  %s30 = scalar_lea.vmem %s1, 136
  %31 = vst [vmem:[%s30] sm:$0xff] %v21
  %s32 = scalar_lea.vmem %s1, 168
  %33 = vst [vmem:[%s32] sm:$0xff] %v21
  %s34 = scalar_lea.vmem %s1, 200
  %35 = vst [vmem:[%s34] sm:$0xff] %v21
  %s36 = scalar_lea.vmem %s1, 232
  %37 = vst [vmem:[%s36] sm:$0xff] %v21
  %s38 = scalar_lea.vmem %s0, 2
  %v39 = vld [vmem:[%s38] ss:$0 sm:$0xff]
  %s40 = scalar_lea.vmem %s1, 16
  %41 = vst [vmem:[%s40] sm:$0xff] %v39
  %s42 = scalar_lea.vmem %s1, 48
  %43 = vst [vmem:[%s42] sm:$0xff] %v39
  %s44 = scalar_lea.vmem %s1, 80
  %45 = vst [vmem:[%s44] sm:$0xff] %v39
  %s46 = scalar_lea.vmem %s1, 112
  %47 = vst [vmem:[%s46] sm:$0xff] %v39
  %s48 = scalar_lea.vmem %s1, 144
  %49 = vst [vmem:[%s48] sm:$0xff] %v39
  %s50 = scalar_lea.vmem %s1, 176
  %51 = vst [vmem:[%s50] sm:$0xff] %v39
  %s52 = scalar_lea.vmem %s1, 208
  %53 = vst [vmem:[%s52] sm:$0xff] %v39
  %s54 = scalar_lea.vmem %s1, 240
  %55 = vst [vmem:[%s54] sm:$0xff] %v39
  %s56 = scalar_lea.vmem %s0, 3
  %v57 = vld [vmem:[%s56] ss:$0 sm:$0xff]
  %s58 = scalar_lea.vmem %s1, 24
  %59 = vst [vmem:[%s58] sm:$0xff] %v57
  %s60 = scalar_lea.vmem %s1, 56
  %61 = vst [vmem:[%s60] sm:$0xff] %v57
  %s62 = scalar_lea.vmem %s1, 88
  %63 = vst [vmem:[%s62] sm:$0xff] %v57
  %s64 = scalar_lea.vmem %s1, 120
  %65 = vst [vmem:[%s64] sm:$0xff] %v57
  %s66 = scalar_lea.vmem %s1, 152
  %67 = vst [vmem:[%s66] sm:$0xff] %v57
  %s68 = scalar_lea.vmem %s1, 184
  %69 = vst [vmem:[%s68] sm:$0xff] %v57
  %s70 = scalar_lea.vmem %s1, 216
  %71 = vst [vmem:[%s70] sm:$0xff] %v57
  %s72 = scalar_lea.vmem %s1, 248
  %73 = vst [vmem:[%s72] sm:$0xff] %v57

// kernel: aspp5d_forward.1
$region0: #{aspp5d_forward.1}
  #allocation0 [shape = 'u32[]', space=smem, size = 0x4, offset = 0x4, fixed_abs, tag = 'smem constant byte address 0x4 - core index']
  #allocation1 [shape = 'u32[144,128]{1,0:T(1,128)}', space=vmem, size = 0x12000, scoped, tag = 'internal scratch']
  %s0 = inlined_call_operand.vmem [shape: f32[2,64,32], index: 0, kind: input, shape index: {}]
  %s1 = inlined_call_operand.vmem [shape: f32[2,18,18,72], index: 1, kind: input, shape index: {}]
  %s2 = inlined_call_operand.vmem [shape: f32[27,72,128], index: 2, kind: input, shape index: {}]
  %s3 = inlined_call_operand.vmem [shape: f32[32,128], index: 3, kind: input, shape index: {}]
  %s4 = inlined_call_operand.vmem [shape: f32[32,128], index: 4, kind: input, shape index: {}]
  %s5 = inlined_call_operand.vmem [shape: f32[5,128,256], index: 5, kind: input, shape index: {}]
  %s6 = inlined_call_operand.vmem [shape: f32[2,64,256], index: 6, kind: output, shape index: {}]
  %s7 = sld [smem:[#allocation0]]
  $region57: #{aspp5d_forward.1} parent=0
    _
  %s9 = ssub.s32 1, %s7
  %s10 = scalar_select 0, %s9, %s7
  loop: start=0, step=1, limit=4
  $region2: #{aspp5d_forward.1} parent=0 // loop_pre_header
    _
  $region3: #{aspp5d_forward.1} parent=0 // loop_header
    %s12 = sphi 0, %s16
    %p13 = scmp.ge.s32.totalorder %s12, 4
    %s22 = sphi 0, %s24
    %s25 = sphi 0, %s22
    %s26 = sphi 0, %s25
    %s42 = sphi 0, %s26
    %s48 = sphi 0, %s50
    %s51 = sphi 0, %s48
    %s52 = sphi 0, %s51
    %s68 = sphi 0, %s52
    %s72 = sphi 0, %s72
    %s74 = sphi 0, %s72
    %s75 = sphi 0, %s74
    %s89 = sphi 0, %s75
    %s93 = sphi 0, %s93
    %s95 = sphi 0, %s93
    %s96 = sphi 0, %s95
    %s110 = sphi 0, %s96
    %s114 = sphi 0, %s114
    %s116 = sphi 0, %s114
    %s117 = sphi 0, %s116
    %s131 = sphi 0, %s117
    %s135 = sphi 0, %s135
    %s137 = sphi 0, %s135
    %s138 = sphi 0, %s137
    %s152 = sphi 0, %s138
    %s158 = sphi 0, %s160
    %s161 = sphi 0, %s158
    %s162 = sphi 0, %s161
    %s178 = sphi 0, %s162
  $region4: #{aspp5d_forward.1} parent=0 // loop_header_branch
    %15 = sbr.rel (%p13) target = $region8
  $region5: #{aspp5d_forward.1} parent=0 // loop_body
    %s17 = ssub.s32 %s12, 1
    %s18 = ssub.s32 %s12, 2
    %s19 = sadd.s32 %s12, 1
    %s20 = ssub.s32 %s12, %s19
    %p21 = scmp.eq.s32.totalorder %s20, 0
    %s23 = sadd.s32 %s22, 1
    %s24 = scalar_select %p21, %s22, %s23
    %p27 = pneg %p21
    %p28 = scmp.eq.s32.totalorder %s12, 1
    %p29 = por %p27, %p28
    %p30 = scmp.ne.s32.totalorder %s22, %s25
    %p31 = scmp.eq.s32.totalorder %s12, 0
    %p32 = por %p30, %p31
    %p33 = scmp.ne.s32.totalorder %s22, %s25
    %p34 = scmp.eq.s32.totalorder %s17, 1
    %p35 = por %p33, %p34
    %p36 = scmp.ne.s32.totalorder %s25, %s26
    %p37 = scmp.eq.s32.totalorder %s17, 0
    %p38 = por %p36, %p37
    %p39 = scmp.ne.s32.totalorder %s25, %s26
    %p40 = scmp.eq.s32.totalorder %s18, 1
    %p41 = por %p39, %p40
    %p43 = scmp.ne.s32.totalorder %s26, %s42
    %p44 = scmp.eq.s32.totalorder %s18, 0
    %p45 = por %p43, %p44
    %s46 = ssub.s32 %s12, %s19
    %p47 = scmp.eq.s32.totalorder %s46, 0
    %s49 = sadd.s32 %s48, 1
    %s50 = scalar_select %p47, %s48, %s49
    %p53 = pneg %p47
    %p54 = scmp.eq.s32.totalorder %s12, 1
    %p55 = por %p53, %p54
    %p56 = scmp.ne.s32.totalorder %s48, %s51
    %p57 = scmp.eq.s32.totalorder %s12, 0
    %p58 = por %p56, %p57
    %p59 = scmp.ne.s32.totalorder %s48, %s51
    %p60 = scmp.eq.s32.totalorder %s17, 1
    %p61 = por %p59, %p60
    %p62 = scmp.ne.s32.totalorder %s51, %s52
    %p63 = scmp.eq.s32.totalorder %s17, 0
    %p64 = por %p62, %p63
    %p65 = scmp.ne.s32.totalorder %s51, %s52
    %p66 = scmp.eq.s32.totalorder %s18, 1
    %p67 = por %p65, %p66
    %p69 = scmp.ne.s32.totalorder %s52, %s68
    %p70 = scmp.eq.s32.totalorder %s18, 0
    %p71 = por %p69, %p70
    %s73 = sadd.s32 %s72, 1
    %p76 = scmp.eq.s32.totalorder %s12, 1
    %p77 = scmp.ne.s32.totalorder %s72, %s74
    %p78 = scmp.eq.s32.totalorder %s12, 0
    %p79 = por %p77, %p78
    %p80 = scmp.ne.s32.totalorder %s72, %s74
    %p81 = scmp.eq.s32.totalorder %s17, 1
    %p82 = por %p80, %p81
    %p83 = scmp.ne.s32.totalorder %s74, %s75
    %p84 = scmp.eq.s32.totalorder %s17, 0
    %p85 = por %p83, %p84
    %p86 = scmp.ne.s32.totalorder %s74, %s75
    %p87 = scmp.eq.s32.totalorder %s18, 1
    %p88 = por %p86, %p87
    %p90 = scmp.ne.s32.totalorder %s75, %s89
    %p91 = scmp.eq.s32.totalorder %s18, 0
    %p92 = por %p90, %p91
    %s94 = sadd.s32 %s93, 1
    %p97 = scmp.eq.s32.totalorder %s12, 1
    %p98 = scmp.ne.s32.totalorder %s93, %s95
    %p99 = scmp.eq.s32.totalorder %s12, 0
    %p100 = por %p98, %p99
    %p101 = scmp.ne.s32.totalorder %s93, %s95
    %p102 = scmp.eq.s32.totalorder %s17, 1
    %p103 = por %p101, %p102
    %p104 = scmp.ne.s32.totalorder %s95, %s96
    %p105 = scmp.eq.s32.totalorder %s17, 0
    %p106 = por %p104, %p105
    %p107 = scmp.ne.s32.totalorder %s95, %s96
    %p108 = scmp.eq.s32.totalorder %s18, 1
    %p109 = por %p107, %p108
    %p111 = scmp.ne.s32.totalorder %s96, %s110
    %p112 = scmp.eq.s32.totalorder %s18, 0
    %p113 = por %p111, %p112
    %s115 = sadd.s32 %s114, 1
    %p118 = scmp.eq.s32.totalorder %s12, 1
    %p119 = scmp.ne.s32.totalorder %s114, %s116
    %p120 = scmp.eq.s32.totalorder %s12, 0
    %p121 = por %p119, %p120
    %p122 = scmp.ne.s32.totalorder %s114, %s116
    %p123 = scmp.eq.s32.totalorder %s17, 1
    %p124 = por %p122, %p123
    %p125 = scmp.ne.s32.totalorder %s116, %s117
    %p126 = scmp.eq.s32.totalorder %s17, 0
    %p127 = por %p125, %p126
    %p128 = scmp.ne.s32.totalorder %s116, %s117
    %p129 = scmp.eq.s32.totalorder %s18, 1
    %p130 = por %p128, %p129
    %p132 = scmp.ne.s32.totalorder %s117, %s131
    %p133 = scmp.eq.s32.totalorder %s18, 0
    %p134 = por %p132, %p133
    %s136 = sadd.s32 %s135, 1
    %p139 = scmp.eq.s32.totalorder %s12, 1
    %p140 = scmp.ne.s32.totalorder %s135, %s137
    %p141 = scmp.eq.s32.totalorder %s12, 0
    %p142 = por %p140, %p141
    %p143 = scmp.ne.s32.totalorder %s135, %s137
    %p144 = scmp.eq.s32.totalorder %s17, 1
    %p145 = por %p143, %p144
    %p146 = scmp.ne.s32.totalorder %s137, %s138
    %p147 = scmp.eq.s32.totalorder %s17, 0
    %p148 = por %p146, %p147
    %p149 = scmp.ne.s32.totalorder %s137, %s138
    %p150 = scmp.eq.s32.totalorder %s18, 1
    %p151 = por %p149, %p150
    %p153 = scmp.ne.s32.totalorder %s138, %s152
    %p154 = scmp.eq.s32.totalorder %s18, 0
    %p155 = por %p153, %p154
    %s156 = ssub.s32 %s12, %s19
    %p157 = scmp.eq.s32.totalorder %s156, 0
    %s159 = sadd.s32 %s158, 1
    %s160 = scalar_select %p157, %s158, %s159
    %p163 = pneg %p157
    %p164 = scmp.eq.s32.totalorder %s12, 1
    %p165 = por %p163, %p164
    %p166 = scmp.ne.s32.totalorder %s158, %s161
    %p167 = scmp.eq.s32.totalorder %s12, 0
    %p168 = por %p166, %p167
    %p169 = scmp.ne.s32.totalorder %s158, %s161
    %p170 = scmp.eq.s32.totalorder %s17, 1
    %p171 = por %p169, %p170
    %p172 = scmp.ne.s32.totalorder %s161, %s162
    %p173 = scmp.eq.s32.totalorder %s17, 0
    %p174 = por %p172, %p173
    %p175 = scmp.ne.s32.totalorder %s161, %s162
    %p176 = scmp.eq.s32.totalorder %s18, 1
    %p177 = por %p175, %p176
    %p179 = scmp.ne.s32.totalorder %s162, %s178
    %p180 = scmp.eq.s32.totalorder %s18, 0
    %p181 = por %p179, %p180
    %p182 = scmp.le.s32.totalorder 1, %s12
    %p183 = scmp.lt.s32.totalorder %s12, 3
    %p184 = pnand %p182, %p183
    %p185 = pneg %p184
    // Predicated region
    $region9: #{aspp5d_forward.1} parent=5 // pred_check
      _
    $region10: #{aspp5d_forward.1} parent=5 // pred_check_branch
      %187 = sbr.rel (%p184) target = $region12
    $region11: #{aspp5d_forward.1} parent=5 // pred_region
      %s188 = ssub.s32 %s12, 1
      // Predicated region
      $region13: #{aspp5d_forward.1} parent=11 // pred_check
        %p189 = pneg %p85
      $region14: #{aspp5d_forward.1} parent=11 // pred_check_branch
        %191 = sbr.rel (%p189) target = $region16
      $region15: #{aspp5d_forward.1} parent=11 // pred_region
        _
      $region16: #{aspp5d_forward.1} parent=11 // pred_fallthru
        _
      // Predicated region
      $region17: #{aspp5d_forward.1} parent=11 // pred_check
        %p192 = pneg %p106
      $region18: #{aspp5d_forward.1} parent=11 // pred_check_branch
        %194 = sbr.rel (%p192) target = $region20
      $region19: #{aspp5d_forward.1} parent=11 // pred_region
        _
      $region20: #{aspp5d_forward.1} parent=11 // pred_fallthru
        _
      // Predicated region
      $region21: #{aspp5d_forward.1} parent=11 // pred_check
        %p195 = pneg %p127
      $region22: #{aspp5d_forward.1} parent=11 // pred_check_branch
        %197 = sbr.rel (%p195) target = $region24
      $region23: #{aspp5d_forward.1} parent=11 // pred_region
        _
      $region24: #{aspp5d_forward.1} parent=11 // pred_fallthru
        _
      // Predicated region
      $region25: #{aspp5d_forward.1} parent=11 // pred_check
        %p198 = pneg %p148
      $region26: #{aspp5d_forward.1} parent=11 // pred_check_branch
        %200 = sbr.rel (%p198) target = $region28
      $region27: #{aspp5d_forward.1} parent=11 // pred_region
        _
      $region28: #{aspp5d_forward.1} parent=11 // pred_fallthru
        _
    $region12: #{aspp5d_forward.1} parent=5 // pred_fallthru
      _
    %p201 = scmp.lt.s32.totalorder %s12, 2
    // Predicated region
    $region29: #{aspp5d_forward.1} parent=5 // pred_check
      %p202 = pneg %p201
    $region30: #{aspp5d_forward.1} parent=5 // pred_check_branch
      %204 = sbr.rel (%p202) target = $region32
    $region31: #{aspp5d_forward.1} parent=5 // pred_region
      // Predicated region
      $region33: #{aspp5d_forward.1} parent=31 // pred_check
        %p205 = pneg %p32
      $region34: #{aspp5d_forward.1} parent=31 // pred_check_branch
        %207 = sbr.rel (%p205) target = $region36
      $region35: #{aspp5d_forward.1} parent=31 // pred_region
        %p208 = scmp.lt.s32.totalorder %s12, 1
        %s209 = scalar_select %p208, %s12, 1
        %s210 = smul.addr %s209, 8
        %s211 = smul.addr %s210, 8
        %s212 = scalar_lea.vmem %s0, %s211
      $region36: #{aspp5d_forward.1} parent=31 // pred_fallthru
        _
      // Predicated region
      $region37: #{aspp5d_forward.1} parent=31 // pred_check
        %p213 = pneg %p58
      $region38: #{aspp5d_forward.1} parent=31 // pred_check_branch
        %215 = sbr.rel (%p213) target = $region40
      $region39: #{aspp5d_forward.1} parent=31 // pred_region
        %p216 = scmp.lt.s32.totalorder %s12, 1
        %s217 = scalar_select %p216, %s12, 1
        %s218 = smul.addr %s217, 54
        %s219 = smul.addr %s218, 8
        %s220 = scalar_lea.vmem %s1, %s219
      $region40: #{aspp5d_forward.1} parent=31 // pred_fallthru
        _
    $region32: #{aspp5d_forward.1} parent=5 // pred_fallthru
      _
    %p221 = scmp.le.s32.totalorder 1, %s12
    %p222 = scmp.lt.s32.totalorder %s12, 3
    %p223 = pnand %p221, %p222
    %p224 = pneg %p223
    // Predicated region
    $region41: #{aspp5d_forward.1} parent=5 // pred_check
      _
    $region42: #{aspp5d_forward.1} parent=5 // pred_check_branch
      %226 = sbr.rel (%p223) target = $region44
    $region43: #{aspp5d_forward.1} parent=5 // pred_region
      %s227 = ssub.s32 %s12, 1
      %p228 = scmp.lt.s32.totalorder %s17, 1
      %s229 = scalar_select %p228, %s17, 1
      %s230 = smul.addr %s229, 8
      %s231 = smul.addr %s230, 8
      %s232 = scalar_lea.vmem %s0, %s231
      %p233 = pneg %p38
      %p234 = pneg %p35
      %p235 = scmp.lt.s32.totalorder %s17, 1
      %s236 = scalar_select %p235, %s17, 1
      %s237 = smul.addr %s236, 54
      %s238 = smul.addr %s237, 8
      %s239 = scalar_lea.vmem %s1, %s238
      %p240 = pneg %p64
      %p241 = pneg %p61
      %p242 = pneg %p85
      %p243 = pneg %p82
      %p244 = pneg %p106
      %p245 = pneg %p103
      %p246 = pneg %p127
      %p247 = pneg %p124
      %p248 = pneg %p148
      %p249 = pneg %p145
      %p250 = pneg %p174
      %p251 = pneg %p171
      %p252 = scmp.lt.s32.totalorder %s17, 1
      %s253 = scalar_select %p252, %s17, 1
      %s254 = smul.addr %s253, 16
      %s255 = smul.addr %s254, 8
      %s256 = scalar_lea.vmem %s6, %s255
      %p257 = scmp.lt.s32.totalorder %s17, 1
      %s258 = scalar_select %p257, %s17, 1
      %s259 = smul.addr %s258, 8
      %s260 = smul.addr %s259, 8
      %s261 = scalar_lea.vmem %s0, %s260
      %p262 = scmp.lt.s32.totalorder %s17, 1
      %s263 = scalar_select %p262, %s17, 1
      %s264 = smul.addr %s263, 54
      %s265 = smul.addr %s264, 8
      %s266 = scalar_lea.vmem %s1, %s265
      %p267 = scmp.lt.s32.totalorder %s17, 1
      %s268 = scalar_select %p267, %s17, 1
      %s269 = smul.addr %s268, 16
      %s270 = smul.addr %s269, 8
      %s271 = scalar_lea.vmem %s6, %s270
      %v272 = vld [vmem:[%s261] sm:$0xff]
      %v273 = vld [vmem:[%s261 + $0x8] sm:$0xff]
      %v274 = vld [vmem:[%s261 + $0x10] sm:$0xff]
      %v275 = vld [vmem:[%s261 + $0x18] sm:$0xff]
      %v276 = vld [vmem:[%s261 + $0x20] sm:$0xff]
      %v277 = vld [vmem:[%s261 + $0x28] sm:$0xff]
      %v278 = vld [vmem:[%s261 + $0x30] sm:$0xff]
      %v279 = vld [vmem:[%s261 + $0x38] sm:$0xff]
      %v280 = vld [vmem:[%s4] sm:$0xff]
      %v281 = vld [vmem:[%s4 + $0x8] sm:$0xff]
      %v282 = vld [vmem:[%s4 + $0x10] sm:$0xff]
      %v283 = vld [vmem:[%s4 + $0x18] sm:$0xff]
      %vm284 = vcmask 261120
      %v286 = vsel %vm284, %v272, 0
      %v289 = vsel %vm284, %v273, 0
      %v292 = vsel %vm284, %v274, 0
      %v295 = vsel %vm284, %v275, 0
      %v298 = vsel %vm284, %v276, 0
      %v301 = vsel %vm284, %v277, 0
      %v304 = vsel %vm284, %v278, 0
      %v307 = vsel %vm284, %v279, 0
      %309 = vmatprep.subr.mxu0 0.0
      %310 = vmatpush1.msra.mxu0 %v280
      %311 = vmatprep.subr.mxu0 0.0
      %312 = vmatpush1.msra.mxu0 %v281
      %313 = vmatprep.subr.mxu0 0.0
      %314 = vmatpush1.msra.mxu0 %v282
      %315 = vmatprep.subr.mxu0 0.0
      %316 = vmatpush1.msra.mxu0 %v283
      %317 = vmatprep.subr.mxu0 0.0
      %318 = vmatpush1.msra.mxu0 0.0
      %319 = vmatprep.subr.mxu0 0.0
      %320 = vmatpush1.msra.mxu0 0.0
      %321 = vmatprep.subr.mxu0 0.0
      %322 = vmatpush1.msra.mxu0 0.0
      %323 = vmatprep.subr.mxu0 0.0
      %324 = vmatpush1.msra.mxu0 0.0
      %325 = vmatprep.subr.mxu0 0.0
      %326 = vmatpush1.msra.mxu0 0.0
      %327 = vmatprep.subr.mxu0 0.0
      %328 = vmatpush1.msra.mxu0 0.0
      %329 = vmatprep.subr.mxu0 0.0
      %330 = vmatpush1.msra.mxu0 0.0
      %331 = vmatprep.subr.mxu0 0.0
      %332 = vmatpush1.msra.mxu0 0.0
      %333 = vmatprep.subr.mxu0 0.0
      %334 = vmatpush1.msra.mxu0 0.0
      %335 = vmatprep.subr.mxu0 0.0
      %336 = vmatpush1.msra.mxu0 0.0
      %337 = vmatprep.subr.mxu0 0.0
      %338 = vmatpush1.msra.mxu0 0.0
      %339 = vmatprep.subr.mxu0 0.0
      %340 = vmatpush1.msra.mxu0 0.0
      %341 = vmatprep.subr.mxu0 0.0
      %342 = vmatpush1.msra.mxu0 0.0
      %343 = vmatprep.subr.mxu0 0.0
      %344 = vmatpush1.msra.mxu0 0.0
      %345 = vmatprep.subr.mxu0 0.0
      %346 = vmatpush1.msra.mxu0 0.0
      %347 = vmatprep.subr.mxu0 0.0
      %348 = vmatpush1.msra.mxu0 0.0
      %349 = vmatprep.subr.mxu0 0.0
      %350 = vmatpush1.msra.mxu0 0.0
      %351 = vmatprep.subr.mxu0 0.0
      %352 = vmatpush1.msra.mxu0 0.0
      %353 = vmatprep.subr.mxu0 0.0
      %354 = vmatpush1.msra.mxu0 0.0
      %355 = vmatprep.subr.mxu0 0.0
      %356 = vmatpush1.msra.mxu0 0.0
      %357 = vmatprep.subr.mxu0 0.0
      %358 = vmatpush1.msra.mxu0 0.0
      %359 = vmatprep.subr.mxu0 0.0
      %360 = vmatpush1.msra.mxu0 0.0
      %361 = vmatprep.subr.mxu0 0.0
      %362 = vmatpush1.msra.mxu0 0.0
      %363 = vmatprep.subr.mxu0 0.0
      %364 = vmatpush1.msra.mxu0 0.0
      %365 = vmatprep.subr.mxu0 0.0
      %366 = vmatpush1.msra.mxu0 0.0
      %367 = vmatprep.subr.mxu0 0.0
      %368 = vmatpush1.msra.mxu0 0.0
      %369 = vmatprep.subr.mxu0 0.0
      %370 = vmatpush1.msra.mxu0 0.0
      %371 = vmatprep.subr.mxu0 0.0
      %372 = vmatpush1.msra.mxu0 0.0
      %373 = vmatprep.mubr.f32.mxu0 0.0
      %374 = vmatmul.mubr.f32.gmra.mrb[0].mxu0 %v286
      %v375 = vpop.f32.mrb[0].mxu0
      %v376 = vadd.f32 0.0, %v375
      %v377 = vpop.f32.mrb[0].mxu0
      %378 = vmatprep.mubr.f32.mxu0 0.0
      %379 = vmatmul.mubr.f32.gmra.mrb[0].mxu0 %v289
      %v380 = vpop.f32.mrb[0].mxu0
      %v381 = vadd.f32 0.0, %v380
      %v382 = vpop.f32.mrb[0].mxu0
      %383 = vmatprep.mubr.f32.mxu0 0.0
      %384 = vmatmul.mubr.f32.gmra.mrb[0].mxu0 %v292
      %v385 = vpop.f32.mrb[0].mxu0
      %v386 = vadd.f32 0.0, %v385
      %v387 = vpop.f32.mrb[0].mxu0
      %388 = vmatprep.mubr.f32.mxu0 0.0
      %389 = vmatmul.mubr.f32.gmra.mrb[0].mxu0 %v295
      %v390 = vpop.f32.mrb[0].mxu0
      %v391 = vadd.f32 0.0, %v390
      %v392 = vpop.f32.mrb[0].mxu0
      %393 = vmatprep.mubr.f32.mxu0 0.0
      %394 = vmatmul.mubr.f32.gmra.mrb[0].mxu0 %v298
      %v395 = vpop.f32.mrb[0].mxu0
      %v396 = vadd.f32 0.0, %v395
      %v397 = vpop.f32.mrb[0].mxu0
      %398 = vmatprep.mubr.f32.mxu0 0.0
      %399 = vmatmul.mubr.f32.gmra.mrb[0].mxu0 %v301
      %v400 = vpop.f32.mrb[0].mxu0
      %v401 = vadd.f32 0.0, %v400
      %v402 = vpop.f32.mrb[0].mxu0
      %403 = vmatprep.mubr.f32.mxu0 0.0
      %404 = vmatmul.mubr.f32.gmra.mrb[0].mxu0 %v304
      %v405 = vpop.f32.mrb[0].mxu0
      %v406 = vadd.f32 0.0, %v405
      %v407 = vpop.f32.mrb[0].mxu0
      %408 = vmatprep.mubr.f32.mxu0 0.0
      %409 = vmatmul.mubr.f32.gmra.mrb[0].mxu0 %v307
      %v410 = vpop.f32.mrb[0].mxu0
      %v411 = vadd.f32 0.0, %v410
      %v412 = vpop.f32.mrb[0].mxu0
      %413 = vdwg.mxu0
      %v414 = vadd.f32 %v376, %v381
      %v415 = vadd.f32 %v414, %v386
      %v416 = vadd.f32 %v415, %v391
      %v417 = vadd.f32 %v416, %v396
      %v418 = vadd.f32 %v417, %v401
      %v419 = vadd.f32 %v418, %v406
      %v420 = vadd.f32 %v419, %v411
      %v421 = vrot.slane %v420, 4
      %v422 = vadd.f32 %v420, %v421
      %v423 = vrot.slane %v422, 2
      %v424 = vadd.f32 %v422, %v423
      %v425 = vrot.slane %v424, 1
      %v426 = vadd.f32 %v424, %v425
      %v427 = vmul.f32 %v426, 0.001953125
      %vm428 = vcmask 1040384
      %v429 = vsel %vm428, %v427, 0.0
      %430 = vadd.xlane.f32.xlu0 %v429
      %v431 = vpop.xlane.xlu0 %430
      %v432 = vrot.slane %v431, 4
      %v433 = vadd.f32 %v431, %v432
      %v434 = vrot.slane %v433, 2
      %v435 = vadd.f32 %v433, %v434
      %v436 = vrot.slane %v435, 1
      %v437 = vadd.f32 %v435, %v436
      %s438 = vtos %v437
      %v439 = vrcp.pop 128.0
      %s440 = vtos %v439
      %s441 = smul.f32 %s438, %s440
      %v442 = vstv %s441
      %v443 = vsub.f32 %v427, %v442
      %v444 = vmul.f32 %v443, %v443
      %v445 = vsel %vm428, %v444, 0.0
      %446 = vadd.xlane.f32.xlu0 %v445
      %v447 = vpop.xlane.xlu0 %446
      %v448 = vrot.slane %v447, 4
      %v449 = vadd.f32 %v447, %v448
      %v450 = vrot.slane %v449, 2
      %v451 = vadd.f32 %v449, %v450
      %v452 = vrot.slane %v451, 1
      %v453 = vadd.f32 %v451, %v452
      %s454 = vtos %v453
      %v455 = vrcp.pop 128.0
      %s456 = vtos %v455
      %s457 = smul.f32 %s454, %s456
      %s458 = sadd.f32 %s457, 1e-05
      %v459 = vstv %s458
      %v460 = vrsqrt.pop %v459
      %s461 = vtos %v460
      %v462 = vstv %s461
      %v463 = vmul.f32 %v443, %v462
      %v464 = vmax.f32 %v463, 0.0
      %v465 = vld [vmem:[%s3] sm:$0xff]
      %v466 = vld [vmem:[%s3 + $0x8] sm:$0xff]
      %v467 = vld [vmem:[%s3 + $0x10] sm:$0xff]
      %v468 = vld [vmem:[%s3 + $0x18] sm:$0xff]
      %469 = vmatprep.subr.mxu0 0.0
      %470 = vmatpush1.msra.mxu0 %v465
      %471 = vmatprep.subr.mxu0 0.0
      %472 = vmatpush1.msra.mxu0 %v466
      %473 = vmatprep.subr.mxu0 0.0
      %474 = vmatpush1.msra.mxu0 %v467
      %475 = vmatprep.subr.mxu0 0.0
      %476 = vmatpush1.msra.mxu0 %v468
      %477 = vmatprep.subr.mxu0 0.0
      %478 = vmatpush1.msra.mxu0 0.0
      %479 = vmatprep.subr.mxu0 0.0
      %480 = vmatpush1.msra.mxu0 0.0
      %481 = vmatprep.subr.mxu0 0.0
      %482 = vmatpush1.msra.mxu0 0.0
      %483 = vmatprep.subr.mxu0 0.0
      %484 = vmatpush1.msra.mxu0 0.0
      %485 = vmatprep.subr.mxu0 0.0
      %486 = vmatpush1.msra.mxu0 0.0
      %487 = vmatprep.subr.mxu0 0.0
      %488 = vmatpush1.msra.mxu0 0.0
      %489 = vmatprep.subr.mxu0 0.0
      %490 = vmatpush1.msra.mxu0 0.0
      %491 = vmatprep.subr.mxu0 0.0
      %492 = vmatpush1.msra.mxu0 0.0
      %493 = vmatprep.subr.mxu0 0.0
      %494 = vmatpush1.msra.mxu0 0.0
      %495 = vmatprep.subr.mxu0 0.0
      %496 = vmatpush1.msra.mxu0 0.0
      %497 = vmatprep.subr.mxu0 0.0
      %498 = vmatpush1.msra.mxu0 0.0
      %499 = vmatprep.subr.mxu0 0.0
      %500 = vmatpush1.msra.mxu0 0.0
      %501 = vmatprep.subr.mxu0 0.0
      %502 = vmatpush1.msra.mxu0 0.0
      %503 = vmatprep.subr.mxu0 0.0
      %504 = vmatpush1.msra.mxu0 0.0
      %505 = vmatprep.subr.mxu0 0.0
      %506 = vmatpush1.msra.mxu0 0.0
      %507 = vmatprep.subr.mxu0 0.0
      %508 = vmatpush1.msra.mxu0 0.0
      %509 = vmatprep.subr.mxu0 0.0
      %510 = vmatpush1.msra.mxu0 0.0
      %511 = vmatprep.subr.mxu0 0.0
      %512 = vmatpush1.msra.mxu0 0.0
      %513 = vmatprep.subr.mxu0 0.0
      %514 = vmatpush1.msra.mxu0 0.0
      %515 = vmatprep.subr.mxu0 0.0
      %516 = vmatpush1.msra.mxu0 0.0
      %517 = vmatprep.subr.mxu0 0.0
      %518 = vmatpush1.msra.mxu0 0.0
      %519 = vmatprep.subr.mxu0 0.0
      %520 = vmatpush1.msra.mxu0 0.0
      %521 = vmatprep.subr.mxu0 0.0
      %522 = vmatpush1.msra.mxu0 0.0
      %523 = vmatprep.subr.mxu0 0.0
      %524 = vmatpush1.msra.mxu0 0.0
      %525 = vmatprep.subr.mxu0 0.0
      %526 = vmatpush1.msra.mxu0 0.0
      %527 = vmatprep.subr.mxu0 0.0
      %528 = vmatpush1.msra.mxu0 0.0
      %529 = vmatprep.subr.mxu0 0.0
      %530 = vmatpush1.msra.mxu0 0.0
      %531 = vmatprep.subr.mxu0 0.0
      %532 = vmatpush1.msra.mxu0 0.0
      %533 = vmatprep.mubr.f32.mxu0 0.0
      %534 = vmatmul.mubr.f32.gmra.mrb[0].mxu0 %v286
      %v535 = vpop.f32.mrb[0].mxu0
      %v536 = vadd.f32 0.0, %v535
      %v537 = vpop.f32.mrb[0].mxu0
      %538 = vmatprep.mubr.f32.mxu0 0.0
      %539 = vmatmul.mubr.f32.gmra.mrb[0].mxu0 %v289
      %v540 = vpop.f32.mrb[0].mxu0
      %v541 = vadd.f32 0.0, %v540
      %v542 = vpop.f32.mrb[0].mxu0
      %543 = vmatprep.mubr.f32.mxu0 0.0
      %544 = vmatmul.mubr.f32.gmra.mrb[0].mxu0 %v292
      %v545 = vpop.f32.mrb[0].mxu0
      %v546 = vadd.f32 0.0, %v545
      %v547 = vpop.f32.mrb[0].mxu0
      %548 = vmatprep.mubr.f32.mxu0 0.0
      %549 = vmatmul.mubr.f32.gmra.mrb[0].mxu0 %v295
      %v550 = vpop.f32.mrb[0].mxu0
      %v551 = vadd.f32 0.0, %v550
      %v552 = vpop.f32.mrb[0].mxu0
      %553 = vmatprep.mubr.f32.mxu0 0.0
      %554 = vmatmul.mubr.f32.gmra.mrb[0].mxu0 %v298
      %v555 = vpop.f32.mrb[0].mxu0
      %v556 = vadd.f32 0.0, %v555
      %v557 = vpop.f32.mrb[0].mxu0
      %558 = vmatprep.mubr.f32.mxu0 0.0
      %559 = vmatmul.mubr.f32.gmra.mrb[0].mxu0 %v301
      %v560 = vpop.f32.mrb[0].mxu0
      %v561 = vadd.f32 0.0, %v560
      %v562 = vpop.f32.mrb[0].mxu0
      %563 = vmatprep.mubr.f32.mxu0 0.0
      %564 = vmatmul.mubr.f32.gmra.mrb[0].mxu0 %v304
      %v565 = vpop.f32.mrb[0].mxu0
      %v566 = vadd.f32 0.0, %v565
      %v567 = vpop.f32.mrb[0].mxu0
      %568 = vmatprep.mubr.f32.mxu0 0.0
      %569 = vmatmul.mubr.f32.gmra.mrb[0].mxu0 %v307
      %v570 = vpop.f32.mrb[0].mxu0
      %v571 = vadd.f32 0.0, %v570
      %v572 = vpop.f32.mrb[0].mxu0
      %573 = vdwg.mxu0
      %v574 = vadd.f32 %v536, %v541
      %v575 = vadd.f32 %v574, %v546
      %v576 = vadd.f32 %v575, %v551
      %v577 = vadd.f32 %v576, %v556
      %v578 = vadd.f32 %v577, %v561
      %v579 = vadd.f32 %v578, %v566
      %v580 = vadd.f32 %v579, %v571
      %581 = vadd.xlane.f32.xlu0 %v580
      %v582 = vpop.xlane.xlu0 %581
      %v583 = vrot.slane %v582, 4
      %v584 = vadd.f32 %v582, %v583
      %v585 = vrot.slane %v584, 2
      %v586 = vadd.f32 %v584, %v585
      %v587 = vrot.slane %v586, 1
      %v588 = vadd.f32 %v586, %v587
      %s589 = vtos %v588
      %v590 = vrcp.pop 8192.0
      %s591 = vtos %v590
      %s592 = smul.f32 %s589, %s591
      %v593 = vstv %s592
      %v594 = vsub.f32 %v536, %v593
      %v595 = vsub.f32 %v541, %v593
      %v596 = vsub.f32 %v546, %v593
      %v597 = vsub.f32 %v551, %v593
      %v598 = vsub.f32 %v556, %v593
      %v599 = vsub.f32 %v561, %v593
      %v600 = vsub.f32 %v566, %v593
      %v601 = vsub.f32 %v571, %v593
      %v602 = vmul.f32 %v594, %v594
      %v603 = vmul.f32 %v595, %v595
      %v604 = vmul.f32 %v596, %v596
      %v605 = vmul.f32 %v597, %v597
      %v606 = vmul.f32 %v598, %v598
      %v607 = vmul.f32 %v599, %v599
      %v608 = vmul.f32 %v600, %v600
      %v609 = vmul.f32 %v601, %v601
      %v610 = vadd.f32 %v602, %v603
      %v611 = vadd.f32 %v610, %v604
      %v612 = vadd.f32 %v611, %v605
      %v613 = vadd.f32 %v612, %v606
      %v614 = vadd.f32 %v613, %v607
      %v615 = vadd.f32 %v614, %v608
      %v616 = vadd.f32 %v615, %v609
      %617 = vadd.xlane.f32.xlu0 %v616
      %v618 = vpop.xlane.xlu0 %617
      %v619 = vrot.slane %v618, 4
      %v620 = vadd.f32 %v618, %v619
      %v621 = vrot.slane %v620, 2
      %v622 = vadd.f32 %v620, %v621
      %v623 = vrot.slane %v622, 1
      %v624 = vadd.f32 %v622, %v623
      %s625 = vtos %v624
      %v626 = vrcp.pop 8192.0
      %s627 = vtos %v626
      %s628 = smul.f32 %s625, %s627
      %s629 = sadd.f32 %s628, 1e-05
      %v630 = vstv %s629
      %v631 = vrsqrt.pop %v630
      %s632 = vtos %v631
      %v633 = vstv %s632
      %v634 = vmul.f32 %v594, %v633
      %v635 = vmul.f32 %v595, %v633
      %v636 = vmul.f32 %v596, %v633
      %v637 = vmul.f32 %v597, %v633
      %v638 = vmul.f32 %v598, %v633
      %v639 = vmul.f32 %v599, %v633
      %v640 = vmul.f32 %v600, %v633
      %v641 = vmul.f32 %v601, %v633
      %v642 = vmax.f32 %v634, 0.0
      %v643 = vmax.f32 %v635, 0.0
      %v644 = vmax.f32 %v636, 0.0
      %v645 = vmax.f32 %v637, 0.0
      %v646 = vmax.f32 %v638, 0.0
      %v647 = vmax.f32 %v639, 0.0
      %v648 = vmax.f32 %v640, 0.0
      %v649 = vmax.f32 %v641, 0.0
      %v650 = vld [vmem:[%s5] sm:$0xff]
      %v651 = vld [vmem:[%s5 + $0x8] sm:$0xff]
      %v652 = vld [vmem:[%s5 + $0x10] sm:$0xff]
      %v653 = vld [vmem:[%s5 + $0x18] sm:$0xff]
      %v654 = vld [vmem:[%s5 + $0x20] sm:$0xff]
      %v655 = vld [vmem:[%s5 + $0x28] sm:$0xff]
      %v656 = vld [vmem:[%s5 + $0x30] sm:$0xff]
      %v657 = vld [vmem:[%s5 + $0x38] sm:$0xff]
      %v658 = vld [vmem:[%s5 + $0x40] sm:$0xff]
      %v659 = vld [vmem:[%s5 + $0x48] sm:$0xff]
      %v660 = vld [vmem:[%s5 + $0x50] sm:$0xff]
      %v661 = vld [vmem:[%s5 + $0x58] sm:$0xff]
      %v662 = vld [vmem:[%s5 + $0x60] sm:$0xff]
      %v663 = vld [vmem:[%s5 + $0x68] sm:$0xff]
      %v664 = vld [vmem:[%s5 + $0x70] sm:$0xff]
      %v665 = vld [vmem:[%s5 + $0x78] sm:$0xff]
      %v666 = vld [vmem:[%s5 + $0x80] sm:$0xff]
      %v667 = vld [vmem:[%s5 + $0x88] sm:$0xff]
      %v668 = vld [vmem:[%s5 + $0x90] sm:$0xff]
      %v669 = vld [vmem:[%s5 + $0x98] sm:$0xff]
      %v670 = vld [vmem:[%s5 + $0xa0] sm:$0xff]
      %v671 = vld [vmem:[%s5 + $0xa8] sm:$0xff]
      %v672 = vld [vmem:[%s5 + $0xb0] sm:$0xff]
      %v673 = vld [vmem:[%s5 + $0xb8] sm:$0xff]
      %v674 = vld [vmem:[%s5 + $0xc0] sm:$0xff]
      %v675 = vld [vmem:[%s5 + $0xc8] sm:$0xff]
      %v676 = vld [vmem:[%s5 + $0xd0] sm:$0xff]
      %v677 = vld [vmem:[%s5 + $0xd8] sm:$0xff]
      %v678 = vld [vmem:[%s5 + $0xe0] sm:$0xff]
      %v679 = vld [vmem:[%s5 + $0xe8] sm:$0xff]
      %v680 = vld [vmem:[%s5 + $0xf0] sm:$0xff]
      %v681 = vld [vmem:[%s5 + $0xf8] sm:$0xff]
      %s682 = scalar_lea.vmem %s5, 256
      %v683 = vld [vmem:[%s682] sm:$0xff]
      %v684 = vld [vmem:[%s682 + $0x8] sm:$0xff]
      %v685 = vld [vmem:[%s682 + $0x10] sm:$0xff]
      %v686 = vld [vmem:[%s682 + $0x18] sm:$0xff]
      %v687 = vld [vmem:[%s682 + $0x20] sm:$0xff]
      %v688 = vld [vmem:[%s682 + $0x28] sm:$0xff]
      %v689 = vld [vmem:[%s682 + $0x30] sm:$0xff]
      %v690 = vld [vmem:[%s682 + $0x38] sm:$0xff]
      %v691 = vld [vmem:[%s682 + $0x40] sm:$0xff]
      %v692 = vld [vmem:[%s682 + $0x48] sm:$0xff]
      %v693 = vld [vmem:[%s682 + $0x50] sm:$0xff]
      %v694 = vld [vmem:[%s682 + $0x58] sm:$0xff]
      %v695 = vld [vmem:[%s682 + $0x60] sm:$0xff]
      %v696 = vld [vmem:[%s682 + $0x68] sm:$0xff]
      %v697 = vld [vmem:[%s682 + $0x70] sm:$0xff]
      %v698 = vld [vmem:[%s682 + $0x78] sm:$0xff]
      %v699 = vld [vmem:[%s682 + $0x80] sm:$0xff]
      %v700 = vld [vmem:[%s682 + $0x88] sm:$0xff]
      %v701 = vld [vmem:[%s682 + $0x90] sm:$0xff]
      %v702 = vld [vmem:[%s682 + $0x98] sm:$0xff]
      %v703 = vld [vmem:[%s682 + $0xa0] sm:$0xff]
      %v704 = vld [vmem:[%s682 + $0xa8] sm:$0xff]
      %v705 = vld [vmem:[%s682 + $0xb0] sm:$0xff]
      %v706 = vld [vmem:[%s682 + $0xb8] sm:$0xff]
      %v707 = vld [vmem:[%s682 + $0xc0] sm:$0xff]
      %v708 = vld [vmem:[%s682 + $0xc8] sm:$0xff]
      %v709 = vld [vmem:[%s682 + $0xd0] sm:$0xff]
      %v710 = vld [vmem:[%s682 + $0xd8] sm:$0xff]
      %v711 = vld [vmem:[%s682 + $0xe0] sm:$0xff]
      %v712 = vld [vmem:[%s682 + $0xe8] sm:$0xff]
      %v713 = vld [vmem:[%s682 + $0xf0] sm:$0xff]
      %v714 = vld [vmem:[%s682 + $0xf8] sm:$0xff]
      %715 = vmatprep.subr.mxu0 %v684
      %716 = vmatpush1.msra.mxu0 %v683
      %717 = vmatprep.subr.mxu0 %v686
      %718 = vmatpush1.msra.mxu0 %v685
      %719 = vmatprep.subr.mxu0 %v688
      %720 = vmatpush1.msra.mxu0 %v687
      %721 = vmatprep.subr.mxu0 %v690
      %722 = vmatpush1.msra.mxu0 %v689
      %723 = vmatprep.subr.mxu0 %v692
      %724 = vmatpush1.msra.mxu0 %v691
      %725 = vmatprep.subr.mxu0 %v694
      %726 = vmatpush1.msra.mxu0 %v693
      %727 = vmatprep.subr.mxu0 %v696
      %728 = vmatpush1.msra.mxu0 %v695
      %729 = vmatprep.subr.mxu0 %v698
      %730 = vmatpush1.msra.mxu0 %v697
      %731 = vmatprep.subr.mxu0 %v700
      %732 = vmatpush1.msra.mxu0 %v699
      %733 = vmatprep.subr.mxu0 %v702
      %734 = vmatpush1.msra.mxu0 %v701
      %735 = vmatprep.subr.mxu0 %v704
      %736 = vmatpush1.msra.mxu0 %v703
      %737 = vmatprep.subr.mxu0 %v706
      %738 = vmatpush1.msra.mxu0 %v705
      %739 = vmatprep.subr.mxu0 %v708
      %740 = vmatpush1.msra.mxu0 %v707
      %741 = vmatprep.subr.mxu0 %v710
      %742 = vmatpush1.msra.mxu0 %v709
      %743 = vmatprep.subr.mxu0 %v712
      %744 = vmatpush1.msra.mxu0 %v711
      %745 = vmatprep.subr.mxu0 %v714
      %746 = vmatpush1.msra.mxu0 %v713
      %747 = vmatprep.subr.mxu0 0.0
      %748 = vmatpush1.msra.mxu0 0.0
      %749 = vmatprep.subr.mxu0 0.0
      %750 = vmatpush1.msra.mxu0 0.0
      %751 = vmatprep.subr.mxu0 0.0
      %752 = vmatpush1.msra.mxu0 0.0
      %753 = vmatprep.subr.mxu0 0.0
      %754 = vmatpush1.msra.mxu0 0.0
      %755 = vmatprep.subr.mxu0 0.0
      %756 = vmatpush1.msra.mxu0 0.0
      %757 = vmatprep.subr.mxu0 0.0
      %758 = vmatpush1.msra.mxu0 0.0
      %759 = vmatprep.subr.mxu0 0.0
      %760 = vmatpush1.msra.mxu0 0.0
      %761 = vmatprep.subr.mxu0 0.0
      %762 = vmatpush1.msra.mxu0 0.0
      %763 = vmatprep.subr.mxu0 0.0
      %764 = vmatpush1.msra.mxu0 0.0
      %765 = vmatprep.subr.mxu0 0.0
      %766 = vmatpush1.msra.mxu0 0.0
      %767 = vmatprep.subr.mxu0 0.0
      %768 = vmatpush1.msra.mxu0 0.0
      %769 = vmatprep.subr.mxu0 0.0
      %770 = vmatpush1.msra.mxu0 0.0
      %771 = vmatprep.subr.mxu0 0.0
      %772 = vmatpush1.msra.mxu0 0.0
      %773 = vmatprep.subr.mxu0 0.0
      %774 = vmatpush1.msra.mxu0 0.0
      %775 = vmatprep.subr.mxu0 0.0
      %776 = vmatpush1.msra.mxu0 0.0
      %777 = vmatprep.subr.mxu0 0.0
      %778 = vmatpush1.msra.mxu0 0.0
      %779 = vmatprep.mubr.f32.mxu0 0.0
      %780 = vmatmul.mubr.f32.gmra.mrb[0].mxu0 %v642
      %v781 = vpop.f32.mrb[0].mxu0
      %v782 = vadd.f32 0.0, %v781
      %v783 = vpop.f32.mrb[0].mxu0
      %v784 = vadd.f32 0.0, %v783
      %785 = vmatprep.mubr.f32.mxu0 0.0
      %786 = vmatmul.mubr.f32.gmra.mrb[0].mxu0 %v643
      %v787 = vpop.f32.mrb[0].mxu0
      %v788 = vadd.f32 0.0, %v787
      %v789 = vpop.f32.mrb[0].mxu0
      %v790 = vadd.f32 0.0, %v789
      %791 = vmatprep.mubr.f32.mxu0 0.0
      %792 = vmatmul.mubr.f32.gmra.mrb[0].mxu0 %v644
      %v793 = vpop.f32.mrb[0].mxu0
      %v794 = vadd.f32 0.0, %v793
      %v795 = vpop.f32.mrb[0].mxu0
      %v796 = vadd.f32 0.0, %v795
      %797 = vmatprep.mubr.f32.mxu0 0.0
      %798 = vmatmul.mubr.f32.gmra.mrb[0].mxu0 %v645
      %v799 = vpop.f32.mrb[0].mxu0
      %v800 = vadd.f32 0.0, %v799
      %v801 = vpop.f32.mrb[0].mxu0
      %v802 = vadd.f32 0.0, %v801
      %803 = vmatprep.mubr.f32.mxu0 0.0
      %804 = vmatmul.mubr.f32.gmra.mrb[0].mxu0 %v646
      %v805 = vpop.f32.mrb[0].mxu0
      %v806 = vadd.f32 0.0, %v805
      %v807 = vpop.f32.mrb[0].mxu0
      %v808 = vadd.f32 0.0, %v807
      %809 = vmatprep.mubr.f32.mxu0 0.0
      %810 = vmatmul.mubr.f32.gmra.mrb[0].mxu0 %v647
      %v811 = vpop.f32.mrb[0].mxu0
      %v812 = vadd.f32 0.0, %v811
      %v813 = vpop.f32.mrb[0].mxu0
      %v814 = vadd.f32 0.0, %v813
      %815 = vmatprep.mubr.f32.mxu0 0.0
      %816 = vmatmul.mubr.f32.gmra.mrb[0].mxu0 %v648
      %v817 = vpop.f32.mrb[0].mxu0
      %v818 = vadd.f32 0.0, %v817
      %v819 = vpop.f32.mrb[0].mxu0
      %v820 = vadd.f32 0.0, %v819
      %821 = vmatprep.mubr.f32.mxu0 0.0
      %822 = vmatmul.mubr.f32.gmra.mrb[0].mxu0 %v649
      %v823 = vpop.f32.mrb[0].mxu0
      %v824 = vadd.f32 0.0, %v823
      %v825 = vpop.f32.mrb[0].mxu0
      %v826 = vadd.f32 0.0, %v825
      %827 = vdwg.mxu0
      %828 = vmatprep.subr.mxu0 %v651
      %829 = vmatpush1.msra.mxu0 %v650
      %830 = vmatprep.subr.mxu0 %v653
      %831 = vmatpush1.msra.mxu0 %v652
      %832 = vmatprep.subr.mxu0 %v655
      %833 = vmatpush1.msra.mxu0 %v654
      %834 = vmatprep.subr.mxu0 %v657
      %835 = vmatpush1.msra.mxu0 %v656
      %836 = vmatprep.subr.mxu0 %v659
      %837 = vmatpush1.msra.mxu0 %v658
      %838 = vmatprep.subr.mxu0 %v661
      %839 = vmatpush1.msra.mxu0 %v660
      %840 = vmatprep.subr.mxu0 %v663
      %841 = vmatpush1.msra.mxu0 %v662
      %842 = vmatprep.subr.mxu0 %v665
      %843 = vmatpush1.msra.mxu0 %v664
      %844 = vmatprep.subr.mxu0 %v667
      %845 = vmatpush1.msra.mxu0 %v666
      %846 = vmatprep.subr.mxu0 %v669
      %847 = vmatpush1.msra.mxu0 %v668
      %848 = vmatprep.subr.mxu0 %v671
      %849 = vmatpush1.msra.mxu0 %v670
      %850 = vmatprep.subr.mxu0 %v673
      %851 = vmatpush1.msra.mxu0 %v672
      %852 = vmatprep.subr.mxu0 %v675
      %853 = vmatpush1.msra.mxu0 %v674
      %854 = vmatprep.subr.mxu0 %v677
      %855 = vmatpush1.msra.mxu0 %v676
      %856 = vmatprep.subr.mxu0 %v679
      %857 = vmatpush1.msra.mxu0 %v678
      %858 = vmatprep.subr.mxu0 %v681
      %859 = vmatpush1.msra.mxu0 %v680
      %860 = vmatprep.subr.mxu0 0.0
      %861 = vmatpush1.msra.mxu0 0.0
      %862 = vmatprep.subr.mxu0 0.0
      %863 = vmatpush1.msra.mxu0 0.0
      %864 = vmatprep.subr.mxu0 0.0
      %865 = vmatpush1.msra.mxu0 0.0
      %866 = vmatprep.subr.mxu0 0.0
      %867 = vmatpush1.msra.mxu0 0.0
      %868 = vmatprep.subr.mxu0 0.0
      %869 = vmatpush1.msra.mxu0 0.0
      %870 = vmatprep.subr.mxu0 0.0
      %871 = vmatpush1.msra.mxu0 0.0
      %872 = vmatprep.subr.mxu0 0.0
      %873 = vmatpush1.msra.mxu0 0.0
      %874 = vmatprep.subr.mxu0 0.0
      %875 = vmatpush1.msra.mxu0 0.0
      %876 = vmatprep.subr.mxu0 0.0
      %877 = vmatpush1.msra.mxu0 0.0
      %878 = vmatprep.subr.mxu0 0.0
      %879 = vmatpush1.msra.mxu0 0.0
      %880 = vmatprep.subr.mxu0 0.0
      %881 = vmatpush1.msra.mxu0 0.0
      %882 = vmatprep.subr.mxu0 0.0
      %883 = vmatpush1.msra.mxu0 0.0
      %884 = vmatprep.subr.mxu0 0.0
      %885 = vmatpush1.msra.mxu0 0.0
      %886 = vmatprep.subr.mxu0 0.0
      %887 = vmatpush1.msra.mxu0 0.0
      %888 = vmatprep.subr.mxu0 0.0
      %889 = vmatpush1.msra.mxu0 0.0
      %890 = vmatprep.subr.mxu0 0.0
      %891 = vmatpush1.msra.mxu0 0.0
      %892 = vmatprep.mubr.f32.mxu0 0.0
      %893 = vmatmul.mubr.f32.gmra.mrb[0].mxu0 %v464
      %v894 = vpop.f32.mrb[0].mxu0
      %v895 = vadd.f32 %v782, %v894
      %v896 = vpop.f32.mrb[0].mxu0
      %v897 = vadd.f32 %v784, %v896
      %898 = vmatprep.mubr.f32.mxu0 0.0
      %899 = vmatmul.mubr.f32.gmra.mrb[0].mxu0 %v464
      %v900 = vpop.f32.mrb[0].mxu0
      %v901 = vadd.f32 %v788, %v900
      %v902 = vpop.f32.mrb[0].mxu0
      %v903 = vadd.f32 %v790, %v902
      %904 = vmatprep.mubr.f32.mxu0 0.0
      %905 = vmatmul.mubr.f32.gmra.mrb[0].mxu0 %v464
      %v906 = vpop.f32.mrb[0].mxu0
      %v907 = vadd.f32 %v794, %v906
      %v908 = vpop.f32.mrb[0].mxu0
      %v909 = vadd.f32 %v796, %v908
      %910 = vmatprep.mubr.f32.mxu0 0.0
      %911 = vmatmul.mubr.f32.gmra.mrb[0].mxu0 %v464
      %v912 = vpop.f32.mrb[0].mxu0
      %v913 = vadd.f32 %v800, %v912
      %v914 = vpop.f32.mrb[0].mxu0
      %v915 = vadd.f32 %v802, %v914
      %916 = vmatprep.mubr.f32.mxu0 0.0
      %917 = vmatmul.mubr.f32.gmra.mrb[0].mxu0 %v464
      %v918 = vpop.f32.mrb[0].mxu0
      %v919 = vadd.f32 %v806, %v918
      %v920 = vpop.f32.mrb[0].mxu0
      %v921 = vadd.f32 %v808, %v920
      %922 = vmatprep.mubr.f32.mxu0 0.0
      %923 = vmatmul.mubr.f32.gmra.mrb[0].mxu0 %v464
      %v924 = vpop.f32.mrb[0].mxu0
      %v925 = vadd.f32 %v812, %v924
      %v926 = vpop.f32.mrb[0].mxu0
      %v927 = vadd.f32 %v814, %v926
      %928 = vmatprep.mubr.f32.mxu0 0.0
      %929 = vmatmul.mubr.f32.gmra.mrb[0].mxu0 %v464
      %v930 = vpop.f32.mrb[0].mxu0
      %v931 = vadd.f32 %v818, %v930
      %v932 = vpop.f32.mrb[0].mxu0
      %v933 = vadd.f32 %v820, %v932
      %934 = vmatprep.mubr.f32.mxu0 0.0
      %935 = vmatmul.mubr.f32.gmra.mrb[0].mxu0 %v464
      %v936 = vpop.f32.mrb[0].mxu0
      %v937 = vadd.f32 %v824, %v936
      %v938 = vpop.f32.mrb[0].mxu0
      %v939 = vadd.f32 %v826, %v938
      %940 = vdwg.mxu0
      %s941 = scalar_lea.vmem %s266, 72
      %v942 = vld [vmem:[%s941 + $0x3] sm:$0xff]
      %v943 = vld [vmem:[%s941 + $0x1b] sm:$0xff]
      %v944 = vld [vmem:[%s941 + $0x33] sm:$0xff]
      %v945 = vld [vmem:[%s941 + $0x4b] sm:$0xff]
      %v946 = vld [vmem:[%s941 + $0x63] sm:$0xff]
      %v947 = vld [vmem:[%s941 + $0x7b] sm:$0xff]
      %v948 = vld [vmem:[%s941 + $0x93] sm:$0xff]
      %v949 = vld [vmem:[%s941 + $0xab] sm:$0xff]
      %v950 = vld [vmem:[%s2] sm:$0xff]
      %v951 = vld [vmem:[%s2 + $0x8] sm:$0xff]
      %v952 = vld [vmem:[%s2 + $0x10] sm:$0xff]
      %v953 = vld [vmem:[%s2 + $0x18] sm:$0xff]
      %v954 = vld [vmem:[%s2 + $0x20] sm:$0xff]
      %v955 = vld [vmem:[%s2 + $0x28] sm:$0xff]
      %v956 = vld [vmem:[%s2 + $0x30] sm:$0xff]
      %v957 = vld [vmem:[%s2 + $0x38] sm:$0xff]
      %v958 = vld [vmem:[%s2 + $0x40] sm:$0xff]
      %v959 = vld [vmem:[%s941 + $0x5] sm:$0xff]
      %v960 = vld [vmem:[%s941 + $0x1d] sm:$0xff]
      %v961 = vld [vmem:[%s941 + $0x35] sm:$0xff]
      %v962 = vld [vmem:[%s941 + $0x4d] sm:$0xff]
      %v963 = vld [vmem:[%s941 + $0x65] sm:$0xff]
      %v964 = vld [vmem:[%s941 + $0x7d] sm:$0xff]
      %v965 = vld [vmem:[%s941 + $0x95] sm:$0xff]
      %v966 = vld [vmem:[%s941 + $0xad] sm:$0xff]
      %s967 = scalar_lea.vmem %s2, 72
      %v968 = vld [vmem:[%s967] sm:$0xff]
      %v969 = vld [vmem:[%s967 + $0x8] sm:$0xff]
      %v970 = vld [vmem:[%s967 + $0x10] sm:$0xff]
      %v971 = vld [vmem:[%s967 + $0x18] sm:$0xff]
      %v972 = vld [vmem:[%s967 + $0x20] sm:$0xff]
      %v973 = vld [vmem:[%s967 + $0x28] sm:$0xff]
      %v974 = vld [vmem:[%s967 + $0x30] sm:$0xff]
      %v975 = vld [vmem:[%s967 + $0x38] sm:$0xff]
      %v976 = vld [vmem:[%s967 + $0x40] sm:$0xff]
      %vm977 = vcmask 588800
      %v979 = vsel %vm977, %v959, 0
      %v982 = vsel %vm977, %v960, 0
      %v985 = vsel %vm977, %v961, 0
      %v988 = vsel %vm977, %v962, 0
      %v991 = vsel %vm977, %v963, 0
      %v994 = vsel %vm977, %v964, 0
      %v997 = vsel %vm977, %v965, 0
      %v1000 = vsel %vm977, %v966, 0
      %1002 = vmatprep.subr.mxu0 0.0
      %1003 = vmatpush1.msra.mxu0 %v968
      %1004 = vmatprep.subr.mxu0 0.0
      %1005 = vmatpush1.msra.mxu0 %v969
      %1006 = vmatprep.subr.mxu0 0.0
      %1007 = vmatpush1.msra.mxu0 %v970
      %1008 = vmatprep.subr.mxu0 0.0
      %1009 = vmatpush1.msra.mxu0 %v971
      %1010 = vmatprep.subr.mxu0 0.0
      %1011 = vmatpush1.msra.mxu0 %v972
      %1012 = vmatprep.subr.mxu0 0.0
      %1013 = vmatpush1.msra.mxu0 %v973
      %1014 = vmatprep.subr.mxu0 0.0
      %1015 = vmatpush1.msra.mxu0 %v974
      %1016 = vmatprep.subr.mxu0 0.0
      %1017 = vmatpush1.msra.mxu0 %v975
      %1018 = vmatprep.subr.mxu0 0.0
      %1019 = vmatpush1.msra.mxu0 %v976
      %1020 = vmatprep.subr.mxu0 0.0
      %1021 = vmatpush1.msra.mxu0 0.0
      %1022 = vmatprep.subr.mxu0 0.0
      %1023 = vmatpush1.msra.mxu0 0.0
      %1024 = vmatprep.subr.mxu0 0.0
      %1025 = vmatpush1.msra.mxu0 0.0
      %1026 = vmatprep.subr.mxu0 0.0
      %1027 = vmatpush1.msra.mxu0 0.0
      %1028 = vmatprep.subr.mxu0 0.0
      %1029 = vmatpush1.msra.mxu0 0.0
      %1030 = vmatprep.subr.mxu0 0.0
      %1031 = vmatpush1.msra.mxu0 0.0
      %1032 = vmatprep.subr.mxu0 0.0
      %1033 = vmatpush1.msra.mxu0 0.0
      %1034 = vmatprep.subr.mxu0 0.0
      %1035 = vmatpush1.msra.mxu0 0.0
      %1036 = vmatprep.subr.mxu0 0.0
      %1037 = vmatpush1.msra.mxu0 0.0
      %1038 = vmatprep.subr.mxu0 0.0
      %1039 = vmatpush1.msra.mxu0 0.0
      %1040 = vmatprep.subr.mxu0 0.0
      %1041 = vmatpush1.msra.mxu0 0.0
      %1042 = vmatprep.subr.mxu0 0.0
      %1043 = vmatpush1.msra.mxu0 0.0
      %1044 = vmatprep.subr.mxu0 0.0
      %1045 = vmatpush1.msra.mxu0 0.0
      %1046 = vmatprep.subr.mxu0 0.0
      %1047 = vmatpush1.msra.mxu0 0.0
      %1048 = vmatprep.subr.mxu0 0.0
      %1049 = vmatpush1.msra.mxu0 0.0
      %1050 = vmatprep.subr.mxu0 0.0
      %1051 = vmatpush1.msra.mxu0 0.0
      %1052 = vmatprep.subr.mxu0 0.0
      %1053 = vmatpush1.msra.mxu0 0.0
      %1054 = vmatprep.subr.mxu0 0.0
      %1055 = vmatpush1.msra.mxu0 0.0
      %1056 = vmatprep.subr.mxu0 0.0
      %1057 = vmatpush1.msra.mxu0 0.0
      %1058 = vmatprep.subr.mxu0 0.0
      %1059 = vmatpush1.msra.mxu0 0.0
      %1060 = vmatprep.subr.mxu0 0.0
      %1061 = vmatpush1.msra.mxu0 0.0
      %1062 = vmatprep.subr.mxu0 0.0
      %1063 = vmatpush1.msra.mxu0 0.0
      %1064 = vmatprep.subr.mxu0 0.0
      %1065 = vmatpush1.msra.mxu0 0.0
      %1066 = vmatprep.mubr.f32.mxu0 0.0
      %1067 = vmatmul.mubr.f32.gmra.mrb[0].mxu0 %v979
      %v1068 = vpop.f32.mrb[0].mxu0
      %v1069 = vadd.f32 0.0, %v1068
      %v1070 = vpop.f32.mrb[0].mxu0
      %1071 = vmatprep.mubr.f32.mxu0 0.0
      %1072 = vmatmul.mubr.f32.gmra.mrb[0].mxu0 %v982
      %v1073 = vpop.f32.mrb[0].mxu0
      %v1074 = vadd.f32 0.0, %v1073
      %v1075 = vpop.f32.mrb[0].mxu0
      %1076 = vmatprep.mubr.f32.mxu0 0.0
      %1077 = vmatmul.mubr.f32.gmra.mrb[0].mxu0 %v985
      %v1078 = vpop.f32.mrb[0].mxu0
      %v1079 = vadd.f32 0.0, %v1078
      %v1080 = vpop.f32.mrb[0].mxu0
      %1081 = vmatprep.mubr.f32.mxu0 0.0
      %1082 = vmatmul.mubr.f32.gmra.mrb[0].mxu0 %v988
      %v1083 = vpop.f32.mrb[0].mxu0
      %v1084 = vadd.f32 0.0, %v1083
      %v1085 = vpop.f32.mrb[0].mxu0
      %1086 = vmatprep.mubr.f32.mxu0 0.0
      %1087 = vmatmul.mubr.f32.gmra.mrb[0].mxu0 %v991
      %v1088 = vpop.f32.mrb[0].mxu0
      %v1089 = vadd.f32 0.0, %v1088
      %v1090 = vpop.f32.mrb[0].mxu0
      %1091 = vmatprep.mubr.f32.mxu0 0.0
      %1092 = vmatmul.mubr.f32.gmra.mrb[0].mxu0 %v994
      %v1093 = vpop.f32.mrb[0].mxu0
      %v1094 = vadd.f32 0.0, %v1093
      %v1095 = vpop.f32.mrb[0].mxu0
      %1096 = vmatprep.mubr.f32.mxu0 0.0
      %1097 = vmatmul.mubr.f32.gmra.mrb[0].mxu0 %v997
      %v1098 = vpop.f32.mrb[0].mxu0
      %v1099 = vadd.f32 0.0, %v1098
      %v1100 = vpop.f32.mrb[0].mxu0
      %1101 = vmatprep.mubr.f32.mxu0 0.0
      %1102 = vmatmul.mubr.f32.gmra.mrb[0].mxu0 %v1000
      %v1103 = vpop.f32.mrb[0].mxu0
      %v1104 = vadd.f32 0.0, %v1103
      %v1105 = vpop.f32.mrb[0].mxu0
      %1106 = vdwg.mxu0
      %v1108 = vsel %vm977, %v942, 0
      %v1111 = vsel %vm977, %v943, 0
      %v1114 = vsel %vm977, %v944, 0
      %v1117 = vsel %vm977, %v945, 0
      %v1120 = vsel %vm977, %v946, 0
      %v1123 = vsel %vm977, %v947, 0
      %v1126 = vsel %vm977, %v948, 0
      %v1129 = vsel %vm977, %v949, 0
      %1131 = vmatprep.subr.mxu0 0.0
      %1132 = vmatpush1.msra.mxu0 %v950
      %1133 = vmatprep.subr.mxu0 0.0
      %1134 = vmatpush1.msra.mxu0 %v951
      %1135 = vmatprep.subr.mxu0 0.0
      %1136 = vmatpush1.msra.mxu0 %v952
      %1137 = vmatprep.subr.mxu0 0.0
      %1138 = vmatpush1.msra.mxu0 %v953
      %1139 = vmatprep.subr.mxu0 0.0
      %1140 = vmatpush1.msra.mxu0 %v954
      %1141 = vmatprep.subr.mxu0 0.0
      %1142 = vmatpush1.msra.mxu0 %v955
      %1143 = vmatprep.subr.mxu0 0.0
      %1144 = vmatpush1.msra.mxu0 %v956
      %1145 = vmatprep.subr.mxu0 0.0
      %1146 = vmatpush1.msra.mxu0 %v957
      %1147 = vmatprep.subr.mxu0 0.0
      %1148 = vmatpush1.msra.mxu0 %v958
      %1149 = vmatprep.subr.mxu0 0.0
      %1150 = vmatpush1.msra.mxu0 0.0
      %1151 = vmatprep.subr.mxu0 0.0
      %1152 = vmatpush1.msra.mxu0 0.0
      %1153 = vmatprep.subr.mxu0 0.0
      %1154 = vmatpush1.msra.mxu0 0.0
      %1155 = vmatprep.subr.mxu0 0.0
      %1156 = vmatpush1.msra.mxu0 0.0
      %1157 = vmatprep.subr.mxu0 0.0
      %1158 = vmatpush1.msra.mxu0 0.0
      %1159 = vmatprep.subr.mxu0 0.0
      %1160 = vmatpush1.msra.mxu0 0.0
      %1161 = vmatprep.subr.mxu0 0.0
      %1162 = vmatpush1.msra.mxu0 0.0
      %1163 = vmatprep.subr.mxu0 0.0
      %1164 = vmatpush1.msra.mxu0 0.0
      %1165 = vmatprep.subr.mxu0 0.0
      %1166 = vmatpush1.msra.mxu0 0.0
      %1167 = vmatprep.subr.mxu0 0.0
      %1168 = vmatpush1.msra.mxu0 0.0
      %1169 = vmatprep.subr.mxu0 0.0
      %1170 = vmatpush1.msra.mxu0 0.0
      %1171 = vmatprep.subr.mxu0 0.0
      %1172 = vmatpush1.msra.mxu0 0.0
      %1173 = vmatprep.subr.mxu0 0.0
      %1174 = vmatpush1.msra.mxu0 0.0
      %1175 = vmatprep.subr.mxu0 0.0
      %1176 = vmatpush1.msra.mxu0 0.0
      %1177 = vmatprep.subr.mxu0 0.0
      %1178 = vmatpush1.msra.mxu0 0.0
      %1179 = vmatprep.subr.mxu0 0.0
      %1180 = vmatpush1.msra.mxu0 0.0
      %1181 = vmatprep.subr.mxu0 0.0
      %1182 = vmatpush1.msra.mxu0 0.0
      %1183 = vmatprep.subr.mxu0 0.0
      %1184 = vmatpush1.msra.mxu0 0.0
      %1185 = vmatprep.subr.mxu0 0.0
      %1186 = vmatpush1.msra.mxu0 0.0
      %1187 = vmatprep.subr.mxu0 0.0
      %1188 = vmatpush1.msra.mxu0 0.0
      %1189 = vmatprep.subr.mxu0 0.0
      %1190 = vmatpush1.msra.mxu0 0.0
      %1191 = vmatprep.subr.mxu0 0.0
      %1192 = vmatpush1.msra.mxu0 0.0
      %1193 = vmatprep.subr.mxu0 0.0
      %1194 = vmatpush1.msra.mxu0 0.0
      %1195 = vmatprep.mubr.f32.mxu0 0.0
      %1196 = vmatmul.mubr.f32.gmra.mrb[0].mxu0 %v1108
      %v1197 = vpop.f32.mrb[0].mxu0
      %v1198 = vadd.f32 %v1069, %v1197
      %v1199 = vpop.f32.mrb[0].mxu0
      %1200 = vmatprep.mubr.f32.mxu0 0.0
      %1201 = vmatmul.mubr.f32.gmra.mrb[0].mxu0 %v1111
      %v1202 = vpop.f32.mrb[0].mxu0
      %v1203 = vadd.f32 %v1074, %v1202
      %v1204 = vpop.f32.mrb[0].mxu0
      %1205 = vmatprep.mubr.f32.mxu0 0.0
      %1206 = vmatmul.mubr.f32.gmra.mrb[0].mxu0 %v1114
      %v1207 = vpop.f32.mrb[0].mxu0
      %v1208 = vadd.f32 %v1079, %v1207
      %v1209 = vpop.f32.mrb[0].mxu0
      %1210 = vmatprep.mubr.f32.mxu0 0.0
      %1211 = vmatmul.mubr.f32.gmra.mrb[0].mxu0 %v1117
      %v1212 = vpop.f32.mrb[0].mxu0
      %v1213 = vadd.f32 %v1084, %v1212
      %v1214 = vpop.f32.mrb[0].mxu0
      %1215 = vmatprep.mubr.f32.mxu0 0.0
      %1216 = vmatmul.mubr.f32.gmra.mrb[0].mxu0 %v1120
      %v1217 = vpop.f32.mrb[0].mxu0
      %v1218 = vadd.f32 %v1089, %v1217
      %v1219 = vpop.f32.mrb[0].mxu0
      %1220 = vmatprep.mubr.f32.mxu0 0.0
      %1221 = vmatmul.mubr.f32.gmra.mrb[0].mxu0 %v1123
      %v1222 = vpop.f32.mrb[0].mxu0
      %v1223 = vadd.f32 %v1094, %v1222
      %v1224 = vpop.f32.mrb[0].mxu0
      %1225 = vmatprep.mubr.f32.mxu0 0.0
      %1226 = vmatmul.mubr.f32.gmra.mrb[0].mxu0 %v1126
      %v1227 = vpop.f32.mrb[0].mxu0
      %v1228 = vadd.f32 %v1099, %v1227
      %v1229 = vpop.f32.mrb[0].mxu0
      %1230 = vmatprep.mubr.f32.mxu0 0.0
      %1231 = vmatmul.mubr.f32.gmra.mrb[0].mxu0 %v1129
      %v1232 = vpop.f32.mrb[0].mxu0
      %v1233 = vadd.f32 %v1104, %v1232
      %v1234 = vpop.f32.mrb[0].mxu0
      %1235 = vdwg.mxu0
      %v1236 = vld [vmem:[%s941 + $0x7] sm:$0xff]
      %v1237 = vld [vmem:[%s941 + $0x1f] sm:$0xff]
      %v1238 = vld [vmem:[%s941 + $0x37] sm:$0xff]
      %v1239 = vld [vmem:[%s941 + $0x4f] sm:$0xff]
      %v1240 = vld [vmem:[%s941 + $0x67] sm:$0xff]
      %v1241 = vld [vmem:[%s941 + $0x7f] sm:$0xff]
      %v1242 = vld [vmem:[%s941 + $0x97] sm:$0xff]
      %v1243 = vld [vmem:[%s941 + $0xaf] sm:$0xff]
      %s1244 = scalar_lea.vmem %s2, 144
      %v1245 = vld [vmem:[%s1244] sm:$0xff]
      %v1246 = vld [vmem:[%s1244 + $0x8] sm:$0xff]
      %v1247 = vld [vmem:[%s1244 + $0x10] sm:$0xff]
      %v1248 = vld [vmem:[%s1244 + $0x18] sm:$0xff]
      %v1249 = vld [vmem:[%s1244 + $0x20] sm:$0xff]
      %v1250 = vld [vmem:[%s1244 + $0x28] sm:$0xff]
      %v1251 = vld [vmem:[%s1244 + $0x30] sm:$0xff]
      %v1252 = vld [vmem:[%s1244 + $0x38] sm:$0xff]
      %v1253 = vld [vmem:[%s1244 + $0x40] sm:$0xff]
      %v1255 = vsel %vm977, %v1236, 0
      %v1258 = vsel %vm977, %v1237, 0
      %v1261 = vsel %vm977, %v1238, 0
      %v1264 = vsel %vm977, %v1239, 0
      %v1267 = vsel %vm977, %v1240, 0
      %v1270 = vsel %vm977, %v1241, 0
      %v1273 = vsel %vm977, %v1242, 0
      %v1276 = vsel %vm977, %v1243, 0
      %1278 = vmatprep.subr.mxu0 0.0
      %1279 = vmatpush1.msra.mxu0 %v1245
      %1280 = vmatprep.subr.mxu0 0.0
      %1281 = vmatpush1.msra.mxu0 %v1246
      %1282 = vmatprep.subr.mxu0 0.0
      %1283 = vmatpush1.msra.mxu0 %v1247
      %1284 = vmatprep.subr.mxu0 0.0
      %1285 = vmatpush1.msra.mxu0 %v1248
      %1286 = vmatprep.subr.mxu0 0.0
      %1287 = vmatpush1.msra.mxu0 %v1249
      %1288 = vmatprep.subr.mxu0 0.0
      %1289 = vmatpush1.msra.mxu0 %v1250
      %1290 = vmatprep.subr.mxu0 0.0
      %1291 = vmatpush1.msra.mxu0 %v1251
      %1292 = vmatprep.subr.mxu0 0.0
      %1293 = vmatpush1.msra.mxu0 %v1252
      %1294 = vmatprep.subr.mxu0 0.0
      %1295 = vmatpush1.msra.mxu0 %v1253
      %1296 = vmatprep.subr.mxu0 0.0
      %1297 = vmatpush1.msra.mxu0 0.0
      %1298 = vmatprep.subr.mxu0 0.0
      %1299 = vmatpush1.msra.mxu0 0.0
      %1300 = vmatprep.subr.mxu0 0.0
      %1301 = vmatpush1.msra.mxu0 0.0
      %1302 = vmatprep.subr.mxu0 0.0
      %1303 = vmatpush1.msra.mxu0 0.0
      %1304 = vmatprep.subr.mxu0 0.0
      %1305 = vmatpush1.msra.mxu0 0.0
      %1306 = vmatprep.subr.mxu0 0.0
      %1307 = vmatpush1.msra.mxu0 0.0
      %1308 = vmatprep.subr.mxu0 0.0
      %1309 = vmatpush1.msra.mxu0 0.0
      %1310 = vmatprep.subr.mxu0 0.0
      %1311 = vmatpush1.msra.mxu0 0.0
      %1312 = vmatprep.subr.mxu0 0.0
      %1313 = vmatpush1.msra.mxu0 0.0
      %1314 = vmatprep.subr.mxu0 0.0
      %1315 = vmatpush1.msra.mxu0 0.0
      %1316 = vmatprep.subr.mxu0 0.0
      %1317 = vmatpush1.msra.mxu0 0.0
      %1318 = vmatprep.subr.mxu0 0.0
      %1319 = vmatpush1.msra.mxu0 0.0
      %1320 = vmatprep.subr.mxu0 0.0
      %1321 = vmatpush1.msra.mxu0 0.0
      %1322 = vmatprep.subr.mxu0 0.0
      %1323 = vmatpush1.msra.mxu0 0.0
      %1324 = vmatprep.subr.mxu0 0.0
      %1325 = vmatpush1.msra.mxu0 0.0
      %1326 = vmatprep.subr.mxu0 0.0
      %1327 = vmatpush1.msra.mxu0 0.0
      %1328 = vmatprep.subr.mxu0 0.0
      %1329 = vmatpush1.msra.mxu0 0.0
      %1330 = vmatprep.subr.mxu0 0.0
      %1331 = vmatpush1.msra.mxu0 0.0
      %1332 = vmatprep.subr.mxu0 0.0
      %1333 = vmatpush1.msra.mxu0 0.0
      %1334 = vmatprep.subr.mxu0 0.0
      %1335 = vmatpush1.msra.mxu0 0.0
      %1336 = vmatprep.subr.mxu0 0.0
      %1337 = vmatpush1.msra.mxu0 0.0
      %1338 = vmatprep.subr.mxu0 0.0
      %1339 = vmatpush1.msra.mxu0 0.0
      %1340 = vmatprep.subr.mxu0 0.0
      %1341 = vmatpush1.msra.mxu0 0.0
      %1342 = vmatprep.mubr.f32.mxu0 0.0
      %1343 = vmatmul.mubr.f32.gmra.mrb[0].mxu0 %v1255
      %v1344 = vpop.f32.mrb[0].mxu0
      %v1345 = vadd.f32 0.0, %v1344
      %v1346 = vpop.f32.mrb[0].mxu0
      %1347 = vmatprep.mubr.f32.mxu0 0.0
      %1348 = vmatmul.mubr.f32.gmra.mrb[0].mxu0 %v1258
      %v1349 = vpop.f32.mrb[0].mxu0
      %v1350 = vadd.f32 0.0, %v1349
      %v1351 = vpop.f32.mrb[0].mxu0
      %1352 = vmatprep.mubr.f32.mxu0 0.0
      %1353 = vmatmul.mubr.f32.gmra.mrb[0].mxu0 %v1261
      %v1354 = vpop.f32.mrb[0].mxu0
      %v1355 = vadd.f32 0.0, %v1354
      %v1356 = vpop.f32.mrb[0].mxu0
      %1357 = vmatprep.mubr.f32.mxu0 0.0
      %1358 = vmatmul.mubr.f32.gmra.mrb[0].mxu0 %v1264
      %v1359 = vpop.f32.mrb[0].mxu0
      %v1360 = vadd.f32 0.0, %v1359
      %v1361 = vpop.f32.mrb[0].mxu0
      %1362 = vmatprep.mubr.f32.mxu0 0.0
      %1363 = vmatmul.mubr.f32.gmra.mrb[0].mxu0 %v1267
      %v1364 = vpop.f32.mrb[0].mxu0
      %v1365 = vadd.f32 0.0, %v1364
      %v1366 = vpop.f32.mrb[0].mxu0
      %1367 = vmatprep.mubr.f32.mxu0 0.0
      %1368 = vmatmul.mubr.f32.gmra.mrb[0].mxu0 %v1270
      %v1369 = vpop.f32.mrb[0].mxu0
      %v1370 = vadd.f32 0.0, %v1369
      %v1371 = vpop.f32.mrb[0].mxu0
      %1372 = vmatprep.mubr.f32.mxu0 0.0
      %1373 = vmatmul.mubr.f32.gmra.mrb[0].mxu0 %v1273
      %v1374 = vpop.f32.mrb[0].mxu0
      %v1375 = vadd.f32 0.0, %v1374
      %v1376 = vpop.f32.mrb[0].mxu0
      %1377 = vmatprep.mubr.f32.mxu0 0.0
      %1378 = vmatmul.mubr.f32.gmra.mrb[0].mxu0 %v1276
      %v1379 = vpop.f32.mrb[0].mxu0
      %v1380 = vadd.f32 0.0, %v1379
      %v1381 = vpop.f32.mrb[0].mxu0
      %1382 = vdwg.mxu0
      %v1383 = vadd.f32 %v1198, %v1345
      %v1384 = vadd.f32 %v1203, %v1350
      %v1385 = vadd.f32 %v1208, %v1355
      %v1386 = vadd.f32 %v1213, %v1360
      %v1387 = vadd.f32 %v1218, %v1365
      %v1388 = vadd.f32 %v1223, %v1370
      %v1389 = vadd.f32 %v1228, %v1375
      %v1390 = vadd.f32 %v1233, %v1380
      %s1391 = scalar_lea.vmem %s266, 120
      %v1392 = vld [vmem:[%s1391 + $0x3] sm:$0xff]
      %v1393 = vld [vmem:[%s1391 + $0x1b] sm:$0xff]
      %v1394 = vld [vmem:[%s1391 + $0x33] sm:$0xff]
      %v1395 = vld [vmem:[%s1391 + $0x4b] sm:$0xff]
      %v1396 = vld [vmem:[%s1391 + $0x63] sm:$0xff]
      %v1397 = vld [vmem:[%s1391 + $0x7b] sm:$0xff]
      %v1398 = vld [vmem:[%s1391 + $0x93] sm:$0xff]
      %v1399 = vld [vmem:[%s1391 + $0xab] sm:$0xff]
      %s1400 = scalar_lea.vmem %s2, 216
      %v1401 = vld [vmem:[%s1400] sm:$0xff]
      %v1402 = vld [vmem:[%s1400 + $0x8] sm:$0xff]
      %v1403 = vld [vmem:[%s1400 + $0x10] sm:$0xff]
      %v1404 = vld [vmem:[%s1400 + $0x18] sm:$0xff]
      %v1405 = vld [vmem:[%s1400 + $0x20] sm:$0xff]
      %v1406 = vld [vmem:[%s1400 + $0x28] sm:$0xff]
      %v1407 = vld [vmem:[%s1400 + $0x30] sm:$0xff]
      %v1408 = vld [vmem:[%s1400 + $0x38] sm:$0xff]
      %v1409 = vld [vmem:[%s1400 + $0x40] sm:$0xff]
      %v1411 = vsel %vm977, %v1392, 0
      %v1414 = vsel %vm977, %v1393, 0
      %v1417 = vsel %vm977, %v1394, 0
      %v1420 = vsel %vm977, %v1395, 0
      %v1423 = vsel %vm977, %v1396, 0
      %v1426 = vsel %vm977, %v1397, 0
      %v1429 = vsel %vm977, %v1398, 0
      %v1432 = vsel %vm977, %v1399, 0
      %1434 = vmatprep.subr.mxu0 0.0
      %1435 = vmatpush1.msra.mxu0 %v1401
      %1436 = vmatprep.subr.mxu0 0.0
      %1437 = vmatpush1.msra.mxu0 %v1402
      %1438 = vmatprep.subr.mxu0 0.0
      %1439 = vmatpush1.msra.mxu0 %v1403
      %1440 = vmatprep.subr.mxu0 0.0
      %1441 = vmatpush1.msra.mxu0 %v1404
      %1442 = vmatprep.subr.mxu0 0.0
      %1443 = vmatpush1.msra.mxu0 %v1405
      %1444 = vmatprep.subr.mxu0 0.0
      %1445 = vmatpush1.msra.mxu0 %v1406
      %1446 = vmatprep.subr.mxu0 0.0
      %1447 = vmatpush1.msra.mxu0 %v1407
      %1448 = vmatprep.subr.mxu0 0.0
      %1449 = vmatpush1.msra.mxu0 %v1408
      %1450 = vmatprep.subr.mxu0 0.0
      %1451 = vmatpush1.msra.mxu0 %v1409
      %1452 = vmatprep.subr.mxu0 0.0
      %1453 = vmatpush1.msra.mxu0 0.0
      %1454 = vmatprep.subr.mxu0 0.0
      %1455 = vmatpush1.msra.mxu0 0.0
      %1456 = vmatprep.subr.mxu0 0.0
      %1457 = vmatpush1.msra.mxu0 0.0
      %1458 = vmatprep.subr.mxu0 0.0
      %1459 = vmatpush1.msra.mxu0 0.0
      %1460 = vmatprep.subr.mxu0 0.0
      %1461 = vmatpush1.msra.mxu0 0.0
      %1462 = vmatprep.subr.mxu0 0.0
      %1463 = vmatpush1.msra.mxu0 0.0
      %1464 = vmatprep.subr.mxu0 0.0
      %1465 = vmatpush1.msra.mxu0 0.0
      %1466 = vmatprep.subr.mxu0 0.0
      %1467 = vmatpush1.msra.mxu0 0.0
      %1468 = vmatprep.subr.mxu0 0.0
      %1469 = vmatpush1.msra.mxu0 0.0
      %1470 = vmatprep.subr.mxu0 0.0
      %1471 = vmatpush1.msra.mxu0 0.0
      %1472 = vmatprep.subr.mxu0 0.0
      %1473 = vmatpush1.msra.mxu0 0.0
      %1474 = vmatprep.subr.mxu0 0.0
      %1475 = vmatpush1.msra.mxu0 0.0
      %1476 = vmatprep.subr.mxu0 0.0
      %1477 = vmatpush1.msra.mxu0 0.0
      %1478 = vmatprep.subr.mxu0 0.0
      %1479 = vmatpush1.msra.mxu0 0.0
      %1480 = vmatprep.subr.mxu0 0.0
      %1481 = vmatpush1.msra.mxu0 0.0
      %1482 = vmatprep.subr.mxu0 0.0
      %1483 = vmatpush1.msra.mxu0 0.0
      %1484 = vmatprep.subr.mxu0 0.0
      %1485 = vmatpush1.msra.mxu0 0.0
      %1486 = vmatprep.subr.mxu0 0.0
      %1487 = vmatpush1.msra.mxu0 0.0
      %1488 = vmatprep.subr.mxu0 0.0
      %1489 = vmatpush1.msra.mxu0 0.0
      %1490 = vmatprep.subr.mxu0 0.0
      %1491 = vmatpush1.msra.mxu0 0.0
      %1492 = vmatprep.subr.mxu0 0.0
      %1493 = vmatpush1.msra.mxu0 0.0
      %1494 = vmatprep.subr.mxu0 0.0
      %1495 = vmatpush1.msra.mxu0 0.0
      %1496 = vmatprep.subr.mxu0 0.0
      %1497 = vmatpush1.msra.mxu0 0.0
      %1498 = vmatprep.mubr.f32.mxu0 0.0
      %1499 = vmatmul.mubr.f32.gmra.mrb[0].mxu0 %v1411
      %v1500 = vpop.f32.mrb[0].mxu0
      %v1501 = vadd.f32 0.0, %v1500
      %v1502 = vpop.f32.mrb[0].mxu0
      %1503 = vmatprep.mubr.f32.mxu0 0.0
      %1504 = vmatmul.mubr.f32.gmra.mrb[0].mxu0 %v1414
      %v1505 = vpop.f32.mrb[0].mxu0
      %v1506 = vadd.f32 0.0, %v1505
      %v1507 = vpop.f32.mrb[0].mxu0
      %1508 = vmatprep.mubr.f32.mxu0 0.0
      %1509 = vmatmul.mubr.f32.gmra.mrb[0].mxu0 %v1417
      %v1510 = vpop.f32.mrb[0].mxu0
      %v1511 = vadd.f32 0.0, %v1510
      %v1512 = vpop.f32.mrb[0].mxu0
      %1513 = vmatprep.mubr.f32.mxu0 0.0
      %1514 = vmatmul.mubr.f32.gmra.mrb[0].mxu0 %v1420
      %v1515 = vpop.f32.mrb[0].mxu0
      %v1516 = vadd.f32 0.0, %v1515
      %v1517 = vpop.f32.mrb[0].mxu0
      %1518 = vmatprep.mubr.f32.mxu0 0.0
      %1519 = vmatmul.mubr.f32.gmra.mrb[0].mxu0 %v1423
      %v1520 = vpop.f32.mrb[0].mxu0
      %v1521 = vadd.f32 0.0, %v1520
      %v1522 = vpop.f32.mrb[0].mxu0
      %1523 = vmatprep.mubr.f32.mxu0 0.0
      %1524 = vmatmul.mubr.f32.gmra.mrb[0].mxu0 %v1426
      %v1525 = vpop.f32.mrb[0].mxu0
      %v1526 = vadd.f32 0.0, %v1525
      %v1527 = vpop.f32.mrb[0].mxu0
      %1528 = vmatprep.mubr.f32.mxu0 0.0
      %1529 = vmatmul.mubr.f32.gmra.mrb[0].mxu0 %v1429
      %v1530 = vpop.f32.mrb[0].mxu0
      %v1531 = vadd.f32 0.0, %v1530
      %v1532 = vpop.f32.mrb[0].mxu0
      %1533 = vmatprep.mubr.f32.mxu0 0.0
      %1534 = vmatmul.mubr.f32.gmra.mrb[0].mxu0 %v1432
      %v1535 = vpop.f32.mrb[0].mxu0
      %v1536 = vadd.f32 0.0, %v1535
      %v1537 = vpop.f32.mrb[0].mxu0
      %1538 = vdwg.mxu0
      %v1539 = vadd.f32 %v1383, %v1501
      %v1540 = vadd.f32 %v1384, %v1506
      %v1541 = vadd.f32 %v1385, %v1511
      %v1542 = vadd.f32 %v1386, %v1516
      %v1543 = vadd.f32 %v1387, %v1521
      %v1544 = vadd.f32 %v1388, %v1526
      %v1545 = vadd.f32 %v1389, %v1531
      %v1546 = vadd.f32 %v1390, %v1536
      %v1547 = vld [vmem:[%s1391 + $0x5] sm:$0xff]
      %v1548 = vld [vmem:[%s1391 + $0x1d] sm:$0xff]
      %v1549 = vld [vmem:[%s1391 + $0x35] sm:$0xff]
      %v1550 = vld [vmem:[%s1391 + $0x4d] sm:$0xff]
      %v1551 = vld [vmem:[%s1391 + $0x65] sm:$0xff]
      %v1552 = vld [vmem:[%s1391 + $0x7d] sm:$0xff]
      %v1553 = vld [vmem:[%s1391 + $0x95] sm:$0xff]
      %v1554 = vld [vmem:[%s1391 + $0xad] sm:$0xff]
      %s1555 = scalar_lea.vmem %s2, 288
      %v1556 = vld [vmem:[%s1555] sm:$0xff]
      %v1557 = vld [vmem:[%s1555 + $0x8] sm:$0xff]
      %v1558 = vld [vmem:[%s1555 + $0x10] sm:$0xff]
      %v1559 = vld [vmem:[%s1555 + $0x18] sm:$0xff]
      %v1560 = vld [vmem:[%s1555 + $0x20] sm:$0xff]
      %v1561 = vld [vmem:[%s1555 + $0x28] sm:$0xff]
      %v1562 = vld [vmem:[%s1555 + $0x30] sm:$0xff]
      %v1563 = vld [vmem:[%s1555 + $0x38] sm:$0xff]
      %v1564 = vld [vmem:[%s1555 + $0x40] sm:$0xff]
      %v1566 = vsel %vm977, %v1547, 0
      %v1569 = vsel %vm977, %v1548, 0
      %v1572 = vsel %vm977, %v1549, 0
      %v1575 = vsel %vm977, %v1550, 0
      %v1578 = vsel %vm977, %v1551, 0
      %v1581 = vsel %vm977, %v1552, 0
      %v1584 = vsel %vm977, %v1553, 0
      %v1587 = vsel %vm977, %v1554, 0
      %1589 = vmatprep.subr.mxu0 0.0
      %1590 = vmatpush1.msra.mxu0 %v1556
      %1591 = vmatprep.subr.mxu0 0.0
      %1592 = vmatpush1.msra.mxu0 %v1557
      %1593 = vmatprep.subr.mxu0 0.0
      %1594 = vmatpush1.msra.mxu0 %v1558
      %1595 = vmatprep.subr.mxu0 0.0
      %1596 = vmatpush1.msra.mxu0 %v1559
      %1597 = vmatprep.subr.mxu0 0.0
      %1598 = vmatpush1.msra.mxu0 %v1560
      %1599 = vmatprep.subr.mxu0 0.0
      %1600 = vmatpush1.msra.mxu0 %v1561
      %1601 = vmatprep.subr.mxu0 0.0
      %1602 = vmatpush1.msra.mxu0 %v1562
      %1603 = vmatprep.subr.mxu0 0.0
      %1604 = vmatpush1.msra.mxu0 %v1563
      %1605 = vmatprep.subr.mxu0 0.0
      %1606 = vmatpush1.msra.mxu0 %v1564
      %1607 = vmatprep.subr.mxu0 0.0
      %1608 = vmatpush1.msra.mxu0 0.0
      %1609 = vmatprep.subr.mxu0 0.0
      %1610 = vmatpush1.msra.mxu0 0.0
      %1611 = vmatprep.subr.mxu0 0.0
      %1612 = vmatpush1.msra.mxu0 0.0
      %1613 = vmatprep.subr.mxu0 0.0
      %1614 = vmatpush1.msra.mxu0 0.0
      %1615 = vmatprep.subr.mxu0 0.0
      %1616 = vmatpush1.msra.mxu0 0.0
      %1617 = vmatprep.subr.mxu0 0.0
      %1618 = vmatpush1.msra.mxu0 0.0
      %1619 = vmatprep.subr.mxu0 0.0
      %1620 = vmatpush1.msra.mxu0 0.0
      %1621 = vmatprep.subr.mxu0 0.0
      %1622 = vmatpush1.msra.mxu0 0.0
      %1623 = vmatprep.subr.mxu0 0.0
      %1624 = vmatpush1.msra.mxu0 0.0
      %1625 = vmatprep.subr.mxu0 0.0
      %1626 = vmatpush1.msra.mxu0 0.0
      %1627 = vmatprep.subr.mxu0 0.0
      %1628 = vmatpush1.msra.mxu0 0.0
      %1629 = vmatprep.subr.mxu0 0.0
      %1630 = vmatpush1.msra.mxu0 0.0
      %1631 = vmatprep.subr.mxu0 0.0
      %1632 = vmatpush1.msra.mxu0 0.0
      %1633 = vmatprep.subr.mxu0 0.0
      %1634 = vmatpush1.msra.mxu0 0.0
      %1635 = vmatprep.subr.mxu0 0.0
      %1636 = vmatpush1.msra.mxu0 0.0
      %1637 = vmatprep.subr.mxu0 0.0
      %1638 = vmatpush1.msra.mxu0 0.0
      %1639 = vmatprep.subr.mxu0 0.0
      %1640 = vmatpush1.msra.mxu0 0.0
      %1641 = vmatprep.subr.mxu0 0.0
      %1642 = vmatpush1.msra.mxu0 0.0
      %1643 = vmatprep.subr.mxu0 0.0
      %1644 = vmatpush1.msra.mxu0 0.0
      %1645 = vmatprep.subr.mxu0 0.0
      %1646 = vmatpush1.msra.mxu0 0.0
      %1647 = vmatprep.subr.mxu0 0.0
      %1648 = vmatpush1.msra.mxu0 0.0
      %1649 = vmatprep.subr.mxu0 0.0
      %1650 = vmatpush1.msra.mxu0 0.0
      %1651 = vmatprep.subr.mxu0 0.0
      %1652 = vmatpush1.msra.mxu0 0.0
      %1653 = vmatprep.mubr.f32.mxu0 0.0
      %1654 = vmatmul.mubr.f32.gmra.mrb[0].mxu0 %v1566
      %v1655 = vpop.f32.mrb[0].mxu0
      %v1656 = vadd.f32 0.0, %v1655
      %v1657 = vpop.f32.mrb[0].mxu0
      %1658 = vmatprep.mubr.f32.mxu0 0.0
      %1659 = vmatmul.mubr.f32.gmra.mrb[0].mxu0 %v1569
      %v1660 = vpop.f32.mrb[0].mxu0
      %v1661 = vadd.f32 0.0, %v1660
      %v1662 = vpop.f32.mrb[0].mxu0
      %1663 = vmatprep.mubr.f32.mxu0 0.0
      %1664 = vmatmul.mubr.f32.gmra.mrb[0].mxu0 %v1572
      %v1665 = vpop.f32.mrb[0].mxu0
      %v1666 = vadd.f32 0.0, %v1665
      %v1667 = vpop.f32.mrb[0].mxu0
      %1668 = vmatprep.mubr.f32.mxu0 0.0
      %1669 = vmatmul.mubr.f32.gmra.mrb[0].mxu0 %v1575
      %v1670 = vpop.f32.mrb[0].mxu0
      %v1671 = vadd.f32 0.0, %v1670
      %v1672 = vpop.f32.mrb[0].mxu0
      %1673 = vmatprep.mubr.f32.mxu0 0.0
      %1674 = vmatmul.mubr.f32.gmra.mrb[0].mxu0 %v1578
      %v1675 = vpop.f32.mrb[0].mxu0
      %v1676 = vadd.f32 0.0, %v1675
      %v1677 = vpop.f32.mrb[0].mxu0
      %1678 = vmatprep.mubr.f32.mxu0 0.0
      %1679 = vmatmul.mubr.f32.gmra.mrb[0].mxu0 %v1581
      %v1680 = vpop.f32.mrb[0].mxu0
      %v1681 = vadd.f32 0.0, %v1680
      %v1682 = vpop.f32.mrb[0].mxu0
      %1683 = vmatprep.mubr.f32.mxu0 0.0
      %1684 = vmatmul.mubr.f32.gmra.mrb[0].mxu0 %v1584
      %v1685 = vpop.f32.mrb[0].mxu0
      %v1686 = vadd.f32 0.0, %v1685
      %v1687 = vpop.f32.mrb[0].mxu0
      %1688 = vmatprep.mubr.f32.mxu0 0.0
      %1689 = vmatmul.mubr.f32.gmra.mrb[0].mxu0 %v1587
      %v1690 = vpop.f32.mrb[0].mxu0
      %v1691 = vadd.f32 0.0, %v1690
      %v1692 = vpop.f32.mrb[0].mxu0
      %1693 = vdwg.mxu0
      %v1694 = vadd.f32 %v1539, %v1656
      %v1695 = vadd.f32 %v1540, %v1661
      %v1696 = vadd.f32 %v1541, %v1666
      %v1697 = vadd.f32 %v1542, %v1671
      %v1698 = vadd.f32 %v1543, %v1676
      %v1699 = vadd.f32 %v1544, %v1681
      %v1700 = vadd.f32 %v1545, %v1686
      %v1701 = vadd.f32 %v1546, %v1691
      %v1702 = vld [vmem:[%s1391 + $0x7] sm:$0xff]
      %v1703 = vld [vmem:[%s1391 + $0x1f] sm:$0xff]
      %v1704 = vld [vmem:[%s1391 + $0x37] sm:$0xff]
      %v1705 = vld [vmem:[%s1391 + $0x4f] sm:$0xff]
      %v1706 = vld [vmem:[%s1391 + $0x67] sm:$0xff]
      %v1707 = vld [vmem:[%s1391 + $0x7f] sm:$0xff]
      %v1708 = vld [vmem:[%s1391 + $0x97] sm:$0xff]
      %v1709 = vld [vmem:[%s1391 + $0xaf] sm:$0xff]
      %s1710 = scalar_lea.vmem %s2, 360
      %v1711 = vld [vmem:[%s1710] sm:$0xff]
      %v1712 = vld [vmem:[%s1710 + $0x8] sm:$0xff]
      %v1713 = vld [vmem:[%s1710 + $0x10] sm:$0xff]
      %v1714 = vld [vmem:[%s1710 + $0x18] sm:$0xff]
      %v1715 = vld [vmem:[%s1710 + $0x20] sm:$0xff]
      %v1716 = vld [vmem:[%s1710 + $0x28] sm:$0xff]
      %v1717 = vld [vmem:[%s1710 + $0x30] sm:$0xff]
      %v1718 = vld [vmem:[%s1710 + $0x38] sm:$0xff]
      %v1719 = vld [vmem:[%s1710 + $0x40] sm:$0xff]
      %v1721 = vsel %vm977, %v1702, 0
      %v1724 = vsel %vm977, %v1703, 0
      %v1727 = vsel %vm977, %v1704, 0
      %v1730 = vsel %vm977, %v1705, 0
      %v1733 = vsel %vm977, %v1706, 0
      %v1736 = vsel %vm977, %v1707, 0
      %v1739 = vsel %vm977, %v1708, 0
      %v1742 = vsel %vm977, %v1709, 0
      %1744 = vmatprep.subr.mxu0 0.0
      %1745 = vmatpush1.msra.mxu0 %v1711
      %1746 = vmatprep.subr.mxu0 0.0
      %1747 = vmatpush1.msra.mxu0 %v1712
      %1748 = vmatprep.subr.mxu0 0.0
      %1749 = vmatpush1.msra.mxu0 %v1713
      %1750 = vmatprep.subr.mxu0 0.0
      %1751 = vmatpush1.msra.mxu0 %v1714
      %1752 = vmatprep.subr.mxu0 0.0
      %1753 = vmatpush1.msra.mxu0 %v1715
      %1754 = vmatprep.subr.mxu0 0.0
      %1755 = vmatpush1.msra.mxu0 %v1716
      %1756 = vmatprep.subr.mxu0 0.0
      %1757 = vmatpush1.msra.mxu0 %v1717
      %1758 = vmatprep.subr.mxu0 0.0
      %1759 = vmatpush1.msra.mxu0 %v1718
      %1760 = vmatprep.subr.mxu0 0.0
      %1761 = vmatpush1.msra.mxu0 %v1719
      %1762 = vmatprep.subr.mxu0 0.0
      %1763 = vmatpush1.msra.mxu0 0.0
      %1764 = vmatprep.subr.mxu0 0.0
      %1765 = vmatpush1.msra.mxu0 0.0
      %1766 = vmatprep.subr.mxu0 0.0
      %1767 = vmatpush1.msra.mxu0 0.0
      %1768 = vmatprep.subr.mxu0 0.0
      %1769 = vmatpush1.msra.mxu0 0.0
      %1770 = vmatprep.subr.mxu0 0.0
      %1771 = vmatpush1.msra.mxu0 0.0
      %1772 = vmatprep.subr.mxu0 0.0
      %1773 = vmatpush1.msra.mxu0 0.0
      %1774 = vmatprep.subr.mxu0 0.0
      %1775 = vmatpush1.msra.mxu0 0.0
      %1776 = vmatprep.subr.mxu0 0.0
      %1777 = vmatpush1.msra.mxu0 0.0
      %1778 = vmatprep.subr.mxu0 0.0
      %1779 = vmatpush1.msra.mxu0 0.0
      %1780 = vmatprep.subr.mxu0 0.0
      %1781 = vmatpush1.msra.mxu0 0.0
      %1782 = vmatprep.subr.mxu0 0.0
      %1783 = vmatpush1.msra.mxu0 0.0
      %1784 = vmatprep.subr.mxu0 0.0
      %1785 = vmatpush1.msra.mxu0 0.0
      %1786 = vmatprep.subr.mxu0 0.0
      %1787 = vmatpush1.msra.mxu0 0.0
      %1788 = vmatprep.subr.mxu0 0.0
      %1789 = vmatpush1.msra.mxu0 0.0
      %1790 = vmatprep.subr.mxu0 0.0
      %1791 = vmatpush1.msra.mxu0 0.0
      %1792 = vmatprep.subr.mxu0 0.0
      %1793 = vmatpush1.msra.mxu0 0.0
      %1794 = vmatprep.subr.mxu0 0.0
      %1795 = vmatpush1.msra.mxu0 0.0
      %1796 = vmatprep.subr.mxu0 0.0
      %1797 = vmatpush1.msra.mxu0 0.0
      %1798 = vmatprep.subr.mxu0 0.0
      %1799 = vmatpush1.msra.mxu0 0.0
      %1800 = vmatprep.subr.mxu0 0.0
      %1801 = vmatpush1.msra.mxu0 0.0
      %1802 = vmatprep.subr.mxu0 0.0
      %1803 = vmatpush1.msra.mxu0 0.0
      %1804 = vmatprep.subr.mxu0 0.0
      %1805 = vmatpush1.msra.mxu0 0.0
      %1806 = vmatprep.subr.mxu0 0.0
      %1807 = vmatpush1.msra.mxu0 0.0
      %1808 = vmatprep.mubr.f32.mxu0 0.0
      %1809 = vmatmul.mubr.f32.gmra.mrb[0].mxu0 %v1721
      %v1810 = vpop.f32.mrb[0].mxu0
      %v1811 = vadd.f32 0.0, %v1810
      %v1812 = vpop.f32.mrb[0].mxu0
      %1813 = vmatprep.mubr.f32.mxu0 0.0
      %1814 = vmatmul.mubr.f32.gmra.mrb[0].mxu0 %v1724
      %v1815 = vpop.f32.mrb[0].mxu0
      %v1816 = vadd.f32 0.0, %v1815
      %v1817 = vpop.f32.mrb[0].mxu0
      %1818 = vmatprep.mubr.f32.mxu0 0.0
      %1819 = vmatmul.mubr.f32.gmra.mrb[0].mxu0 %v1727
      %v1820 = vpop.f32.mrb[0].mxu0
      %v1821 = vadd.f32 0.0, %v1820
      %v1822 = vpop.f32.mrb[0].mxu0
      %1823 = vmatprep.mubr.f32.mxu0 0.0
      %1824 = vmatmul.mubr.f32.gmra.mrb[0].mxu0 %v1730
      %v1825 = vpop.f32.mrb[0].mxu0
      %v1826 = vadd.f32 0.0, %v1825
      %v1827 = vpop.f32.mrb[0].mxu0
      %1828 = vmatprep.mubr.f32.mxu0 0.0
      %1829 = vmatmul.mubr.f32.gmra.mrb[0].mxu0 %v1733
      %v1830 = vpop.f32.mrb[0].mxu0
      %v1831 = vadd.f32 0.0, %v1830
      %v1832 = vpop.f32.mrb[0].mxu0
      %1833 = vmatprep.mubr.f32.mxu0 0.0
      %1834 = vmatmul.mubr.f32.gmra.mrb[0].mxu0 %v1736
      %v1835 = vpop.f32.mrb[0].mxu0
      %v1836 = vadd.f32 0.0, %v1835
      %v1837 = vpop.f32.mrb[0].mxu0
      %1838 = vmatprep.mubr.f32.mxu0 0.0
      %1839 = vmatmul.mubr.f32.gmra.mrb[0].mxu0 %v1739
      %v1840 = vpop.f32.mrb[0].mxu0
      %v1841 = vadd.f32 0.0, %v1840
      %v1842 = vpop.f32.mrb[0].mxu0
      %1843 = vmatprep.mubr.f32.mxu0 0.0
      %1844 = vmatmul.mubr.f32.gmra.mrb[0].mxu0 %v1742
      %v1845 = vpop.f32.mrb[0].mxu0
      %v1846 = vadd.f32 0.0, %v1845
      %v1847 = vpop.f32.mrb[0].mxu0
      %1848 = vdwg.mxu0
      %v1849 = vadd.f32 %v1694, %v1811
      %v1850 = vadd.f32 %v1695, %v1816
      %v1851 = vadd.f32 %v1696, %v1821
      %v1852 = vadd.f32 %v1697, %v1826
      %v1853 = vadd.f32 %v1698, %v1831
      %v1854 = vadd.f32 %v1699, %v1836
      %v1855 = vadd.f32 %v1700, %v1841
      %v1856 = vadd.f32 %v1701, %v1846
      %s1857 = scalar_lea.vmem %s266, 168
      %v1858 = vld [vmem:[%s1857 + $0x3] sm:$0xff]
      %v1859 = vld [vmem:[%s1857 + $0x1b] sm:$0xff]
      %v1860 = vld [vmem:[%s1857 + $0x33] sm:$0xff]
      %v1861 = vld [vmem:[%s1857 + $0x4b] sm:$0xff]
      %v1862 = vld [vmem:[%s1857 + $0x63] sm:$0xff]
      %v1863 = vld [vmem:[%s1857 + $0x7b] sm:$0xff]
      %v1864 = vld [vmem:[%s1857 + $0x93] sm:$0xff]
      %v1865 = vld [vmem:[%s1857 + $0xab] sm:$0xff]
      %s1866 = scalar_lea.vmem %s2, 432
      %v1867 = vld [vmem:[%s1866] sm:$0xff]
      %v1868 = vld [vmem:[%s1866 + $0x8] sm:$0xff]
      %v1869 = vld [vmem:[%s1866 + $0x10] sm:$0xff]
      %v1870 = vld [vmem:[%s1866 + $0x18] sm:$0xff]
      %v1871 = vld [vmem:[%s1866 + $0x20] sm:$0xff]
      %v1872 = vld [vmem:[%s1866 + $0x28] sm:$0xff]
      %v1873 = vld [vmem:[%s1866 + $0x30] sm:$0xff]
      %v1874 = vld [vmem:[%s1866 + $0x38] sm:$0xff]
      %v1875 = vld [vmem:[%s1866 + $0x40] sm:$0xff]
      %v1877 = vsel %vm977, %v1858, 0
      %v1880 = vsel %vm977, %v1859, 0
      %v1883 = vsel %vm977, %v1860, 0
      %v1886 = vsel %vm977, %v1861, 0
      %v1889 = vsel %vm977, %v1862, 0
      %v1892 = vsel %vm977, %v1863, 0
      %v1895 = vsel %vm977, %v1864, 0
      %v1898 = vsel %vm977, %v1865, 0
      %1900 = vmatprep.subr.mxu0 0.0
      %1901 = vmatpush1.msra.mxu0 %v1867
      %1902 = vmatprep.subr.mxu0 0.0
      %1903 = vmatpush1.msra.mxu0 %v1868
      %1904 = vmatprep.subr.mxu0 0.0
      %1905 = vmatpush1.msra.mxu0 %v1869
      %1906 = vmatprep.subr.mxu0 0.0
      %1907 = vmatpush1.msra.mxu0 %v1870
      %1908 = vmatprep.subr.mxu0 0.0
      %1909 = vmatpush1.msra.mxu0 %v1871
      %1910 = vmatprep.subr.mxu0 0.0
      %1911 = vmatpush1.msra.mxu0 %v1872
      %1912 = vmatprep.subr.mxu0 0.0
      %1913 = vmatpush1.msra.mxu0 %v1873
      %1914 = vmatprep.subr.mxu0 0.0
      %1915 = vmatpush1.msra.mxu0 %v1874
      %1916 = vmatprep.subr.mxu0 0.0
      %1917 = vmatpush1.msra.mxu0 %v1875
      %1918 = vmatprep.subr.mxu0 0.0
      %1919 = vmatpush1.msra.mxu0 0.0
      %1920 = vmatprep.subr.mxu0 0.0
      %1921 = vmatpush1.msra.mxu0 0.0
      %1922 = vmatprep.subr.mxu0 0.0
      %1923 = vmatpush1.msra.mxu0 0.0
      %1924 = vmatprep.subr.mxu0 0.0
      %1925 = vmatpush1.msra.mxu0 0.0
      %1926 = vmatprep.subr.mxu0 0.0
      %1927 = vmatpush1.msra.mxu0 0.0
      %1928 = vmatprep.subr.mxu0 0.0
      %1929 = vmatpush1.msra.mxu0 0.0
      %1930 = vmatprep.subr.mxu0 0.0
      %1931 = vmatpush1.msra.mxu0 0.0
      %1932 = vmatprep.subr.mxu0 0.0
      %1933 = vmatpush1.msra.mxu0 0.0
      %1934 = vmatprep.subr.mxu0 0.0
      %1935 = vmatpush1.msra.mxu0 0.0
      %1936 = vmatprep.subr.mxu0 0.0
      %1937 = vmatpush1.msra.mxu0 0.0
      %1938 = vmatprep.subr.mxu0 0.0
      %1939 = vmatpush1.msra.mxu0 0.0
      %1940 = vmatprep.subr.mxu0 0.0
      %1941 = vmatpush1.msra.mxu0 0.0
      %1942 = vmatprep.subr.mxu0 0.0
      %1943 = vmatpush1.msra.mxu0 0.0
      %1944 = vmatprep.subr.mxu0 0.0
      %1945 = vmatpush1.msra.mxu0 0.0
      %1946 = vmatprep.subr.mxu0 0.0
      %1947 = vmatpush1.msra.mxu0 0.0
      %1948 = vmatprep.subr.mxu0 0.0
      %1949 = vmatpush1.msra.mxu0 0.0
      %1950 = vmatprep.subr.mxu0 0.0
      %1951 = vmatpush1.msra.mxu0 0.0
      %1952 = vmatprep.subr.mxu0 0.0
      %1953 = vmatpush1.msra.mxu0 0.0
      %1954 = vmatprep.subr.mxu0 0.0
      %1955 = vmatpush1.msra.mxu0 0.0
      %1956 = vmatprep.subr.mxu0 0.0
      %1957 = vmatpush1.msra.mxu0 0.0
      %1958 = vmatprep.subr.mxu0 0.0
      %1959 = vmatpush1.msra.mxu0 0.0
      %1960 = vmatprep.subr.mxu0 0.0
      %1961 = vmatpush1.msra.mxu0 0.0
      %1962 = vmatprep.subr.mxu0 0.0
      %1963 = vmatpush1.msra.mxu0 0.0
      %1964 = vmatprep.mubr.f32.mxu0 0.0
      %1965 = vmatmul.mubr.f32.gmra.mrb[0].mxu0 %v1877
      %v1966 = vpop.f32.mrb[0].mxu0
      %v1967 = vadd.f32 0.0, %v1966
      %v1968 = vpop.f32.mrb[0].mxu0
      %1969 = vmatprep.mubr.f32.mxu0 0.0
      %1970 = vmatmul.mubr.f32.gmra.mrb[0].mxu0 %v1880
      %v1971 = vpop.f32.mrb[0].mxu0
      %v1972 = vadd.f32 0.0, %v1971
      %v1973 = vpop.f32.mrb[0].mxu0
      %1974 = vmatprep.mubr.f32.mxu0 0.0
      %1975 = vmatmul.mubr.f32.gmra.mrb[0].mxu0 %v1883
      %v1976 = vpop.f32.mrb[0].mxu0
      %v1977 = vadd.f32 0.0, %v1976
      %v1978 = vpop.f32.mrb[0].mxu0
      %1979 = vmatprep.mubr.f32.mxu0 0.0
      %1980 = vmatmul.mubr.f32.gmra.mrb[0].mxu0 %v1886
      %v1981 = vpop.f32.mrb[0].mxu0
      %v1982 = vadd.f32 0.0, %v1981
      %v1983 = vpop.f32.mrb[0].mxu0
      %1984 = vmatprep.mubr.f32.mxu0 0.0
      %1985 = vmatmul.mubr.f32.gmra.mrb[0].mxu0 %v1889
      %v1986 = vpop.f32.mrb[0].mxu0
      %v1987 = vadd.f32 0.0, %v1986
      %v1988 = vpop.f32.mrb[0].mxu0
      %1989 = vmatprep.mubr.f32.mxu0 0.0
      %1990 = vmatmul.mubr.f32.gmra.mrb[0].mxu0 %v1892
      %v1991 = vpop.f32.mrb[0].mxu0
      %v1992 = vadd.f32 0.0, %v1991
      %v1993 = vpop.f32.mrb[0].mxu0
      %1994 = vmatprep.mubr.f32.mxu0 0.0
      %1995 = vmatmul.mubr.f32.gmra.mrb[0].mxu0 %v1895
      %v1996 = vpop.f32.mrb[0].mxu0
      %v1997 = vadd.f32 0.0, %v1996
      %v1998 = vpop.f32.mrb[0].mxu0
      %1999 = vmatprep.mubr.f32.mxu0 0.0
      %2000 = vmatmul.mubr.f32.gmra.mrb[0].mxu0 %v1898
      %v2001 = vpop.f32.mrb[0].mxu0
      %v2002 = vadd.f32 0.0, %v2001
      %v2003 = vpop.f32.mrb[0].mxu0
      %2004 = vdwg.mxu0
      %v2005 = vadd.f32 %v1849, %v1967
      %v2006 = vadd.f32 %v1850, %v1972
      %v2007 = vadd.f32 %v1851, %v1977
      %v2008 = vadd.f32 %v1852, %v1982
      %v2009 = vadd.f32 %v1853, %v1987
      %v2010 = vadd.f32 %v1854, %v1992
      %v2011 = vadd.f32 %v1855, %v1997
      %v2012 = vadd.f32 %v1856, %v2002
      %v2013 = vld [vmem:[%s1857 + $0x5] sm:$0xff]
      %v2014 = vld [vmem:[%s1857 + $0x1d] sm:$0xff]
      %v2015 = vld [vmem:[%s1857 + $0x35] sm:$0xff]
      %v2016 = vld [vmem:[%s1857 + $0x4d] sm:$0xff]
      %v2017 = vld [vmem:[%s1857 + $0x65] sm:$0xff]
      %v2018 = vld [vmem:[%s1857 + $0x7d] sm:$0xff]
      %v2019 = vld [vmem:[%s1857 + $0x95] sm:$0xff]
      %v2020 = vld [vmem:[%s1857 + $0xad] sm:$0xff]
      %s2021 = scalar_lea.vmem %s2, 504
      %v2022 = vld [vmem:[%s2021] sm:$0xff]
      %v2023 = vld [vmem:[%s2021 + $0x8] sm:$0xff]
      %v2024 = vld [vmem:[%s2021 + $0x10] sm:$0xff]
      %v2025 = vld [vmem:[%s2021 + $0x18] sm:$0xff]
      %v2026 = vld [vmem:[%s2021 + $0x20] sm:$0xff]
      %v2027 = vld [vmem:[%s2021 + $0x28] sm:$0xff]
      %v2028 = vld [vmem:[%s2021 + $0x30] sm:$0xff]
      %v2029 = vld [vmem:[%s2021 + $0x38] sm:$0xff]
      %v2030 = vld [vmem:[%s2021 + $0x40] sm:$0xff]
      %v2032 = vsel %vm977, %v2013, 0
      %v2035 = vsel %vm977, %v2014, 0
      %v2038 = vsel %vm977, %v2015, 0
      %v2041 = vsel %vm977, %v2016, 0
      %v2044 = vsel %vm977, %v2017, 0
      %v2047 = vsel %vm977, %v2018, 0
      %v2050 = vsel %vm977, %v2019, 0
      %v2053 = vsel %vm977, %v2020, 0
      %2055 = vmatprep.subr.mxu0 0.0
      %2056 = vmatpush1.msra.mxu0 %v2022
      %2057 = vmatprep.subr.mxu0 0.0
      %2058 = vmatpush1.msra.mxu0 %v2023
      %2059 = vmatprep.subr.mxu0 0.0
      %2060 = vmatpush1.msra.mxu0 %v2024
      %2061 = vmatprep.subr.mxu0 0.0
      %2062 = vmatpush1.msra.mxu0 %v2025
      %2063 = vmatprep.subr.mxu0 0.0
      %2064 = vmatpush1.msra.mxu0 %v2026
      %2065 = vmatprep.subr.mxu0 0.0
      %2066 = vmatpush1.msra.mxu0 %v2027
      %2067 = vmatprep.subr.mxu0 0.0
      %2068 = vmatpush1.msra.mxu0 %v2028
      %2069 = vmatprep.subr.mxu0 0.0
      %2070 = vmatpush1.msra.mxu0 %v2029
      %2071 = vmatprep.subr.mxu0 0.0
      %2072 = vmatpush1.msra.mxu0 %v2030
      %2073 = vmatprep.subr.mxu0 0.0
      %2074 = vmatpush1.msra.mxu0 0.0
      %2075 = vmatprep.subr.mxu0 0.0
      %2076 = vmatpush1.msra.mxu0 0.0
      %2077 = vmatprep.subr.mxu0 0.0
      %2078 = vmatpush1.msra.mxu0 0.0
      %2079 = vmatprep.subr.mxu0 0.0
      %2080 = vmatpush1.msra.mxu0 0.0
      %2081 = vmatprep.subr.mxu0 0.0
      %2082 = vmatpush1.msra.mxu0 0.0
      %2083 = vmatprep.subr.mxu0 0.0
      %2084 = vmatpush1.msra.mxu0 0.0
      %2085 = vmatprep.subr.mxu0 0.0
      %2086 = vmatpush1.msra.mxu0 0.0
      %2087 = vmatprep.subr.mxu0 0.0
      %2088 = vmatpush1.msra.mxu0 0.0
      %2089 = vmatprep.subr.mxu0 0.0
      %2090 = vmatpush1.msra.mxu0 0.0
      %2091 = vmatprep.subr.mxu0 0.0
      %2092 = vmatpush1.msra.mxu0 0.0
      %2093 = vmatprep.subr.mxu0 0.0
      %2094 = vmatpush1.msra.mxu0 0.0
      %2095 = vmatprep.subr.mxu0 0.0
      %2096 = vmatpush1.msra.mxu0 0.0
      %2097 = vmatprep.subr.mxu0 0.0
      %2098 = vmatpush1.msra.mxu0 0.0
      %2099 = vmatprep.subr.mxu0 0.0
      %2100 = vmatpush1.msra.mxu0 0.0
      %2101 = vmatprep.subr.mxu0 0.0
      %2102 = vmatpush1.msra.mxu0 0.0
      %2103 = vmatprep.subr.mxu0 0.0
      %2104 = vmatpush1.msra.mxu0 0.0
      %2105 = vmatprep.subr.mxu0 0.0
      %2106 = vmatpush1.msra.mxu0 0.0
      %2107 = vmatprep.subr.mxu0 0.0
      %2108 = vmatpush1.msra.mxu0 0.0
      %2109 = vmatprep.subr.mxu0 0.0
      %2110 = vmatpush1.msra.mxu0 0.0
      %2111 = vmatprep.subr.mxu0 0.0
      %2112 = vmatpush1.msra.mxu0 0.0
      %2113 = vmatprep.subr.mxu0 0.0
      %2114 = vmatpush1.msra.mxu0 0.0
      %2115 = vmatprep.subr.mxu0 0.0
      %2116 = vmatpush1.msra.mxu0 0.0
      %2117 = vmatprep.subr.mxu0 0.0
      %2118 = vmatpush1.msra.mxu0 0.0
      %2119 = vmatprep.mubr.f32.mxu0 0.0
      %2120 = vmatmul.mubr.f32.gmra.mrb[0].mxu0 %v2032
      %v2121 = vpop.f32.mrb[0].mxu0
      %v2122 = vadd.f32 0.0, %v2121
      %v2123 = vpop.f32.mrb[0].mxu0
      %2124 = vmatprep.mubr.f32.mxu0 0.0
      %2125 = vmatmul.mubr.f32.gmra.mrb[0].mxu0 %v2035
      %v2126 = vpop.f32.mrb[0].mxu0
      %v2127 = vadd.f32 0.0, %v2126
      %v2128 = vpop.f32.mrb[0].mxu0
      %2129 = vmatprep.mubr.f32.mxu0 0.0
      %2130 = vmatmul.mubr.f32.gmra.mrb[0].mxu0 %v2038
      %v2131 = vpop.f32.mrb[0].mxu0
      %v2132 = vadd.f32 0.0, %v2131
      %v2133 = vpop.f32.mrb[0].mxu0
      %2134 = vmatprep.mubr.f32.mxu0 0.0
      %2135 = vmatmul.mubr.f32.gmra.mrb[0].mxu0 %v2041
      %v2136 = vpop.f32.mrb[0].mxu0
      %v2137 = vadd.f32 0.0, %v2136
      %v2138 = vpop.f32.mrb[0].mxu0
      %2139 = vmatprep.mubr.f32.mxu0 0.0
      %2140 = vmatmul.mubr.f32.gmra.mrb[0].mxu0 %v2044
      %v2141 = vpop.f32.mrb[0].mxu0
      %v2142 = vadd.f32 0.0, %v2141
      %v2143 = vpop.f32.mrb[0].mxu0
      %2144 = vmatprep.mubr.f32.mxu0 0.0
      %2145 = vmatmul.mubr.f32.gmra.mrb[0].mxu0 %v2047
      %v2146 = vpop.f32.mrb[0].mxu0
      %v2147 = vadd.f32 0.0, %v2146
      %v2148 = vpop.f32.mrb[0].mxu0
      %2149 = vmatprep.mubr.f32.mxu0 0.0
      %2150 = vmatmul.mubr.f32.gmra.mrb[0].mxu0 %v2050
      %v2151 = vpop.f32.mrb[0].mxu0
      %v2152 = vadd.f32 0.0, %v2151
      %v2153 = vpop.f32.mrb[0].mxu0
      %2154 = vmatprep.mubr.f32.mxu0 0.0
      %2155 = vmatmul.mubr.f32.gmra.mrb[0].mxu0 %v2053
      %v2156 = vpop.f32.mrb[0].mxu0
      %v2157 = vadd.f32 0.0, %v2156
      %v2158 = vpop.f32.mrb[0].mxu0
      %2159 = vdwg.mxu0
      %v2160 = vadd.f32 %v2005, %v2122
      %v2161 = vadd.f32 %v2006, %v2127
      %v2162 = vadd.f32 %v2007, %v2132
      %v2163 = vadd.f32 %v2008, %v2137
      %v2164 = vadd.f32 %v2009, %v2142
      %v2165 = vadd.f32 %v2010, %v2147
      %v2166 = vadd.f32 %v2011, %v2152
      %v2167 = vadd.f32 %v2012, %v2157
      %v2168 = vld [vmem:[%s1857 + $0x7] sm:$0xff]
      %v2169 = vld [vmem:[%s1857 + $0x1f] sm:$0xff]
      %v2170 = vld [vmem:[%s1857 + $0x37] sm:$0xff]
      %v2171 = vld [vmem:[%s1857 + $0x4f] sm:$0xff]
      %v2172 = vld [vmem:[%s1857 + $0x67] sm:$0xff]
      %v2173 = vld [vmem:[%s1857 + $0x7f] sm:$0xff]
      %v2174 = vld [vmem:[%s1857 + $0x97] sm:$0xff]
      %v2175 = vld [vmem:[%s1857 + $0xaf] sm:$0xff]
      %s2176 = scalar_lea.vmem %s2, 576
      %v2177 = vld [vmem:[%s2176] sm:$0xff]
      %v2178 = vld [vmem:[%s2176 + $0x8] sm:$0xff]
      %v2179 = vld [vmem:[%s2176 + $0x10] sm:$0xff]
      %v2180 = vld [vmem:[%s2176 + $0x18] sm:$0xff]
      %v2181 = vld [vmem:[%s2176 + $0x20] sm:$0xff]
      %v2182 = vld [vmem:[%s2176 + $0x28] sm:$0xff]
      %v2183 = vld [vmem:[%s2176 + $0x30] sm:$0xff]
      %v2184 = vld [vmem:[%s2176 + $0x38] sm:$0xff]
      %v2185 = vld [vmem:[%s2176 + $0x40] sm:$0xff]
      %v2187 = vsel %vm977, %v2168, 0
      %v2190 = vsel %vm977, %v2169, 0
      %v2193 = vsel %vm977, %v2170, 0
      %v2196 = vsel %vm977, %v2171, 0
      %v2199 = vsel %vm977, %v2172, 0
      %v2202 = vsel %vm977, %v2173, 0
      %v2205 = vsel %vm977, %v2174, 0
      %v2208 = vsel %vm977, %v2175, 0
      %2210 = vmatprep.subr.mxu0 0.0
      %2211 = vmatpush1.msra.mxu0 %v2177
      %2212 = vmatprep.subr.mxu0 0.0
      %2213 = vmatpush1.msra.mxu0 %v2178
      %2214 = vmatprep.subr.mxu0 0.0
      %2215 = vmatpush1.msra.mxu0 %v2179
      %2216 = vmatprep.subr.mxu0 0.0
      %2217 = vmatpush1.msra.mxu0 %v2180
      %2218 = vmatprep.subr.mxu0 0.0
      %2219 = vmatpush1.msra.mxu0 %v2181
      %2220 = vmatprep.subr.mxu0 0.0
      %2221 = vmatpush1.msra.mxu0 %v2182
      %2222 = vmatprep.subr.mxu0 0.0
      %2223 = vmatpush1.msra.mxu0 %v2183
      %2224 = vmatprep.subr.mxu0 0.0
      %2225 = vmatpush1.msra.mxu0 %v2184
      %2226 = vmatprep.subr.mxu0 0.0
      %2227 = vmatpush1.msra.mxu0 %v2185
      %2228 = vmatprep.subr.mxu0 0.0
      %2229 = vmatpush1.msra.mxu0 0.0
      %2230 = vmatprep.subr.mxu0 0.0
      %2231 = vmatpush1.msra.mxu0 0.0
      %2232 = vmatprep.subr.mxu0 0.0
      %2233 = vmatpush1.msra.mxu0 0.0
      %2234 = vmatprep.subr.mxu0 0.0
      %2235 = vmatpush1.msra.mxu0 0.0
      %2236 = vmatprep.subr.mxu0 0.0
      %2237 = vmatpush1.msra.mxu0 0.0
      %2238 = vmatprep.subr.mxu0 0.0
      %2239 = vmatpush1.msra.mxu0 0.0
      %2240 = vmatprep.subr.mxu0 0.0
      %2241 = vmatpush1.msra.mxu0 0.0
      %2242 = vmatprep.subr.mxu0 0.0
      %2243 = vmatpush1.msra.mxu0 0.0
      %2244 = vmatprep.subr.mxu0 0.0
      %2245 = vmatpush1.msra.mxu0 0.0
      %2246 = vmatprep.subr.mxu0 0.0
      %2247 = vmatpush1.msra.mxu0 0.0
      %2248 = vmatprep.subr.mxu0 0.0
      %2249 = vmatpush1.msra.mxu0 0.0
      %2250 = vmatprep.subr.mxu0 0.0
      %2251 = vmatpush1.msra.mxu0 0.0
      %2252 = vmatprep.subr.mxu0 0.0
      %2253 = vmatpush1.msra.mxu0 0.0
      %2254 = vmatprep.subr.mxu0 0.0
      %2255 = vmatpush1.msra.mxu0 0.0
      %2256 = vmatprep.subr.mxu0 0.0
      %2257 = vmatpush1.msra.mxu0 0.0
      %2258 = vmatprep.subr.mxu0 0.0
      %2259 = vmatpush1.msra.mxu0 0.0
      %2260 = vmatprep.subr.mxu0 0.0
      %2261 = vmatpush1.msra.mxu0 0.0
      %2262 = vmatprep.subr.mxu0 0.0
      %2263 = vmatpush1.msra.mxu0 0.0
      %2264 = vmatprep.subr.mxu0 0.0
      %2265 = vmatpush1.msra.mxu0 0.0
      %2266 = vmatprep.subr.mxu0 0.0
      %2267 = vmatpush1.msra.mxu0 0.0
      %2268 = vmatprep.subr.mxu0 0.0
      %2269 = vmatpush1.msra.mxu0 0.0
      %2270 = vmatprep.subr.mxu0 0.0
      %2271 = vmatpush1.msra.mxu0 0.0
      %2272 = vmatprep.subr.mxu0 0.0
      %2273 = vmatpush1.msra.mxu0 0.0
      %2274 = vmatprep.mubr.f32.mxu0 0.0
      %2275 = vmatmul.mubr.f32.gmra.mrb[0].mxu0 %v2187
      %v2276 = vpop.f32.mrb[0].mxu0
      %v2277 = vadd.f32 0.0, %v2276
      %v2278 = vpop.f32.mrb[0].mxu0
      %2279 = vmatprep.mubr.f32.mxu0 0.0
      %2280 = vmatmul.mubr.f32.gmra.mrb[0].mxu0 %v2190
      %v2281 = vpop.f32.mrb[0].mxu0
      %v2282 = vadd.f32 0.0, %v2281
      %v2283 = vpop.f32.mrb[0].mxu0
      %2284 = vmatprep.mubr.f32.mxu0 0.0
      %2285 = vmatmul.mubr.f32.gmra.mrb[0].mxu0 %v2193
      %v2286 = vpop.f32.mrb[0].mxu0
      %v2287 = vadd.f32 0.0, %v2286
      %v2288 = vpop.f32.mrb[0].mxu0
      %2289 = vmatprep.mubr.f32.mxu0 0.0
      %2290 = vmatmul.mubr.f32.gmra.mrb[0].mxu0 %v2196
      %v2291 = vpop.f32.mrb[0].mxu0
      %v2292 = vadd.f32 0.0, %v2291
      %v2293 = vpop.f32.mrb[0].mxu0
      %2294 = vmatprep.mubr.f32.mxu0 0.0
      %2295 = vmatmul.mubr.f32.gmra.mrb[0].mxu0 %v2199
      %v2296 = vpop.f32.mrb[0].mxu0
      %v2297 = vadd.f32 0.0, %v2296
      %v2298 = vpop.f32.mrb[0].mxu0
      %2299 = vmatprep.mubr.f32.mxu0 0.0
      %2300 = vmatmul.mubr.f32.gmra.mrb[0].mxu0 %v2202
      %v2301 = vpop.f32.mrb[0].mxu0
      %v2302 = vadd.f32 0.0, %v2301
      %v2303 = vpop.f32.mrb[0].mxu0
      %2304 = vmatprep.mubr.f32.mxu0 0.0
      %2305 = vmatmul.mubr.f32.gmra.mrb[0].mxu0 %v2205
      %v2306 = vpop.f32.mrb[0].mxu0
      %v2307 = vadd.f32 0.0, %v2306
      %v2308 = vpop.f32.mrb[0].mxu0
      %2309 = vmatprep.mubr.f32.mxu0 0.0
      %2310 = vmatmul.mubr.f32.gmra.mrb[0].mxu0 %v2208
      %v2311 = vpop.f32.mrb[0].mxu0
      %v2312 = vadd.f32 0.0, %v2311
      %v2313 = vpop.f32.mrb[0].mxu0
      %2314 = vdwg.mxu0
      %v2315 = vadd.f32 %v2160, %v2277
      %v2316 = vadd.f32 %v2161, %v2282
      %v2317 = vadd.f32 %v2162, %v2287
      %v2318 = vadd.f32 %v2163, %v2292
      %v2319 = vadd.f32 %v2164, %v2297
      %v2320 = vadd.f32 %v2165, %v2302
      %v2321 = vadd.f32 %v2166, %v2307
      %v2322 = vadd.f32 %v2167, %v2312
      %v2323 = vadd.f32 %v2315, %v2316
      %v2324 = vadd.f32 %v2323, %v2317
      %v2325 = vadd.f32 %v2324, %v2318
      %v2326 = vadd.f32 %v2325, %v2319
      %v2327 = vadd.f32 %v2326, %v2320
      %v2328 = vadd.f32 %v2327, %v2321
      %v2329 = vadd.f32 %v2328, %v2322
      %2330 = vadd.xlane.f32.xlu0 %v2329
      %v2331 = vpop.xlane.xlu0 %2330
      %v2332 = vrot.slane %v2331, 4
      %v2333 = vadd.f32 %v2331, %v2332
      %v2334 = vrot.slane %v2333, 2
      %v2335 = vadd.f32 %v2333, %v2334
      %v2336 = vrot.slane %v2335, 1
      %v2337 = vadd.f32 %v2335, %v2336
      %s2338 = vtos %v2337
      %v2339 = vrcp.pop 8192.0
      %s2340 = vtos %v2339
      %s2341 = smul.f32 %s2338, %s2340
      %v2342 = vstv %s2341
      %v2343 = vsub.f32 %v2315, %v2342
      %v2344 = vsub.f32 %v2316, %v2342
      %v2345 = vsub.f32 %v2317, %v2342
      %v2346 = vsub.f32 %v2318, %v2342
      %v2347 = vsub.f32 %v2319, %v2342
      %v2348 = vsub.f32 %v2320, %v2342
      %v2349 = vsub.f32 %v2321, %v2342
      %v2350 = vsub.f32 %v2322, %v2342
      %v2351 = vmul.f32 %v2343, %v2343
      %v2352 = vmul.f32 %v2344, %v2344
      %v2353 = vmul.f32 %v2345, %v2345
      %v2354 = vmul.f32 %v2346, %v2346
      %v2355 = vmul.f32 %v2347, %v2347
      %v2356 = vmul.f32 %v2348, %v2348
      %v2357 = vmul.f32 %v2349, %v2349
      %v2358 = vmul.f32 %v2350, %v2350
      %v2359 = vadd.f32 %v2351, %v2352
      %v2360 = vadd.f32 %v2359, %v2353
      %v2361 = vadd.f32 %v2360, %v2354
      %v2362 = vadd.f32 %v2361, %v2355
      %v2363 = vadd.f32 %v2362, %v2356
      %v2364 = vadd.f32 %v2363, %v2357
      %v2365 = vadd.f32 %v2364, %v2358
      %2366 = vadd.xlane.f32.xlu0 %v2365
      %v2367 = vpop.xlane.xlu0 %2366
      %v2368 = vrot.slane %v2367, 4
      %v2369 = vadd.f32 %v2367, %v2368
      %v2370 = vrot.slane %v2369, 2
      %v2371 = vadd.f32 %v2369, %v2370
      %v2372 = vrot.slane %v2371, 1
      %v2373 = vadd.f32 %v2371, %v2372
      %s2374 = vtos %v2373
      %v2375 = vrcp.pop 8192.0
      %s2376 = vtos %v2375
      %s2377 = smul.f32 %s2374, %s2376
      %s2378 = sadd.f32 %s2377, 1e-05
      %v2379 = vstv %s2378
      %v2380 = vrsqrt.pop %v2379
      %s2381 = vtos %v2380
      %v2382 = vstv %s2381
      %v2383 = vmul.f32 %v2343, %v2382
      %v2384 = vmul.f32 %v2344, %v2382
      %v2385 = vmul.f32 %v2345, %v2382
      %v2386 = vmul.f32 %v2346, %v2382
      %v2387 = vmul.f32 %v2347, %v2382
      %v2388 = vmul.f32 %v2348, %v2382
      %v2389 = vmul.f32 %v2349, %v2382
      %v2390 = vmul.f32 %v2350, %v2382
      %v2391 = vmax.f32 %v2383, 0.0
      %v2392 = vmax.f32 %v2384, 0.0
      %v2393 = vmax.f32 %v2385, 0.0
      %v2394 = vmax.f32 %v2386, 0.0
      %v2395 = vmax.f32 %v2387, 0.0
      %v2396 = vmax.f32 %v2388, 0.0
      %v2397 = vmax.f32 %v2389, 0.0
      %v2398 = vmax.f32 %v2390, 0.0
      %s2399 = scalar_lea.vmem %s5, 512
      %v2400 = vld [vmem:[%s2399] sm:$0xff]
      %v2401 = vld [vmem:[%s2399 + $0x8] sm:$0xff]
      %v2402 = vld [vmem:[%s2399 + $0x10] sm:$0xff]
      %v2403 = vld [vmem:[%s2399 + $0x18] sm:$0xff]
      %v2404 = vld [vmem:[%s2399 + $0x20] sm:$0xff]
      %v2405 = vld [vmem:[%s2399 + $0x28] sm:$0xff]
      %v2406 = vld [vmem:[%s2399 + $0x30] sm:$0xff]
      %v2407 = vld [vmem:[%s2399 + $0x38] sm:$0xff]
      %v2408 = vld [vmem:[%s2399 + $0x40] sm:$0xff]
      %v2409 = vld [vmem:[%s2399 + $0x48] sm:$0xff]
      %v2410 = vld [vmem:[%s2399 + $0x50] sm:$0xff]
      %v2411 = vld [vmem:[%s2399 + $0x58] sm:$0xff]
      %v2412 = vld [vmem:[%s2399 + $0x60] sm:$0xff]
      %v2413 = vld [vmem:[%s2399 + $0x68] sm:$0xff]
      %v2414 = vld [vmem:[%s2399 + $0x70] sm:$0xff]
      %v2415 = vld [vmem:[%s2399 + $0x78] sm:$0xff]
      %v2416 = vld [vmem:[%s2399 + $0x80] sm:$0xff]
      %v2417 = vld [vmem:[%s2399 + $0x88] sm:$0xff]
      %v2418 = vld [vmem:[%s2399 + $0x90] sm:$0xff]
      %v2419 = vld [vmem:[%s2399 + $0x98] sm:$0xff]
      %v2420 = vld [vmem:[%s2399 + $0xa0] sm:$0xff]
      %v2421 = vld [vmem:[%s2399 + $0xa8] sm:$0xff]
      %v2422 = vld [vmem:[%s2399 + $0xb0] sm:$0xff]
      %v2423 = vld [vmem:[%s2399 + $0xb8] sm:$0xff]
      %v2424 = vld [vmem:[%s2399 + $0xc0] sm:$0xff]
      %v2425 = vld [vmem:[%s2399 + $0xc8] sm:$0xff]
      %v2426 = vld [vmem:[%s2399 + $0xd0] sm:$0xff]
      %v2427 = vld [vmem:[%s2399 + $0xd8] sm:$0xff]
      %v2428 = vld [vmem:[%s2399 + $0xe0] sm:$0xff]
      %v2429 = vld [vmem:[%s2399 + $0xe8] sm:$0xff]
      %v2430 = vld [vmem:[%s2399 + $0xf0] sm:$0xff]
      %v2431 = vld [vmem:[%s2399 + $0xf8] sm:$0xff]
      %2432 = vmatprep.subr.mxu0 %v2401
      %2433 = vmatpush1.msra.mxu0 %v2400
      %2434 = vmatprep.subr.mxu0 %v2403
      %2435 = vmatpush1.msra.mxu0 %v2402
      %2436 = vmatprep.subr.mxu0 %v2405
      %2437 = vmatpush1.msra.mxu0 %v2404
      %2438 = vmatprep.subr.mxu0 %v2407
      %2439 = vmatpush1.msra.mxu0 %v2406
      %2440 = vmatprep.subr.mxu0 %v2409
      %2441 = vmatpush1.msra.mxu0 %v2408
      %2442 = vmatprep.subr.mxu0 %v2411
      %2443 = vmatpush1.msra.mxu0 %v2410
      %2444 = vmatprep.subr.mxu0 %v2413
      %2445 = vmatpush1.msra.mxu0 %v2412
      %2446 = vmatprep.subr.mxu0 %v2415
      %2447 = vmatpush1.msra.mxu0 %v2414
      %2448 = vmatprep.subr.mxu0 %v2417
      %2449 = vmatpush1.msra.mxu0 %v2416
      %2450 = vmatprep.subr.mxu0 %v2419
      %2451 = vmatpush1.msra.mxu0 %v2418
      %2452 = vmatprep.subr.mxu0 %v2421
      %2453 = vmatpush1.msra.mxu0 %v2420
      %2454 = vmatprep.subr.mxu0 %v2423
      %2455 = vmatpush1.msra.mxu0 %v2422
      %2456 = vmatprep.subr.mxu0 %v2425
      %2457 = vmatpush1.msra.mxu0 %v2424
      %2458 = vmatprep.subr.mxu0 %v2427
      %2459 = vmatpush1.msra.mxu0 %v2426
      %2460 = vmatprep.subr.mxu0 %v2429
      %2461 = vmatpush1.msra.mxu0 %v2428
      %2462 = vmatprep.subr.mxu0 %v2431
      %2463 = vmatpush1.msra.mxu0 %v2430
      %2464 = vmatprep.subr.mxu0 0.0
      %2465 = vmatpush1.msra.mxu0 0.0
      %2466 = vmatprep.subr.mxu0 0.0
      %2467 = vmatpush1.msra.mxu0 0.0
      %2468 = vmatprep.subr.mxu0 0.0
      %2469 = vmatpush1.msra.mxu0 0.0
      %2470 = vmatprep.subr.mxu0 0.0
      %2471 = vmatpush1.msra.mxu0 0.0
      %2472 = vmatprep.subr.mxu0 0.0
      %2473 = vmatpush1.msra.mxu0 0.0
      %2474 = vmatprep.subr.mxu0 0.0
      %2475 = vmatpush1.msra.mxu0 0.0
      %2476 = vmatprep.subr.mxu0 0.0
      %2477 = vmatpush1.msra.mxu0 0.0
      %2478 = vmatprep.subr.mxu0 0.0
      %2479 = vmatpush1.msra.mxu0 0.0
      %2480 = vmatprep.subr.mxu0 0.0
      %2481 = vmatpush1.msra.mxu0 0.0
      %2482 = vmatprep.subr.mxu0 0.0
      %2483 = vmatpush1.msra.mxu0 0.0
      %2484 = vmatprep.subr.mxu0 0.0
      %2485 = vmatpush1.msra.mxu0 0.0
      %2486 = vmatprep.subr.mxu0 0.0
      %2487 = vmatpush1.msra.mxu0 0.0
      %2488 = vmatprep.subr.mxu0 0.0
      %2489 = vmatpush1.msra.mxu0 0.0
      %2490 = vmatprep.subr.mxu0 0.0
      %2491 = vmatpush1.msra.mxu0 0.0
      %2492 = vmatprep.subr.mxu0 0.0
      %2493 = vmatpush1.msra.mxu0 0.0
      %2494 = vmatprep.subr.mxu0 0.0
      %2495 = vmatpush1.msra.mxu0 0.0
      %2496 = vmatprep.mubr.f32.mxu0 0.0
      %2497 = vmatmul.mubr.f32.gmra.mrb[0].mxu0 %v2391
      %v2498 = vpop.f32.mrb[0].mxu0
      %v2499 = vadd.f32 0.0, %v2498
      %v2500 = vpop.f32.mrb[0].mxu0
      %v2501 = vadd.f32 0.0, %v2500
      %2502 = vmatprep.mubr.f32.mxu0 0.0
      %2503 = vmatmul.mubr.f32.gmra.mrb[0].mxu0 %v2392
      %v2504 = vpop.f32.mrb[0].mxu0
      %v2505 = vadd.f32 0.0, %v2504
      %v2506 = vpop.f32.mrb[0].mxu0
      %v2507 = vadd.f32 0.0, %v2506
      %2508 = vmatprep.mubr.f32.mxu0 0.0
      %2509 = vmatmul.mubr.f32.gmra.mrb[0].mxu0 %v2393
      %v2510 = vpop.f32.mrb[0].mxu0
      %v2511 = vadd.f32 0.0, %v2510
      %v2512 = vpop.f32.mrb[0].mxu0
      %v2513 = vadd.f32 0.0, %v2512
      %2514 = vmatprep.mubr.f32.mxu0 0.0
      %2515 = vmatmul.mubr.f32.gmra.mrb[0].mxu0 %v2394
      %v2516 = vpop.f32.mrb[0].mxu0
      %v2517 = vadd.f32 0.0, %v2516
      %v2518 = vpop.f32.mrb[0].mxu0
      %v2519 = vadd.f32 0.0, %v2518
      %2520 = vmatprep.mubr.f32.mxu0 0.0
      %2521 = vmatmul.mubr.f32.gmra.mrb[0].mxu0 %v2395
      %v2522 = vpop.f32.mrb[0].mxu0
      %v2523 = vadd.f32 0.0, %v2522
      %v2524 = vpop.f32.mrb[0].mxu0
      %v2525 = vadd.f32 0.0, %v2524
      %2526 = vmatprep.mubr.f32.mxu0 0.0
      %2527 = vmatmul.mubr.f32.gmra.mrb[0].mxu0 %v2396
      %v2528 = vpop.f32.mrb[0].mxu0
      %v2529 = vadd.f32 0.0, %v2528
      %v2530 = vpop.f32.mrb[0].mxu0
      %v2531 = vadd.f32 0.0, %v2530
      %2532 = vmatprep.mubr.f32.mxu0 0.0
      %2533 = vmatmul.mubr.f32.gmra.mrb[0].mxu0 %v2397
      %v2534 = vpop.f32.mrb[0].mxu0
      %v2535 = vadd.f32 0.0, %v2534
      %v2536 = vpop.f32.mrb[0].mxu0
      %v2537 = vadd.f32 0.0, %v2536
      %2538 = vmatprep.mubr.f32.mxu0 0.0
      %2539 = vmatmul.mubr.f32.gmra.mrb[0].mxu0 %v2398
      %v2540 = vpop.f32.mrb[0].mxu0
      %v2541 = vadd.f32 0.0, %v2540
      %v2542 = vpop.f32.mrb[0].mxu0
      %v2543 = vadd.f32 0.0, %v2542
      %2544 = vdwg.mxu0
      %v2545 = vadd.f32 %v895, %v2499
      %v2546 = vadd.f32 %v897, %v2501
      %v2547 = vadd.f32 %v901, %v2505
      %v2548 = vadd.f32 %v903, %v2507
      %v2549 = vadd.f32 %v907, %v2511
      %v2550 = vadd.f32 %v909, %v2513
      %v2551 = vadd.f32 %v913, %v2517
      %v2552 = vadd.f32 %v915, %v2519
      %v2553 = vadd.f32 %v919, %v2523
      %v2554 = vadd.f32 %v921, %v2525
      %v2555 = vadd.f32 %v925, %v2529
      %v2556 = vadd.f32 %v927, %v2531
      %v2557 = vadd.f32 %v931, %v2535
      %v2558 = vadd.f32 %v933, %v2537
      %v2559 = vadd.f32 %v937, %v2541
      %v2560 = vadd.f32 %v939, %v2543
      %s2561 = scalar_lea.vmem %s266, 48
      %v2562 = vld [vmem:[%s2561 + $0x2] sm:$0xff]
      %v2563 = vld [vmem:[%s2561 + $0x1a] sm:$0xff]
      %v2564 = vld [vmem:[%s2561 + $0x32] sm:$0xff]
      %v2565 = vld [vmem:[%s2561 + $0x4a] sm:$0xff]
      %v2566 = vld [vmem:[%s2561 + $0x62] sm:$0xff]
      %v2567 = vld [vmem:[%s2561 + $0x7a] sm:$0xff]
      %v2568 = vld [vmem:[%s2561 + $0x92] sm:$0xff]
      %v2569 = vld [vmem:[%s2561 + $0xaa] sm:$0xff]
      %s2570 = scalar_lea.vmem %s2, 648
      %v2571 = vld [vmem:[%s2570] sm:$0xff]
      %v2572 = vld [vmem:[%s2570 + $0x8] sm:$0xff]
      %v2573 = vld [vmem:[%s2570 + $0x10] sm:$0xff]
      %v2574 = vld [vmem:[%s2570 + $0x18] sm:$0xff]
      %v2575 = vld [vmem:[%s2570 + $0x20] sm:$0xff]
      %v2576 = vld [vmem:[%s2570 + $0x28] sm:$0xff]
      %v2577 = vld [vmem:[%s2570 + $0x30] sm:$0xff]
      %v2578 = vld [vmem:[%s2570 + $0x38] sm:$0xff]
      %v2579 = vld [vmem:[%s2570 + $0x40] sm:$0xff]
      %v2580 = vld [vmem:[%s2561 + $0x5] sm:$0xff]
      %v2581 = vld [vmem:[%s2561 + $0x1d] sm:$0xff]
      %v2582 = vld [vmem:[%s2561 + $0x35] sm:$0xff]
      %v2583 = vld [vmem:[%s2561 + $0x4d] sm:$0xff]
      %v2584 = vld [vmem:[%s2561 + $0x65] sm:$0xff]
      %v2585 = vld [vmem:[%s2561 + $0x7d] sm:$0xff]
      %v2586 = vld [vmem:[%s2561 + $0x95] sm:$0xff]
      %v2587 = vld [vmem:[%s2561 + $0xad] sm:$0xff]
      %s2588 = scalar_lea.vmem %s2, 720
      %v2589 = vld [vmem:[%s2588] sm:$0xff]
      %v2590 = vld [vmem:[%s2588 + $0x8] sm:$0xff]
      %v2591 = vld [vmem:[%s2588 + $0x10] sm:$0xff]
      %v2592 = vld [vmem:[%s2588 + $0x18] sm:$0xff]
      %v2593 = vld [vmem:[%s2588 + $0x20] sm:$0xff]
      %v2594 = vld [vmem:[%s2588 + $0x28] sm:$0xff]
      %v2595 = vld [vmem:[%s2588 + $0x30] sm:$0xff]
      %v2596 = vld [vmem:[%s2588 + $0x38] sm:$0xff]
      %v2597 = vld [vmem:[%s2588 + $0x40] sm:$0xff]
      %v2599 = vsel %vm977, %v2580, 0
      %v2602 = vsel %vm977, %v2581, 0
      %v2605 = vsel %vm977, %v2582, 0
      %v2608 = vsel %vm977, %v2583, 0
      %v2611 = vsel %vm977, %v2584, 0
      %v2614 = vsel %vm977, %v2585, 0
      %v2617 = vsel %vm977, %v2586, 0
      %v2620 = vsel %vm977, %v2587, 0
      %2622 = vmatprep.subr.mxu0 0.0
      %2623 = vmatpush1.msra.mxu0 %v2589
      %2624 = vmatprep.subr.mxu0 0.0
      %2625 = vmatpush1.msra.mxu0 %v2590
      %2626 = vmatprep.subr.mxu0 0.0
      %2627 = vmatpush1.msra.mxu0 %v2591
      %2628 = vmatprep.subr.mxu0 0.0
      %2629 = vmatpush1.msra.mxu0 %v2592
      %2630 = vmatprep.subr.mxu0 0.0
      %2631 = vmatpush1.msra.mxu0 %v2593
      %2632 = vmatprep.subr.mxu0 0.0
      %2633 = vmatpush1.msra.mxu0 %v2594
      %2634 = vmatprep.subr.mxu0 0.0
      %2635 = vmatpush1.msra.mxu0 %v2595
      %2636 = vmatprep.subr.mxu0 0.0
      %2637 = vmatpush1.msra.mxu0 %v2596
      %2638 = vmatprep.subr.mxu0 0.0
      %2639 = vmatpush1.msra.mxu0 %v2597
      %2640 = vmatprep.subr.mxu0 0.0
      %2641 = vmatpush1.msra.mxu0 0.0
      %2642 = vmatprep.subr.mxu0 0.0
      %2643 = vmatpush1.msra.mxu0 0.0
      %2644 = vmatprep.subr.mxu0 0.0
      %2645 = vmatpush1.msra.mxu0 0.0
      %2646 = vmatprep.subr.mxu0 0.0
      %2647 = vmatpush1.msra.mxu0 0.0
      %2648 = vmatprep.subr.mxu0 0.0
      %2649 = vmatpush1.msra.mxu0 0.0
      %2650 = vmatprep.subr.mxu0 0.0
      %2651 = vmatpush1.msra.mxu0 0.0
      %2652 = vmatprep.subr.mxu0 0.0
      %2653 = vmatpush1.msra.mxu0 0.0
      %2654 = vmatprep.subr.mxu0 0.0
      %2655 = vmatpush1.msra.mxu0 0.0
      %2656 = vmatprep.subr.mxu0 0.0
      %2657 = vmatpush1.msra.mxu0 0.0
      %2658 = vmatprep.subr.mxu0 0.0
      %2659 = vmatpush1.msra.mxu0 0.0
      %2660 = vmatprep.subr.mxu0 0.0
      %2661 = vmatpush1.msra.mxu0 0.0
      %2662 = vmatprep.subr.mxu0 0.0
      %2663 = vmatpush1.msra.mxu0 0.0
      %2664 = vmatprep.subr.mxu0 0.0
      %2665 = vmatpush1.msra.mxu0 0.0
      %2666 = vmatprep.subr.mxu0 0.0
      %2667 = vmatpush1.msra.mxu0 0.0
      %2668 = vmatprep.subr.mxu0 0.0
      %2669 = vmatpush1.msra.mxu0 0.0
      %2670 = vmatprep.subr.mxu0 0.0
      %2671 = vmatpush1.msra.mxu0 0.0
      %2672 = vmatprep.subr.mxu0 0.0
      %2673 = vmatpush1.msra.mxu0 0.0
      %2674 = vmatprep.subr.mxu0 0.0
      %2675 = vmatpush1.msra.mxu0 0.0
      %2676 = vmatprep.subr.mxu0 0.0
      %2677 = vmatpush1.msra.mxu0 0.0
      %2678 = vmatprep.subr.mxu0 0.0
      %2679 = vmatpush1.msra.mxu0 0.0
      %2680 = vmatprep.subr.mxu0 0.0
      %2681 = vmatpush1.msra.mxu0 0.0
      %2682 = vmatprep.subr.mxu0 0.0
      %2683 = vmatpush1.msra.mxu0 0.0
      %2684 = vmatprep.subr.mxu0 0.0
      %2685 = vmatpush1.msra.mxu0 0.0
      %2686 = vmatprep.mubr.f32.mxu0 0.0
      %2687 = vmatmul.mubr.f32.gmra.mrb[0].mxu0 %v2599
      %v2688 = vpop.f32.mrb[0].mxu0
      %v2689 = vadd.f32 0.0, %v2688
      %v2690 = vpop.f32.mrb[0].mxu0
      %2691 = vmatprep.mubr.f32.mxu0 0.0
      %2692 = vmatmul.mubr.f32.gmra.mrb[0].mxu0 %v2602
      %v2693 = vpop.f32.mrb[0].mxu0
      %v2694 = vadd.f32 0.0, %v2693
      %v2695 = vpop.f32.mrb[0].mxu0
      %2696 = vmatprep.mubr.f32.mxu0 0.0
      %2697 = vmatmul.mubr.f32.gmra.mrb[0].mxu0 %v2605
      %v2698 = vpop.f32.mrb[0].mxu0
      %v2699 = vadd.f32 0.0, %v2698
      %v2700 = vpop.f32.mrb[0].mxu0
      %2701 = vmatprep.mubr.f32.mxu0 0.0
      %2702 = vmatmul.mubr.f32.gmra.mrb[0].mxu0 %v2608
      %v2703 = vpop.f32.mrb[0].mxu0
      %v2704 = vadd.f32 0.0, %v2703
      %v2705 = vpop.f32.mrb[0].mxu0
      %2706 = vmatprep.mubr.f32.mxu0 0.0
      %2707 = vmatmul.mubr.f32.gmra.mrb[0].mxu0 %v2611
      %v2708 = vpop.f32.mrb[0].mxu0
      %v2709 = vadd.f32 0.0, %v2708
      %v2710 = vpop.f32.mrb[0].mxu0
      %2711 = vmatprep.mubr.f32.mxu0 0.0
      %2712 = vmatmul.mubr.f32.gmra.mrb[0].mxu0 %v2614
      %v2713 = vpop.f32.mrb[0].mxu0
      %v2714 = vadd.f32 0.0, %v2713
      %v2715 = vpop.f32.mrb[0].mxu0
      %2716 = vmatprep.mubr.f32.mxu0 0.0
      %2717 = vmatmul.mubr.f32.gmra.mrb[0].mxu0 %v2617
      %v2718 = vpop.f32.mrb[0].mxu0
      %v2719 = vadd.f32 0.0, %v2718
      %v2720 = vpop.f32.mrb[0].mxu0
      %2721 = vmatprep.mubr.f32.mxu0 0.0
      %2722 = vmatmul.mubr.f32.gmra.mrb[0].mxu0 %v2620
      %v2723 = vpop.f32.mrb[0].mxu0
      %v2724 = vadd.f32 0.0, %v2723
      %v2725 = vpop.f32.mrb[0].mxu0
      %2726 = vdwg.mxu0
      %v2728 = vsel %vm977, %v2562, 0
      %v2731 = vsel %vm977, %v2563, 0
      %v2734 = vsel %vm977, %v2564, 0
      %v2737 = vsel %vm977, %v2565, 0
      %v2740 = vsel %vm977, %v2566, 0
      %v2743 = vsel %vm977, %v2567, 0
      %v2746 = vsel %vm977, %v2568, 0
      %v2749 = vsel %vm977, %v2569, 0
      %2751 = vmatprep.subr.mxu0 0.0
      %2752 = vmatpush1.msra.mxu0 %v2571
      %2753 = vmatprep.subr.mxu0 0.0
      %2754 = vmatpush1.msra.mxu0 %v2572
      %2755 = vmatprep.subr.mxu0 0.0
      %2756 = vmatpush1.msra.mxu0 %v2573
      %2757 = vmatprep.subr.mxu0 0.0
      %2758 = vmatpush1.msra.mxu0 %v2574
      %2759 = vmatprep.subr.mxu0 0.0
      %2760 = vmatpush1.msra.mxu0 %v2575
      %2761 = vmatprep.subr.mxu0 0.0
      %2762 = vmatpush1.msra.mxu0 %v2576
      %2763 = vmatprep.subr.mxu0 0.0
      %2764 = vmatpush1.msra.mxu0 %v2577
      %2765 = vmatprep.subr.mxu0 0.0
      %2766 = vmatpush1.msra.mxu0 %v2578
      %2767 = vmatprep.subr.mxu0 0.0
      %2768 = vmatpush1.msra.mxu0 %v2579
      %2769 = vmatprep.subr.mxu0 0.0
      %2770 = vmatpush1.msra.mxu0 0.0
      %2771 = vmatprep.subr.mxu0 0.0
      %2772 = vmatpush1.msra.mxu0 0.0
      %2773 = vmatprep.subr.mxu0 0.0
      %2774 = vmatpush1.msra.mxu0 0.0
      %2775 = vmatprep.subr.mxu0 0.0
      %2776 = vmatpush1.msra.mxu0 0.0
      %2777 = vmatprep.subr.mxu0 0.0
      %2778 = vmatpush1.msra.mxu0 0.0
      %2779 = vmatprep.subr.mxu0 0.0
      %2780 = vmatpush1.msra.mxu0 0.0
      %2781 = vmatprep.subr.mxu0 0.0
      %2782 = vmatpush1.msra.mxu0 0.0
      %2783 = vmatprep.subr.mxu0 0.0
      %2784 = vmatpush1.msra.mxu0 0.0
      %2785 = vmatprep.subr.mxu0 0.0
      %2786 = vmatpush1.msra.mxu0 0.0
      %2787 = vmatprep.subr.mxu0 0.0
      %2788 = vmatpush1.msra.mxu0 0.0
      %2789 = vmatprep.subr.mxu0 0.0
      %2790 = vmatpush1.msra.mxu0 0.0
      %2791 = vmatprep.subr.mxu0 0.0
      %2792 = vmatpush1.msra.mxu0 0.0
      %2793 = vmatprep.subr.mxu0 0.0
      %2794 = vmatpush1.msra.mxu0 0.0
      %2795 = vmatprep.subr.mxu0 0.0
      %2796 = vmatpush1.msra.mxu0 0.0
      %2797 = vmatprep.subr.mxu0 0.0
      %2798 = vmatpush1.msra.mxu0 0.0
      %2799 = vmatprep.subr.mxu0 0.0
      %2800 = vmatpush1.msra.mxu0 0.0
      %2801 = vmatprep.subr.mxu0 0.0
      %2802 = vmatpush1.msra.mxu0 0.0
      %2803 = vmatprep.subr.mxu0 0.0
      %2804 = vmatpush1.msra.mxu0 0.0
      %2805 = vmatprep.subr.mxu0 0.0
      %2806 = vmatpush1.msra.mxu0 0.0
      %2807 = vmatprep.subr.mxu0 0.0
      %2808 = vmatpush1.msra.mxu0 0.0
      %2809 = vmatprep.subr.mxu0 0.0
      %2810 = vmatpush1.msra.mxu0 0.0
      %2811 = vmatprep.subr.mxu0 0.0
      %2812 = vmatpush1.msra.mxu0 0.0
      %2813 = vmatprep.subr.mxu0 0.0
      %2814 = vmatpush1.msra.mxu0 0.0
      %2815 = vmatprep.mubr.f32.mxu0 0.0
      %2816 = vmatmul.mubr.f32.gmra.mrb[0].mxu0 %v2728
      %v2817 = vpop.f32.mrb[0].mxu0
      %v2818 = vadd.f32 %v2689, %v2817
      %v2819 = vpop.f32.mrb[0].mxu0
      %2820 = vmatprep.mubr.f32.mxu0 0.0
      %2821 = vmatmul.mubr.f32.gmra.mrb[0].mxu0 %v2731
      %v2822 = vpop.f32.mrb[0].mxu0
      %v2823 = vadd.f32 %v2694, %v2822
      %v2824 = vpop.f32.mrb[0].mxu0
      %2825 = vmatprep.mubr.f32.mxu0 0.0
      %2826 = vmatmul.mubr.f32.gmra.mrb[0].mxu0 %v2734
      %v2827 = vpop.f32.mrb[0].mxu0
      %v2828 = vadd.f32 %v2699, %v2827
      %v2829 = vpop.f32.mrb[0].mxu0
      %2830 = vmatprep.mubr.f32.mxu0 0.0
      %2831 = vmatmul.mubr.f32.gmra.mrb[0].mxu0 %v2737
      %v2832 = vpop.f32.mrb[0].mxu0
      %v2833 = vadd.f32 %v2704, %v2832
      %v2834 = vpop.f32.mrb[0].mxu0
      %2835 = vmatprep.mubr.f32.mxu0 0.0
      %2836 = vmatmul.mubr.f32.gmra.mrb[0].mxu0 %v2740
      %v2837 = vpop.f32.mrb[0].mxu0
      %v2838 = vadd.f32 %v2709, %v2837
      %v2839 = vpop.f32.mrb[0].mxu0
      %2840 = vmatprep.mubr.f32.mxu0 0.0
      %2841 = vmatmul.mubr.f32.gmra.mrb[0].mxu0 %v2743
      %v2842 = vpop.f32.mrb[0].mxu0
      %v2843 = vadd.f32 %v2714, %v2842
      %v2844 = vpop.f32.mrb[0].mxu0
      %2845 = vmatprep.mubr.f32.mxu0 0.0
      %2846 = vmatmul.mubr.f32.gmra.mrb[0].mxu0 %v2746
      %v2847 = vpop.f32.mrb[0].mxu0
      %v2848 = vadd.f32 %v2719, %v2847
      %v2849 = vpop.f32.mrb[0].mxu0
      %2850 = vmatprep.mubr.f32.mxu0 0.0
      %2851 = vmatmul.mubr.f32.gmra.mrb[0].mxu0 %v2749
      %v2852 = vpop.f32.mrb[0].mxu0
      %v2853 = vadd.f32 %v2724, %v2852
      %v2854 = vpop.f32.mrb[0].mxu0
      %2855 = vdwg.mxu0
      %v2856 = vld [vmem:[%s2561 + $0x8] sm:$0xff]
      %v2857 = vld [vmem:[%s2561 + $0x20] sm:$0xff]
      %v2858 = vld [vmem:[%s2561 + $0x38] sm:$0xff]
      %v2859 = vld [vmem:[%s2561 + $0x50] sm:$0xff]
      %v2860 = vld [vmem:[%s2561 + $0x68] sm:$0xff]
      %v2861 = vld [vmem:[%s2561 + $0x80] sm:$0xff]
      %v2862 = vld [vmem:[%s2561 + $0x98] sm:$0xff]
      %v2863 = vld [vmem:[%s2561 + $0xb0] sm:$0xff]
      %s2864 = scalar_lea.vmem %s2, 792
      %v2865 = vld [vmem:[%s2864] sm:$0xff]
      %v2866 = vld [vmem:[%s2864 + $0x8] sm:$0xff]
      %v2867 = vld [vmem:[%s2864 + $0x10] sm:$0xff]
      %v2868 = vld [vmem:[%s2864 + $0x18] sm:$0xff]
      %v2869 = vld [vmem:[%s2864 + $0x20] sm:$0xff]
      %v2870 = vld [vmem:[%s2864 + $0x28] sm:$0xff]
      %v2871 = vld [vmem:[%s2864 + $0x30] sm:$0xff]
      %v2872 = vld [vmem:[%s2864 + $0x38] sm:$0xff]
      %v2873 = vld [vmem:[%s2864 + $0x40] sm:$0xff]
      %v2875 = vsel %vm977, %v2856, 0
      %v2878 = vsel %vm977, %v2857, 0
      %v2881 = vsel %vm977, %v2858, 0
      %v2884 = vsel %vm977, %v2859, 0
      %v2887 = vsel %vm977, %v2860, 0
      %v2890 = vsel %vm977, %v2861, 0
      %v2893 = vsel %vm977, %v2862, 0
      %v2896 = vsel %vm977, %v2863, 0
      %2898 = vmatprep.subr.mxu0 0.0
      %2899 = vmatpush1.msra.mxu0 %v2865
      %2900 = vmatprep.subr.mxu0 0.0
      %2901 = vmatpush1.msra.mxu0 %v2866
      %2902 = vmatprep.subr.mxu0 0.0
      %2903 = vmatpush1.msra.mxu0 %v2867
      %2904 = vmatprep.subr.mxu0 0.0
      %2905 = vmatpush1.msra.mxu0 %v2868
      %2906 = vmatprep.subr.mxu0 0.0
      %2907 = vmatpush1.msra.mxu0 %v2869
      %2908 = vmatprep.subr.mxu0 0.0
      %2909 = vmatpush1.msra.mxu0 %v2870
      %2910 = vmatprep.subr.mxu0 0.0
      %2911 = vmatpush1.msra.mxu0 %v2871
      %2912 = vmatprep.subr.mxu0 0.0
      %2913 = vmatpush1.msra.mxu0 %v2872
      %2914 = vmatprep.subr.mxu0 0.0
      %2915 = vmatpush1.msra.mxu0 %v2873
      %2916 = vmatprep.subr.mxu0 0.0
      %2917 = vmatpush1.msra.mxu0 0.0
      %2918 = vmatprep.subr.mxu0 0.0
      %2919 = vmatpush1.msra.mxu0 0.0
      %2920 = vmatprep.subr.mxu0 0.0
      %2921 = vmatpush1.msra.mxu0 0.0
      %2922 = vmatprep.subr.mxu0 0.0
      %2923 = vmatpush1.msra.mxu0 0.0
      %2924 = vmatprep.subr.mxu0 0.0
      %2925 = vmatpush1.msra.mxu0 0.0
      %2926 = vmatprep.subr.mxu0 0.0
      %2927 = vmatpush1.msra.mxu0 0.0
      %2928 = vmatprep.subr.mxu0 0.0
      %2929 = vmatpush1.msra.mxu0 0.0
      %2930 = vmatprep.subr.mxu0 0.0
      %2931 = vmatpush1.msra.mxu0 0.0
      %2932 = vmatprep.subr.mxu0 0.0
      %2933 = vmatpush1.msra.mxu0 0.0
      %2934 = vmatprep.subr.mxu0 0.0
      %2935 = vmatpush1.msra.mxu0 0.0
      %2936 = vmatprep.subr.mxu0 0.0
      %2937 = vmatpush1.msra.mxu0 0.0
      %2938 = vmatprep.subr.mxu0 0.0
      %2939 = vmatpush1.msra.mxu0 0.0
      %2940 = vmatprep.subr.mxu0 0.0
      %2941 = vmatpush1.msra.mxu0 0.0
      %2942 = vmatprep.subr.mxu0 0.0
      %2943 = vmatpush1.msra.mxu0 0.0
      %2944 = vmatprep.subr.mxu0 0.0
      %2945 = vmatpush1.msra.mxu0 0.0
      %2946 = vmatprep.subr.mxu0 0.0
      %2947 = vmatpush1.msra.mxu0 0.0
      %2948 = vmatprep.subr.mxu0 0.0
      %2949 = vmatpush1.msra.mxu0 0.0
      %2950 = vmatprep.subr.mxu0 0.0
      %2951 = vmatpush1.msra.mxu0 0.0
      %2952 = vmatprep.subr.mxu0 0.0
      %2953 = vmatpush1.msra.mxu0 0.0
      %2954 = vmatprep.subr.mxu0 0.0
      %2955 = vmatpush1.msra.mxu0 0.0
      %2956 = vmatprep.subr.mxu0 0.0
      %2957 = vmatpush1.msra.mxu0 0.0
      %2958 = vmatprep.subr.mxu0 0.0
      %2959 = vmatpush1.msra.mxu0 0.0
      %2960 = vmatprep.subr.mxu0 0.0
      %2961 = vmatpush1.msra.mxu0 0.0
      %2962 = vmatprep.mubr.f32.mxu0 0.0
      %2963 = vmatmul.mubr.f32.gmra.mrb[0].mxu0 %v2875
      %v2964 = vpop.f32.mrb[0].mxu0
      %v2965 = vadd.f32 0.0, %v2964
      %v2966 = vpop.f32.mrb[0].mxu0
      %2967 = vmatprep.mubr.f32.mxu0 0.0
      %2968 = vmatmul.mubr.f32.gmra.mrb[0].mxu0 %v2878
      %v2969 = vpop.f32.mrb[0].mxu0
      %v2970 = vadd.f32 0.0, %v2969
      %v2971 = vpop.f32.mrb[0].mxu0
      %2972 = vmatprep.mubr.f32.mxu0 0.0
      %2973 = vmatmul.mubr.f32.gmra.mrb[0].mxu0 %v2881
      %v2974 = vpop.f32.mrb[0].mxu0
      %v2975 = vadd.f32 0.0, %v2974
      %v2976 = vpop.f32.mrb[0].mxu0
      %2977 = vmatprep.mubr.f32.mxu0 0.0
      %2978 = vmatmul.mubr.f32.gmra.mrb[0].mxu0 %v2884
      %v2979 = vpop.f32.mrb[0].mxu0
      %v2980 = vadd.f32 0.0, %v2979
      %v2981 = vpop.f32.mrb[0].mxu0
      %2982 = vmatprep.mubr.f32.mxu0 0.0
      %2983 = vmatmul.mubr.f32.gmra.mrb[0].mxu0 %v2887
      %v2984 = vpop.f32.mrb[0].mxu0
      %v2985 = vadd.f32 0.0, %v2984
      %v2986 = vpop.f32.mrb[0].mxu0
      %2987 = vmatprep.mubr.f32.mxu0 0.0
      %2988 = vmatmul.mubr.f32.gmra.mrb[0].mxu0 %v2890
      %v2989 = vpop.f32.mrb[0].mxu0
      %v2990 = vadd.f32 0.0, %v2989
      %v2991 = vpop.f32.mrb[0].mxu0
      %2992 = vmatprep.mubr.f32.mxu0 0.0
      %2993 = vmatmul.mubr.f32.gmra.mrb[0].mxu0 %v2893
      %v2994 = vpop.f32.mrb[0].mxu0
      %v2995 = vadd.f32 0.0, %v2994
      %v2996 = vpop.f32.mrb[0].mxu0
      %2997 = vmatprep.mubr.f32.mxu0 0.0
      %2998 = vmatmul.mubr.f32.gmra.mrb[0].mxu0 %v2896
      %v2999 = vpop.f32.mrb[0].mxu0
      %v3000 = vadd.f32 0.0, %v2999
      %v3001 = vpop.f32.mrb[0].mxu0
      %3002 = vdwg.mxu0
      %v3003 = vadd.f32 %v2818, %v2965
      %v3004 = vadd.f32 %v2823, %v2970
      %v3005 = vadd.f32 %v2828, %v2975
      %v3006 = vadd.f32 %v2833, %v2980
      %v3007 = vadd.f32 %v2838, %v2985
      %v3008 = vadd.f32 %v2843, %v2990
      %v3009 = vadd.f32 %v2848, %v2995
      %v3010 = vadd.f32 %v2853, %v3000
      %v3011 = vld [vmem:[%s1391 + $0x2] sm:$0xff]
      %v3012 = vld [vmem:[%s1391 + $0x1a] sm:$0xff]
      %v3013 = vld [vmem:[%s1391 + $0x32] sm:$0xff]
      %v3014 = vld [vmem:[%s1391 + $0x4a] sm:$0xff]
      %v3015 = vld [vmem:[%s1391 + $0x62] sm:$0xff]
      %v3016 = vld [vmem:[%s1391 + $0x7a] sm:$0xff]
      %v3017 = vld [vmem:[%s1391 + $0x92] sm:$0xff]
      %v3018 = vld [vmem:[%s1391 + $0xaa] sm:$0xff]
      %s3019 = scalar_lea.vmem %s2, 864
      %v3020 = vld [vmem:[%s3019] sm:$0xff]
      %v3021 = vld [vmem:[%s3019 + $0x8] sm:$0xff]
      %v3022 = vld [vmem:[%s3019 + $0x10] sm:$0xff]
      %v3023 = vld [vmem:[%s3019 + $0x18] sm:$0xff]
      %v3024 = vld [vmem:[%s3019 + $0x20] sm:$0xff]
      %v3025 = vld [vmem:[%s3019 + $0x28] sm:$0xff]
      %v3026 = vld [vmem:[%s3019 + $0x30] sm:$0xff]
      %v3027 = vld [vmem:[%s3019 + $0x38] sm:$0xff]
      %v3028 = vld [vmem:[%s3019 + $0x40] sm:$0xff]
      %v3030 = vsel %vm977, %v3011, 0
      %v3033 = vsel %vm977, %v3012, 0
      %v3036 = vsel %vm977, %v3013, 0
      %v3039 = vsel %vm977, %v3014, 0
      %v3042 = vsel %vm977, %v3015, 0
      %v3045 = vsel %vm977, %v3016, 0
      %v3048 = vsel %vm977, %v3017, 0
      %v3051 = vsel %vm977, %v3018, 0
      %3053 = vmatprep.subr.mxu0 0.0
      %3054 = vmatpush1.msra.mxu0 %v3020
      %3055 = vmatprep.subr.mxu0 0.0
      %3056 = vmatpush1.msra.mxu0 %v3021
      %3057 = vmatprep.subr.mxu0 0.0
      %3058 = vmatpush1.msra.mxu0 %v3022
      %3059 = vmatprep.subr.mxu0 0.0
      %3060 = vmatpush1.msra.mxu0 %v3023
      %3061 = vmatprep.subr.mxu0 0.0
      %3062 = vmatpush1.msra.mxu0 %v3024
      %3063 = vmatprep.subr.mxu0 0.0
      %3064 = vmatpush1.msra.mxu0 %v3025
      %3065 = vmatprep.subr.mxu0 0.0
      %3066 = vmatpush1.msra.mxu0 %v3026
      %3067 = vmatprep.subr.mxu0 0.0
      %3068 = vmatpush1.msra.mxu0 %v3027
      %3069 = vmatprep.subr.mxu0 0.0
      %3070 = vmatpush1.msra.mxu0 %v3028
      %3071 = vmatprep.subr.mxu0 0.0
      %3072 = vmatpush1.msra.mxu0 0.0
      %3073 = vmatprep.subr.mxu0 0.0
      %3074 = vmatpush1.msra.mxu0 0.0
      %3075 = vmatprep.subr.mxu0 0.0
      %3076 = vmatpush1.msra.mxu0 0.0
      %3077 = vmatprep.subr.mxu0 0.0
      %3078 = vmatpush1.msra.mxu0 0.0
      %3079 = vmatprep.subr.mxu0 0.0
      %3080 = vmatpush1.msra.mxu0 0.0
      %3081 = vmatprep.subr.mxu0 0.0
      %3082 = vmatpush1.msra.mxu0 0.0
      %3083 = vmatprep.subr.mxu0 0.0
      %3084 = vmatpush1.msra.mxu0 0.0
      %3085 = vmatprep.subr.mxu0 0.0
      %3086 = vmatpush1.msra.mxu0 0.0
      %3087 = vmatprep.subr.mxu0 0.0
      %3088 = vmatpush1.msra.mxu0 0.0
      %3089 = vmatprep.subr.mxu0 0.0
      %3090 = vmatpush1.msra.mxu0 0.0
      %3091 = vmatprep.subr.mxu0 0.0
      %3092 = vmatpush1.msra.mxu0 0.0
      %3093 = vmatprep.subr.mxu0 0.0
      %3094 = vmatpush1.msra.mxu0 0.0
      %3095 = vmatprep.subr.mxu0 0.0
      %3096 = vmatpush1.msra.mxu0 0.0
      %3097 = vmatprep.subr.mxu0 0.0
      %3098 = vmatpush1.msra.mxu0 0.0
      %3099 = vmatprep.subr.mxu0 0.0
      %3100 = vmatpush1.msra.mxu0 0.0
      %3101 = vmatprep.subr.mxu0 0.0
      %3102 = vmatpush1.msra.mxu0 0.0
      %3103 = vmatprep.subr.mxu0 0.0
      %3104 = vmatpush1.msra.mxu0 0.0
      %3105 = vmatprep.subr.mxu0 0.0
      %3106 = vmatpush1.msra.mxu0 0.0
      %3107 = vmatprep.subr.mxu0 0.0
      %3108 = vmatpush1.msra.mxu0 0.0
      %3109 = vmatprep.subr.mxu0 0.0
      %3110 = vmatpush1.msra.mxu0 0.0
      %3111 = vmatprep.subr.mxu0 0.0
      %3112 = vmatpush1.msra.mxu0 0.0
      %3113 = vmatprep.subr.mxu0 0.0
      %3114 = vmatpush1.msra.mxu0 0.0
      %3115 = vmatprep.subr.mxu0 0.0
      %3116 = vmatpush1.msra.mxu0 0.0
      %3117 = vmatprep.mubr.f32.mxu0 0.0
      %3118 = vmatmul.mubr.f32.gmra.mrb[0].mxu0 %v3030
      %v3119 = vpop.f32.mrb[0].mxu0
      %v3120 = vadd.f32 0.0, %v3119
      %v3121 = vpop.f32.mrb[0].mxu0
      %3122 = vmatprep.mubr.f32.mxu0 0.0
      %3123 = vmatmul.mubr.f32.gmra.mrb[0].mxu0 %v3033
      %v3124 = vpop.f32.mrb[0].mxu0
      %v3125 = vadd.f32 0.0, %v3124
      %v3126 = vpop.f32.mrb[0].mxu0
      %3127 = vmatprep.mubr.f32.mxu0 0.0
      %3128 = vmatmul.mubr.f32.gmra.mrb[0].mxu0 %v3036
      %v3129 = vpop.f32.mrb[0].mxu0
      %v3130 = vadd.f32 0.0, %v3129
      %v3131 = vpop.f32.mrb[0].mxu0
      %3132 = vmatprep.mubr.f32.mxu0 0.0
      %3133 = vmatmul.mubr.f32.gmra.mrb[0].mxu0 %v3039
      %v3134 = vpop.f32.mrb[0].mxu0
      %v3135 = vadd.f32 0.0, %v3134
      %v3136 = vpop.f32.mrb[0].mxu0
      %3137 = vmatprep.mubr.f32.mxu0 0.0
      %3138 = vmatmul.mubr.f32.gmra.mrb[0].mxu0 %v3042
      %v3139 = vpop.f32.mrb[0].mxu0
      %v3140 = vadd.f32 0.0, %v3139
      %v3141 = vpop.f32.mrb[0].mxu0
      %3142 = vmatprep.mubr.f32.mxu0 0.0
      %3143 = vmatmul.mubr.f32.gmra.mrb[0].mxu0 %v3045
      %v3144 = vpop.f32.mrb[0].mxu0
      %v3145 = vadd.f32 0.0, %v3144
      %v3146 = vpop.f32.mrb[0].mxu0
      %3147 = vmatprep.mubr.f32.mxu0 0.0
      %3148 = vmatmul.mubr.f32.gmra.mrb[0].mxu0 %v3048
      %v3149 = vpop.f32.mrb[0].mxu0
      %v3150 = vadd.f32 0.0, %v3149
      %v3151 = vpop.f32.mrb[0].mxu0
      %3152 = vmatprep.mubr.f32.mxu0 0.0
      %3153 = vmatmul.mubr.f32.gmra.mrb[0].mxu0 %v3051
      %v3154 = vpop.f32.mrb[0].mxu0
      %v3155 = vadd.f32 0.0, %v3154
      %v3156 = vpop.f32.mrb[0].mxu0
      %3157 = vdwg.mxu0
      %v3158 = vadd.f32 %v3003, %v3120
      %v3159 = vadd.f32 %v3004, %v3125
      %v3160 = vadd.f32 %v3005, %v3130
      %v3161 = vadd.f32 %v3006, %v3135
      %v3162 = vadd.f32 %v3007, %v3140
      %v3163 = vadd.f32 %v3008, %v3145
      %v3164 = vadd.f32 %v3009, %v3150
      %v3165 = vadd.f32 %v3010, %v3155
      %s3166 = scalar_lea.vmem %s2, 936
      %v3167 = vld [vmem:[%s3166] sm:$0xff]
      %v3168 = vld [vmem:[%s3166 + $0x8] sm:$0xff]
      %v3169 = vld [vmem:[%s3166 + $0x10] sm:$0xff]
      %v3170 = vld [vmem:[%s3166 + $0x18] sm:$0xff]
      %v3171 = vld [vmem:[%s3166 + $0x20] sm:$0xff]
      %v3172 = vld [vmem:[%s3166 + $0x28] sm:$0xff]
      %v3173 = vld [vmem:[%s3166 + $0x30] sm:$0xff]
      %v3174 = vld [vmem:[%s3166 + $0x38] sm:$0xff]
      %v3175 = vld [vmem:[%s3166 + $0x40] sm:$0xff]
      %3176 = vmatprep.subr.mxu0 0.0
      %3177 = vmatpush1.msra.mxu0 %v3167
      %3178 = vmatprep.subr.mxu0 0.0
      %3179 = vmatpush1.msra.mxu0 %v3168
      %3180 = vmatprep.subr.mxu0 0.0
      %3181 = vmatpush1.msra.mxu0 %v3169
      %3182 = vmatprep.subr.mxu0 0.0
      %3183 = vmatpush1.msra.mxu0 %v3170
      %3184 = vmatprep.subr.mxu0 0.0
      %3185 = vmatpush1.msra.mxu0 %v3171
      %3186 = vmatprep.subr.mxu0 0.0
      %3187 = vmatpush1.msra.mxu0 %v3172
      %3188 = vmatprep.subr.mxu0 0.0
      %3189 = vmatpush1.msra.mxu0 %v3173
      %3190 = vmatprep.subr.mxu0 0.0
      %3191 = vmatpush1.msra.mxu0 %v3174
      %3192 = vmatprep.subr.mxu0 0.0
      %3193 = vmatpush1.msra.mxu0 %v3175
      %3194 = vmatprep.subr.mxu0 0.0
      %3195 = vmatpush1.msra.mxu0 0.0
      %3196 = vmatprep.subr.mxu0 0.0
      %3197 = vmatpush1.msra.mxu0 0.0
      %3198 = vmatprep.subr.mxu0 0.0
      %3199 = vmatpush1.msra.mxu0 0.0
      %3200 = vmatprep.subr.mxu0 0.0
      %3201 = vmatpush1.msra.mxu0 0.0
      %3202 = vmatprep.subr.mxu0 0.0
      %3203 = vmatpush1.msra.mxu0 0.0
      %3204 = vmatprep.subr.mxu0 0.0
      %3205 = vmatpush1.msra.mxu0 0.0
      %3206 = vmatprep.subr.mxu0 0.0
      %3207 = vmatpush1.msra.mxu0 0.0
      %3208 = vmatprep.subr.mxu0 0.0
      %3209 = vmatpush1.msra.mxu0 0.0
      %3210 = vmatprep.subr.mxu0 0.0
      %3211 = vmatpush1.msra.mxu0 0.0
      %3212 = vmatprep.subr.mxu0 0.0
      %3213 = vmatpush1.msra.mxu0 0.0
      %3214 = vmatprep.subr.mxu0 0.0
      %3215 = vmatpush1.msra.mxu0 0.0
      %3216 = vmatprep.subr.mxu0 0.0
      %3217 = vmatpush1.msra.mxu0 0.0
      %3218 = vmatprep.subr.mxu0 0.0
      %3219 = vmatpush1.msra.mxu0 0.0
      %3220 = vmatprep.subr.mxu0 0.0
      %3221 = vmatpush1.msra.mxu0 0.0
      %3222 = vmatprep.subr.mxu0 0.0
      %3223 = vmatpush1.msra.mxu0 0.0
      %3224 = vmatprep.subr.mxu0 0.0
      %3225 = vmatpush1.msra.mxu0 0.0
      %3226 = vmatprep.subr.mxu0 0.0
      %3227 = vmatpush1.msra.mxu0 0.0
      %3228 = vmatprep.subr.mxu0 0.0
      %3229 = vmatpush1.msra.mxu0 0.0
      %3230 = vmatprep.subr.mxu0 0.0
      %3231 = vmatpush1.msra.mxu0 0.0
      %3232 = vmatprep.subr.mxu0 0.0
      %3233 = vmatpush1.msra.mxu0 0.0
      %3234 = vmatprep.subr.mxu0 0.0
      %3235 = vmatpush1.msra.mxu0 0.0
      %3236 = vmatprep.subr.mxu0 0.0
      %3237 = vmatpush1.msra.mxu0 0.0
      %3238 = vmatprep.subr.mxu0 0.0
      %3239 = vmatpush1.msra.mxu0 0.0
      %3240 = vmatprep.mubr.f32.mxu0 0.0
      %3241 = vmatmul.mubr.f32.gmra.mrb[0].mxu0 %v1566
      %v3242 = vpop.f32.mrb[0].mxu0
      %v3243 = vadd.f32 0.0, %v3242
      %v3244 = vpop.f32.mrb[0].mxu0
      %3245 = vmatprep.mubr.f32.mxu0 0.0
      %3246 = vmatmul.mubr.f32.gmra.mrb[0].mxu0 %v1569
      %v3247 = vpop.f32.mrb[0].mxu0
      %v3248 = vadd.f32 0.0, %v3247
      %v3249 = vpop.f32.mrb[0].mxu0
      %3250 = vmatprep.mubr.f32.mxu0 0.0
      %3251 = vmatmul.mubr.f32.gmra.mrb[0].mxu0 %v1572
      %v3252 = vpop.f32.mrb[0].mxu0
      %v3253 = vadd.f32 0.0, %v3252
      %v3254 = vpop.f32.mrb[0].mxu0
      %3255 = vmatprep.mubr.f32.mxu0 0.0
      %3256 = vmatmul.mubr.f32.gmra.mrb[0].mxu0 %v1575
      %v3257 = vpop.f32.mrb[0].mxu0
      %v3258 = vadd.f32 0.0, %v3257
      %v3259 = vpop.f32.mrb[0].mxu0
      %3260 = vmatprep.mubr.f32.mxu0 0.0
      %3261 = vmatmul.mubr.f32.gmra.mrb[0].mxu0 %v1578
      %v3262 = vpop.f32.mrb[0].mxu0
      %v3263 = vadd.f32 0.0, %v3262
      %v3264 = vpop.f32.mrb[0].mxu0
      %3265 = vmatprep.mubr.f32.mxu0 0.0
      %3266 = vmatmul.mubr.f32.gmra.mrb[0].mxu0 %v1581
      %v3267 = vpop.f32.mrb[0].mxu0
      %v3268 = vadd.f32 0.0, %v3267
      %v3269 = vpop.f32.mrb[0].mxu0
      %3270 = vmatprep.mubr.f32.mxu0 0.0
      %3271 = vmatmul.mubr.f32.gmra.mrb[0].mxu0 %v1584
      %v3272 = vpop.f32.mrb[0].mxu0
      %v3273 = vadd.f32 0.0, %v3272
      %v3274 = vpop.f32.mrb[0].mxu0
      %3275 = vmatprep.mubr.f32.mxu0 0.0
      %3276 = vmatmul.mubr.f32.gmra.mrb[0].mxu0 %v1587
      %v3277 = vpop.f32.mrb[0].mxu0
      %v3278 = vadd.f32 0.0, %v3277
      %v3279 = vpop.f32.mrb[0].mxu0
      %3280 = vdwg.mxu0
      %v3281 = vadd.f32 %v3158, %v3243
      %v3282 = vadd.f32 %v3159, %v3248
      %v3283 = vadd.f32 %v3160, %v3253
      %v3284 = vadd.f32 %v3161, %v3258
      %v3285 = vadd.f32 %v3162, %v3263
      %v3286 = vadd.f32 %v3163, %v3268
      %v3287 = vadd.f32 %v3164, %v3273
      %v3288 = vadd.f32 %v3165, %v3278
      %v3289 = vld [vmem:[%s1391 + $0x8] sm:$0xff]
      %v3290 = vld [vmem:[%s1391 + $0x20] sm:$0xff]
      %v3291 = vld [vmem:[%s1391 + $0x38] sm:$0xff]
      %v3292 = vld [vmem:[%s1391 + $0x50] sm:$0xff]
      %v3293 = vld [vmem:[%s1391 + $0x68] sm:$0xff]
      %v3294 = vld [vmem:[%s1391 + $0x80] sm:$0xff]
      %v3295 = vld [vmem:[%s1391 + $0x98] sm:$0xff]
      %v3296 = vld [vmem:[%s1391 + $0xb0] sm:$0xff]
      %s3297 = scalar_lea.vmem %s2, 1008
      %v3298 = vld [vmem:[%s3297] sm:$0xff]
      %v3299 = vld [vmem:[%s3297 + $0x8] sm:$0xff]
      %v3300 = vld [vmem:[%s3297 + $0x10] sm:$0xff]
      %v3301 = vld [vmem:[%s3297 + $0x18] sm:$0xff]
      %v3302 = vld [vmem:[%s3297 + $0x20] sm:$0xff]
      %v3303 = vld [vmem:[%s3297 + $0x28] sm:$0xff]
      %v3304 = vld [vmem:[%s3297 + $0x30] sm:$0xff]
      %v3305 = vld [vmem:[%s3297 + $0x38] sm:$0xff]
      %v3306 = vld [vmem:[%s3297 + $0x40] sm:$0xff]
      %v3308 = vsel %vm977, %v3289, 0
      %v3311 = vsel %vm977, %v3290, 0
      %v3314 = vsel %vm977, %v3291, 0
      %v3317 = vsel %vm977, %v3292, 0
      %v3320 = vsel %vm977, %v3293, 0
      %v3323 = vsel %vm977, %v3294, 0
      %v3326 = vsel %vm977, %v3295, 0
      %v3329 = vsel %vm977, %v3296, 0
      %3331 = vmatprep.subr.mxu0 0.0
      %3332 = vmatpush1.msra.mxu0 %v3298
      %3333 = vmatprep.subr.mxu0 0.0
      %3334 = vmatpush1.msra.mxu0 %v3299
      %3335 = vmatprep.subr.mxu0 0.0
      %3336 = vmatpush1.msra.mxu0 %v3300
      %3337 = vmatprep.subr.mxu0 0.0
      %3338 = vmatpush1.msra.mxu0 %v3301
      %3339 = vmatprep.subr.mxu0 0.0
      %3340 = vmatpush1.msra.mxu0 %v3302
      %3341 = vmatprep.subr.mxu0 0.0
      %3342 = vmatpush1.msra.mxu0 %v3303
      %3343 = vmatprep.subr.mxu0 0.0
      %3344 = vmatpush1.msra.mxu0 %v3304
      %3345 = vmatprep.subr.mxu0 0.0
      %3346 = vmatpush1.msra.mxu0 %v3305
      %3347 = vmatprep.subr.mxu0 0.0
      %3348 = vmatpush1.msra.mxu0 %v3306
      %3349 = vmatprep.subr.mxu0 0.0
      %3350 = vmatpush1.msra.mxu0 0.0
      %3351 = vmatprep.subr.mxu0 0.0
      %3352 = vmatpush1.msra.mxu0 0.0
      %3353 = vmatprep.subr.mxu0 0.0
      %3354 = vmatpush1.msra.mxu0 0.0
      %3355 = vmatprep.subr.mxu0 0.0
      %3356 = vmatpush1.msra.mxu0 0.0
      %3357 = vmatprep.subr.mxu0 0.0
      %3358 = vmatpush1.msra.mxu0 0.0
      %3359 = vmatprep.subr.mxu0 0.0
      %3360 = vmatpush1.msra.mxu0 0.0
      %3361 = vmatprep.subr.mxu0 0.0
      %3362 = vmatpush1.msra.mxu0 0.0
      %3363 = vmatprep.subr.mxu0 0.0
      %3364 = vmatpush1.msra.mxu0 0.0
      %3365 = vmatprep.subr.mxu0 0.0
      %3366 = vmatpush1.msra.mxu0 0.0
      %3367 = vmatprep.subr.mxu0 0.0
      %3368 = vmatpush1.msra.mxu0 0.0
      %3369 = vmatprep.subr.mxu0 0.0
      %3370 = vmatpush1.msra.mxu0 0.0
      %3371 = vmatprep.subr.mxu0 0.0
      %3372 = vmatpush1.msra.mxu0 0.0
      %3373 = vmatprep.subr.mxu0 0.0
      %3374 = vmatpush1.msra.mxu0 0.0
      %3375 = vmatprep.subr.mxu0 0.0
      %3376 = vmatpush1.msra.mxu0 0.0
      %3377 = vmatprep.subr.mxu0 0.0
      %3378 = vmatpush1.msra.mxu0 0.0
      %3379 = vmatprep.subr.mxu0 0.0
      %3380 = vmatpush1.msra.mxu0 0.0
      %3381 = vmatprep.subr.mxu0 0.0
      %3382 = vmatpush1.msra.mxu0 0.0
      %3383 = vmatprep.subr.mxu0 0.0
      %3384 = vmatpush1.msra.mxu0 0.0
      %3385 = vmatprep.subr.mxu0 0.0
      %3386 = vmatpush1.msra.mxu0 0.0
      %3387 = vmatprep.subr.mxu0 0.0
      %3388 = vmatpush1.msra.mxu0 0.0
      %3389 = vmatprep.subr.mxu0 0.0
      %3390 = vmatpush1.msra.mxu0 0.0
      %3391 = vmatprep.subr.mxu0 0.0
      %3392 = vmatpush1.msra.mxu0 0.0
      %3393 = vmatprep.subr.mxu0 0.0
      %3394 = vmatpush1.msra.mxu0 0.0
      %3395 = vmatprep.mubr.f32.mxu0 0.0
      %3396 = vmatmul.mubr.f32.gmra.mrb[0].mxu0 %v3308
      %v3397 = vpop.f32.mrb[0].mxu0
      %v3398 = vadd.f32 0.0, %v3397
      %v3399 = vpop.f32.mrb[0].mxu0
      %3400 = vmatprep.mubr.f32.mxu0 0.0
      %3401 = vmatmul.mubr.f32.gmra.mrb[0].mxu0 %v3311
      %v3402 = vpop.f32.mrb[0].mxu0
      %v3403 = vadd.f32 0.0, %v3402
      %v3404 = vpop.f32.mrb[0].mxu0
      %3405 = vmatprep.mubr.f32.mxu0 0.0
      %3406 = vmatmul.mubr.f32.gmra.mrb[0].mxu0 %v3314
      %v3407 = vpop.f32.mrb[0].mxu0
      %v3408 = vadd.f32 0.0, %v3407
      %v3409 = vpop.f32.mrb[0].mxu0
      %3410 = vmatprep.mubr.f32.mxu0 0.0
      %3411 = vmatmul.mubr.f32.gmra.mrb[0].mxu0 %v3317
      %v3412 = vpop.f32.mrb[0].mxu0
      %v3413 = vadd.f32 0.0, %v3412
      %v3414 = vpop.f32.mrb[0].mxu0
      %3415 = vmatprep.mubr.f32.mxu0 0.0
      %3416 = vmatmul.mubr.f32.gmra.mrb[0].mxu0 %v3320
      %v3417 = vpop.f32.mrb[0].mxu0
      %v3418 = vadd.f32 0.0, %v3417
      %v3419 = vpop.f32.mrb[0].mxu0
      %3420 = vmatprep.mubr.f32.mxu0 0.0
      %3421 = vmatmul.mubr.f32.gmra.mrb[0].mxu0 %v3323
      %v3422 = vpop.f32.mrb[0].mxu0
      %v3423 = vadd.f32 0.0, %v3422
      %v3424 = vpop.f32.mrb[0].mxu0
      %3425 = vmatprep.mubr.f32.mxu0 0.0
      %3426 = vmatmul.mubr.f32.gmra.mrb[0].mxu0 %v3326
      %v3427 = vpop.f32.mrb[0].mxu0
      %v3428 = vadd.f32 0.0, %v3427
      %v3429 = vpop.f32.mrb[0].mxu0
      %3430 = vmatprep.mubr.f32.mxu0 0.0
      %3431 = vmatmul.mubr.f32.gmra.mrb[0].mxu0 %v3329
      %v3432 = vpop.f32.mrb[0].mxu0
      %v3433 = vadd.f32 0.0, %v3432
      %v3434 = vpop.f32.mrb[0].mxu0
      %3435 = vdwg.mxu0
      %v3436 = vadd.f32 %v3281, %v3398
      %v3437 = vadd.f32 %v3282, %v3403
      %v3438 = vadd.f32 %v3283, %v3408
      %v3439 = vadd.f32 %v3284, %v3413
      %v3440 = vadd.f32 %v3285, %v3418
      %v3441 = vadd.f32 %v3286, %v3423
      %v3442 = vadd.f32 %v3287, %v3428
      %v3443 = vadd.f32 %v3288, %v3433
      %s3444 = scalar_lea.vmem %s266, 192
      %v3445 = vld [vmem:[%s3444 + $0x2] sm:$0xff]
      %v3446 = vld [vmem:[%s3444 + $0x1a] sm:$0xff]
      %v3447 = vld [vmem:[%s3444 + $0x32] sm:$0xff]
      %v3448 = vld [vmem:[%s3444 + $0x4a] sm:$0xff]
      %v3449 = vld [vmem:[%s3444 + $0x62] sm:$0xff]
      %v3450 = vld [vmem:[%s3444 + $0x7a] sm:$0xff]
      %v3451 = vld [vmem:[%s3444 + $0x92] sm:$0xff]
      %v3452 = vld [vmem:[%s3444 + $0xaa] sm:$0xff]
      %s3453 = scalar_lea.vmem %s2, 1080
      %v3454 = vld [vmem:[%s3453] sm:$0xff]
      %v3455 = vld [vmem:[%s3453 + $0x8] sm:$0xff]
      %v3456 = vld [vmem:[%s3453 + $0x10] sm:$0xff]
      %v3457 = vld [vmem:[%s3453 + $0x18] sm:$0xff]
      %v3458 = vld [vmem:[%s3453 + $0x20] sm:$0xff]
      %v3459 = vld [vmem:[%s3453 + $0x28] sm:$0xff]
      %v3460 = vld [vmem:[%s3453 + $0x30] sm:$0xff]
      %v3461 = vld [vmem:[%s3453 + $0x38] sm:$0xff]
      %v3462 = vld [vmem:[%s3453 + $0x40] sm:$0xff]
      %v3464 = vsel %vm977, %v3445, 0
      %v3467 = vsel %vm977, %v3446, 0
      %v3470 = vsel %vm977, %v3447, 0
      %v3473 = vsel %vm977, %v3448, 0
      %v3476 = vsel %vm977, %v3449, 0
      %v3479 = vsel %vm977, %v3450, 0
      %v3482 = vsel %vm977, %v3451, 0
      %v3485 = vsel %vm977, %v3452, 0
      %3487 = vmatprep.subr.mxu0 0.0
      %3488 = vmatpush1.msra.mxu0 %v3454
      %3489 = vmatprep.subr.mxu0 0.0
      %3490 = vmatpush1.msra.mxu0 %v3455
      %3491 = vmatprep.subr.mxu0 0.0
      %3492 = vmatpush1.msra.mxu0 %v3456
      %3493 = vmatprep.subr.mxu0 0.0
      %3494 = vmatpush1.msra.mxu0 %v3457
      %3495 = vmatprep.subr.mxu0 0.0
      %3496 = vmatpush1.msra.mxu0 %v3458
      %3497 = vmatprep.subr.mxu0 0.0
      %3498 = vmatpush1.msra.mxu0 %v3459
      %3499 = vmatprep.subr.mxu0 0.0
      %3500 = vmatpush1.msra.mxu0 %v3460
      %3501 = vmatprep.subr.mxu0 0.0
      %3502 = vmatpush1.msra.mxu0 %v3461
      %3503 = vmatprep.subr.mxu0 0.0
      %3504 = vmatpush1.msra.mxu0 %v3462
      %3505 = vmatprep.subr.mxu0 0.0
      %3506 = vmatpush1.msra.mxu0 0.0
      %3507 = vmatprep.subr.mxu0 0.0
      %3508 = vmatpush1.msra.mxu0 0.0
      %3509 = vmatprep.subr.mxu0 0.0
      %3510 = vmatpush1.msra.mxu0 0.0
      %3511 = vmatprep.subr.mxu0 0.0
      %3512 = vmatpush1.msra.mxu0 0.0
      %3513 = vmatprep.subr.mxu0 0.0
      %3514 = vmatpush1.msra.mxu0 0.0
      %3515 = vmatprep.subr.mxu0 0.0
      %3516 = vmatpush1.msra.mxu0 0.0
      %3517 = vmatprep.subr.mxu0 0.0
      %3518 = vmatpush1.msra.mxu0 0.0
      %3519 = vmatprep.subr.mxu0 0.0
      %3520 = vmatpush1.msra.mxu0 0.0
      %3521 = vmatprep.subr.mxu0 0.0
      %3522 = vmatpush1.msra.mxu0 0.0
      %3523 = vmatprep.subr.mxu0 0.0
      %3524 = vmatpush1.msra.mxu0 0.0
      %3525 = vmatprep.subr.mxu0 0.0
      %3526 = vmatpush1.msra.mxu0 0.0
      %3527 = vmatprep.subr.mxu0 0.0
      %3528 = vmatpush1.msra.mxu0 0.0
      %3529 = vmatprep.subr.mxu0 0.0
      %3530 = vmatpush1.msra.mxu0 0.0
      %3531 = vmatprep.subr.mxu0 0.0
      %3532 = vmatpush1.msra.mxu0 0.0
      %3533 = vmatprep.subr.mxu0 0.0
      %3534 = vmatpush1.msra.mxu0 0.0
      %3535 = vmatprep.subr.mxu0 0.0
      %3536 = vmatpush1.msra.mxu0 0.0
      %3537 = vmatprep.subr.mxu0 0.0
      %3538 = vmatpush1.msra.mxu0 0.0
      %3539 = vmatprep.subr.mxu0 0.0
      %3540 = vmatpush1.msra.mxu0 0.0
      %3541 = vmatprep.subr.mxu0 0.0
      %3542 = vmatpush1.msra.mxu0 0.0
      %3543 = vmatprep.subr.mxu0 0.0
      %3544 = vmatpush1.msra.mxu0 0.0
      %3545 = vmatprep.subr.mxu0 0.0
      %3546 = vmatpush1.msra.mxu0 0.0
      %3547 = vmatprep.subr.mxu0 0.0
      %3548 = vmatpush1.msra.mxu0 0.0
      %3549 = vmatprep.subr.mxu0 0.0
      %3550 = vmatpush1.msra.mxu0 0.0
      %3551 = vmatprep.mubr.f32.mxu0 0.0
      %3552 = vmatmul.mubr.f32.gmra.mrb[0].mxu0 %v3464
      %v3553 = vpop.f32.mrb[0].mxu0
      %v3554 = vadd.f32 0.0, %v3553
      %v3555 = vpop.f32.mrb[0].mxu0
      %3556 = vmatprep.mubr.f32.mxu0 0.0
      %3557 = vmatmul.mubr.f32.gmra.mrb[0].mxu0 %v3467
      %v3558 = vpop.f32.mrb[0].mxu0
      %v3559 = vadd.f32 0.0, %v3558
      %v3560 = vpop.f32.mrb[0].mxu0
      %3561 = vmatprep.mubr.f32.mxu0 0.0
      %3562 = vmatmul.mubr.f32.gmra.mrb[0].mxu0 %v3470
      %v3563 = vpop.f32.mrb[0].mxu0
      %v3564 = vadd.f32 0.0, %v3563
      %v3565 = vpop.f32.mrb[0].mxu0
      %3566 = vmatprep.mubr.f32.mxu0 0.0
      %3567 = vmatmul.mubr.f32.gmra.mrb[0].mxu0 %v3473
      %v3568 = vpop.f32.mrb[0].mxu0
      %v3569 = vadd.f32 0.0, %v3568
      %v3570 = vpop.f32.mrb[0].mxu0
      %3571 = vmatprep.mubr.f32.mxu0 0.0
      %3572 = vmatmul.mubr.f32.gmra.mrb[0].mxu0 %v3476
      %v3573 = vpop.f32.mrb[0].mxu0
      %v3574 = vadd.f32 0.0, %v3573
      %v3575 = vpop.f32.mrb[0].mxu0
      %3576 = vmatprep.mubr.f32.mxu0 0.0
      %3577 = vmatmul.mubr.f32.gmra.mrb[0].mxu0 %v3479
      %v3578 = vpop.f32.mrb[0].mxu0
      %v3579 = vadd.f32 0.0, %v3578
      %v3580 = vpop.f32.mrb[0].mxu0
      %3581 = vmatprep.mubr.f32.mxu0 0.0
      %3582 = vmatmul.mubr.f32.gmra.mrb[0].mxu0 %v3482
      %v3583 = vpop.f32.mrb[0].mxu0
      %v3584 = vadd.f32 0.0, %v3583
      %v3585 = vpop.f32.mrb[0].mxu0
      %3586 = vmatprep.mubr.f32.mxu0 0.0
      %3587 = vmatmul.mubr.f32.gmra.mrb[0].mxu0 %v3485
      %v3588 = vpop.f32.mrb[0].mxu0
      %v3589 = vadd.f32 0.0, %v3588
      %v3590 = vpop.f32.mrb[0].mxu0
      %3591 = vdwg.mxu0
      %v3592 = vadd.f32 %v3436, %v3554
      %v3593 = vadd.f32 %v3437, %v3559
      %v3594 = vadd.f32 %v3438, %v3564
      %v3595 = vadd.f32 %v3439, %v3569
      %v3596 = vadd.f32 %v3440, %v3574
      %v3597 = vadd.f32 %v3441, %v3579
      %v3598 = vadd.f32 %v3442, %v3584
      %v3599 = vadd.f32 %v3443, %v3589
      %v3600 = vld [vmem:[%s3444 + $0x5] sm:$0xff]
      %v3601 = vld [vmem:[%s3444 + $0x1d] sm:$0xff]
      %v3602 = vld [vmem:[%s3444 + $0x35] sm:$0xff]
      %v3603 = vld [vmem:[%s3444 + $0x4d] sm:$0xff]
      %v3604 = vld [vmem:[%s3444 + $0x65] sm:$0xff]
      %v3605 = vld [vmem:[%s3444 + $0x7d] sm:$0xff]
      %v3606 = vld [vmem:[%s3444 + $0x95] sm:$0xff]
      %v3607 = vld [vmem:[%s3444 + $0xad] sm:$0xff]
      %s3608 = scalar_lea.vmem %s2, 1152
      %v3609 = vld [vmem:[%s3608] sm:$0xff]
      %v3610 = vld [vmem:[%s3608 + $0x8] sm:$0xff]
      %v3611 = vld [vmem:[%s3608 + $0x10] sm:$0xff]
      %v3612 = vld [vmem:[%s3608 + $0x18] sm:$0xff]
      %v3613 = vld [vmem:[%s3608 + $0x20] sm:$0xff]
      %v3614 = vld [vmem:[%s3608 + $0x28] sm:$0xff]
      %v3615 = vld [vmem:[%s3608 + $0x30] sm:$0xff]
      %v3616 = vld [vmem:[%s3608 + $0x38] sm:$0xff]
      %v3617 = vld [vmem:[%s3608 + $0x40] sm:$0xff]
      %v3619 = vsel %vm977, %v3600, 0
      %v3622 = vsel %vm977, %v3601, 0
      %v3625 = vsel %vm977, %v3602, 0
      %v3628 = vsel %vm977, %v3603, 0
      %v3631 = vsel %vm977, %v3604, 0
      %v3634 = vsel %vm977, %v3605, 0
      %v3637 = vsel %vm977, %v3606, 0
      %v3640 = vsel %vm977, %v3607, 0
      %3642 = vmatprep.subr.mxu0 0.0
      %3643 = vmatpush1.msra.mxu0 %v3609
      %3644 = vmatprep.subr.mxu0 0.0
      %3645 = vmatpush1.msra.mxu0 %v3610
      %3646 = vmatprep.subr.mxu0 0.0
      %3647 = vmatpush1.msra.mxu0 %v3611
      %3648 = vmatprep.subr.mxu0 0.0
      %3649 = vmatpush1.msra.mxu0 %v3612
      %3650 = vmatprep.subr.mxu0 0.0
      %3651 = vmatpush1.msra.mxu0 %v3613
      %3652 = vmatprep.subr.mxu0 0.0
      %3653 = vmatpush1.msra.mxu0 %v3614
      %3654 = vmatprep.subr.mxu0 0.0
      %3655 = vmatpush1.msra.mxu0 %v3615
      %3656 = vmatprep.subr.mxu0 0.0
      %3657 = vmatpush1.msra.mxu0 %v3616
      %3658 = vmatprep.subr.mxu0 0.0
      %3659 = vmatpush1.msra.mxu0 %v3617
      %3660 = vmatprep.subr.mxu0 0.0
      %3661 = vmatpush1.msra.mxu0 0.0
      %3662 = vmatprep.subr.mxu0 0.0
      %3663 = vmatpush1.msra.mxu0 0.0
      %3664 = vmatprep.subr.mxu0 0.0
      %3665 = vmatpush1.msra.mxu0 0.0
      %3666 = vmatprep.subr.mxu0 0.0
      %3667 = vmatpush1.msra.mxu0 0.0
      %3668 = vmatprep.subr.mxu0 0.0
      %3669 = vmatpush1.msra.mxu0 0.0
      %3670 = vmatprep.subr.mxu0 0.0
      %3671 = vmatpush1.msra.mxu0 0.0
      %3672 = vmatprep.subr.mxu0 0.0
      %3673 = vmatpush1.msra.mxu0 0.0
      %3674 = vmatprep.subr.mxu0 0.0
      %3675 = vmatpush1.msra.mxu0 0.0
      %3676 = vmatprep.subr.mxu0 0.0
      %3677 = vmatpush1.msra.mxu0 0.0
      %3678 = vmatprep.subr.mxu0 0.0
      %3679 = vmatpush1.msra.mxu0 0.0
      %3680 = vmatprep.subr.mxu0 0.0
      %3681 = vmatpush1.msra.mxu0 0.0
      %3682 = vmatprep.subr.mxu0 0.0
      %3683 = vmatpush1.msra.mxu0 0.0
      %3684 = vmatprep.subr.mxu0 0.0
      %3685 = vmatpush1.msra.mxu0 0.0
      %3686 = vmatprep.subr.mxu0 0.0
      %3687 = vmatpush1.msra.mxu0 0.0
      %3688 = vmatprep.subr.mxu0 0.0
      %3689 = vmatpush1.msra.mxu0 0.0
      %3690 = vmatprep.subr.mxu0 0.0
      %3691 = vmatpush1.msra.mxu0 0.0
      %3692 = vmatprep.subr.mxu0 0.0
      %3693 = vmatpush1.msra.mxu0 0.0
      %3694 = vmatprep.subr.mxu0 0.0
      %3695 = vmatpush1.msra.mxu0 0.0
      %3696 = vmatprep.subr.mxu0 0.0
      %3697 = vmatpush1.msra.mxu0 0.0
      %3698 = vmatprep.subr.mxu0 0.0
      %3699 = vmatpush1.msra.mxu0 0.0
      %3700 = vmatprep.subr.mxu0 0.0
      %3701 = vmatpush1.msra.mxu0 0.0
      %3702 = vmatprep.subr.mxu0 0.0
      %3703 = vmatpush1.msra.mxu0 0.0
      %3704 = vmatprep.subr.mxu0 0.0
      %3705 = vmatpush1.msra.mxu0 0.0
      %3706 = vmatprep.mubr.f32.mxu0 0.0
      %3707 = vmatmul.mubr.f32.gmra.mrb[0].mxu0 %v3619
      %v3708 = vpop.f32.mrb[0].mxu0
      %v3709 = vadd.f32 0.0, %v3708
      %v3710 = vpop.f32.mrb[0].mxu0
      %3711 = vmatprep.mubr.f32.mxu0 0.0
      %3712 = vmatmul.mubr.f32.gmra.mrb[0].mxu0 %v3622
      %v3713 = vpop.f32.mrb[0].mxu0
      %v3714 = vadd.f32 0.0, %v3713
      %v3715 = vpop.f32.mrb[0].mxu0
      %3716 = vmatprep.mubr.f32.mxu0 0.0
      %3717 = vmatmul.mubr.f32.gmra.mrb[0].mxu0 %v3625
      %v3718 = vpop.f32.mrb[0].mxu0
      %v3719 = vadd.f32 0.0, %v3718
      %v3720 = vpop.f32.mrb[0].mxu0
      %3721 = vmatprep.mubr.f32.mxu0 0.0
      %3722 = vmatmul.mubr.f32.gmra.mrb[0].mxu0 %v3628
      %v3723 = vpop.f32.mrb[0].mxu0
      %v3724 = vadd.f32 0.0, %v3723
      %v3725 = vpop.f32.mrb[0].mxu0
      %3726 = vmatprep.mubr.f32.mxu0 0.0
      %3727 = vmatmul.mubr.f32.gmra.mrb[0].mxu0 %v3631
      %v3728 = vpop.f32.mrb[0].mxu0
      %v3729 = vadd.f32 0.0, %v3728
      %v3730 = vpop.f32.mrb[0].mxu0
      %3731 = vmatprep.mubr.f32.mxu0 0.0
      %3732 = vmatmul.mubr.f32.gmra.mrb[0].mxu0 %v3634
      %v3733 = vpop.f32.mrb[0].mxu0
      %v3734 = vadd.f32 0.0, %v3733
      %v3735 = vpop.f32.mrb[0].mxu0
      %3736 = vmatprep.mubr.f32.mxu0 0.0
      %3737 = vmatmul.mubr.f32.gmra.mrb[0].mxu0 %v3637
      %v3738 = vpop.f32.mrb[0].mxu0
      %v3739 = vadd.f32 0.0, %v3738
      %v3740 = vpop.f32.mrb[0].mxu0
      %3741 = vmatprep.mubr.f32.mxu0 0.0
      %3742 = vmatmul.mubr.f32.gmra.mrb[0].mxu0 %v3640
      %v3743 = vpop.f32.mrb[0].mxu0
      %v3744 = vadd.f32 0.0, %v3743
      %v3745 = vpop.f32.mrb[0].mxu0
      %3746 = vdwg.mxu0
      %v3747 = vadd.f32 %v3592, %v3709
      %v3748 = vadd.f32 %v3593, %v3714
      %v3749 = vadd.f32 %v3594, %v3719
      %v3750 = vadd.f32 %v3595, %v3724
      %v3751 = vadd.f32 %v3596, %v3729
      %v3752 = vadd.f32 %v3597, %v3734
      %v3753 = vadd.f32 %v3598, %v3739
      %v3754 = vadd.f32 %v3599, %v3744
      %v3755 = vld [vmem:[%s3444 + $0x8] sm:$0xff]
      %v3756 = vld [vmem:[%s3444 + $0x20] sm:$0xff]
      %v3757 = vld [vmem:[%s3444 + $0x38] sm:$0xff]
      %v3758 = vld [vmem:[%s3444 + $0x50] sm:$0xff]
      %v3759 = vld [vmem:[%s3444 + $0x68] sm:$0xff]
      %v3760 = vld [vmem:[%s3444 + $0x80] sm:$0xff]
      %v3761 = vld [vmem:[%s3444 + $0x98] sm:$0xff]
      %v3762 = vld [vmem:[%s3444 + $0xb0] sm:$0xff]
      %s3763 = scalar_lea.vmem %s2, 1224
      %v3764 = vld [vmem:[%s3763] sm:$0xff]
      %v3765 = vld [vmem:[%s3763 + $0x8] sm:$0xff]
      %v3766 = vld [vmem:[%s3763 + $0x10] sm:$0xff]
      %v3767 = vld [vmem:[%s3763 + $0x18] sm:$0xff]
      %v3768 = vld [vmem:[%s3763 + $0x20] sm:$0xff]
      %v3769 = vld [vmem:[%s3763 + $0x28] sm:$0xff]
      %v3770 = vld [vmem:[%s3763 + $0x30] sm:$0xff]
      %v3771 = vld [vmem:[%s3763 + $0x38] sm:$0xff]
      %v3772 = vld [vmem:[%s3763 + $0x40] sm:$0xff]
      %v3774 = vsel %vm977, %v3755, 0
      %v3777 = vsel %vm977, %v3756, 0
      %v3780 = vsel %vm977, %v3757, 0
      %v3783 = vsel %vm977, %v3758, 0
      %v3786 = vsel %vm977, %v3759, 0
      %v3789 = vsel %vm977, %v3760, 0
      %v3792 = vsel %vm977, %v3761, 0
      %v3795 = vsel %vm977, %v3762, 0
      %3797 = vmatprep.subr.mxu0 0.0
      %3798 = vmatpush1.msra.mxu0 %v3764
      %3799 = vmatprep.subr.mxu0 0.0
      %3800 = vmatpush1.msra.mxu0 %v3765
      %3801 = vmatprep.subr.mxu0 0.0
      %3802 = vmatpush1.msra.mxu0 %v3766
      %3803 = vmatprep.subr.mxu0 0.0
      %3804 = vmatpush1.msra.mxu0 %v3767
      %3805 = vmatprep.subr.mxu0 0.0
      %3806 = vmatpush1.msra.mxu0 %v3768
      %3807 = vmatprep.subr.mxu0 0.0
      %3808 = vmatpush1.msra.mxu0 %v3769
      %3809 = vmatprep.subr.mxu0 0.0
      %3810 = vmatpush1.msra.mxu0 %v3770
      %3811 = vmatprep.subr.mxu0 0.0
      %3812 = vmatpush1.msra.mxu0 %v3771
      %3813 = vmatprep.subr.mxu0 0.0
      %3814 = vmatpush1.msra.mxu0 %v3772
      %3815 = vmatprep.subr.mxu0 0.0
      %3816 = vmatpush1.msra.mxu0 0.0
      %3817 = vmatprep.subr.mxu0 0.0
      %3818 = vmatpush1.msra.mxu0 0.0
      %3819 = vmatprep.subr.mxu0 0.0
      %3820 = vmatpush1.msra.mxu0 0.0
      %3821 = vmatprep.subr.mxu0 0.0
      %3822 = vmatpush1.msra.mxu0 0.0
      %3823 = vmatprep.subr.mxu0 0.0
      %3824 = vmatpush1.msra.mxu0 0.0
      %3825 = vmatprep.subr.mxu0 0.0
      %3826 = vmatpush1.msra.mxu0 0.0
      %3827 = vmatprep.subr.mxu0 0.0
      %3828 = vmatpush1.msra.mxu0 0.0
      %3829 = vmatprep.subr.mxu0 0.0
      %3830 = vmatpush1.msra.mxu0 0.0
      %3831 = vmatprep.subr.mxu0 0.0
      %3832 = vmatpush1.msra.mxu0 0.0
      %3833 = vmatprep.subr.mxu0 0.0
      %3834 = vmatpush1.msra.mxu0 0.0
      %3835 = vmatprep.subr.mxu0 0.0
      %3836 = vmatpush1.msra.mxu0 0.0
      %3837 = vmatprep.subr.mxu0 0.0
      %3838 = vmatpush1.msra.mxu0 0.0
      %3839 = vmatprep.subr.mxu0 0.0
      %3840 = vmatpush1.msra.mxu0 0.0
      %3841 = vmatprep.subr.mxu0 0.0
      %3842 = vmatpush1.msra.mxu0 0.0
      %3843 = vmatprep.subr.mxu0 0.0
      %3844 = vmatpush1.msra.mxu0 0.0
      %3845 = vmatprep.subr.mxu0 0.0
      %3846 = vmatpush1.msra.mxu0 0.0
      %3847 = vmatprep.subr.mxu0 0.0
      %3848 = vmatpush1.msra.mxu0 0.0
      %3849 = vmatprep.subr.mxu0 0.0
      %3850 = vmatpush1.msra.mxu0 0.0
      %3851 = vmatprep.subr.mxu0 0.0
      %3852 = vmatpush1.msra.mxu0 0.0
      %3853 = vmatprep.subr.mxu0 0.0
      %3854 = vmatpush1.msra.mxu0 0.0
      %3855 = vmatprep.subr.mxu0 0.0
      %3856 = vmatpush1.msra.mxu0 0.0
      %3857 = vmatprep.subr.mxu0 0.0
      %3858 = vmatpush1.msra.mxu0 0.0
      %3859 = vmatprep.subr.mxu0 0.0
      %3860 = vmatpush1.msra.mxu0 0.0
      %3861 = vmatprep.mubr.f32.mxu0 0.0
      %3862 = vmatmul.mubr.f32.gmra.mrb[0].mxu0 %v3774
      %v3863 = vpop.f32.mrb[0].mxu0
      %v3864 = vadd.f32 0.0, %v3863
      %v3865 = vpop.f32.mrb[0].mxu0
      %3866 = vmatprep.mubr.f32.mxu0 0.0
      %3867 = vmatmul.mubr.f32.gmra.mrb[0].mxu0 %v3777
      %v3868 = vpop.f32.mrb[0].mxu0
      %v3869 = vadd.f32 0.0, %v3868
      %v3870 = vpop.f32.mrb[0].mxu0
      %3871 = vmatprep.mubr.f32.mxu0 0.0
      %3872 = vmatmul.mubr.f32.gmra.mrb[0].mxu0 %v3780
      %v3873 = vpop.f32.mrb[0].mxu0
      %v3874 = vadd.f32 0.0, %v3873
      %v3875 = vpop.f32.mrb[0].mxu0
      %3876 = vmatprep.mubr.f32.mxu0 0.0
      %3877 = vmatmul.mubr.f32.gmra.mrb[0].mxu0 %v3783
      %v3878 = vpop.f32.mrb[0].mxu0
      %v3879 = vadd.f32 0.0, %v3878
      %v3880 = vpop.f32.mrb[0].mxu0
      %3881 = vmatprep.mubr.f32.mxu0 0.0
      %3882 = vmatmul.mubr.f32.gmra.mrb[0].mxu0 %v3786
      %v3883 = vpop.f32.mrb[0].mxu0
      %v3884 = vadd.f32 0.0, %v3883
      %v3885 = vpop.f32.mrb[0].mxu0
      %3886 = vmatprep.mubr.f32.mxu0 0.0
      %3887 = vmatmul.mubr.f32.gmra.mrb[0].mxu0 %v3789
      %v3888 = vpop.f32.mrb[0].mxu0
      %v3889 = vadd.f32 0.0, %v3888
      %v3890 = vpop.f32.mrb[0].mxu0
      %3891 = vmatprep.mubr.f32.mxu0 0.0
      %3892 = vmatmul.mubr.f32.gmra.mrb[0].mxu0 %v3792
      %v3893 = vpop.f32.mrb[0].mxu0
      %v3894 = vadd.f32 0.0, %v3893
      %v3895 = vpop.f32.mrb[0].mxu0
      %3896 = vmatprep.mubr.f32.mxu0 0.0
      %3897 = vmatmul.mubr.f32.gmra.mrb[0].mxu0 %v3795
      %v3898 = vpop.f32.mrb[0].mxu0
      %v3899 = vadd.f32 0.0, %v3898
      %v3900 = vpop.f32.mrb[0].mxu0
      %3901 = vdwg.mxu0
      %v3902 = vadd.f32 %v3747, %v3864
      %v3903 = vadd.f32 %v3748, %v3869
      %v3904 = vadd.f32 %v3749, %v3874
      %v3905 = vadd.f32 %v3750, %v3879
      %v3906 = vadd.f32 %v3751, %v3884
      %v3907 = vadd.f32 %v3752, %v3889
      %v3908 = vadd.f32 %v3753, %v3894
      %v3909 = vadd.f32 %v3754, %v3899
      %v3910 = vadd.f32 %v3902, %v3903
      %v3911 = vadd.f32 %v3910, %v3904
      %v3912 = vadd.f32 %v3911, %v3905
      %v3913 = vadd.f32 %v3912, %v3906
      %v3914 = vadd.f32 %v3913, %v3907
      %v3915 = vadd.f32 %v3914, %v3908
      %v3916 = vadd.f32 %v3915, %v3909
      %3917 = vadd.xlane.f32.xlu0 %v3916
      %v3918 = vpop.xlane.xlu0 %3917
      %v3919 = vrot.slane %v3918, 4
      %v3920 = vadd.f32 %v3918, %v3919
      %v3921 = vrot.slane %v3920, 2
      %v3922 = vadd.f32 %v3920, %v3921
      %v3923 = vrot.slane %v3922, 1
      %v3924 = vadd.f32 %v3922, %v3923
      %s3925 = vtos %v3924
      %v3926 = vrcp.pop 8192.0
      %s3927 = vtos %v3926
      %s3928 = smul.f32 %s3925, %s3927
      %v3929 = vstv %s3928
      %v3930 = vsub.f32 %v3902, %v3929
      %v3931 = vsub.f32 %v3903, %v3929
      %v3932 = vsub.f32 %v3904, %v3929
      %v3933 = vsub.f32 %v3905, %v3929
      %v3934 = vsub.f32 %v3906, %v3929
      %v3935 = vsub.f32 %v3907, %v3929
      %v3936 = vsub.f32 %v3908, %v3929
      %v3937 = vsub.f32 %v3909, %v3929
      %v3938 = vmul.f32 %v3930, %v3930
      %v3939 = vmul.f32 %v3931, %v3931
      %v3940 = vmul.f32 %v3932, %v3932
      %v3941 = vmul.f32 %v3933, %v3933
      %v3942 = vmul.f32 %v3934, %v3934
      %v3943 = vmul.f32 %v3935, %v3935
      %v3944 = vmul.f32 %v3936, %v3936
      %v3945 = vmul.f32 %v3937, %v3937
      %v3946 = vadd.f32 %v3938, %v3939
      %v3947 = vadd.f32 %v3946, %v3940
      %v3948 = vadd.f32 %v3947, %v3941
      %v3949 = vadd.f32 %v3948, %v3942
      %v3950 = vadd.f32 %v3949, %v3943
      %v3951 = vadd.f32 %v3950, %v3944
      %v3952 = vadd.f32 %v3951, %v3945
      %3953 = vadd.xlane.f32.xlu0 %v3952
      %v3954 = vpop.xlane.xlu0 %3953
      %v3955 = vrot.slane %v3954, 4
      %v3956 = vadd.f32 %v3954, %v3955
      %v3957 = vrot.slane %v3956, 2
      %v3958 = vadd.f32 %v3956, %v3957
      %v3959 = vrot.slane %v3958, 1
      %v3960 = vadd.f32 %v3958, %v3959
      %s3961 = vtos %v3960
      %v3962 = vrcp.pop 8192.0
      %s3963 = vtos %v3962
      %s3964 = smul.f32 %s3961, %s3963
      %s3965 = sadd.f32 %s3964, 1e-05
      %v3966 = vstv %s3965
      %v3967 = vrsqrt.pop %v3966
      %s3968 = vtos %v3967
      %v3969 = vstv %s3968
      %v3970 = vmul.f32 %v3930, %v3969
      %v3971 = vmul.f32 %v3931, %v3969
      %v3972 = vmul.f32 %v3932, %v3969
      %v3973 = vmul.f32 %v3933, %v3969
      %v3974 = vmul.f32 %v3934, %v3969
      %v3975 = vmul.f32 %v3935, %v3969
      %v3976 = vmul.f32 %v3936, %v3969
      %v3977 = vmul.f32 %v3937, %v3969
      %v3978 = vmax.f32 %v3970, 0.0
      %v3979 = vmax.f32 %v3971, 0.0
      %v3980 = vmax.f32 %v3972, 0.0
      %v3981 = vmax.f32 %v3973, 0.0
      %v3982 = vmax.f32 %v3974, 0.0
      %v3983 = vmax.f32 %v3975, 0.0
      %v3984 = vmax.f32 %v3976, 0.0
      %v3985 = vmax.f32 %v3977, 0.0
      %s3986 = scalar_lea.vmem %s5, 768
      %v3987 = vld [vmem:[%s3986] sm:$0xff]
      %v3988 = vld [vmem:[%s3986 + $0x8] sm:$0xff]
      %v3989 = vld [vmem:[%s3986 + $0x10] sm:$0xff]
      %v3990 = vld [vmem:[%s3986 + $0x18] sm:$0xff]
      %v3991 = vld [vmem:[%s3986 + $0x20] sm:$0xff]
      %v3992 = vld [vmem:[%s3986 + $0x28] sm:$0xff]
      %v3993 = vld [vmem:[%s3986 + $0x30] sm:$0xff]
      %v3994 = vld [vmem:[%s3986 + $0x38] sm:$0xff]
      %v3995 = vld [vmem:[%s3986 + $0x40] sm:$0xff]
      %v3996 = vld [vmem:[%s3986 + $0x48] sm:$0xff]
      %v3997 = vld [vmem:[%s3986 + $0x50] sm:$0xff]
      %v3998 = vld [vmem:[%s3986 + $0x58] sm:$0xff]
      %v3999 = vld [vmem:[%s3986 + $0x60] sm:$0xff]
      %v4000 = vld [vmem:[%s3986 + $0x68] sm:$0xff]
      %v4001 = vld [vmem:[%s3986 + $0x70] sm:$0xff]
      %v4002 = vld [vmem:[%s3986 + $0x78] sm:$0xff]
      %v4003 = vld [vmem:[%s3986 + $0x80] sm:$0xff]
      %v4004 = vld [vmem:[%s3986 + $0x88] sm:$0xff]
      %v4005 = vld [vmem:[%s3986 + $0x90] sm:$0xff]
      %v4006 = vld [vmem:[%s3986 + $0x98] sm:$0xff]
      %v4007 = vld [vmem:[%s3986 + $0xa0] sm:$0xff]
      %v4008 = vld [vmem:[%s3986 + $0xa8] sm:$0xff]
      %v4009 = vld [vmem:[%s3986 + $0xb0] sm:$0xff]
      %v4010 = vld [vmem:[%s3986 + $0xb8] sm:$0xff]
      %v4011 = vld [vmem:[%s3986 + $0xc0] sm:$0xff]
      %v4012 = vld [vmem:[%s3986 + $0xc8] sm:$0xff]
      %v4013 = vld [vmem:[%s3986 + $0xd0] sm:$0xff]
      %v4014 = vld [vmem:[%s3986 + $0xd8] sm:$0xff]
      %v4015 = vld [vmem:[%s3986 + $0xe0] sm:$0xff]
      %v4016 = vld [vmem:[%s3986 + $0xe8] sm:$0xff]
      %v4017 = vld [vmem:[%s3986 + $0xf0] sm:$0xff]
      %v4018 = vld [vmem:[%s3986 + $0xf8] sm:$0xff]
      %4019 = vmatprep.subr.mxu0 %v3988
      %4020 = vmatpush1.msra.mxu0 %v3987
      %4021 = vmatprep.subr.mxu0 %v3990
      %4022 = vmatpush1.msra.mxu0 %v3989
      %4023 = vmatprep.subr.mxu0 %v3992
      %4024 = vmatpush1.msra.mxu0 %v3991
      %4025 = vmatprep.subr.mxu0 %v3994
      %4026 = vmatpush1.msra.mxu0 %v3993
      %4027 = vmatprep.subr.mxu0 %v3996
      %4028 = vmatpush1.msra.mxu0 %v3995
      %4029 = vmatprep.subr.mxu0 %v3998
      %4030 = vmatpush1.msra.mxu0 %v3997
      %4031 = vmatprep.subr.mxu0 %v4000
      %4032 = vmatpush1.msra.mxu0 %v3999
      %4033 = vmatprep.subr.mxu0 %v4002
      %4034 = vmatpush1.msra.mxu0 %v4001
      %4035 = vmatprep.subr.mxu0 %v4004
      %4036 = vmatpush1.msra.mxu0 %v4003
      %4037 = vmatprep.subr.mxu0 %v4006
      %4038 = vmatpush1.msra.mxu0 %v4005
      %4039 = vmatprep.subr.mxu0 %v4008
      %4040 = vmatpush1.msra.mxu0 %v4007
      %4041 = vmatprep.subr.mxu0 %v4010
      %4042 = vmatpush1.msra.mxu0 %v4009
      %4043 = vmatprep.subr.mxu0 %v4012
      %4044 = vmatpush1.msra.mxu0 %v4011
      %4045 = vmatprep.subr.mxu0 %v4014
      %4046 = vmatpush1.msra.mxu0 %v4013
      %4047 = vmatprep.subr.mxu0 %v4016
      %4048 = vmatpush1.msra.mxu0 %v4015
      %4049 = vmatprep.subr.mxu0 %v4018
      %4050 = vmatpush1.msra.mxu0 %v4017
      %4051 = vmatprep.subr.mxu0 0.0
      %4052 = vmatpush1.msra.mxu0 0.0
      %4053 = vmatprep.subr.mxu0 0.0
      %4054 = vmatpush1.msra.mxu0 0.0
      %4055 = vmatprep.subr.mxu0 0.0
      %4056 = vmatpush1.msra.mxu0 0.0
      %4057 = vmatprep.subr.mxu0 0.0
      %4058 = vmatpush1.msra.mxu0 0.0
      %4059 = vmatprep.subr.mxu0 0.0
      %4060 = vmatpush1.msra.mxu0 0.0
      %4061 = vmatprep.subr.mxu0 0.0
      %4062 = vmatpush1.msra.mxu0 0.0
      %4063 = vmatprep.subr.mxu0 0.0
      %4064 = vmatpush1.msra.mxu0 0.0
      %4065 = vmatprep.subr.mxu0 0.0
      %4066 = vmatpush1.msra.mxu0 0.0
      %4067 = vmatprep.subr.mxu0 0.0
      %4068 = vmatpush1.msra.mxu0 0.0
      %4069 = vmatprep.subr.mxu0 0.0
      %4070 = vmatpush1.msra.mxu0 0.0
      %4071 = vmatprep.subr.mxu0 0.0
      %4072 = vmatpush1.msra.mxu0 0.0
      %4073 = vmatprep.subr.mxu0 0.0
      %4074 = vmatpush1.msra.mxu0 0.0
      %4075 = vmatprep.subr.mxu0 0.0
      %4076 = vmatpush1.msra.mxu0 0.0
      %4077 = vmatprep.subr.mxu0 0.0
      %4078 = vmatpush1.msra.mxu0 0.0
      %4079 = vmatprep.subr.mxu0 0.0
      %4080 = vmatpush1.msra.mxu0 0.0
      %4081 = vmatprep.subr.mxu0 0.0
      %4082 = vmatpush1.msra.mxu0 0.0
      %4083 = vmatprep.mubr.f32.mxu0 0.0
      %4084 = vmatmul.mubr.f32.gmra.mrb[0].mxu0 %v3978
      %v4085 = vpop.f32.mrb[0].mxu0
      %v4086 = vadd.f32 0.0, %v4085
      %v4087 = vpop.f32.mrb[0].mxu0
      %v4088 = vadd.f32 0.0, %v4087
      %4089 = vmatprep.mubr.f32.mxu0 0.0
      %4090 = vmatmul.mubr.f32.gmra.mrb[0].mxu0 %v3979
      %v4091 = vpop.f32.mrb[0].mxu0
      %v4092 = vadd.f32 0.0, %v4091
      %v4093 = vpop.f32.mrb[0].mxu0
      %v4094 = vadd.f32 0.0, %v4093
      %4095 = vmatprep.mubr.f32.mxu0 0.0
      %4096 = vmatmul.mubr.f32.gmra.mrb[0].mxu0 %v3980
      %v4097 = vpop.f32.mrb[0].mxu0
      %v4098 = vadd.f32 0.0, %v4097
      %v4099 = vpop.f32.mrb[0].mxu0
      %v4100 = vadd.f32 0.0, %v4099
      %4101 = vmatprep.mubr.f32.mxu0 0.0
      %4102 = vmatmul.mubr.f32.gmra.mrb[0].mxu0 %v3981
      %v4103 = vpop.f32.mrb[0].mxu0
      %v4104 = vadd.f32 0.0, %v4103
      %v4105 = vpop.f32.mrb[0].mxu0
      %v4106 = vadd.f32 0.0, %v4105
      %4107 = vmatprep.mubr.f32.mxu0 0.0
      %4108 = vmatmul.mubr.f32.gmra.mrb[0].mxu0 %v3982
      %v4109 = vpop.f32.mrb[0].mxu0
      %v4110 = vadd.f32 0.0, %v4109
      %v4111 = vpop.f32.mrb[0].mxu0
      %v4112 = vadd.f32 0.0, %v4111
      %4113 = vmatprep.mubr.f32.mxu0 0.0
      %4114 = vmatmul.mubr.f32.gmra.mrb[0].mxu0 %v3983
      %v4115 = vpop.f32.mrb[0].mxu0
      %v4116 = vadd.f32 0.0, %v4115
      %v4117 = vpop.f32.mrb[0].mxu0
      %v4118 = vadd.f32 0.0, %v4117
      %4119 = vmatprep.mubr.f32.mxu0 0.0
      %4120 = vmatmul.mubr.f32.gmra.mrb[0].mxu0 %v3984
      %v4121 = vpop.f32.mrb[0].mxu0
      %v4122 = vadd.f32 0.0, %v4121
      %v4123 = vpop.f32.mrb[0].mxu0
      %v4124 = vadd.f32 0.0, %v4123
      %4125 = vmatprep.mubr.f32.mxu0 0.0
      %4126 = vmatmul.mubr.f32.gmra.mrb[0].mxu0 %v3985
      %v4127 = vpop.f32.mrb[0].mxu0
      %v4128 = vadd.f32 0.0, %v4127
      %v4129 = vpop.f32.mrb[0].mxu0
      %v4130 = vadd.f32 0.0, %v4129
      %4131 = vdwg.mxu0
      %v4132 = vadd.f32 %v2545, %v4086
      %v4133 = vadd.f32 %v2546, %v4088
      %v4134 = vadd.f32 %v2547, %v4092
      %v4135 = vadd.f32 %v2548, %v4094
      %v4136 = vadd.f32 %v2549, %v4098
      %v4137 = vadd.f32 %v2550, %v4100
      %v4138 = vadd.f32 %v2551, %v4104
      %v4139 = vadd.f32 %v2552, %v4106
      %v4140 = vadd.f32 %v2553, %v4110
      %v4141 = vadd.f32 %v2554, %v4112
      %v4142 = vadd.f32 %v2555, %v4116
      %v4143 = vadd.f32 %v2556, %v4118
      %v4144 = vadd.f32 %v2557, %v4122
      %v4145 = vadd.f32 %v2558, %v4124
      %v4146 = vadd.f32 %v2559, %v4128
      %v4147 = vadd.f32 %v2560, %v4130
      %v4148 = vld [vmem:[%s266] sm:$0xff]
      %v4149 = vld [vmem:[%s266 + $0x18] sm:$0xff]
      %v4150 = vld [vmem:[%s266 + $0x30] sm:$0xff]
      %v4151 = vld [vmem:[%s266 + $0x48] sm:$0xff]
      %v4152 = vld [vmem:[%s266 + $0x60] sm:$0xff]
      %v4153 = vld [vmem:[%s266 + $0x78] sm:$0xff]
      %v4154 = vld [vmem:[%s266 + $0x90] sm:$0xff]
      %v4155 = vld [vmem:[%s266 + $0xa8] sm:$0xff]
      %s4156 = scalar_lea.vmem %s2, 1296
      %v4157 = vld [vmem:[%s4156] sm:$0xff]
      %v4158 = vld [vmem:[%s4156 + $0x8] sm:$0xff]
      %v4159 = vld [vmem:[%s4156 + $0x10] sm:$0xff]
      %v4160 = vld [vmem:[%s4156 + $0x18] sm:$0xff]
      %v4161 = vld [vmem:[%s4156 + $0x20] sm:$0xff]
      %v4162 = vld [vmem:[%s4156 + $0x28] sm:$0xff]
      %v4163 = vld [vmem:[%s4156 + $0x30] sm:$0xff]
      %v4164 = vld [vmem:[%s4156 + $0x38] sm:$0xff]
      %v4165 = vld [vmem:[%s4156 + $0x40] sm:$0xff]
      %v4166 = vld [vmem:[%s266 + $0x5] sm:$0xff]
      %v4167 = vld [vmem:[%s266 + $0x1d] sm:$0xff]
      %v4168 = vld [vmem:[%s266 + $0x35] sm:$0xff]
      %v4169 = vld [vmem:[%s266 + $0x4d] sm:$0xff]
      %v4170 = vld [vmem:[%s266 + $0x65] sm:$0xff]
      %v4171 = vld [vmem:[%s266 + $0x7d] sm:$0xff]
      %v4172 = vld [vmem:[%s266 + $0x95] sm:$0xff]
      %v4173 = vld [vmem:[%s266 + $0xad] sm:$0xff]
      %s4174 = scalar_lea.vmem %s2, 1368
      %v4175 = vld [vmem:[%s4174] sm:$0xff]
      %v4176 = vld [vmem:[%s4174 + $0x8] sm:$0xff]
      %v4177 = vld [vmem:[%s4174 + $0x10] sm:$0xff]
      %v4178 = vld [vmem:[%s4174 + $0x18] sm:$0xff]
      %v4179 = vld [vmem:[%s4174 + $0x20] sm:$0xff]
      %v4180 = vld [vmem:[%s4174 + $0x28] sm:$0xff]
      %v4181 = vld [vmem:[%s4174 + $0x30] sm:$0xff]
      %v4182 = vld [vmem:[%s4174 + $0x38] sm:$0xff]
      %v4183 = vld [vmem:[%s4174 + $0x40] sm:$0xff]
      %v4185 = vsel %vm977, %v4166, 0
      %v4188 = vsel %vm977, %v4167, 0
      %v4191 = vsel %vm977, %v4168, 0
      %v4194 = vsel %vm977, %v4169, 0
      %v4197 = vsel %vm977, %v4170, 0
      %v4200 = vsel %vm977, %v4171, 0
      %v4203 = vsel %vm977, %v4172, 0
      %v4206 = vsel %vm977, %v4173, 0
      %4208 = vmatprep.subr.mxu0 0.0
      %4209 = vmatpush1.msra.mxu0 %v4175
      %4210 = vmatprep.subr.mxu0 0.0
      %4211 = vmatpush1.msra.mxu0 %v4176
      %4212 = vmatprep.subr.mxu0 0.0
      %4213 = vmatpush1.msra.mxu0 %v4177
      %4214 = vmatprep.subr.mxu0 0.0
      %4215 = vmatpush1.msra.mxu0 %v4178
      %4216 = vmatprep.subr.mxu0 0.0
      %4217 = vmatpush1.msra.mxu0 %v4179
      %4218 = vmatprep.subr.mxu0 0.0
      %4219 = vmatpush1.msra.mxu0 %v4180
      %4220 = vmatprep.subr.mxu0 0.0
      %4221 = vmatpush1.msra.mxu0 %v4181
      %4222 = vmatprep.subr.mxu0 0.0
      %4223 = vmatpush1.msra.mxu0 %v4182
      %4224 = vmatprep.subr.mxu0 0.0
      %4225 = vmatpush1.msra.mxu0 %v4183
      %4226 = vmatprep.subr.mxu0 0.0
      %4227 = vmatpush1.msra.mxu0 0.0
      %4228 = vmatprep.subr.mxu0 0.0
      %4229 = vmatpush1.msra.mxu0 0.0
      %4230 = vmatprep.subr.mxu0 0.0
      %4231 = vmatpush1.msra.mxu0 0.0
      %4232 = vmatprep.subr.mxu0 0.0
      %4233 = vmatpush1.msra.mxu0 0.0
      %4234 = vmatprep.subr.mxu0 0.0
      %4235 = vmatpush1.msra.mxu0 0.0
      %4236 = vmatprep.subr.mxu0 0.0
      %4237 = vmatpush1.msra.mxu0 0.0
      %4238 = vmatprep.subr.mxu0 0.0
      %4239 = vmatpush1.msra.mxu0 0.0
      %4240 = vmatprep.subr.mxu0 0.0
      %4241 = vmatpush1.msra.mxu0 0.0
      %4242 = vmatprep.subr.mxu0 0.0
      %4243 = vmatpush1.msra.mxu0 0.0
      %4244 = vmatprep.subr.mxu0 0.0
      %4245 = vmatpush1.msra.mxu0 0.0
      %4246 = vmatprep.subr.mxu0 0.0
      %4247 = vmatpush1.msra.mxu0 0.0
      %4248 = vmatprep.subr.mxu0 0.0
      %4249 = vmatpush1.msra.mxu0 0.0
      %4250 = vmatprep.subr.mxu0 0.0
      %4251 = vmatpush1.msra.mxu0 0.0
      %4252 = vmatprep.subr.mxu0 0.0
      %4253 = vmatpush1.msra.mxu0 0.0
      %4254 = vmatprep.subr.mxu0 0.0
      %4255 = vmatpush1.msra.mxu0 0.0
      %4256 = vmatprep.subr.mxu0 0.0
      %4257 = vmatpush1.msra.mxu0 0.0
      %4258 = vmatprep.subr.mxu0 0.0
      %4259 = vmatpush1.msra.mxu0 0.0
      %4260 = vmatprep.subr.mxu0 0.0
      %4261 = vmatpush1.msra.mxu0 0.0
      %4262 = vmatprep.subr.mxu0 0.0
      %4263 = vmatpush1.msra.mxu0 0.0
      %4264 = vmatprep.subr.mxu0 0.0
      %4265 = vmatpush1.msra.mxu0 0.0
      %4266 = vmatprep.subr.mxu0 0.0
      %4267 = vmatpush1.msra.mxu0 0.0
      %4268 = vmatprep.subr.mxu0 0.0
      %4269 = vmatpush1.msra.mxu0 0.0
      %4270 = vmatprep.subr.mxu0 0.0
      %4271 = vmatpush1.msra.mxu0 0.0
      %4272 = vmatprep.mubr.f32.mxu0 0.0
      %4273 = vmatmul.mubr.f32.gmra.mrb[0].mxu0 %v4185
      %v4274 = vpop.f32.mrb[0].mxu0
      %v4275 = vadd.f32 0.0, %v4274
      %v4276 = vpop.f32.mrb[0].mxu0
      %4277 = vmatprep.mubr.f32.mxu0 0.0
      %4278 = vmatmul.mubr.f32.gmra.mrb[0].mxu0 %v4188
      %v4279 = vpop.f32.mrb[0].mxu0
      %v4280 = vadd.f32 0.0, %v4279
      %v4281 = vpop.f32.mrb[0].mxu0
      %4282 = vmatprep.mubr.f32.mxu0 0.0
      %4283 = vmatmul.mubr.f32.gmra.mrb[0].mxu0 %v4191
      %v4284 = vpop.f32.mrb[0].mxu0
      %v4285 = vadd.f32 0.0, %v4284
      %v4286 = vpop.f32.mrb[0].mxu0
      %4287 = vmatprep.mubr.f32.mxu0 0.0
      %4288 = vmatmul.mubr.f32.gmra.mrb[0].mxu0 %v4194
      %v4289 = vpop.f32.mrb[0].mxu0
      %v4290 = vadd.f32 0.0, %v4289
      %v4291 = vpop.f32.mrb[0].mxu0
      %4292 = vmatprep.mubr.f32.mxu0 0.0
      %4293 = vmatmul.mubr.f32.gmra.mrb[0].mxu0 %v4197
      %v4294 = vpop.f32.mrb[0].mxu0
      %v4295 = vadd.f32 0.0, %v4294
      %v4296 = vpop.f32.mrb[0].mxu0
      %4297 = vmatprep.mubr.f32.mxu0 0.0
      %4298 = vmatmul.mubr.f32.gmra.mrb[0].mxu0 %v4200
      %v4299 = vpop.f32.mrb[0].mxu0
      %v4300 = vadd.f32 0.0, %v4299
      %v4301 = vpop.f32.mrb[0].mxu0
      %4302 = vmatprep.mubr.f32.mxu0 0.0
      %4303 = vmatmul.mubr.f32.gmra.mrb[0].mxu0 %v4203
      %v4304 = vpop.f32.mrb[0].mxu0
      %v4305 = vadd.f32 0.0, %v4304
      %v4306 = vpop.f32.mrb[0].mxu0
      %4307 = vmatprep.mubr.f32.mxu0 0.0
      %4308 = vmatmul.mubr.f32.gmra.mrb[0].mxu0 %v4206
      %v4309 = vpop.f32.mrb[0].mxu0
      %v4310 = vadd.f32 0.0, %v4309
      %v4311 = vpop.f32.mrb[0].mxu0
      %4312 = vdwg.mxu0
      %v4314 = vsel %vm977, %v4148, 0
      %v4317 = vsel %vm977, %v4149, 0
      %v4320 = vsel %vm977, %v4150, 0
      %v4323 = vsel %vm977, %v4151, 0
      %v4326 = vsel %vm977, %v4152, 0
      %v4329 = vsel %vm977, %v4153, 0
      %v4332 = vsel %vm977, %v4154, 0
      %v4335 = vsel %vm977, %v4155, 0
      %4337 = vmatprep.subr.mxu0 0.0
      %4338 = vmatpush1.msra.mxu0 %v4157
      %4339 = vmatprep.subr.mxu0 0.0
      %4340 = vmatpush1.msra.mxu0 %v4158
      %4341 = vmatprep.subr.mxu0 0.0
      %4342 = vmatpush1.msra.mxu0 %v4159
      %4343 = vmatprep.subr.mxu0 0.0
      %4344 = vmatpush1.msra.mxu0 %v4160
      %4345 = vmatprep.subr.mxu0 0.0
      %4346 = vmatpush1.msra.mxu0 %v4161
      %4347 = vmatprep.subr.mxu0 0.0
      %4348 = vmatpush1.msra.mxu0 %v4162
      %4349 = vmatprep.subr.mxu0 0.0
      %4350 = vmatpush1.msra.mxu0 %v4163
      %4351 = vmatprep.subr.mxu0 0.0
      %4352 = vmatpush1.msra.mxu0 %v4164
      %4353 = vmatprep.subr.mxu0 0.0
      %4354 = vmatpush1.msra.mxu0 %v4165
      %4355 = vmatprep.subr.mxu0 0.0
      %4356 = vmatpush1.msra.mxu0 0.0
      %4357 = vmatprep.subr.mxu0 0.0
      %4358 = vmatpush1.msra.mxu0 0.0
      %4359 = vmatprep.subr.mxu0 0.0
      %4360 = vmatpush1.msra.mxu0 0.0
      %4361 = vmatprep.subr.mxu0 0.0
      %4362 = vmatpush1.msra.mxu0 0.0
      %4363 = vmatprep.subr.mxu0 0.0
      %4364 = vmatpush1.msra.mxu0 0.0
      %4365 = vmatprep.subr.mxu0 0.0
      %4366 = vmatpush1.msra.mxu0 0.0
      %4367 = vmatprep.subr.mxu0 0.0
      %4368 = vmatpush1.msra.mxu0 0.0
      %4369 = vmatprep.subr.mxu0 0.0
      %4370 = vmatpush1.msra.mxu0 0.0
      %4371 = vmatprep.subr.mxu0 0.0
      %4372 = vmatpush1.msra.mxu0 0.0
      %4373 = vmatprep.subr.mxu0 0.0
      %4374 = vmatpush1.msra.mxu0 0.0
      %4375 = vmatprep.subr.mxu0 0.0
      %4376 = vmatpush1.msra.mxu0 0.0
      %4377 = vmatprep.subr.mxu0 0.0
      %4378 = vmatpush1.msra.mxu0 0.0
      %4379 = vmatprep.subr.mxu0 0.0
      %4380 = vmatpush1.msra.mxu0 0.0
      %4381 = vmatprep.subr.mxu0 0.0
      %4382 = vmatpush1.msra.mxu0 0.0
      %4383 = vmatprep.subr.mxu0 0.0
      %4384 = vmatpush1.msra.mxu0 0.0
      %4385 = vmatprep.subr.mxu0 0.0
      %4386 = vmatpush1.msra.mxu0 0.0
      %4387 = vmatprep.subr.mxu0 0.0
      %4388 = vmatpush1.msra.mxu0 0.0
      %4389 = vmatprep.subr.mxu0 0.0
      %4390 = vmatpush1.msra.mxu0 0.0
      %4391 = vmatprep.subr.mxu0 0.0
      %4392 = vmatpush1.msra.mxu0 0.0
      %4393 = vmatprep.subr.mxu0 0.0
      %4394 = vmatpush1.msra.mxu0 0.0
      %4395 = vmatprep.subr.mxu0 0.0
      %4396 = vmatpush1.msra.mxu0 0.0
      %4397 = vmatprep.subr.mxu0 0.0
      %4398 = vmatpush1.msra.mxu0 0.0
      %4399 = vmatprep.subr.mxu0 0.0
      %4400 = vmatpush1.msra.mxu0 0.0
      %4401 = vmatprep.mubr.f32.mxu0 0.0
      %4402 = vmatmul.mubr.f32.gmra.mrb[0].mxu0 %v4314
      %v4403 = vpop.f32.mrb[0].mxu0
      %v4404 = vadd.f32 %v4275, %v4403
      %v4405 = vpop.f32.mrb[0].mxu0
      %4406 = vmatprep.mubr.f32.mxu0 0.0
      %4407 = vmatmul.mubr.f32.gmra.mrb[0].mxu0 %v4317
      %v4408 = vpop.f32.mrb[0].mxu0
      %v4409 = vadd.f32 %v4280, %v4408
      %v4410 = vpop.f32.mrb[0].mxu0
      %4411 = vmatprep.mubr.f32.mxu0 0.0
      %4412 = vmatmul.mubr.f32.gmra.mrb[0].mxu0 %v4320
      %v4413 = vpop.f32.mrb[0].mxu0
      %v4414 = vadd.f32 %v4285, %v4413
      %v4415 = vpop.f32.mrb[0].mxu0
      %4416 = vmatprep.mubr.f32.mxu0 0.0
      %4417 = vmatmul.mubr.f32.gmra.mrb[0].mxu0 %v4323
      %v4418 = vpop.f32.mrb[0].mxu0
      %v4419 = vadd.f32 %v4290, %v4418
      %v4420 = vpop.f32.mrb[0].mxu0
      %4421 = vmatprep.mubr.f32.mxu0 0.0
      %4422 = vmatmul.mubr.f32.gmra.mrb[0].mxu0 %v4326
      %v4423 = vpop.f32.mrb[0].mxu0
      %v4424 = vadd.f32 %v4295, %v4423
      %v4425 = vpop.f32.mrb[0].mxu0
      %4426 = vmatprep.mubr.f32.mxu0 0.0
      %4427 = vmatmul.mubr.f32.gmra.mrb[0].mxu0 %v4329
      %v4428 = vpop.f32.mrb[0].mxu0
      %v4429 = vadd.f32 %v4300, %v4428
      %v4430 = vpop.f32.mrb[0].mxu0
      %4431 = vmatprep.mubr.f32.mxu0 0.0
      %4432 = vmatmul.mubr.f32.gmra.mrb[0].mxu0 %v4332
      %v4433 = vpop.f32.mrb[0].mxu0
      %v4434 = vadd.f32 %v4305, %v4433
      %v4435 = vpop.f32.mrb[0].mxu0
      %4436 = vmatprep.mubr.f32.mxu0 0.0
      %4437 = vmatmul.mubr.f32.gmra.mrb[0].mxu0 %v4335
      %v4438 = vpop.f32.mrb[0].mxu0
      %v4439 = vadd.f32 %v4310, %v4438
      %v4440 = vpop.f32.mrb[0].mxu0
      %4441 = vdwg.mxu0
      %v4442 = vld [vmem:[%s266 + $0xa] sm:$0xff]
      %v4443 = vld [vmem:[%s266 + $0x22] sm:$0xff]
      %v4444 = vld [vmem:[%s266 + $0x3a] sm:$0xff]
      %v4445 = vld [vmem:[%s266 + $0x52] sm:$0xff]
      %v4446 = vld [vmem:[%s266 + $0x6a] sm:$0xff]
      %v4447 = vld [vmem:[%s266 + $0x82] sm:$0xff]
      %v4448 = vld [vmem:[%s266 + $0x9a] sm:$0xff]
      %v4449 = vld [vmem:[%s266 + $0xb2] sm:$0xff]
      %s4450 = scalar_lea.vmem %s2, 1440
      %v4451 = vld [vmem:[%s4450] sm:$0xff]
      %v4452 = vld [vmem:[%s4450 + $0x8] sm:$0xff]
      %v4453 = vld [vmem:[%s4450 + $0x10] sm:$0xff]
      %v4454 = vld [vmem:[%s4450 + $0x18] sm:$0xff]
      %v4455 = vld [vmem:[%s4450 + $0x20] sm:$0xff]
      %v4456 = vld [vmem:[%s4450 + $0x28] sm:$0xff]
      %v4457 = vld [vmem:[%s4450 + $0x30] sm:$0xff]
      %v4458 = vld [vmem:[%s4450 + $0x38] sm:$0xff]
      %v4459 = vld [vmem:[%s4450 + $0x40] sm:$0xff]
      %v4461 = vsel %vm977, %v4442, 0
      %v4464 = vsel %vm977, %v4443, 0
      %v4467 = vsel %vm977, %v4444, 0
      %v4470 = vsel %vm977, %v4445, 0
      %v4473 = vsel %vm977, %v4446, 0
      %v4476 = vsel %vm977, %v4447, 0
      %v4479 = vsel %vm977, %v4448, 0
      %v4482 = vsel %vm977, %v4449, 0
      %4484 = vmatprep.subr.mxu0 0.0
      %4485 = vmatpush1.msra.mxu0 %v4451
      %4486 = vmatprep.subr.mxu0 0.0
      %4487 = vmatpush1.msra.mxu0 %v4452
      %4488 = vmatprep.subr.mxu0 0.0
      %4489 = vmatpush1.msra.mxu0 %v4453
      %4490 = vmatprep.subr.mxu0 0.0
      %4491 = vmatpush1.msra.mxu0 %v4454
      %4492 = vmatprep.subr.mxu0 0.0
      %4493 = vmatpush1.msra.mxu0 %v4455
      %4494 = vmatprep.subr.mxu0 0.0
      %4495 = vmatpush1.msra.mxu0 %v4456
      %4496 = vmatprep.subr.mxu0 0.0
      %4497 = vmatpush1.msra.mxu0 %v4457
      %4498 = vmatprep.subr.mxu0 0.0
      %4499 = vmatpush1.msra.mxu0 %v4458
      %4500 = vmatprep.subr.mxu0 0.0
      %4501 = vmatpush1.msra.mxu0 %v4459
      %4502 = vmatprep.subr.mxu0 0.0
      %4503 = vmatpush1.msra.mxu0 0.0
      %4504 = vmatprep.subr.mxu0 0.0
      %4505 = vmatpush1.msra.mxu0 0.0
      %4506 = vmatprep.subr.mxu0 0.0
      %4507 = vmatpush1.msra.mxu0 0.0
      %4508 = vmatprep.subr.mxu0 0.0
      %4509 = vmatpush1.msra.mxu0 0.0
      %4510 = vmatprep.subr.mxu0 0.0
      %4511 = vmatpush1.msra.mxu0 0.0
      %4512 = vmatprep.subr.mxu0 0.0
      %4513 = vmatpush1.msra.mxu0 0.0
      %4514 = vmatprep.subr.mxu0 0.0
      %4515 = vmatpush1.msra.mxu0 0.0
      %4516 = vmatprep.subr.mxu0 0.0
      %4517 = vmatpush1.msra.mxu0 0.0
      %4518 = vmatprep.subr.mxu0 0.0
      %4519 = vmatpush1.msra.mxu0 0.0
      %4520 = vmatprep.subr.mxu0 0.0
      %4521 = vmatpush1.msra.mxu0 0.0
      %4522 = vmatprep.subr.mxu0 0.0
      %4523 = vmatpush1.msra.mxu0 0.0
      %4524 = vmatprep.subr.mxu0 0.0
      %4525 = vmatpush1.msra.mxu0 0.0
      %4526 = vmatprep.subr.mxu0 0.0
      %4527 = vmatpush1.msra.mxu0 0.0
      %4528 = vmatprep.subr.mxu0 0.0
      %4529 = vmatpush1.msra.mxu0 0.0
      %4530 = vmatprep.subr.mxu0 0.0
      %4531 = vmatpush1.msra.mxu0 0.0
      %4532 = vmatprep.subr.mxu0 0.0
      %4533 = vmatpush1.msra.mxu0 0.0
      %4534 = vmatprep.subr.mxu0 0.0
      %4535 = vmatpush1.msra.mxu0 0.0
      %4536 = vmatprep.subr.mxu0 0.0
      %4537 = vmatpush1.msra.mxu0 0.0
      %4538 = vmatprep.subr.mxu0 0.0
      %4539 = vmatpush1.msra.mxu0 0.0
      %4540 = vmatprep.subr.mxu0 0.0
      %4541 = vmatpush1.msra.mxu0 0.0
      %4542 = vmatprep.subr.mxu0 0.0
      %4543 = vmatpush1.msra.mxu0 0.0
      %4544 = vmatprep.subr.mxu0 0.0
      %4545 = vmatpush1.msra.mxu0 0.0
      %4546 = vmatprep.subr.mxu0 0.0
      %4547 = vmatpush1.msra.mxu0 0.0
      %4548 = vmatprep.mubr.f32.mxu0 0.0
      %4549 = vmatmul.mubr.f32.gmra.mrb[0].mxu0 %v4461
      %v4550 = vpop.f32.mrb[0].mxu0
      %v4551 = vadd.f32 0.0, %v4550
      %v4552 = vpop.f32.mrb[0].mxu0
      %4553 = vmatprep.mubr.f32.mxu0 0.0
      %4554 = vmatmul.mubr.f32.gmra.mrb[0].mxu0 %v4464
      %v4555 = vpop.f32.mrb[0].mxu0
      %v4556 = vadd.f32 0.0, %v4555
      %v4557 = vpop.f32.mrb[0].mxu0
      %4558 = vmatprep.mubr.f32.mxu0 0.0
      %4559 = vmatmul.mubr.f32.gmra.mrb[0].mxu0 %v4467
      %v4560 = vpop.f32.mrb[0].mxu0
      %v4561 = vadd.f32 0.0, %v4560
      %v4562 = vpop.f32.mrb[0].mxu0
      %4563 = vmatprep.mubr.f32.mxu0 0.0
      %4564 = vmatmul.mubr.f32.gmra.mrb[0].mxu0 %v4470
      %v4565 = vpop.f32.mrb[0].mxu0
      %v4566 = vadd.f32 0.0, %v4565
      %v4567 = vpop.f32.mrb[0].mxu0
      %4568 = vmatprep.mubr.f32.mxu0 0.0
      %4569 = vmatmul.mubr.f32.gmra.mrb[0].mxu0 %v4473
      %v4570 = vpop.f32.mrb[0].mxu0
      %v4571 = vadd.f32 0.0, %v4570
      %v4572 = vpop.f32.mrb[0].mxu0
      %4573 = vmatprep.mubr.f32.mxu0 0.0
      %4574 = vmatmul.mubr.f32.gmra.mrb[0].mxu0 %v4476
      %v4575 = vpop.f32.mrb[0].mxu0
      %v4576 = vadd.f32 0.0, %v4575
      %v4577 = vpop.f32.mrb[0].mxu0
      %4578 = vmatprep.mubr.f32.mxu0 0.0
      %4579 = vmatmul.mubr.f32.gmra.mrb[0].mxu0 %v4479
      %v4580 = vpop.f32.mrb[0].mxu0
      %v4581 = vadd.f32 0.0, %v4580
      %v4582 = vpop.f32.mrb[0].mxu0
      %4583 = vmatprep.mubr.f32.mxu0 0.0
      %4584 = vmatmul.mubr.f32.gmra.mrb[0].mxu0 %v4482
      %v4585 = vpop.f32.mrb[0].mxu0
      %v4586 = vadd.f32 0.0, %v4585
      %v4587 = vpop.f32.mrb[0].mxu0
      %4588 = vdwg.mxu0
      %v4589 = vadd.f32 %v4404, %v4551
      %v4590 = vadd.f32 %v4409, %v4556
      %v4591 = vadd.f32 %v4414, %v4561
      %v4592 = vadd.f32 %v4419, %v4566
      %v4593 = vadd.f32 %v4424, %v4571
      %v4594 = vadd.f32 %v4429, %v4576
      %v4595 = vadd.f32 %v4434, %v4581
      %v4596 = vadd.f32 %v4439, %v4586
      %v4597 = vld [vmem:[%s1391] sm:$0xff]
      %v4598 = vld [vmem:[%s1391 + $0x18] sm:$0xff]
      %v4599 = vld [vmem:[%s1391 + $0x30] sm:$0xff]
      %v4600 = vld [vmem:[%s1391 + $0x48] sm:$0xff]
      %v4601 = vld [vmem:[%s1391 + $0x60] sm:$0xff]
      %v4602 = vld [vmem:[%s1391 + $0x78] sm:$0xff]
      %v4603 = vld [vmem:[%s1391 + $0x90] sm:$0xff]
      %v4604 = vld [vmem:[%s1391 + $0xa8] sm:$0xff]
      %s4605 = scalar_lea.vmem %s2, 1512
      %v4606 = vld [vmem:[%s4605] sm:$0xff]
      %v4607 = vld [vmem:[%s4605 + $0x8] sm:$0xff]
      %v4608 = vld [vmem:[%s4605 + $0x10] sm:$0xff]
      %v4609 = vld [vmem:[%s4605 + $0x18] sm:$0xff]
      %v4610 = vld [vmem:[%s4605 + $0x20] sm:$0xff]
      %v4611 = vld [vmem:[%s4605 + $0x28] sm:$0xff]
      %v4612 = vld [vmem:[%s4605 + $0x30] sm:$0xff]
      %v4613 = vld [vmem:[%s4605 + $0x38] sm:$0xff]
      %v4614 = vld [vmem:[%s4605 + $0x40] sm:$0xff]
      %v4616 = vsel %vm977, %v4597, 0
      %v4619 = vsel %vm977, %v4598, 0
      %v4622 = vsel %vm977, %v4599, 0
      %v4625 = vsel %vm977, %v4600, 0
      %v4628 = vsel %vm977, %v4601, 0
      %v4631 = vsel %vm977, %v4602, 0
      %v4634 = vsel %vm977, %v4603, 0
      %v4637 = vsel %vm977, %v4604, 0
      %4639 = vmatprep.subr.mxu0 0.0
      %4640 = vmatpush1.msra.mxu0 %v4606
      %4641 = vmatprep.subr.mxu0 0.0
      %4642 = vmatpush1.msra.mxu0 %v4607
      %4643 = vmatprep.subr.mxu0 0.0
      %4644 = vmatpush1.msra.mxu0 %v4608
      %4645 = vmatprep.subr.mxu0 0.0
      %4646 = vmatpush1.msra.mxu0 %v4609
      %4647 = vmatprep.subr.mxu0 0.0
      %4648 = vmatpush1.msra.mxu0 %v4610
      %4649 = vmatprep.subr.mxu0 0.0
      %4650 = vmatpush1.msra.mxu0 %v4611
      %4651 = vmatprep.subr.mxu0 0.0
      %4652 = vmatpush1.msra.mxu0 %v4612
      %4653 = vmatprep.subr.mxu0 0.0
      %4654 = vmatpush1.msra.mxu0 %v4613
      %4655 = vmatprep.subr.mxu0 0.0
      %4656 = vmatpush1.msra.mxu0 %v4614
      %4657 = vmatprep.subr.mxu0 0.0
      %4658 = vmatpush1.msra.mxu0 0.0
      %4659 = vmatprep.subr.mxu0 0.0
      %4660 = vmatpush1.msra.mxu0 0.0
      %4661 = vmatprep.subr.mxu0 0.0
      %4662 = vmatpush1.msra.mxu0 0.0
      %4663 = vmatprep.subr.mxu0 0.0
      %4664 = vmatpush1.msra.mxu0 0.0
      %4665 = vmatprep.subr.mxu0 0.0
      %4666 = vmatpush1.msra.mxu0 0.0
      %4667 = vmatprep.subr.mxu0 0.0
      %4668 = vmatpush1.msra.mxu0 0.0
      %4669 = vmatprep.subr.mxu0 0.0
      %4670 = vmatpush1.msra.mxu0 0.0
      %4671 = vmatprep.subr.mxu0 0.0
      %4672 = vmatpush1.msra.mxu0 0.0
      %4673 = vmatprep.subr.mxu0 0.0
      %4674 = vmatpush1.msra.mxu0 0.0
      %4675 = vmatprep.subr.mxu0 0.0
      %4676 = vmatpush1.msra.mxu0 0.0
      %4677 = vmatprep.subr.mxu0 0.0
      %4678 = vmatpush1.msra.mxu0 0.0
      %4679 = vmatprep.subr.mxu0 0.0
      %4680 = vmatpush1.msra.mxu0 0.0
      %4681 = vmatprep.subr.mxu0 0.0
      %4682 = vmatpush1.msra.mxu0 0.0
      %4683 = vmatprep.subr.mxu0 0.0
      %4684 = vmatpush1.msra.mxu0 0.0
      %4685 = vmatprep.subr.mxu0 0.0
      %4686 = vmatpush1.msra.mxu0 0.0
      %4687 = vmatprep.subr.mxu0 0.0
      %4688 = vmatpush1.msra.mxu0 0.0
      %4689 = vmatprep.subr.mxu0 0.0
      %4690 = vmatpush1.msra.mxu0 0.0
      %4691 = vmatprep.subr.mxu0 0.0
      %4692 = vmatpush1.msra.mxu0 0.0
      %4693 = vmatprep.subr.mxu0 0.0
      %4694 = vmatpush1.msra.mxu0 0.0
      %4695 = vmatprep.subr.mxu0 0.0
      %4696 = vmatpush1.msra.mxu0 0.0
      %4697 = vmatprep.subr.mxu0 0.0
      %4698 = vmatpush1.msra.mxu0 0.0
      %4699 = vmatprep.subr.mxu0 0.0
      %4700 = vmatpush1.msra.mxu0 0.0
      %4701 = vmatprep.subr.mxu0 0.0
      %4702 = vmatpush1.msra.mxu0 0.0
      %4703 = vmatprep.mubr.f32.mxu0 0.0
      %4704 = vmatmul.mubr.f32.gmra.mrb[0].mxu0 %v4616
      %v4705 = vpop.f32.mrb[0].mxu0
      %v4706 = vadd.f32 0.0, %v4705
      %v4707 = vpop.f32.mrb[0].mxu0
      %4708 = vmatprep.mubr.f32.mxu0 0.0
      %4709 = vmatmul.mubr.f32.gmra.mrb[0].mxu0 %v4619
      %v4710 = vpop.f32.mrb[0].mxu0
      %v4711 = vadd.f32 0.0, %v4710
      %v4712 = vpop.f32.mrb[0].mxu0
      %4713 = vmatprep.mubr.f32.mxu0 0.0
      %4714 = vmatmul.mubr.f32.gmra.mrb[0].mxu0 %v4622
      %v4715 = vpop.f32.mrb[0].mxu0
      %v4716 = vadd.f32 0.0, %v4715
      %v4717 = vpop.f32.mrb[0].mxu0
      %4718 = vmatprep.mubr.f32.mxu0 0.0
      %4719 = vmatmul.mubr.f32.gmra.mrb[0].mxu0 %v4625
      %v4720 = vpop.f32.mrb[0].mxu0
      %v4721 = vadd.f32 0.0, %v4720
      %v4722 = vpop.f32.mrb[0].mxu0
      %4723 = vmatprep.mubr.f32.mxu0 0.0
      %4724 = vmatmul.mubr.f32.gmra.mrb[0].mxu0 %v4628
      %v4725 = vpop.f32.mrb[0].mxu0
      %v4726 = vadd.f32 0.0, %v4725
      %v4727 = vpop.f32.mrb[0].mxu0
      %4728 = vmatprep.mubr.f32.mxu0 0.0
      %4729 = vmatmul.mubr.f32.gmra.mrb[0].mxu0 %v4631
      %v4730 = vpop.f32.mrb[0].mxu0
      %v4731 = vadd.f32 0.0, %v4730
      %v4732 = vpop.f32.mrb[0].mxu0
      %4733 = vmatprep.mubr.f32.mxu0 0.0
      %4734 = vmatmul.mubr.f32.gmra.mrb[0].mxu0 %v4634
      %v4735 = vpop.f32.mrb[0].mxu0
      %v4736 = vadd.f32 0.0, %v4735
      %v4737 = vpop.f32.mrb[0].mxu0
      %4738 = vmatprep.mubr.f32.mxu0 0.0
      %4739 = vmatmul.mubr.f32.gmra.mrb[0].mxu0 %v4637
      %v4740 = vpop.f32.mrb[0].mxu0
      %v4741 = vadd.f32 0.0, %v4740
      %v4742 = vpop.f32.mrb[0].mxu0
      %4743 = vdwg.mxu0
      %v4744 = vadd.f32 %v4589, %v4706
      %v4745 = vadd.f32 %v4590, %v4711
      %v4746 = vadd.f32 %v4591, %v4716
      %v4747 = vadd.f32 %v4592, %v4721
      %v4748 = vadd.f32 %v4593, %v4726
      %v4749 = vadd.f32 %v4594, %v4731
      %v4750 = vadd.f32 %v4595, %v4736
      %v4751 = vadd.f32 %v4596, %v4741
      %s4752 = scalar_lea.vmem %s2, 1584
      %v4753 = vld [vmem:[%s4752] sm:$0xff]
      %v4754 = vld [vmem:[%s4752 + $0x8] sm:$0xff]
      %v4755 = vld [vmem:[%s4752 + $0x10] sm:$0xff]
      %v4756 = vld [vmem:[%s4752 + $0x18] sm:$0xff]
      %v4757 = vld [vmem:[%s4752 + $0x20] sm:$0xff]
      %v4758 = vld [vmem:[%s4752 + $0x28] sm:$0xff]
      %v4759 = vld [vmem:[%s4752 + $0x30] sm:$0xff]
      %v4760 = vld [vmem:[%s4752 + $0x38] sm:$0xff]
      %v4761 = vld [vmem:[%s4752 + $0x40] sm:$0xff]
      %4762 = vmatprep.subr.mxu0 0.0
      %4763 = vmatpush1.msra.mxu0 %v4753
      %4764 = vmatprep.subr.mxu0 0.0
      %4765 = vmatpush1.msra.mxu0 %v4754
      %4766 = vmatprep.subr.mxu0 0.0
      %4767 = vmatpush1.msra.mxu0 %v4755
      %4768 = vmatprep.subr.mxu0 0.0
      %4769 = vmatpush1.msra.mxu0 %v4756
      %4770 = vmatprep.subr.mxu0 0.0
      %4771 = vmatpush1.msra.mxu0 %v4757
      %4772 = vmatprep.subr.mxu0 0.0
      %4773 = vmatpush1.msra.mxu0 %v4758
      %4774 = vmatprep.subr.mxu0 0.0
      %4775 = vmatpush1.msra.mxu0 %v4759
      %4776 = vmatprep.subr.mxu0 0.0
      %4777 = vmatpush1.msra.mxu0 %v4760
      %4778 = vmatprep.subr.mxu0 0.0
      %4779 = vmatpush1.msra.mxu0 %v4761
      %4780 = vmatprep.subr.mxu0 0.0
      %4781 = vmatpush1.msra.mxu0 0.0
      %4782 = vmatprep.subr.mxu0 0.0
      %4783 = vmatpush1.msra.mxu0 0.0
      %4784 = vmatprep.subr.mxu0 0.0
      %4785 = vmatpush1.msra.mxu0 0.0
      %4786 = vmatprep.subr.mxu0 0.0
      %4787 = vmatpush1.msra.mxu0 0.0
      %4788 = vmatprep.subr.mxu0 0.0
      %4789 = vmatpush1.msra.mxu0 0.0
      %4790 = vmatprep.subr.mxu0 0.0
      %4791 = vmatpush1.msra.mxu0 0.0
      %4792 = vmatprep.subr.mxu0 0.0
      %4793 = vmatpush1.msra.mxu0 0.0
      %4794 = vmatprep.subr.mxu0 0.0
      %4795 = vmatpush1.msra.mxu0 0.0
      %4796 = vmatprep.subr.mxu0 0.0
      %4797 = vmatpush1.msra.mxu0 0.0
      %4798 = vmatprep.subr.mxu0 0.0
      %4799 = vmatpush1.msra.mxu0 0.0
      %4800 = vmatprep.subr.mxu0 0.0
      %4801 = vmatpush1.msra.mxu0 0.0
      %4802 = vmatprep.subr.mxu0 0.0
      %4803 = vmatpush1.msra.mxu0 0.0
      %4804 = vmatprep.subr.mxu0 0.0
      %4805 = vmatpush1.msra.mxu0 0.0
      %4806 = vmatprep.subr.mxu0 0.0
      %4807 = vmatpush1.msra.mxu0 0.0
      %4808 = vmatprep.subr.mxu0 0.0
      %4809 = vmatpush1.msra.mxu0 0.0
      %4810 = vmatprep.subr.mxu0 0.0
      %4811 = vmatpush1.msra.mxu0 0.0
      %4812 = vmatprep.subr.mxu0 0.0
      %4813 = vmatpush1.msra.mxu0 0.0
      %4814 = vmatprep.subr.mxu0 0.0
      %4815 = vmatpush1.msra.mxu0 0.0
      %4816 = vmatprep.subr.mxu0 0.0
      %4817 = vmatpush1.msra.mxu0 0.0
      %4818 = vmatprep.subr.mxu0 0.0
      %4819 = vmatpush1.msra.mxu0 0.0
      %4820 = vmatprep.subr.mxu0 0.0
      %4821 = vmatpush1.msra.mxu0 0.0
      %4822 = vmatprep.subr.mxu0 0.0
      %4823 = vmatpush1.msra.mxu0 0.0
      %4824 = vmatprep.subr.mxu0 0.0
      %4825 = vmatpush1.msra.mxu0 0.0
      %4826 = vmatprep.mubr.f32.mxu0 0.0
      %4827 = vmatmul.mubr.f32.gmra.mrb[0].mxu0 %v1566
      %v4828 = vpop.f32.mrb[0].mxu0
      %v4829 = vadd.f32 0.0, %v4828
      %v4830 = vpop.f32.mrb[0].mxu0
      %4831 = vmatprep.mubr.f32.mxu0 0.0
      %4832 = vmatmul.mubr.f32.gmra.mrb[0].mxu0 %v1569
      %v4833 = vpop.f32.mrb[0].mxu0
      %v4834 = vadd.f32 0.0, %v4833
      %v4835 = vpop.f32.mrb[0].mxu0
      %4836 = vmatprep.mubr.f32.mxu0 0.0
      %4837 = vmatmul.mubr.f32.gmra.mrb[0].mxu0 %v1572
      %v4838 = vpop.f32.mrb[0].mxu0
      %v4839 = vadd.f32 0.0, %v4838
      %v4840 = vpop.f32.mrb[0].mxu0
      %4841 = vmatprep.mubr.f32.mxu0 0.0
      %4842 = vmatmul.mubr.f32.gmra.mrb[0].mxu0 %v1575
      %v4843 = vpop.f32.mrb[0].mxu0
      %v4844 = vadd.f32 0.0, %v4843
      %v4845 = vpop.f32.mrb[0].mxu0
      %4846 = vmatprep.mubr.f32.mxu0 0.0
      %4847 = vmatmul.mubr.f32.gmra.mrb[0].mxu0 %v1578
      %v4848 = vpop.f32.mrb[0].mxu0
      %v4849 = vadd.f32 0.0, %v4848
      %v4850 = vpop.f32.mrb[0].mxu0
      %4851 = vmatprep.mubr.f32.mxu0 0.0
      %4852 = vmatmul.mubr.f32.gmra.mrb[0].mxu0 %v1581
      %v4853 = vpop.f32.mrb[0].mxu0
      %v4854 = vadd.f32 0.0, %v4853
      %v4855 = vpop.f32.mrb[0].mxu0
      %4856 = vmatprep.mubr.f32.mxu0 0.0
      %4857 = vmatmul.mubr.f32.gmra.mrb[0].mxu0 %v1584
      %v4858 = vpop.f32.mrb[0].mxu0
      %v4859 = vadd.f32 0.0, %v4858
      %v4860 = vpop.f32.mrb[0].mxu0
      %4861 = vmatprep.mubr.f32.mxu0 0.0
      %4862 = vmatmul.mubr.f32.gmra.mrb[0].mxu0 %v1587
      %v4863 = vpop.f32.mrb[0].mxu0
      %v4864 = vadd.f32 0.0, %v4863
      %v4865 = vpop.f32.mrb[0].mxu0
      %4866 = vdwg.mxu0
      %v4867 = vadd.f32 %v4744, %v4829
      %v4868 = vadd.f32 %v4745, %v4834
      %v4869 = vadd.f32 %v4746, %v4839
      %v4870 = vadd.f32 %v4747, %v4844
      %v4871 = vadd.f32 %v4748, %v4849
      %v4872 = vadd.f32 %v4749, %v4854
      %v4873 = vadd.f32 %v4750, %v4859
      %v4874 = vadd.f32 %v4751, %v4864
      %v4875 = vld [vmem:[%s1391 + $0xa] sm:$0xff]
      %v4876 = vld [vmem:[%s1391 + $0x22] sm:$0xff]
      %v4877 = vld [vmem:[%s1391 + $0x3a] sm:$0xff]
      %v4878 = vld [vmem:[%s1391 + $0x52] sm:$0xff]
      %v4879 = vld [vmem:[%s1391 + $0x6a] sm:$0xff]
      %v4880 = vld [vmem:[%s1391 + $0x82] sm:$0xff]
      %v4881 = vld [vmem:[%s1391 + $0x9a] sm:$0xff]
      %v4882 = vld [vmem:[%s1391 + $0xb2] sm:$0xff]
      %s4883 = scalar_lea.vmem %s2, 1656
      %v4884 = vld [vmem:[%s4883] sm:$0xff]
      %v4885 = vld [vmem:[%s4883 + $0x8] sm:$0xff]
      %v4886 = vld [vmem:[%s4883 + $0x10] sm:$0xff]
      %v4887 = vld [vmem:[%s4883 + $0x18] sm:$0xff]
      %v4888 = vld [vmem:[%s4883 + $0x20] sm:$0xff]
      %v4889 = vld [vmem:[%s4883 + $0x28] sm:$0xff]
      %v4890 = vld [vmem:[%s4883 + $0x30] sm:$0xff]
      %v4891 = vld [vmem:[%s4883 + $0x38] sm:$0xff]
      %v4892 = vld [vmem:[%s4883 + $0x40] sm:$0xff]
      %v4894 = vsel %vm977, %v4875, 0
      %v4897 = vsel %vm977, %v4876, 0
      %v4900 = vsel %vm977, %v4877, 0
      %v4903 = vsel %vm977, %v4878, 0
      %v4906 = vsel %vm977, %v4879, 0
      %v4909 = vsel %vm977, %v4880, 0
      %v4912 = vsel %vm977, %v4881, 0
      %v4915 = vsel %vm977, %v4882, 0
      %4917 = vmatprep.subr.mxu0 0.0
      %4918 = vmatpush1.msra.mxu0 %v4884
      %4919 = vmatprep.subr.mxu0 0.0
      %4920 = vmatpush1.msra.mxu0 %v4885
      %4921 = vmatprep.subr.mxu0 0.0
      %4922 = vmatpush1.msra.mxu0 %v4886
      %4923 = vmatprep.subr.mxu0 0.0
      %4924 = vmatpush1.msra.mxu0 %v4887
      %4925 = vmatprep.subr.mxu0 0.0
      %4926 = vmatpush1.msra.mxu0 %v4888
      %4927 = vmatprep.subr.mxu0 0.0
      %4928 = vmatpush1.msra.mxu0 %v4889
      %4929 = vmatprep.subr.mxu0 0.0
      %4930 = vmatpush1.msra.mxu0 %v4890
      %4931 = vmatprep.subr.mxu0 0.0
      %4932 = vmatpush1.msra.mxu0 %v4891
      %4933 = vmatprep.subr.mxu0 0.0
      %4934 = vmatpush1.msra.mxu0 %v4892
      %4935 = vmatprep.subr.mxu0 0.0
      %4936 = vmatpush1.msra.mxu0 0.0
      %4937 = vmatprep.subr.mxu0 0.0
      %4938 = vmatpush1.msra.mxu0 0.0
      %4939 = vmatprep.subr.mxu0 0.0
      %4940 = vmatpush1.msra.mxu0 0.0
      %4941 = vmatprep.subr.mxu0 0.0
      %4942 = vmatpush1.msra.mxu0 0.0
      %4943 = vmatprep.subr.mxu0 0.0
      %4944 = vmatpush1.msra.mxu0 0.0
      %4945 = vmatprep.subr.mxu0 0.0
      %4946 = vmatpush1.msra.mxu0 0.0
      %4947 = vmatprep.subr.mxu0 0.0
      %4948 = vmatpush1.msra.mxu0 0.0
      %4949 = vmatprep.subr.mxu0 0.0
      %4950 = vmatpush1.msra.mxu0 0.0
      %4951 = vmatprep.subr.mxu0 0.0
      %4952 = vmatpush1.msra.mxu0 0.0
      %4953 = vmatprep.subr.mxu0 0.0
      %4954 = vmatpush1.msra.mxu0 0.0
      %4955 = vmatprep.subr.mxu0 0.0
      %4956 = vmatpush1.msra.mxu0 0.0
      %4957 = vmatprep.subr.mxu0 0.0
      %4958 = vmatpush1.msra.mxu0 0.0
      %4959 = vmatprep.subr.mxu0 0.0
      %4960 = vmatpush1.msra.mxu0 0.0
      %4961 = vmatprep.subr.mxu0 0.0
      %4962 = vmatpush1.msra.mxu0 0.0
      %4963 = vmatprep.subr.mxu0 0.0
      %4964 = vmatpush1.msra.mxu0 0.0
      %4965 = vmatprep.subr.mxu0 0.0
      %4966 = vmatpush1.msra.mxu0 0.0
      %4967 = vmatprep.subr.mxu0 0.0
      %4968 = vmatpush1.msra.mxu0 0.0
      %4969 = vmatprep.subr.mxu0 0.0
      %4970 = vmatpush1.msra.mxu0 0.0
      %4971 = vmatprep.subr.mxu0 0.0
      %4972 = vmatpush1.msra.mxu0 0.0
      %4973 = vmatprep.subr.mxu0 0.0
      %4974 = vmatpush1.msra.mxu0 0.0
      %4975 = vmatprep.subr.mxu0 0.0
      %4976 = vmatpush1.msra.mxu0 0.0
      %4977 = vmatprep.subr.mxu0 0.0
      %4978 = vmatpush1.msra.mxu0 0.0
      %4979 = vmatprep.subr.mxu0 0.0
      %4980 = vmatpush1.msra.mxu0 0.0
      %4981 = vmatprep.mubr.f32.mxu0 0.0
      %4982 = vmatmul.mubr.f32.gmra.mrb[0].mxu0 %v4894
      %v4983 = vpop.f32.mrb[0].mxu0
      %v4984 = vadd.f32 0.0, %v4983
      %v4985 = vpop.f32.mrb[0].mxu0
      %4986 = vmatprep.mubr.f32.mxu0 0.0
      %4987 = vmatmul.mubr.f32.gmra.mrb[0].mxu0 %v4897
      %v4988 = vpop.f32.mrb[0].mxu0
      %v4989 = vadd.f32 0.0, %v4988
      %v4990 = vpop.f32.mrb[0].mxu0
      %4991 = vmatprep.mubr.f32.mxu0 0.0
      %4992 = vmatmul.mubr.f32.gmra.mrb[0].mxu0 %v4900
      %v4993 = vpop.f32.mrb[0].mxu0
      %v4994 = vadd.f32 0.0, %v4993
      %v4995 = vpop.f32.mrb[0].mxu0
      %4996 = vmatprep.mubr.f32.mxu0 0.0
      %4997 = vmatmul.mubr.f32.gmra.mrb[0].mxu0 %v4903
      %v4998 = vpop.f32.mrb[0].mxu0
      %v4999 = vadd.f32 0.0, %v4998
      %v5000 = vpop.f32.mrb[0].mxu0
      %5001 = vmatprep.mubr.f32.mxu0 0.0
      %5002 = vmatmul.mubr.f32.gmra.mrb[0].mxu0 %v4906
      %v5003 = vpop.f32.mrb[0].mxu0
      %v5004 = vadd.f32 0.0, %v5003
      %v5005 = vpop.f32.mrb[0].mxu0
      %5006 = vmatprep.mubr.f32.mxu0 0.0
      %5007 = vmatmul.mubr.f32.gmra.mrb[0].mxu0 %v4909
      %v5008 = vpop.f32.mrb[0].mxu0
      %v5009 = vadd.f32 0.0, %v5008
      %v5010 = vpop.f32.mrb[0].mxu0
      %5011 = vmatprep.mubr.f32.mxu0 0.0
      %5012 = vmatmul.mubr.f32.gmra.mrb[0].mxu0 %v4912
      %v5013 = vpop.f32.mrb[0].mxu0
      %v5014 = vadd.f32 0.0, %v5013
      %v5015 = vpop.f32.mrb[0].mxu0
      %5016 = vmatprep.mubr.f32.mxu0 0.0
      %5017 = vmatmul.mubr.f32.gmra.mrb[0].mxu0 %v4915
      %v5018 = vpop.f32.mrb[0].mxu0
      %v5019 = vadd.f32 0.0, %v5018
      %v5020 = vpop.f32.mrb[0].mxu0
      %5021 = vdwg.mxu0
      %v5022 = vadd.f32 %v4867, %v4984
      %v5023 = vadd.f32 %v4868, %v4989
      %v5024 = vadd.f32 %v4869, %v4994
      %v5025 = vadd.f32 %v4870, %v4999
      %v5026 = vadd.f32 %v4871, %v5004
      %v5027 = vadd.f32 %v4872, %v5009
      %v5028 = vadd.f32 %v4873, %v5014
      %v5029 = vadd.f32 %v4874, %v5019
      %s5030 = scalar_lea.vmem %s266, 240
      %v5031 = vld [vmem:[%s5030] sm:$0xff]
      %v5032 = vld [vmem:[%s5030 + $0x18] sm:$0xff]
      %v5033 = vld [vmem:[%s5030 + $0x30] sm:$0xff]
      %v5034 = vld [vmem:[%s5030 + $0x48] sm:$0xff]
      %v5035 = vld [vmem:[%s5030 + $0x60] sm:$0xff]
      %v5036 = vld [vmem:[%s5030 + $0x78] sm:$0xff]
      %v5037 = vld [vmem:[%s5030 + $0x90] sm:$0xff]
      %v5038 = vld [vmem:[%s5030 + $0xa8] sm:$0xff]
      %s5039 = scalar_lea.vmem %s2, 1728
      %v5040 = vld [vmem:[%s5039] sm:$0xff]
      %v5041 = vld [vmem:[%s5039 + $0x8] sm:$0xff]
      %v5042 = vld [vmem:[%s5039 + $0x10] sm:$0xff]
      %v5043 = vld [vmem:[%s5039 + $0x18] sm:$0xff]
      %v5044 = vld [vmem:[%s5039 + $0x20] sm:$0xff]
      %v5045 = vld [vmem:[%s5039 + $0x28] sm:$0xff]
      %v5046 = vld [vmem:[%s5039 + $0x30] sm:$0xff]
      %v5047 = vld [vmem:[%s5039 + $0x38] sm:$0xff]
      %v5048 = vld [vmem:[%s5039 + $0x40] sm:$0xff]
      %v5050 = vsel %vm977, %v5031, 0
      %v5053 = vsel %vm977, %v5032, 0
      %v5056 = vsel %vm977, %v5033, 0
      %v5059 = vsel %vm977, %v5034, 0
      %v5062 = vsel %vm977, %v5035, 0
      %v5065 = vsel %vm977, %v5036, 0
      %v5068 = vsel %vm977, %v5037, 0
      %v5071 = vsel %vm977, %v5038, 0
      %5073 = vmatprep.subr.mxu0 0.0
      %5074 = vmatpush1.msra.mxu0 %v5040
      %5075 = vmatprep.subr.mxu0 0.0
      %5076 = vmatpush1.msra.mxu0 %v5041
      %5077 = vmatprep.subr.mxu0 0.0
      %5078 = vmatpush1.msra.mxu0 %v5042
      %5079 = vmatprep.subr.mxu0 0.0
      %5080 = vmatpush1.msra.mxu0 %v5043
      %5081 = vmatprep.subr.mxu0 0.0
      %5082 = vmatpush1.msra.mxu0 %v5044
      %5083 = vmatprep.subr.mxu0 0.0
      %5084 = vmatpush1.msra.mxu0 %v5045
      %5085 = vmatprep.subr.mxu0 0.0
      %5086 = vmatpush1.msra.mxu0 %v5046
      %5087 = vmatprep.subr.mxu0 0.0
      %5088 = vmatpush1.msra.mxu0 %v5047
      %5089 = vmatprep.subr.mxu0 0.0
      %5090 = vmatpush1.msra.mxu0 %v5048
      %5091 = vmatprep.subr.mxu0 0.0
      %5092 = vmatpush1.msra.mxu0 0.0
      %5093 = vmatprep.subr.mxu0 0.0
      %5094 = vmatpush1.msra.mxu0 0.0
      %5095 = vmatprep.subr.mxu0 0.0
      %5096 = vmatpush1.msra.mxu0 0.0
      %5097 = vmatprep.subr.mxu0 0.0
      %5098 = vmatpush1.msra.mxu0 0.0
      %5099 = vmatprep.subr.mxu0 0.0
      %5100 = vmatpush1.msra.mxu0 0.0
      %5101 = vmatprep.subr.mxu0 0.0
      %5102 = vmatpush1.msra.mxu0 0.0
      %5103 = vmatprep.subr.mxu0 0.0
      %5104 = vmatpush1.msra.mxu0 0.0
      %5105 = vmatprep.subr.mxu0 0.0
      %5106 = vmatpush1.msra.mxu0 0.0
      %5107 = vmatprep.subr.mxu0 0.0
      %5108 = vmatpush1.msra.mxu0 0.0
      %5109 = vmatprep.subr.mxu0 0.0
      %5110 = vmatpush1.msra.mxu0 0.0
      %5111 = vmatprep.subr.mxu0 0.0
      %5112 = vmatpush1.msra.mxu0 0.0
      %5113 = vmatprep.subr.mxu0 0.0
      %5114 = vmatpush1.msra.mxu0 0.0
      %5115 = vmatprep.subr.mxu0 0.0
      %5116 = vmatpush1.msra.mxu0 0.0
      %5117 = vmatprep.subr.mxu0 0.0
      %5118 = vmatpush1.msra.mxu0 0.0
      %5119 = vmatprep.subr.mxu0 0.0
      %5120 = vmatpush1.msra.mxu0 0.0
      %5121 = vmatprep.subr.mxu0 0.0
      %5122 = vmatpush1.msra.mxu0 0.0
      %5123 = vmatprep.subr.mxu0 0.0
      %5124 = vmatpush1.msra.mxu0 0.0
      %5125 = vmatprep.subr.mxu0 0.0
      %5126 = vmatpush1.msra.mxu0 0.0
      %5127 = vmatprep.subr.mxu0 0.0
      %5128 = vmatpush1.msra.mxu0 0.0
      %5129 = vmatprep.subr.mxu0 0.0
      %5130 = vmatpush1.msra.mxu0 0.0
      %5131 = vmatprep.subr.mxu0 0.0
      %5132 = vmatpush1.msra.mxu0 0.0
      %5133 = vmatprep.subr.mxu0 0.0
      %5134 = vmatpush1.msra.mxu0 0.0
      %5135 = vmatprep.subr.mxu0 0.0
      %5136 = vmatpush1.msra.mxu0 0.0
      %5137 = vmatprep.mubr.f32.mxu0 0.0
      %5138 = vmatmul.mubr.f32.gmra.mrb[0].mxu0 %v5050
      %v5139 = vpop.f32.mrb[0].mxu0
      %v5140 = vadd.f32 0.0, %v5139
      %v5141 = vpop.f32.mrb[0].mxu0
      %5142 = vmatprep.mubr.f32.mxu0 0.0
      %5143 = vmatmul.mubr.f32.gmra.mrb[0].mxu0 %v5053
      %v5144 = vpop.f32.mrb[0].mxu0
      %v5145 = vadd.f32 0.0, %v5144
      %v5146 = vpop.f32.mrb[0].mxu0
      %5147 = vmatprep.mubr.f32.mxu0 0.0
      %5148 = vmatmul.mubr.f32.gmra.mrb[0].mxu0 %v5056
      %v5149 = vpop.f32.mrb[0].mxu0
      %v5150 = vadd.f32 0.0, %v5149
      %v5151 = vpop.f32.mrb[0].mxu0
      %5152 = vmatprep.mubr.f32.mxu0 0.0
      %5153 = vmatmul.mubr.f32.gmra.mrb[0].mxu0 %v5059
      %v5154 = vpop.f32.mrb[0].mxu0
      %v5155 = vadd.f32 0.0, %v5154
      %v5156 = vpop.f32.mrb[0].mxu0
      %5157 = vmatprep.mubr.f32.mxu0 0.0
      %5158 = vmatmul.mubr.f32.gmra.mrb[0].mxu0 %v5062
      %v5159 = vpop.f32.mrb[0].mxu0
      %v5160 = vadd.f32 0.0, %v5159
      %v5161 = vpop.f32.mrb[0].mxu0
      %5162 = vmatprep.mubr.f32.mxu0 0.0
      %5163 = vmatmul.mubr.f32.gmra.mrb[0].mxu0 %v5065
      %v5164 = vpop.f32.mrb[0].mxu0
      %v5165 = vadd.f32 0.0, %v5164
      %v5166 = vpop.f32.mrb[0].mxu0
      %5167 = vmatprep.mubr.f32.mxu0 0.0
      %5168 = vmatmul.mubr.f32.gmra.mrb[0].mxu0 %v5068
      %v5169 = vpop.f32.mrb[0].mxu0
      %v5170 = vadd.f32 0.0, %v5169
      %v5171 = vpop.f32.mrb[0].mxu0
      %5172 = vmatprep.mubr.f32.mxu0 0.0
      %5173 = vmatmul.mubr.f32.gmra.mrb[0].mxu0 %v5071
      %v5174 = vpop.f32.mrb[0].mxu0
      %v5175 = vadd.f32 0.0, %v5174
      %v5176 = vpop.f32.mrb[0].mxu0
      %5177 = vdwg.mxu0
      %v5178 = vadd.f32 %v5022, %v5140
      %v5179 = vadd.f32 %v5023, %v5145
      %v5180 = vadd.f32 %v5024, %v5150
      %v5181 = vadd.f32 %v5025, %v5155
      %v5182 = vadd.f32 %v5026, %v5160
      %v5183 = vadd.f32 %v5027, %v5165
      %v5184 = vadd.f32 %v5028, %v5170
      %v5185 = vadd.f32 %v5029, %v5175
      %v5186 = vld [vmem:[%s5030 + $0x5] sm:$0xff]
      %v5187 = vld [vmem:[%s5030 + $0x1d] sm:$0xff]
      %v5188 = vld [vmem:[%s5030 + $0x35] sm:$0xff]
      %v5189 = vld [vmem:[%s5030 + $0x4d] sm:$0xff]
      %v5190 = vld [vmem:[%s5030 + $0x65] sm:$0xff]
      %v5191 = vld [vmem:[%s5030 + $0x7d] sm:$0xff]
      %v5192 = vld [vmem:[%s5030 + $0x95] sm:$0xff]
      %v5193 = vld [vmem:[%s5030 + $0xad] sm:$0xff]
      %s5194 = scalar_lea.vmem %s2, 1800
      %v5195 = vld [vmem:[%s5194] sm:$0xff]
      %v5196 = vld [vmem:[%s5194 + $0x8] sm:$0xff]
      %v5197 = vld [vmem:[%s5194 + $0x10] sm:$0xff]
      %v5198 = vld [vmem:[%s5194 + $0x18] sm:$0xff]
      %v5199 = vld [vmem:[%s5194 + $0x20] sm:$0xff]
      %v5200 = vld [vmem:[%s5194 + $0x28] sm:$0xff]
      %v5201 = vld [vmem:[%s5194 + $0x30] sm:$0xff]
      %v5202 = vld [vmem:[%s5194 + $0x38] sm:$0xff]
      %v5203 = vld [vmem:[%s5194 + $0x40] sm:$0xff]
      %v5205 = vsel %vm977, %v5186, 0
      %v5208 = vsel %vm977, %v5187, 0
      %v5211 = vsel %vm977, %v5188, 0
      %v5214 = vsel %vm977, %v5189, 0
      %v5217 = vsel %vm977, %v5190, 0
      %v5220 = vsel %vm977, %v5191, 0
      %v5223 = vsel %vm977, %v5192, 0
      %v5226 = vsel %vm977, %v5193, 0
      %5228 = vmatprep.subr.mxu0 0.0
      %5229 = vmatpush1.msra.mxu0 %v5195
      %5230 = vmatprep.subr.mxu0 0.0
      %5231 = vmatpush1.msra.mxu0 %v5196
      %5232 = vmatprep.subr.mxu0 0.0
      %5233 = vmatpush1.msra.mxu0 %v5197
      %5234 = vmatprep.subr.mxu0 0.0
      %5235 = vmatpush1.msra.mxu0 %v5198
      %5236 = vmatprep.subr.mxu0 0.0
      %5237 = vmatpush1.msra.mxu0 %v5199
      %5238 = vmatprep.subr.mxu0 0.0
      %5239 = vmatpush1.msra.mxu0 %v5200
      %5240 = vmatprep.subr.mxu0 0.0
      %5241 = vmatpush1.msra.mxu0 %v5201
      %5242 = vmatprep.subr.mxu0 0.0
      %5243 = vmatpush1.msra.mxu0 %v5202
      %5244 = vmatprep.subr.mxu0 0.0
      %5245 = vmatpush1.msra.mxu0 %v5203
      %5246 = vmatprep.subr.mxu0 0.0
      %5247 = vmatpush1.msra.mxu0 0.0
      %5248 = vmatprep.subr.mxu0 0.0
      %5249 = vmatpush1.msra.mxu0 0.0
      %5250 = vmatprep.subr.mxu0 0.0
      %5251 = vmatpush1.msra.mxu0 0.0
      %5252 = vmatprep.subr.mxu0 0.0
      %5253 = vmatpush1.msra.mxu0 0.0
      %5254 = vmatprep.subr.mxu0 0.0
      %5255 = vmatpush1.msra.mxu0 0.0
      %5256 = vmatprep.subr.mxu0 0.0
      %5257 = vmatpush1.msra.mxu0 0.0
      %5258 = vmatprep.subr.mxu0 0.0
      %5259 = vmatpush1.msra.mxu0 0.0
      %5260 = vmatprep.subr.mxu0 0.0
      %5261 = vmatpush1.msra.mxu0 0.0
      %5262 = vmatprep.subr.mxu0 0.0
      %5263 = vmatpush1.msra.mxu0 0.0
      %5264 = vmatprep.subr.mxu0 0.0
      %5265 = vmatpush1.msra.mxu0 0.0
      %5266 = vmatprep.subr.mxu0 0.0
      %5267 = vmatpush1.msra.mxu0 0.0
      %5268 = vmatprep.subr.mxu0 0.0
      %5269 = vmatpush1.msra.mxu0 0.0
      %5270 = vmatprep.subr.mxu0 0.0
      %5271 = vmatpush1.msra.mxu0 0.0
      %5272 = vmatprep.subr.mxu0 0.0
      %5273 = vmatpush1.msra.mxu0 0.0
      %5274 = vmatprep.subr.mxu0 0.0
      %5275 = vmatpush1.msra.mxu0 0.0
      %5276 = vmatprep.subr.mxu0 0.0
      %5277 = vmatpush1.msra.mxu0 0.0
      %5278 = vmatprep.subr.mxu0 0.0
      %5279 = vmatpush1.msra.mxu0 0.0
      %5280 = vmatprep.subr.mxu0 0.0
      %5281 = vmatpush1.msra.mxu0 0.0
      %5282 = vmatprep.subr.mxu0 0.0
      %5283 = vmatpush1.msra.mxu0 0.0
      %5284 = vmatprep.subr.mxu0 0.0
      %5285 = vmatpush1.msra.mxu0 0.0
      %5286 = vmatprep.subr.mxu0 0.0
      %5287 = vmatpush1.msra.mxu0 0.0
      %5288 = vmatprep.subr.mxu0 0.0
      %5289 = vmatpush1.msra.mxu0 0.0
      %5290 = vmatprep.subr.mxu0 0.0
      %5291 = vmatpush1.msra.mxu0 0.0
      %5292 = vmatprep.mubr.f32.mxu0 0.0
      %5293 = vmatmul.mubr.f32.gmra.mrb[0].mxu0 %v5205
      %v5294 = vpop.f32.mrb[0].mxu0
      %v5295 = vadd.f32 0.0, %v5294
      %v5296 = vpop.f32.mrb[0].mxu0
      %5297 = vmatprep.mubr.f32.mxu0 0.0
      %5298 = vmatmul.mubr.f32.gmra.mrb[0].mxu0 %v5208
      %v5299 = vpop.f32.mrb[0].mxu0
      %v5300 = vadd.f32 0.0, %v5299
      %v5301 = vpop.f32.mrb[0].mxu0
      %5302 = vmatprep.mubr.f32.mxu0 0.0
      %5303 = vmatmul.mubr.f32.gmra.mrb[0].mxu0 %v5211
      %v5304 = vpop.f32.mrb[0].mxu0
      %v5305 = vadd.f32 0.0, %v5304
      %v5306 = vpop.f32.mrb[0].mxu0
      %5307 = vmatprep.mubr.f32.mxu0 0.0
      %5308 = vmatmul.mubr.f32.gmra.mrb[0].mxu0 %v5214
      %v5309 = vpop.f32.mrb[0].mxu0
      %v5310 = vadd.f32 0.0, %v5309
      %v5311 = vpop.f32.mrb[0].mxu0
      %5312 = vmatprep.mubr.f32.mxu0 0.0
      %5313 = vmatmul.mubr.f32.gmra.mrb[0].mxu0 %v5217
      %v5314 = vpop.f32.mrb[0].mxu0
      %v5315 = vadd.f32 0.0, %v5314
      %v5316 = vpop.f32.mrb[0].mxu0
      %5317 = vmatprep.mubr.f32.mxu0 0.0
      %5318 = vmatmul.mubr.f32.gmra.mrb[0].mxu0 %v5220
      %v5319 = vpop.f32.mrb[0].mxu0
      %v5320 = vadd.f32 0.0, %v5319
      %v5321 = vpop.f32.mrb[0].mxu0
      %5322 = vmatprep.mubr.f32.mxu0 0.0
      %5323 = vmatmul.mubr.f32.gmra.mrb[0].mxu0 %v5223
      %v5324 = vpop.f32.mrb[0].mxu0
      %v5325 = vadd.f32 0.0, %v5324
      %v5326 = vpop.f32.mrb[0].mxu0
      %5327 = vmatprep.mubr.f32.mxu0 0.0
      %5328 = vmatmul.mubr.f32.gmra.mrb[0].mxu0 %v5226
      %v5329 = vpop.f32.mrb[0].mxu0
      %v5330 = vadd.f32 0.0, %v5329
      %v5331 = vpop.f32.mrb[0].mxu0
      %5332 = vdwg.mxu0
      %v5333 = vadd.f32 %v5178, %v5295
      %v5334 = vadd.f32 %v5179, %v5300
      %v5335 = vadd.f32 %v5180, %v5305
      %v5336 = vadd.f32 %v5181, %v5310
      %v5337 = vadd.f32 %v5182, %v5315
      %v5338 = vadd.f32 %v5183, %v5320
      %v5339 = vadd.f32 %v5184, %v5325
      %v5340 = vadd.f32 %v5185, %v5330
      %v5341 = vld [vmem:[%s5030 + $0xa] sm:$0xff]
      %v5342 = vld [vmem:[%s5030 + $0x22] sm:$0xff]
      %v5343 = vld [vmem:[%s5030 + $0x3a] sm:$0xff]
      %v5344 = vld [vmem:[%s5030 + $0x52] sm:$0xff]
      %v5345 = vld [vmem:[%s5030 + $0x6a] sm:$0xff]
      %v5346 = vld [vmem:[%s5030 + $0x82] sm:$0xff]
      %v5347 = vld [vmem:[%s5030 + $0x9a] sm:$0xff]
      %v5348 = vld [vmem:[%s5030 + $0xb2] sm:$0xff]
      %s5349 = scalar_lea.vmem %s2, 1872
      %v5350 = vld [vmem:[%s5349] sm:$0xff]
      %v5351 = vld [vmem:[%s5349 + $0x8] sm:$0xff]
      %v5352 = vld [vmem:[%s5349 + $0x10] sm:$0xff]
      %v5353 = vld [vmem:[%s5349 + $0x18] sm:$0xff]
      %v5354 = vld [vmem:[%s5349 + $0x20] sm:$0xff]
      %v5355 = vld [vmem:[%s5349 + $0x28] sm:$0xff]
      %v5356 = vld [vmem:[%s5349 + $0x30] sm:$0xff]
      %v5357 = vld [vmem:[%s5349 + $0x38] sm:$0xff]
      %v5358 = vld [vmem:[%s5349 + $0x40] sm:$0xff]
      %v5360 = vsel %vm977, %v5341, 0
      %v5363 = vsel %vm977, %v5342, 0
      %v5366 = vsel %vm977, %v5343, 0
      %v5369 = vsel %vm977, %v5344, 0
      %v5372 = vsel %vm977, %v5345, 0
      %v5375 = vsel %vm977, %v5346, 0
      %v5378 = vsel %vm977, %v5347, 0
      %v5381 = vsel %vm977, %v5348, 0
      %5383 = vmatprep.subr.mxu0 0.0
      %5384 = vmatpush1.msra.mxu0 %v5350
      %5385 = vmatprep.subr.mxu0 0.0
      %5386 = vmatpush1.msra.mxu0 %v5351
      %5387 = vmatprep.subr.mxu0 0.0
      %5388 = vmatpush1.msra.mxu0 %v5352
      %5389 = vmatprep.subr.mxu0 0.0
      %5390 = vmatpush1.msra.mxu0 %v5353
      %5391 = vmatprep.subr.mxu0 0.0
      %5392 = vmatpush1.msra.mxu0 %v5354
      %5393 = vmatprep.subr.mxu0 0.0
      %5394 = vmatpush1.msra.mxu0 %v5355
      %5395 = vmatprep.subr.mxu0 0.0
      %5396 = vmatpush1.msra.mxu0 %v5356
      %5397 = vmatprep.subr.mxu0 0.0
      %5398 = vmatpush1.msra.mxu0 %v5357
      %5399 = vmatprep.subr.mxu0 0.0
      %5400 = vmatpush1.msra.mxu0 %v5358
      %5401 = vmatprep.subr.mxu0 0.0
      %5402 = vmatpush1.msra.mxu0 0.0
      %5403 = vmatprep.subr.mxu0 0.0
      %5404 = vmatpush1.msra.mxu0 0.0
      %5405 = vmatprep.subr.mxu0 0.0
      %5406 = vmatpush1.msra.mxu0 0.0
      %5407 = vmatprep.subr.mxu0 0.0
      %5408 = vmatpush1.msra.mxu0 0.0
      %5409 = vmatprep.subr.mxu0 0.0
      %5410 = vmatpush1.msra.mxu0 0.0
      %5411 = vmatprep.subr.mxu0 0.0
      %5412 = vmatpush1.msra.mxu0 0.0
      %5413 = vmatprep.subr.mxu0 0.0
      %5414 = vmatpush1.msra.mxu0 0.0
      %5415 = vmatprep.subr.mxu0 0.0
      %5416 = vmatpush1.msra.mxu0 0.0
      %5417 = vmatprep.subr.mxu0 0.0
      %5418 = vmatpush1.msra.mxu0 0.0
      %5419 = vmatprep.subr.mxu0 0.0
      %5420 = vmatpush1.msra.mxu0 0.0
      %5421 = vmatprep.subr.mxu0 0.0
      %5422 = vmatpush1.msra.mxu0 0.0
      %5423 = vmatprep.subr.mxu0 0.0
      %5424 = vmatpush1.msra.mxu0 0.0
      %5425 = vmatprep.subr.mxu0 0.0
      %5426 = vmatpush1.msra.mxu0 0.0
      %5427 = vmatprep.subr.mxu0 0.0
      %5428 = vmatpush1.msra.mxu0 0.0
      %5429 = vmatprep.subr.mxu0 0.0
      %5430 = vmatpush1.msra.mxu0 0.0
      %5431 = vmatprep.subr.mxu0 0.0
      %5432 = vmatpush1.msra.mxu0 0.0
      %5433 = vmatprep.subr.mxu0 0.0
      %5434 = vmatpush1.msra.mxu0 0.0
      %5435 = vmatprep.subr.mxu0 0.0
      %5436 = vmatpush1.msra.mxu0 0.0
      %5437 = vmatprep.subr.mxu0 0.0
      %5438 = vmatpush1.msra.mxu0 0.0
      %5439 = vmatprep.subr.mxu0 0.0
      %5440 = vmatpush1.msra.mxu0 0.0
      %5441 = vmatprep.subr.mxu0 0.0
      %5442 = vmatpush1.msra.mxu0 0.0
      %5443 = vmatprep.subr.mxu0 0.0
      %5444 = vmatpush1.msra.mxu0 0.0
      %5445 = vmatprep.subr.mxu0 0.0
      %5446 = vmatpush1.msra.mxu0 0.0
      %5447 = vmatprep.mubr.f32.mxu0 0.0
      %5448 = vmatmul.mubr.f32.gmra.mrb[0].mxu0 %v5360
      %v5449 = vpop.f32.mrb[0].mxu0
      %v5450 = vadd.f32 0.0, %v5449
      %v5451 = vpop.f32.mrb[0].mxu0
      %5452 = vmatprep.mubr.f32.mxu0 0.0
      %5453 = vmatmul.mubr.f32.gmra.mrb[0].mxu0 %v5363
      %v5454 = vpop.f32.mrb[0].mxu0
      %v5455 = vadd.f32 0.0, %v5454
      %v5456 = vpop.f32.mrb[0].mxu0
      %5457 = vmatprep.mubr.f32.mxu0 0.0
      %5458 = vmatmul.mubr.f32.gmra.mrb[0].mxu0 %v5366
      %v5459 = vpop.f32.mrb[0].mxu0
      %v5460 = vadd.f32 0.0, %v5459
      %v5461 = vpop.f32.mrb[0].mxu0
      %5462 = vmatprep.mubr.f32.mxu0 0.0
      %5463 = vmatmul.mubr.f32.gmra.mrb[0].mxu0 %v5369
      %v5464 = vpop.f32.mrb[0].mxu0
      %v5465 = vadd.f32 0.0, %v5464
      %v5466 = vpop.f32.mrb[0].mxu0
      %5467 = vmatprep.mubr.f32.mxu0 0.0
      %5468 = vmatmul.mubr.f32.gmra.mrb[0].mxu0 %v5372
      %v5469 = vpop.f32.mrb[0].mxu0
      %v5470 = vadd.f32 0.0, %v5469
      %v5471 = vpop.f32.mrb[0].mxu0
      %5472 = vmatprep.mubr.f32.mxu0 0.0
      %5473 = vmatmul.mubr.f32.gmra.mrb[0].mxu0 %v5375
      %v5474 = vpop.f32.mrb[0].mxu0
      %v5475 = vadd.f32 0.0, %v5474
      %v5476 = vpop.f32.mrb[0].mxu0
      %5477 = vmatprep.mubr.f32.mxu0 0.0
      %5478 = vmatmul.mubr.f32.gmra.mrb[0].mxu0 %v5378
      %v5479 = vpop.f32.mrb[0].mxu0
      %v5480 = vadd.f32 0.0, %v5479
      %v5481 = vpop.f32.mrb[0].mxu0
      %5482 = vmatprep.mubr.f32.mxu0 0.0
      %5483 = vmatmul.mubr.f32.gmra.mrb[0].mxu0 %v5381
      %v5484 = vpop.f32.mrb[0].mxu0
      %v5485 = vadd.f32 0.0, %v5484
      %v5486 = vpop.f32.mrb[0].mxu0
      %5487 = vdwg.mxu0
      %v5488 = vadd.f32 %v5333, %v5450
      %v5489 = vadd.f32 %v5334, %v5455
      %v5490 = vadd.f32 %v5335, %v5460
      %v5491 = vadd.f32 %v5336, %v5465
      %v5492 = vadd.f32 %v5337, %v5470
      %v5493 = vadd.f32 %v5338, %v5475
      %v5494 = vadd.f32 %v5339, %v5480
      %v5495 = vadd.f32 %v5340, %v5485
      %v5496 = vadd.f32 %v5488, %v5489
      %v5497 = vadd.f32 %v5496, %v5490
      %v5498 = vadd.f32 %v5497, %v5491
      %v5499 = vadd.f32 %v5498, %v5492
      %v5500 = vadd.f32 %v5499, %v5493
      %v5501 = vadd.f32 %v5500, %v5494
      %v5502 = vadd.f32 %v5501, %v5495
      %5503 = vadd.xlane.f32.xlu0 %v5502
      %v5504 = vpop.xlane.xlu0 %5503
      %v5505 = vrot.slane %v5504, 4
      %v5506 = vadd.f32 %v5504, %v5505
      %v5507 = vrot.slane %v5506, 2
      %v5508 = vadd.f32 %v5506, %v5507
      %v5509 = vrot.slane %v5508, 1
      %v5510 = vadd.f32 %v5508, %v5509
      %s5511 = vtos %v5510
      %v5512 = vrcp.pop 8192.0
      %s5513 = vtos %v5512
      %s5514 = smul.f32 %s5511, %s5513
      %v5515 = vstv %s5514
      %v5516 = vsub.f32 %v5488, %v5515
      %v5517 = vsub.f32 %v5489, %v5515
      %v5518 = vsub.f32 %v5490, %v5515
      %v5519 = vsub.f32 %v5491, %v5515
      %v5520 = vsub.f32 %v5492, %v5515
      %v5521 = vsub.f32 %v5493, %v5515
      %v5522 = vsub.f32 %v5494, %v5515
      %v5523 = vsub.f32 %v5495, %v5515
      %v5524 = vmul.f32 %v5516, %v5516
      %v5525 = vmul.f32 %v5517, %v5517
      %v5526 = vmul.f32 %v5518, %v5518
      %v5527 = vmul.f32 %v5519, %v5519
      %v5528 = vmul.f32 %v5520, %v5520
      %v5529 = vmul.f32 %v5521, %v5521
      %v5530 = vmul.f32 %v5522, %v5522
      %v5531 = vmul.f32 %v5523, %v5523
      %v5532 = vadd.f32 %v5524, %v5525
      %v5533 = vadd.f32 %v5532, %v5526
      %v5534 = vadd.f32 %v5533, %v5527
      %v5535 = vadd.f32 %v5534, %v5528
      %v5536 = vadd.f32 %v5535, %v5529
      %v5537 = vadd.f32 %v5536, %v5530
      %v5538 = vadd.f32 %v5537, %v5531
      %5539 = vadd.xlane.f32.xlu0 %v5538
      %v5540 = vpop.xlane.xlu0 %5539
      %v5541 = vrot.slane %v5540, 4
      %v5542 = vadd.f32 %v5540, %v5541
      %v5543 = vrot.slane %v5542, 2
      %v5544 = vadd.f32 %v5542, %v5543
      %v5545 = vrot.slane %v5544, 1
      %v5546 = vadd.f32 %v5544, %v5545
      %s5547 = vtos %v5546
      %v5548 = vrcp.pop 8192.0
      %s5549 = vtos %v5548
      %s5550 = smul.f32 %s5547, %s5549
      %s5551 = sadd.f32 %s5550, 1e-05
      %v5552 = vstv %s5551
      %v5553 = vrsqrt.pop %v5552
      %s5554 = vtos %v5553
      %v5555 = vstv %s5554
      %v5556 = vmul.f32 %v5516, %v5555
      %v5557 = vmul.f32 %v5517, %v5555
      %v5558 = vmul.f32 %v5518, %v5555
      %v5559 = vmul.f32 %v5519, %v5555
      %v5560 = vmul.f32 %v5520, %v5555
      %v5561 = vmul.f32 %v5521, %v5555
      %v5562 = vmul.f32 %v5522, %v5555
      %v5563 = vmul.f32 %v5523, %v5555
      %v5564 = vmax.f32 %v5556, 0.0
      %v5565 = vmax.f32 %v5557, 0.0
      %v5566 = vmax.f32 %v5558, 0.0
      %v5567 = vmax.f32 %v5559, 0.0
      %v5568 = vmax.f32 %v5560, 0.0
      %v5569 = vmax.f32 %v5561, 0.0
      %v5570 = vmax.f32 %v5562, 0.0
      %v5571 = vmax.f32 %v5563, 0.0
      %s5572 = scalar_lea.vmem %s5, 1024
      %v5573 = vld [vmem:[%s5572] sm:$0xff]
      %v5574 = vld [vmem:[%s5572 + $0x8] sm:$0xff]
      %v5575 = vld [vmem:[%s5572 + $0x10] sm:$0xff]
      %v5576 = vld [vmem:[%s5572 + $0x18] sm:$0xff]
      %v5577 = vld [vmem:[%s5572 + $0x20] sm:$0xff]
      %v5578 = vld [vmem:[%s5572 + $0x28] sm:$0xff]
      %v5579 = vld [vmem:[%s5572 + $0x30] sm:$0xff]
      %v5580 = vld [vmem:[%s5572 + $0x38] sm:$0xff]
      %v5581 = vld [vmem:[%s5572 + $0x40] sm:$0xff]
      %v5582 = vld [vmem:[%s5572 + $0x48] sm:$0xff]
      %v5583 = vld [vmem:[%s5572 + $0x50] sm:$0xff]
      %v5584 = vld [vmem:[%s5572 + $0x58] sm:$0xff]
      %v5585 = vld [vmem:[%s5572 + $0x60] sm:$0xff]
      %v5586 = vld [vmem:[%s5572 + $0x68] sm:$0xff]
      %v5587 = vld [vmem:[%s5572 + $0x70] sm:$0xff]
      %v5588 = vld [vmem:[%s5572 + $0x78] sm:$0xff]
      %v5589 = vld [vmem:[%s5572 + $0x80] sm:$0xff]
      %v5590 = vld [vmem:[%s5572 + $0x88] sm:$0xff]
      %v5591 = vld [vmem:[%s5572 + $0x90] sm:$0xff]
      %v5592 = vld [vmem:[%s5572 + $0x98] sm:$0xff]
      %v5593 = vld [vmem:[%s5572 + $0xa0] sm:$0xff]
      %v5594 = vld [vmem:[%s5572 + $0xa8] sm:$0xff]
      %v5595 = vld [vmem:[%s5572 + $0xb0] sm:$0xff]
      %v5596 = vld [vmem:[%s5572 + $0xb8] sm:$0xff]
      %v5597 = vld [vmem:[%s5572 + $0xc0] sm:$0xff]
      %v5598 = vld [vmem:[%s5572 + $0xc8] sm:$0xff]
      %v5599 = vld [vmem:[%s5572 + $0xd0] sm:$0xff]
      %v5600 = vld [vmem:[%s5572 + $0xd8] sm:$0xff]
      %v5601 = vld [vmem:[%s5572 + $0xe0] sm:$0xff]
      %v5602 = vld [vmem:[%s5572 + $0xe8] sm:$0xff]
      %v5603 = vld [vmem:[%s5572 + $0xf0] sm:$0xff]
      %v5604 = vld [vmem:[%s5572 + $0xf8] sm:$0xff]
      %5605 = vmatprep.subr.mxu0 %v5574
      %5606 = vmatpush1.msra.mxu0 %v5573
      %5607 = vmatprep.subr.mxu0 %v5576
      %5608 = vmatpush1.msra.mxu0 %v5575
      %5609 = vmatprep.subr.mxu0 %v5578
      %5610 = vmatpush1.msra.mxu0 %v5577
      %5611 = vmatprep.subr.mxu0 %v5580
      %5612 = vmatpush1.msra.mxu0 %v5579
      %5613 = vmatprep.subr.mxu0 %v5582
      %5614 = vmatpush1.msra.mxu0 %v5581
      %5615 = vmatprep.subr.mxu0 %v5584
      %5616 = vmatpush1.msra.mxu0 %v5583
      %5617 = vmatprep.subr.mxu0 %v5586
      %5618 = vmatpush1.msra.mxu0 %v5585
      %5619 = vmatprep.subr.mxu0 %v5588
      %5620 = vmatpush1.msra.mxu0 %v5587
      %5621 = vmatprep.subr.mxu0 %v5590
      %5622 = vmatpush1.msra.mxu0 %v5589
      %5623 = vmatprep.subr.mxu0 %v5592
      %5624 = vmatpush1.msra.mxu0 %v5591
      %5625 = vmatprep.subr.mxu0 %v5594
      %5626 = vmatpush1.msra.mxu0 %v5593
      %5627 = vmatprep.subr.mxu0 %v5596
      %5628 = vmatpush1.msra.mxu0 %v5595
      %5629 = vmatprep.subr.mxu0 %v5598
      %5630 = vmatpush1.msra.mxu0 %v5597
      %5631 = vmatprep.subr.mxu0 %v5600
      %5632 = vmatpush1.msra.mxu0 %v5599
      %5633 = vmatprep.subr.mxu0 %v5602
      %5634 = vmatpush1.msra.mxu0 %v5601
      %5635 = vmatprep.subr.mxu0 %v5604
      %5636 = vmatpush1.msra.mxu0 %v5603
      %5637 = vmatprep.subr.mxu0 0.0
      %5638 = vmatpush1.msra.mxu0 0.0
      %5639 = vmatprep.subr.mxu0 0.0
      %5640 = vmatpush1.msra.mxu0 0.0
      %5641 = vmatprep.subr.mxu0 0.0
      %5642 = vmatpush1.msra.mxu0 0.0
      %5643 = vmatprep.subr.mxu0 0.0
      %5644 = vmatpush1.msra.mxu0 0.0
      %5645 = vmatprep.subr.mxu0 0.0
      %5646 = vmatpush1.msra.mxu0 0.0
      %5647 = vmatprep.subr.mxu0 0.0
      %5648 = vmatpush1.msra.mxu0 0.0
      %5649 = vmatprep.subr.mxu0 0.0
      %5650 = vmatpush1.msra.mxu0 0.0
      %5651 = vmatprep.subr.mxu0 0.0
      %5652 = vmatpush1.msra.mxu0 0.0
      %5653 = vmatprep.subr.mxu0 0.0
      %5654 = vmatpush1.msra.mxu0 0.0
      %5655 = vmatprep.subr.mxu0 0.0
      %5656 = vmatpush1.msra.mxu0 0.0
      %5657 = vmatprep.subr.mxu0 0.0
      %5658 = vmatpush1.msra.mxu0 0.0
      %5659 = vmatprep.subr.mxu0 0.0
      %5660 = vmatpush1.msra.mxu0 0.0
      %5661 = vmatprep.subr.mxu0 0.0
      %5662 = vmatpush1.msra.mxu0 0.0
      %5663 = vmatprep.subr.mxu0 0.0
      %5664 = vmatpush1.msra.mxu0 0.0
      %5665 = vmatprep.subr.mxu0 0.0
      %5666 = vmatpush1.msra.mxu0 0.0
      %5667 = vmatprep.subr.mxu0 0.0
      %5668 = vmatpush1.msra.mxu0 0.0
      %5669 = vmatprep.mubr.f32.mxu0 0.0
      %5670 = vmatmul.mubr.f32.gmra.mrb[0].mxu0 %v5564
      %v5671 = vpop.f32.mrb[0].mxu0
      %v5672 = vadd.f32 0.0, %v5671
      %v5673 = vpop.f32.mrb[0].mxu0
      %v5674 = vadd.f32 0.0, %v5673
      %5675 = vmatprep.mubr.f32.mxu0 0.0
      %5676 = vmatmul.mubr.f32.gmra.mrb[0].mxu0 %v5565
      %v5677 = vpop.f32.mrb[0].mxu0
      %v5678 = vadd.f32 0.0, %v5677
      %v5679 = vpop.f32.mrb[0].mxu0
      %v5680 = vadd.f32 0.0, %v5679
      %5681 = vmatprep.mubr.f32.mxu0 0.0
      %5682 = vmatmul.mubr.f32.gmra.mrb[0].mxu0 %v5566
      %v5683 = vpop.f32.mrb[0].mxu0
      %v5684 = vadd.f32 0.0, %v5683
      %v5685 = vpop.f32.mrb[0].mxu0
      %v5686 = vadd.f32 0.0, %v5685
      %5687 = vmatprep.mubr.f32.mxu0 0.0
      %5688 = vmatmul.mubr.f32.gmra.mrb[0].mxu0 %v5567
      %v5689 = vpop.f32.mrb[0].mxu0
      %v5690 = vadd.f32 0.0, %v5689
      %v5691 = vpop.f32.mrb[0].mxu0
      %v5692 = vadd.f32 0.0, %v5691
      %5693 = vmatprep.mubr.f32.mxu0 0.0
      %5694 = vmatmul.mubr.f32.gmra.mrb[0].mxu0 %v5568
      %v5695 = vpop.f32.mrb[0].mxu0
      %v5696 = vadd.f32 0.0, %v5695
      %v5697 = vpop.f32.mrb[0].mxu0
      %v5698 = vadd.f32 0.0, %v5697
      %5699 = vmatprep.mubr.f32.mxu0 0.0
      %5700 = vmatmul.mubr.f32.gmra.mrb[0].mxu0 %v5569
      %v5701 = vpop.f32.mrb[0].mxu0
      %v5702 = vadd.f32 0.0, %v5701
      %v5703 = vpop.f32.mrb[0].mxu0
      %v5704 = vadd.f32 0.0, %v5703
      %5705 = vmatprep.mubr.f32.mxu0 0.0
      %5706 = vmatmul.mubr.f32.gmra.mrb[0].mxu0 %v5570
      %v5707 = vpop.f32.mrb[0].mxu0
      %v5708 = vadd.f32 0.0, %v5707
      %v5709 = vpop.f32.mrb[0].mxu0
      %v5710 = vadd.f32 0.0, %v5709
      %5711 = vmatprep.mubr.f32.mxu0 0.0
      %5712 = vmatmul.mubr.f32.gmra.mrb[0].mxu0 %v5571
      %v5713 = vpop.f32.mrb[0].mxu0
      %v5714 = vadd.f32 0.0, %v5713
      %v5715 = vpop.f32.mrb[0].mxu0
      %v5716 = vadd.f32 0.0, %v5715
      %5717 = vdwg.mxu0
      %v5718 = vadd.f32 %v4132, %v5672
      %v5719 = vadd.f32 %v4133, %v5674
      %v5720 = vadd.f32 %v4134, %v5678
      %v5721 = vadd.f32 %v4135, %v5680
      %v5722 = vadd.f32 %v4136, %v5684
      %v5723 = vadd.f32 %v4137, %v5686
      %v5724 = vadd.f32 %v4138, %v5690
      %v5725 = vadd.f32 %v4139, %v5692
      %v5726 = vadd.f32 %v4140, %v5696
      %v5727 = vadd.f32 %v4141, %v5698
      %v5728 = vadd.f32 %v4142, %v5702
      %v5729 = vadd.f32 %v4143, %v5704
      %v5730 = vadd.f32 %v4144, %v5708
      %v5731 = vadd.f32 %v4145, %v5710
      %v5732 = vadd.f32 %v4146, %v5714
      %v5733 = vadd.f32 %v4147, %v5716
      %v5734 = vadd.f32 %v5718, %v5719
      %v5735 = vadd.f32 %v5734, %v5720
      %v5736 = vadd.f32 %v5735, %v5721
      %v5737 = vadd.f32 %v5736, %v5722
      %v5738 = vadd.f32 %v5737, %v5723
      %v5739 = vadd.f32 %v5738, %v5724
      %v5740 = vadd.f32 %v5739, %v5725
      %v5741 = vadd.f32 %v5740, %v5726
      %v5742 = vadd.f32 %v5741, %v5727
      %v5743 = vadd.f32 %v5742, %v5728
      %v5744 = vadd.f32 %v5743, %v5729
      %v5745 = vadd.f32 %v5744, %v5730
      %v5746 = vadd.f32 %v5745, %v5731
      %v5747 = vadd.f32 %v5746, %v5732
      %v5748 = vadd.f32 %v5747, %v5733
      %5749 = vadd.xlane.f32.xlu0 %v5748
      %v5750 = vpop.xlane.xlu0 %5749
      %v5751 = vrot.slane %v5750, 4
      %v5752 = vadd.f32 %v5750, %v5751
      %v5753 = vrot.slane %v5752, 2
      %v5754 = vadd.f32 %v5752, %v5753
      %v5755 = vrot.slane %v5754, 1
      %v5756 = vadd.f32 %v5754, %v5755
      %s5757 = vtos %v5756
      %v5758 = vrcp.pop 16384.0
      %s5759 = vtos %v5758
      %s5760 = smul.f32 %s5757, %s5759
      %v5761 = vstv %s5760
      %v5762 = vsub.f32 %v5718, %v5761
      %v5763 = vsub.f32 %v5719, %v5761
      %v5764 = vsub.f32 %v5720, %v5761
      %v5765 = vsub.f32 %v5721, %v5761
      %v5766 = vsub.f32 %v5722, %v5761
      %v5767 = vsub.f32 %v5723, %v5761
      %v5768 = vsub.f32 %v5724, %v5761
      %v5769 = vsub.f32 %v5725, %v5761
      %v5770 = vsub.f32 %v5726, %v5761
      %v5771 = vsub.f32 %v5727, %v5761
      %v5772 = vsub.f32 %v5728, %v5761
      %v5773 = vsub.f32 %v5729, %v5761
      %v5774 = vsub.f32 %v5730, %v5761
      %v5775 = vsub.f32 %v5731, %v5761
      %v5776 = vsub.f32 %v5732, %v5761
      %v5777 = vsub.f32 %v5733, %v5761
      %v5778 = vmul.f32 %v5762, %v5762
      %v5779 = vmul.f32 %v5763, %v5763
      %v5780 = vmul.f32 %v5764, %v5764
      %v5781 = vmul.f32 %v5765, %v5765
      %v5782 = vmul.f32 %v5766, %v5766
      %v5783 = vmul.f32 %v5767, %v5767
      %v5784 = vmul.f32 %v5768, %v5768
      %v5785 = vmul.f32 %v5769, %v5769
      %v5786 = vmul.f32 %v5770, %v5770
      %v5787 = vmul.f32 %v5771, %v5771
      %v5788 = vmul.f32 %v5772, %v5772
      %v5789 = vmul.f32 %v5773, %v5773
      %v5790 = vmul.f32 %v5774, %v5774
      %v5791 = vmul.f32 %v5775, %v5775
      %v5792 = vmul.f32 %v5776, %v5776
      %v5793 = vmul.f32 %v5777, %v5777
      %v5794 = vadd.f32 %v5778, %v5779
      %v5795 = vadd.f32 %v5794, %v5780
      %v5796 = vadd.f32 %v5795, %v5781
      %v5797 = vadd.f32 %v5796, %v5782
      %v5798 = vadd.f32 %v5797, %v5783
      %v5799 = vadd.f32 %v5798, %v5784
      %v5800 = vadd.f32 %v5799, %v5785
      %v5801 = vadd.f32 %v5800, %v5786
      %v5802 = vadd.f32 %v5801, %v5787
      %v5803 = vadd.f32 %v5802, %v5788
      %v5804 = vadd.f32 %v5803, %v5789
      %v5805 = vadd.f32 %v5804, %v5790
      %v5806 = vadd.f32 %v5805, %v5791
      %v5807 = vadd.f32 %v5806, %v5792
      %v5808 = vadd.f32 %v5807, %v5793
      %5809 = vadd.xlane.f32.xlu0 %v5808
      %v5810 = vpop.xlane.xlu0 %5809
      %v5811 = vrot.slane %v5810, 4
      %v5812 = vadd.f32 %v5810, %v5811
      %v5813 = vrot.slane %v5812, 2
      %v5814 = vadd.f32 %v5812, %v5813
      %v5815 = vrot.slane %v5814, 1
      %v5816 = vadd.f32 %v5814, %v5815
      %s5817 = vtos %v5816
      %v5818 = vrcp.pop 16384.0
      %s5819 = vtos %v5818
      %s5820 = smul.f32 %s5817, %s5819
      %s5821 = sadd.f32 %s5820, 1e-05
      %v5822 = vstv %s5821
      %v5823 = vrsqrt.pop %v5822
      %s5824 = vtos %v5823
      %v5825 = vstv %s5824
      %v5826 = vmul.f32 %v5762, %v5825
      %v5827 = vmul.f32 %v5763, %v5825
      %v5828 = vmul.f32 %v5764, %v5825
      %v5829 = vmul.f32 %v5765, %v5825
      %v5830 = vmul.f32 %v5766, %v5825
      %v5831 = vmul.f32 %v5767, %v5825
      %v5832 = vmul.f32 %v5768, %v5825
      %v5833 = vmul.f32 %v5769, %v5825
      %v5834 = vmul.f32 %v5770, %v5825
      %v5835 = vmul.f32 %v5771, %v5825
      %v5836 = vmul.f32 %v5772, %v5825
      %v5837 = vmul.f32 %v5773, %v5825
      %v5838 = vmul.f32 %v5774, %v5825
      %v5839 = vmul.f32 %v5775, %v5825
      %v5840 = vmul.f32 %v5776, %v5825
      %v5841 = vmul.f32 %v5777, %v5825
      %v5842 = vmax.f32 %v5826, 0.0
      %v5843 = vmax.f32 %v5827, 0.0
      %v5844 = vmax.f32 %v5828, 0.0
      %v5845 = vmax.f32 %v5829, 0.0
      %v5846 = vmax.f32 %v5830, 0.0
      %v5847 = vmax.f32 %v5831, 0.0
      %v5848 = vmax.f32 %v5832, 0.0
      %v5849 = vmax.f32 %v5833, 0.0
      %v5850 = vmax.f32 %v5834, 0.0
      %v5851 = vmax.f32 %v5835, 0.0
      %v5852 = vmax.f32 %v5836, 0.0
      %v5853 = vmax.f32 %v5837, 0.0
      %v5854 = vmax.f32 %v5838, 0.0
      %v5855 = vmax.f32 %v5839, 0.0
      %v5856 = vmax.f32 %v5840, 0.0
      %v5857 = vmax.f32 %v5841, 0.0
      %5858 = vst [vmem:[%s271] sm:$0xff] %v5842
      %5859 = vst [vmem:[%s271 + $0x8] sm:$0xff] %v5843
      %5860 = vst [vmem:[%s271 + $0x10] sm:$0xff] %v5844
      %5861 = vst [vmem:[%s271 + $0x18] sm:$0xff] %v5845
      %5862 = vst [vmem:[%s271 + $0x20] sm:$0xff] %v5846
      %5863 = vst [vmem:[%s271 + $0x28] sm:$0xff] %v5847
      %5864 = vst [vmem:[%s271 + $0x30] sm:$0xff] %v5848
      %5865 = vst [vmem:[%s271 + $0x38] sm:$0xff] %v5849
      %5866 = vst [vmem:[%s271 + $0x40] sm:$0xff] %v5850
      %5867 = vst [vmem:[%s271 + $0x48] sm:$0xff] %v5851
      %5868 = vst [vmem:[%s271 + $0x50] sm:$0xff] %v5852
      %5869 = vst [vmem:[%s271 + $0x58] sm:$0xff] %v5853
      %5870 = vst [vmem:[%s271 + $0x60] sm:$0xff] %v5854
      %5871 = vst [vmem:[%s271 + $0x68] sm:$0xff] %v5855
      %5872 = vst [vmem:[%s271 + $0x70] sm:$0xff] %v5856
      %5873 = vst [vmem:[%s271 + $0x78] sm:$0xff] %v5857
      %p5874 = scmp.lt.s32.totalorder %s17, 1
      %s5875 = scalar_select %p5874, %s17, 1
      %s5876 = smul.addr %s5875, 16
      %s5877 = smul.addr %s5876, 8
      %s5878 = scalar_lea.vmem %s6, %s5877
      // Predicated region
      $region45: #{aspp5d_forward.1} parent=43 // pred_check
        %p5879 = pneg %p171
      $region46: #{aspp5d_forward.1} parent=43 // pred_check_branch
        %5881 = sbr.rel (%p5879) target = $region48
      $region47: #{aspp5d_forward.1} parent=43 // pred_region
        _
      $region48: #{aspp5d_forward.1} parent=43 // pred_fallthru
        _
    $region44: #{aspp5d_forward.1} parent=5 // pred_fallthru
      _
    %p5882 = scmp.le.s32.totalorder 2, %s12
    // Predicated region
    $region49: #{aspp5d_forward.1} parent=5 // pred_check
      %p5883 = pneg %p5882
    $region50: #{aspp5d_forward.1} parent=5 // pred_check_branch
      %5885 = sbr.rel (%p5883) target = $region52
    $region51: #{aspp5d_forward.1} parent=5 // pred_region
      %s5886 = ssub.s32 %s12, 2
      // Predicated region
      $region53: #{aspp5d_forward.1} parent=51 // pred_check
        %p5887 = pneg %p177
      $region54: #{aspp5d_forward.1} parent=51 // pred_check_branch
        %5889 = sbr.rel (%p5887) target = $region56
      $region55: #{aspp5d_forward.1} parent=51 // pred_region
        %p5890 = scmp.lt.s32.totalorder %s18, 1
        %s5891 = scalar_select %p5890, %s18, 1
        %s5892 = smul.addr %s5891, 16
        %s5893 = smul.addr %s5892, 8
        %s5894 = scalar_lea.vmem %s6, %s5893
      $region56: #{aspp5d_forward.1} parent=51 // pred_fallthru
        _
    $region52: #{aspp5d_forward.1} parent=5 // pred_fallthru
      _
  $region6: #{aspp5d_forward.1} parent=0 // loop_footer
    %s16 = sadd.s32 1, %s12
  $region7: #{aspp5d_forward.1} parent=0 // loop_footer_branch
    %11 = sbr.rel target = $region3
  $region8: #{aspp5d_forward.1} parent=0 // loop_exit
    _

</llo_original>
